<compile_context>
chip_gen: v7x
topology: tpu7x:2x2x1
jax: 0.10.0
libtpu: 0.0.40
codegen_flags: <defaults>
</compile_context>

<pallas_src>
import jax
import jax.numpy as jnp
import numpy as np
from jax import lax
from jax.experimental import pallas as pl
from jax.experimental.pallas import tpu as pltpu

SEQ = 196
IN_DIM = 2048
OUT_DIM = 1024


# ----------------------------------------------------------------------------
# Fused kernel:  y = relu(x @ W^T + b)  and  mean_b = (1/SEQ) * sum_s y[s, b]
# ----------------------------------------------------------------------------
def _fused_linear_relu_mean_kernel(x_ref, w_ref, b_ref, s_ref, y_ref, mean_ref):
    """Grid = (N//tn, K//tk); k (axis 1) is the innermost reduction axis.

    x_ref:    (tm, tk)  bf16  seq-major activations (row = s*B + b)
    w_ref:    (tn, tk)  bf16  torch-layout weight block (OUT, IN)
    b_ref:    (1, tn)   f32   bias block
    s_ref:    (B, tm)   f32   per-batch averaging selector (1/SEQ on own rows)
    y_ref:    (tm, tn)  f32   relu(x @ W^T + b); k-resident accumulator
    mean_ref: (B, tn)   f32   per-batch mean over the SEQ positions
    """
    k = pl.program_id(1)

    # A @ B^T: contract the last dim of both operands (MXU-native, no
    # transposes paid on either the weight or the activations).
    partial = lax.dot_general(
        x_ref[...],
        w_ref[...],
        dimension_numbers=(((1,), (1,)), ((), ())),
        preferred_element_type=jnp.float32,
    )

    @pl.when(k == 0)
    def _():
        y_ref[...] = partial            # direct store; no bias broadcast here

    @pl.when(k != 0)
    def _():
        y_ref[...] += partial

    @pl.when(k == pl.num_programs(1) - 1)
    def _():
        y = jnp.maximum(y_ref[...] + b_ref[...], 0.0)   # bias fused with relu
        y_ref[...] = y
        # Fused mean: tiny (B, tm) @ (tm, tn) selector matmul on data already
        # resident in VMEM -- no second kernel launch, no HBM re-read.
        mean_ref[...] = jnp.dot(s_ref[...], y, preferred_element_type=jnp.float32)


def _fused_linear_relu_mean(x_flat, weight, bias_2d, sel, *, tn, tk):
    m, k_dim = x_flat.shape
    n = weight.shape[0]
    batch = sel.shape[0]
    assert n % tn == 0 and k_dim % tk == 0

    # TODO(synk): if B grows (tm = B*SEQ), add a real M tile (multiple of 8*SEQ,
    # marked "parallel") so the resident y block stays within v7x's 64 MiB VMEM.
    grid = (n // tn, k_dim // tk)

    cost = pl.CostEstimate(
        flops=2 * m * k_dim * n + 2 * batch * m * n,
        transcendentals=0,
        bytes_accessed=(
            x_flat.size * x_flat.dtype.itemsize
            + weight.size * weight.dtype.itemsize
            + bias_2d.size * 4
            + sel.size * 4
            + m * n * 4
            + batch * n * 4
        ),
    )

    return pl.pallas_call(
        _fused_linear_relu_mean_kernel,
        out_shape=(
            jax.ShapeDtypeStruct((m, n), jnp.float32),      # y (seq-major rows)
            jax.ShapeDtypeStruct((batch, n), jnp.float32),  # per-batch mean
        ),
        grid_spec=pltpu.PrefetchScalarGridSpec(
            num_scalar_prefetch=0,
            grid=grid,
            in_specs=[
                pl.BlockSpec((m, tk), lambda j, k: (0, k)),       # x
                pl.BlockSpec((tn, tk), lambda j, k: (j, k)),      # W (OUT, IN)
                pl.BlockSpec((1, tn), lambda j, k: (0, j)),       # bias
                pl.BlockSpec((batch, m), lambda j, k: (0, 0)),    # selector
            ],
            out_specs=[
                pl.BlockSpec((m, tn), lambda j, k: (0, j)),       # y
                pl.BlockSpec((batch, tn), lambda j, k: (0, j)),   # mean
            ],
        ),
        compiler_params=pltpu.CompilerParams(
            dimension_semantics=("parallel", "arbitrary"),
            vmem_limit_bytes=32 * 1024 * 1024,
        ),
        cost_estimate=cost,
    )(x_flat, weight, bias_2d, sel)


def _select_tiles():
    """(tn, tk) per TPU generation.

    v7x has 2 TensorCores -> split N so each core gets one 512-wide block
    (this duplicates only the cheap bf16 x stream, never the 4 MB weight).
    Single-TC v5e / v6e keep a single N block so x is streamed exactly once.
    tk = 512 -> 4 pipelined k-steps, hiding the first weight-block DMA.
    """
    try:
        kind = jax.devices()[0].device_kind.lower()
    except Exception:
        kind = ""
    if "7" in kind:
        return 512, 512
    return OUT_DIM, 512


# ----------------------------------------------------------------------------
# Wrapper reproducing ExtractImageFeature.forward
# ----------------------------------------------------------------------------
@jax.jit
def extract_image_feature(x, weight, bias):
    """x: (B, SEQ, IN) f32; weight: (OUT, IN) torch layout (bf16 preferred,
    f32 accepted); bias: (OUT,) f32.

    Returns (mean, output) matching the PyTorch module:
      mean:   (B, OUT)       float32
      output: (SEQ, B, OUT)  float32
    """
    b_dim, seq, in_dim = x.shape
    out_dim = weight.shape[0]
    m = b_dim * seq

    # Seq-major rows (row = s*B + b): this reorder is folded by XLA into the
    # bf16-cast copy fusion we already pay for, and makes the kernel output
    # reshape for free into the (SEQ, B, OUT) layout the module returns --
    # no post-kernel transpose.
    x_flat = jnp.transpose(x, (1, 0, 2)).reshape(m, in_dim).astype(jnp.bfloat16)
    w_bf16 = weight.astype(jnp.bfloat16)      # no-op if caller pre-cast it
    bias_2d = bias.astype(jnp.float32).reshape(1, out_dim)

    # Per-batch averaging selector: sel[bb, r] = 1/SEQ iff row r (= s*B + bb)
    # belongs to batch bb.  Pure-iota construction -> constant-folded by XLA.
    row_b = jnp.arange(b_dim, dtype=jnp.int32)[:, None]
    col_b = jnp.arange(m, dtype=jnp.int32)[None, :] % b_dim
    sel = jnp.where(col_b == row_b, jnp.float32(1.0 / seq), jnp.float32(0.0))

    tn, tk = _select_tiles()
    y_flat, mean = _fused_linear_relu_mean(x_flat, w_bf16, bias_2d, sel, tn=tn, tk=tk)

    # Free reshape: rows are already seq-major.
    output = y_flat.reshape(seq, b_dim, out_dim)
    return mean, output


if __name__ == "__main__":
    B = 2
    key = jax.random.PRNGKey(0)
    kx, kw, kb = jax.random.split(key, 3)

    # Deterministic synthetic parameters (same shapes as torch.nn.Linear(2048, 1024)).
    bound = 1.0 / np.sqrt(IN_DIM)
    weight = jax.random.uniform(kw, (OUT_DIM, IN_DIM), jnp.float32, -bound, bound)
    bias = jax.random.uniform(kb, (OUT_DIM,), jnp.float32, -bound, bound)
    x = jax.random.normal(kx, (B, SEQ, IN_DIM), jnp.float32)

    # In deployment the weight would be stored bf16 once; mirror that here so the
    # per-call graph streams 4 MB instead of 8 MB for W.
    weight_bf16 = weight.astype(jnp.bfloat16)

    mean, output = extract_image_feature(x, weight_bf16, bias)
    mean = jax.block_until_ready(mean)
    output = jax.block_until_ready(output)

    # Pure-JAX reference on the same bf16-rounded operands (f32 accumulation).
    x_r = x.astype(jnp.bfloat16).astype(jnp.float32)
    w_r = weight_bf16.astype(jnp.float32)
    ref_out = jax.nn.relu(
        jnp.einsum(
            "sbi,oi->sbo",
            jnp.transpose(x_r, (1, 0, 2)),
            w_r,
            precision="highest",
        )
        + bias
    )
    ref_mean = jnp.mean(ref_out, axis=0)

    assert mean.shape == (B, OUT_DIM)
    assert output.shape == (SEQ, B, OUT_DIM)
    assert np.allclose(np.asarray(output), np.asarray(ref_out), rtol=2e-3, atol=2e-3)
    assert np.allclose(np.asarray(mean), np.asarray(ref_mean), rtol=2e-3, atol=2e-3)

    print("KERNEL_OK")
</pallas_src>

<mosaic_0001>
module attributes {stable_mosaic.version = 11 : i64} {
  func.func @_fused_linear_relu_mean_kernel(%arg0: i32, %arg1: i32, %arg2: memref<392x512xbf16, #tpu.memory_space<vmem>>, %arg3: memref<1024x512xbf16, #tpu.memory_space<vmem>>, %arg4: memref<1x1024xf32, #tpu.memory_space<vmem>>, %arg5: memref<2x392xf32, #tpu.memory_space<vmem>>, %arg6: memref<392x1024xf32, #tpu.memory_space<vmem>>, %arg7: memref<2x1024xf32, #tpu.memory_space<vmem>>) attributes {dimension_semantics = [#tpu.dimension_semantics<parallel>, #tpu.dimension_semantics<arbitrary>], iteration_bounds = array<i64: 1, 4>, scalar_prefetch = 0 : i64, scratch_operands = 0 : i64, tpu.core_type = #tpu.core_type<tc>, window_params = [{transform_indices = @transform_0, window_bounds = array<i64: 392, 512>}, {transform_indices = @transform_1, window_bounds = array<i64: 1024, 512>}, {transform_indices = @transform_2, window_bounds = array<i64: 1, 1024>}, {pipeline_mode = #tpu.pipeline_mode<synchronous>, transform_indices = @transform_3, window_bounds = array<i64: 2, 392>}, {transform_indices = @transform_4, window_bounds = array<i64: 392, 1024>}, {transform_indices = @transform_5, window_bounds = array<i64: 2, 1024>}]} {
    %c0 = arith.constant 0 : index
    %c0_0 = arith.constant 0 : index
    %0 = vector.load %arg2[%c0, %c0_0] : memref<392x512xbf16, #tpu.memory_space<vmem>>, vector<392x512xbf16>
    %c0_1 = arith.constant 0 : index
    %c0_2 = arith.constant 0 : index
    %1 = vector.load %arg3[%c0_1, %c0_2] : memref<1024x512xbf16, #tpu.memory_space<vmem>>, vector<1024x512xbf16>
    %cst = arith.constant dense<0.000000e+00> : vector<392x1024xf32>
    %2 = tpu.matmul %0, %1, %cst {dimension_numbers = #tpu.dot_dimension_numbers<[1], [1], [0], [0], [0, 0, 1, 0], [], []>} : vector<392x512xbf16>, vector<1024x512xbf16>, vector<392x1024xf32> -> vector<392x1024xf32>
    %c0_i32 = arith.constant 0 : i32
    %3 = arith.cmpi eq, %arg1, %c0_i32 : i32
    %4 = arith.extui %3 : i1 to i32
    %c0_i32_3 = arith.constant 0 : i32
    %5 = arith.cmpi ne, %4, %c0_i32_3 : i32
    scf.if %5 {
      %c0_7 = arith.constant 0 : index
      %c0_8 = arith.constant 0 : index
      %12 = vector.load %arg6[%c0_7, %c0_8] : memref<392x1024xf32, #tpu.memory_space<vmem>>, vector<392x1024xf32>
      tpu.vector_store %arg6[%c0_7, %c0_8], %2 {strides = array<i32>} : memref<392x1024xf32, #tpu.memory_space<vmem>>, vector<392x1024xf32>,
    } else {
    }
    %c0_i32_4 = arith.constant 0 : i32
    %6 = arith.cmpi ne, %arg1, %c0_i32_4 : i32
    %7 = arith.extui %6 : i1 to i32
    %c0_i32_5 = arith.constant 0 : i32
    %8 = arith.cmpi ne, %7, %c0_i32_5 : i32
    scf.if %8 {
      %c0_7 = arith.constant 0 : index
      %c0_8 = arith.constant 0 : index
      %12 = vector.load %arg6[%c0_7, %c0_8] : memref<392x1024xf32, #tpu.memory_space<vmem>>, vector<392x1024xf32>
      %13 = arith.addf %12, %2 : vector<392x1024xf32>
      %c0_9 = arith.constant 0 : index
      %c0_10 = arith.constant 0 : index
      %14 = vector.load %arg6[%c0_9, %c0_10] : memref<392x1024xf32, #tpu.memory_space<vmem>>, vector<392x1024xf32>
      tpu.vector_store %arg6[%c0_9, %c0_10], %13 {strides = array<i32>} : memref<392x1024xf32, #tpu.memory_space<vmem>>, vector<392x1024xf32>,
    } else {
    }
    %c3_i32 = arith.constant 3 : i32
    %9 = arith.cmpi eq, %arg1, %c3_i32 : i32
    %10 = arith.extui %9 : i1 to i32
    %c0_i32_6 = arith.constant 0 : i32
    %11 = arith.cmpi ne, %10, %c0_i32_6 : i32
    scf.if %11 {
      %c0_7 = arith.constant 0 : index
      %c0_8 = arith.constant 0 : index
      %12 = vector.load %arg6[%c0_7, %c0_8] : memref<392x1024xf32, #tpu.memory_space<vmem>>, vector<392x1024xf32>
      %c0_9 = arith.constant 0 : index
      %c0_10 = arith.constant 0 : index
      %13 = vector.load %arg4[%c0_9, %c0_10] : memref<1x1024xf32, #tpu.memory_space<vmem>>, vector<1x1024xf32>
      %14 = vector.broadcast %13 : vector<1x1024xf32> to vector<392x1024xf32>
      %15 = arith.addf %12, %14 : vector<392x1024xf32>
      %cst_11 = arith.constant 0.000000e+00 : f32
      %16 = vector.broadcast %cst_11 : f32 to vector<392x1024xf32>
      %17 = arith.maximumf %15, %16 : vector<392x1024xf32>
      %c0_12 = arith.constant 0 : index
      %c0_13 = arith.constant 0 : index
      %18 = vector.load %arg6[%c0_12, %c0_13] : memref<392x1024xf32, #tpu.memory_space<vmem>>, vector<392x1024xf32>
      tpu.vector_store %arg6[%c0_12, %c0_13], %17 {strides = array<i32>} : memref<392x1024xf32, #tpu.memory_space<vmem>>, vector<392x1024xf32>,
      %c0_14 = arith.constant 0 : index
      %c0_15 = arith.constant 0 : index
      %19 = vector.load %arg5[%c0_14, %c0_15] : memref<2x392xf32, #tpu.memory_space<vmem>>, vector<2x392xf32>
      %cst_16 = arith.constant dense<0.000000e+00> : vector<2x1024xf32>
      %20 = tpu.matmul %19, %17, %cst_16 {dimension_numbers = #tpu.dot_dimension_numbers<[1], [0], [0], [1], [0, 0, 1, 1], [], []>} : vector<2x392xf32>, vector<392x1024xf32>, vector<2x1024xf32> -> vector<2x1024xf32>
      %c0_17 = arith.constant 0 : index
      %c0_18 = arith.constant 0 : index
      %21 = vector.load %arg7[%c0_17, %c0_18] : memref<2x1024xf32, #tpu.memory_space<vmem>>, vector<2x1024xf32>
      tpu.vector_store %arg7[%c0_17, %c0_18], %20 {strides = array<i32>} : memref<2x1024xf32, #tpu.memory_space<vmem>>, vector<2x1024xf32>,
    } else {
    }
    return
  }
  func.func @transform_0(%arg0: i32, %arg1: i32) -> (i32, i32) {
    %c0_i32 = arith.constant 0 : i32
    %c0_i32_0 = arith.constant 0 : i32
    return %c0_i32, %arg1 : i32, i32
  }
  func.func @transform_1(%arg0: i32, %arg1: i32) -> (i32, i32) {
    %c0_i32 = arith.constant 0 : i32
    return %arg0, %arg1 : i32, i32
  }
  func.func @transform_2(%arg0: i32, %arg1: i32) -> (i32, i32) {
    %c0_i32 = arith.constant 0 : i32
    %c0_i32_0 = arith.constant 0 : i32
    return %c0_i32, %arg0 : i32, i32
  }
  func.func @transform_3(%arg0: i32, %arg1: i32) -> (i32, i32) {
    %c0_i32 = arith.constant 0 : i32
    %c0_i32_0 = arith.constant 0 : i32
    %c0_i32_1 = arith.constant 0 : i32
    return %c0_i32, %c0_i32_0 : i32, i32
  }
  func.func @transform_4(%arg0: i32, %arg1: i32) -> (i32, i32) {
    %c0_i32 = arith.constant 0 : i32
    %c0_i32_0 = arith.constant 0 : i32
    return %c0_i32, %arg0 : i32, i32
  }
  func.func @transform_5(%arg0: i32, %arg1: i32) -> (i32, i32) {
    %c0_i32 = arith.constant 0 : i32
    %c0_i32_0 = arith.constant 0 : i32
    return %c0_i32, %arg0 : i32, i32
  }
}

</mosaic_0001>

<llo_original>
// kernel: extract_image_feature.1
$region0: #{extract_image_feature.1}
  #allocation0 [shape = 'u32[]', space=smem, size = 0x4, offset = 0x4, fixed_abs, tag = 'smem constant byte address 0x4 - core index']
  #allocation1 [shape = 'u32[144,128]{1,0:T(1,128)}', space=vmem, size = 0x12000, scoped, tag = 'internal scratch']
  %s0 = inlined_call_operand.vmem [shape: bf16[392,2048], index: 0, kind: input, shape index: {}]
  %s1 = inlined_call_operand.vmem [shape: bf16[1024,2048], index: 1, kind: input, shape index: {}]
  %s2 = inlined_call_operand.vmem [shape: f32[1,1024], index: 2, kind: input, shape index: {}]
  %s3 = inlined_call_operand.vmem [shape: f32[2,392], index: 3, kind: input, shape index: {}]
  %s4 = inlined_call_operand.vmem [shape: f32[392,1024], index: 4, kind: output, shape index: {0}]
  %s5 = inlined_call_operand.hbm [shape: f32[2,1024], index: 5, kind: output, shape index: {1}]
  %6 = xla_tuple %s4, %s5
  %s7 = sld [smem:[#allocation0]]
  $region115: #{extract_image_feature.1} parent=0
    _
  %s9 = ssub.s32 1, %s7
  %s10 = scalar_select 0, %s9, %s7
  $region1: #{extract_image_feature.1} parent=0
    #allocation2 [shape = 'u8[802816]{0}', space=vmem, size = 0xc4000, scoped, tag = 'input window, operand 0']
    #allocation3 [shape = 'u8[2097152]{0}', space=vmem, size = 0x200000, scoped, tag = 'input window, operand 1']
    #allocation4 [shape = 'u8[8192]{0}', space=vmem, size = 0x2000, scoped, tag = 'output window, operand 1, single buffered']
    #allocation5 [shape = 's32[2]{0}', space=sflag, size = 0x8, scoped, tag = 'scoped memory for extract_image_feature.1']
    %11 = vsyncpa [#allocation5], 0
    loop: start=0, step=1, limit=6
    $region2: #{extract_image_feature.1} parent=1 // loop_pre_header
      _
    $region3: #{extract_image_feature.1} parent=1 // loop_header
      %s13 = sphi 0, %s17
      %p14 = scmp.ge.s32.totalorder %s13, 6
      %s20 = sphi 0, %s32
      %s21 = sphi 0, %s28
      %s22 = sphi 0, %s20
      %s23 = sphi 0, %s21
      %s24 = sphi 0, %s22
      %s25 = sphi 0, %s23
      %s35 = sphi 0, %s37
      %s38 = sphi 0, %s35
      %s39 = sphi 0, %s38
      %s55 = sphi 0, %s39
      %s63 = sphi 0, %s65
      %s66 = sphi 0, %s63
      %s67 = sphi 0, %s66
      %s83 = sphi 0, %s67
      %s89 = sphi 0, %s91
      %s92 = sphi 0, %s89
      %s93 = sphi 0, %s92
      %s109 = sphi 0, %s93
      %s113 = sphi 0, %s113
      %s115 = sphi 0, %s113
      %s116 = sphi 0, %s115
      %s130 = sphi 0, %s116
      %s136 = sphi 0, %s138
      %s139 = sphi 0, %s136
      %s140 = sphi 0, %s139
      %s156 = sphi 0, %s140
      %s162 = sphi 0, %s164
      %s165 = sphi 0, %s162
      %s166 = sphi 0, %s165
      %s182 = sphi 0, %s166
    $region4: #{extract_image_feature.1} parent=1 // loop_header_branch
      %16 = sbr.rel (%p14) target = $region8
    $region5: #{extract_image_feature.1} parent=1 // loop_body
      %s18 = ssub.s32 %s13, 1
      %s19 = ssub.s32 %s13, 2
      %s26 = sadd.s32 1, %s21
      %p27 = scmp.ge.s32.totalorder %s26, 4
      %s28 = scalar_select %p27, 0, %s26
      %s29 = sadd.s32 1, %s20
      %s30 = scalar_select %p27, %s29, %s20
      %p31 = scmp.ge.s32.totalorder %s30, 1
      %s32 = scalar_select %p31, 0, %s30
      %s33 = ssub.s32 %s21, %s28
      %p34 = scmp.eq.s32.totalorder %s33, 0
      %s36 = sadd.s32 %s35, 1
      %s37 = scalar_select %p34, %s35, %s36
      %p40 = pneg %p34
      %p41 = scmp.eq.s32.totalorder %s13, 3
      %p42 = por %p40, %p41
      %p43 = scmp.ne.s32.totalorder %s35, %s38
      %p44 = scmp.eq.s32.totalorder %s13, 0
      %p45 = por %p43, %p44
      %p46 = scmp.ne.s32.totalorder %s35, %s38
      %p47 = scmp.eq.s32.totalorder %s18, 3
      %p48 = por %p46, %p47
      %p49 = scmp.ne.s32.totalorder %s38, %s39
      %p50 = scmp.eq.s32.totalorder %s18, 0
      %p51 = por %p49, %p50
      %p52 = scmp.ne.s32.totalorder %s38, %s39
      %p53 = scmp.eq.s32.totalorder %s19, 3
      %p54 = por %p52, %p53
      %p56 = scmp.ne.s32.totalorder %s39, %s55
      %p57 = scmp.eq.s32.totalorder %s19, 0
      %p58 = por %p56, %p57
      %s59 = ssub.s32 %s20, %s32
      %s60 = ssub.s32 %s21, %s28
      %s61 = sor.u32 %s59, %s60
      %p62 = scmp.eq.s32.totalorder %s61, 0
      %s64 = sadd.s32 %s63, 1
      %s65 = scalar_select %p62, %s63, %s64
      %p68 = pneg %p62
      %p69 = scmp.eq.s32.totalorder %s13, 3
      %p70 = por %p68, %p69
      %p71 = scmp.ne.s32.totalorder %s63, %s66
      %p72 = scmp.eq.s32.totalorder %s13, 0
      %p73 = por %p71, %p72
      %p74 = scmp.ne.s32.totalorder %s63, %s66
      %p75 = scmp.eq.s32.totalorder %s18, 3
      %p76 = por %p74, %p75
      %p77 = scmp.ne.s32.totalorder %s66, %s67
      %p78 = scmp.eq.s32.totalorder %s18, 0
      %p79 = por %p77, %p78
      %p80 = scmp.ne.s32.totalorder %s66, %s67
      %p81 = scmp.eq.s32.totalorder %s19, 3
      %p82 = por %p80, %p81
      %p84 = scmp.ne.s32.totalorder %s67, %s83
      %p85 = scmp.eq.s32.totalorder %s19, 0
      %p86 = por %p84, %p85
      %s87 = ssub.s32 %s20, %s32
      %p88 = scmp.eq.s32.totalorder %s87, 0
      %s90 = sadd.s32 %s89, 1
      %s91 = scalar_select %p88, %s89, %s90
      %p94 = pneg %p88
      %p95 = scmp.eq.s32.totalorder %s13, 3
      %p96 = por %p94, %p95
      %p97 = scmp.ne.s32.totalorder %s89, %s92
      %p98 = scmp.eq.s32.totalorder %s13, 0
      %p99 = por %p97, %p98
      %p100 = scmp.ne.s32.totalorder %s89, %s92
      %p101 = scmp.eq.s32.totalorder %s18, 3
      %p102 = por %p100, %p101
      %p103 = scmp.ne.s32.totalorder %s92, %s93
      %p104 = scmp.eq.s32.totalorder %s18, 0
      %p105 = por %p103, %p104
      %p106 = scmp.ne.s32.totalorder %s92, %s93
      %p107 = scmp.eq.s32.totalorder %s19, 3
      %p108 = por %p106, %p107
      %p110 = scmp.ne.s32.totalorder %s93, %s109
      %p111 = scmp.eq.s32.totalorder %s19, 0
      %p112 = por %p110, %p111
      %s114 = sadd.s32 %s113, 1
      %p117 = scmp.eq.s32.totalorder %s13, 3
      %p118 = scmp.ne.s32.totalorder %s113, %s115
      %p119 = scmp.eq.s32.totalorder %s13, 0
      %p120 = por %p118, %p119
      %p121 = scmp.ne.s32.totalorder %s113, %s115
      %p122 = scmp.eq.s32.totalorder %s18, 3
      %p123 = por %p121, %p122
      %p124 = scmp.ne.s32.totalorder %s115, %s116
      %p125 = scmp.eq.s32.totalorder %s18, 0
      %p126 = por %p124, %p125
      %p127 = scmp.ne.s32.totalorder %s115, %s116
      %p128 = scmp.eq.s32.totalorder %s19, 3
      %p129 = por %p127, %p128
      %p131 = scmp.ne.s32.totalorder %s116, %s130
      %p132 = scmp.eq.s32.totalorder %s19, 0
      %p133 = por %p131, %p132
      %s134 = ssub.s32 %s20, %s32
      %p135 = scmp.eq.s32.totalorder %s134, 0
      %s137 = sadd.s32 %s136, 1
      %s138 = scalar_select %p135, %s136, %s137
      %p141 = pneg %p135
      %p142 = scmp.eq.s32.totalorder %s13, 3
      %p143 = por %p141, %p142
      %p144 = scmp.ne.s32.totalorder %s136, %s139
      %p145 = scmp.eq.s32.totalorder %s13, 0
      %p146 = por %p144, %p145
      %p147 = scmp.ne.s32.totalorder %s136, %s139
      %p148 = scmp.eq.s32.totalorder %s18, 3
      %p149 = por %p147, %p148
      %p150 = scmp.ne.s32.totalorder %s139, %s140
      %p151 = scmp.eq.s32.totalorder %s18, 0
      %p152 = por %p150, %p151
      %p153 = scmp.ne.s32.totalorder %s139, %s140
      %p154 = scmp.eq.s32.totalorder %s19, 3
      %p155 = por %p153, %p154
      %p157 = scmp.ne.s32.totalorder %s140, %s156
      %p158 = scmp.eq.s32.totalorder %s19, 0
      %p159 = por %p157, %p158
      %s160 = ssub.s32 %s20, %s32
      %p161 = scmp.eq.s32.totalorder %s160, 0
      %s163 = sadd.s32 %s162, 1
      %s164 = scalar_select %p161, %s162, %s163
      %p167 = pneg %p161
      %p168 = scmp.eq.s32.totalorder %s13, 3
      %p169 = por %p167, %p168
      %p170 = scmp.ne.s32.totalorder %s162, %s165
      %p171 = scmp.eq.s32.totalorder %s13, 0
      %p172 = por %p170, %p171
      %p173 = scmp.ne.s32.totalorder %s162, %s165
      %p174 = scmp.eq.s32.totalorder %s18, 3
      %p175 = por %p173, %p174
      %p176 = scmp.ne.s32.totalorder %s165, %s166
      %p177 = scmp.eq.s32.totalorder %s18, 0
      %p178 = por %p176, %p177
      %p179 = scmp.ne.s32.totalorder %s165, %s166
      %p180 = scmp.eq.s32.totalorder %s19, 3
      %p181 = por %p179, %p180
      %p183 = scmp.ne.s32.totalorder %s166, %s182
      %p184 = scmp.eq.s32.totalorder %s19, 0
      %p185 = por %p183, %p184
      %p186 = scmp.le.s32.totalorder 1, %s13
      %p187 = scmp.lt.s32.totalorder %s13, 5
      %p188 = pnand %p186, %p187
      %p189 = pneg %p188
      // Predicated region
      $region9: #{extract_image_feature.1} parent=5 // pred_check
        _
      $region10: #{extract_image_feature.1} parent=5 // pred_check_branch
        %191 = sbr.rel (%p188) target = $region12
      $region11: #{extract_image_feature.1} parent=5 // pred_region
        %s192 = ssub.s32 %s13, 1
        // Predicated region
        $region13: #{extract_image_feature.1} parent=11 // pred_check
          %p193 = pneg %p105
        $region14: #{extract_image_feature.1} parent=11 // pred_check_branch
          %195 = sbr.rel (%p193) target = $region16
        $region15: #{extract_image_feature.1} parent=11 // pred_region
          %s196 = smul.u32 8, %s22
          %p197 = scmp.lt.s32.totalorder %s196, 7
          %s198 = scalar_select %p197, %s196, 7
          %s199 = scalar_lea.vmem %s2, %s198
          %s200 = smul.u32 8, %s22
        $region16: #{extract_image_feature.1} parent=11 // pred_fallthru
          _
        // Predicated region
        $region17: #{extract_image_feature.1} parent=11 // pred_check
          %p201 = pneg %p126
        $region18: #{extract_image_feature.1} parent=11 // pred_check_branch
          %203 = sbr.rel (%p201) target = $region20
        $region19: #{extract_image_feature.1} parent=11 // pred_region
          _
        $region20: #{extract_image_feature.1} parent=11 // pred_fallthru
          _
      $region12: #{extract_image_feature.1} parent=5 // pred_fallthru
        _
      %p204 = scmp.lt.s32.totalorder %s13, 4
      // Predicated region
      $region21: #{extract_image_feature.1} parent=5 // pred_check
        %p205 = pneg %p204
      $region22: #{extract_image_feature.1} parent=5 // pred_check_branch
        %207 = sbr.rel (%p205) target = $region24
      $region23: #{extract_image_feature.1} parent=5 // pred_region
        // Predicated region
        $region25: #{extract_image_feature.1} parent=23 // pred_check
          %p208 = pneg %p45
        $region26: #{extract_image_feature.1} parent=23 // pred_check_branch
          %210 = sbr.rel (%p208) target = $region28
        $region27: #{extract_image_feature.1} parent=23 // pred_region
          %s211 = sand.u32 %s35, 1
          %s212 = sand.u32 %s35, 1
          %s213 = smul.addr %s212, 784
          %s214 = scalar_lea.vmem [#allocation2], %s213
          %s215 = smul.u32 4, %s21
          %s216 = smul.addr %s215, 4
          %s217 = scalar_lea.vmem %s0, %s216
          // Predicated region
          $region29: #{extract_image_feature.1} parent=27 // pred_check
            _
          $region30: #{extract_image_feature.1} parent=27 // pred_check_branch
            %219 = sbr.rel (0) target = $region32
          $region31: #{extract_image_feature.1} parent=27 // pred_region
            // Predicated region
            $region33: #{extract_image_feature.1} parent=31 // pred_check
              _
            $region34: #{extract_image_feature.1} parent=31 // pred_check_branch
              %221 = sbr.rel (0) target = $region36
            $region35: #{extract_image_feature.1} parent=31 // pred_region
              loop: start=0, step=1, limit=1
              $region37: #{extract_image_feature.1} parent=35 // loop_pre_header
                _
              $region38: #{extract_image_feature.1} parent=35 // loop_header
                %s223 = sphi 0, %s227
                %p224 = scmp.ge.s32.totalorder %s223, 1
                %s228 = sphi %s217, %s217
                %s229 = sphi %s214, %s214
              $region39: #{extract_image_feature.1} parent=35 // loop_header_branch
                %226 = sbr.rel (%p224) target = $region43
              $region40: #{extract_image_feature.1} parent=35 // loop_body
                %v230 = vld [vmem:[%s228] sm:$0xff]
                %231 = vst [vmem:[%s229] sm:$0xff] %v230
                %v232 = vld [vmem:[%s228 + $0x8] sm:$0xff]
                %233 = vst [vmem:[%s229 + $0x8] sm:$0xff] %v232
                %v234 = vld [vmem:[%s228 + $0x40] sm:$0xff]
                %235 = vst [vmem:[%s229 + $0x10] sm:$0xff] %v234
                %v236 = vld [vmem:[%s228 + $0x48] sm:$0xff]
                %237 = vst [vmem:[%s229 + $0x18] sm:$0xff] %v236
                %v238 = vld [vmem:[%s228 + $0x80] sm:$0xff]
                %239 = vst [vmem:[%s229 + $0x20] sm:$0xff] %v238
                %v240 = vld [vmem:[%s228 + $0x88] sm:$0xff]
                %241 = vst [vmem:[%s229 + $0x28] sm:$0xff] %v240
                %v242 = vld [vmem:[%s228 + $0xc0] sm:$0xff]
                %243 = vst [vmem:[%s229 + $0x30] sm:$0xff] %v242
                %v244 = vld [vmem:[%s228 + $0xc8] sm:$0xff]
                %245 = vst [vmem:[%s229 + $0x38] sm:$0xff] %v244
                %v246 = vld [vmem:[%s228 + $0x100] sm:$0xff]
                %247 = vst [vmem:[%s229 + $0x40] sm:$0xff] %v246
                %v248 = vld [vmem:[%s228 + $0x108] sm:$0xff]
                %249 = vst [vmem:[%s229 + $0x48] sm:$0xff] %v248
                %v250 = vld [vmem:[%s228 + $0x140] sm:$0xff]
                %251 = vst [vmem:[%s229 + $0x50] sm:$0xff] %v250
                %v252 = vld [vmem:[%s228 + $0x148] sm:$0xff]
                %253 = vst [vmem:[%s229 + $0x58] sm:$0xff] %v252
                %v254 = vld [vmem:[%s228 + $0x180] sm:$0xff]
                %255 = vst [vmem:[%s229 + $0x60] sm:$0xff] %v254
                %v256 = vld [vmem:[%s228 + $0x188] sm:$0xff]
                %257 = vst [vmem:[%s229 + $0x68] sm:$0xff] %v256
                %v258 = vld [vmem:[%s228 + $0x1c0] sm:$0xff]
                %259 = vst [vmem:[%s229 + $0x70] sm:$0xff] %v258
                %v260 = vld [vmem:[%s228 + $0x1c8] sm:$0xff]
                %261 = vst [vmem:[%s229 + $0x78] sm:$0xff] %v260
                %v262 = vld [vmem:[%s228 + $0x200] sm:$0xff]
                %263 = vst [vmem:[%s229 + $0x80] sm:$0xff] %v262
                %v264 = vld [vmem:[%s228 + $0x208] sm:$0xff]
                %265 = vst [vmem:[%s229 + $0x88] sm:$0xff] %v264
                %v266 = vld [vmem:[%s228 + $0x240] sm:$0xff]
                %267 = vst [vmem:[%s229 + $0x90] sm:$0xff] %v266
                %v268 = vld [vmem:[%s228 + $0x248] sm:$0xff]
                %269 = vst [vmem:[%s229 + $0x98] sm:$0xff] %v268
                %v270 = vld [vmem:[%s228 + $0x280] sm:$0xff]
                %271 = vst [vmem:[%s229 + $0xa0] sm:$0xff] %v270
                %v272 = vld [vmem:[%s228 + $0x288] sm:$0xff]
                %273 = vst [vmem:[%s229 + $0xa8] sm:$0xff] %v272
                %v274 = vld [vmem:[%s228 + $0x2c0] sm:$0xff]
                %275 = vst [vmem:[%s229 + $0xb0] sm:$0xff] %v274
                %v276 = vld [vmem:[%s228 + $0x2c8] sm:$0xff]
                %277 = vst [vmem:[%s229 + $0xb8] sm:$0xff] %v276
                %v278 = vld [vmem:[%s228 + $0x300] sm:$0xff]
                %279 = vst [vmem:[%s229 + $0xc0] sm:$0xff] %v278
                %v280 = vld [vmem:[%s228 + $0x308] sm:$0xff]
                %281 = vst [vmem:[%s229 + $0xc8] sm:$0xff] %v280
                %v282 = vld [vmem:[%s228 + $0x340] sm:$0xff]
                %283 = vst [vmem:[%s229 + $0xd0] sm:$0xff] %v282
                %v284 = vld [vmem:[%s228 + $0x348] sm:$0xff]
                %285 = vst [vmem:[%s229 + $0xd8] sm:$0xff] %v284
                %v286 = vld [vmem:[%s228 + $0x380] sm:$0xff]
                %287 = vst [vmem:[%s229 + $0xe0] sm:$0xff] %v286
                %v288 = vld [vmem:[%s228 + $0x388] sm:$0xff]
                %289 = vst [vmem:[%s229 + $0xe8] sm:$0xff] %v288
                %v290 = vld [vmem:[%s228 + $0x3c0] sm:$0xff]
                %291 = vst [vmem:[%s229 + $0xf0] sm:$0xff] %v290
                %v292 = vld [vmem:[%s228 + $0x3c8] sm:$0xff]
                %293 = vst [vmem:[%s229 + $0xf8] sm:$0xff] %v292
                %v294 = vld [vmem:[%s228 + $0x400] sm:$0xff]
                %295 = vst [vmem:[%s229 + $0x100] sm:$0xff] %v294
                %v296 = vld [vmem:[%s228 + $0x408] sm:$0xff]
                %297 = vst [vmem:[%s229 + $0x108] sm:$0xff] %v296
                %v298 = vld [vmem:[%s228 + $0x440] sm:$0xff]
                %299 = vst [vmem:[%s229 + $0x110] sm:$0xff] %v298
                %v300 = vld [vmem:[%s228 + $0x448] sm:$0xff]
                %301 = vst [vmem:[%s229 + $0x118] sm:$0xff] %v300
                %v302 = vld [vmem:[%s228 + $0x480] sm:$0xff]
                %303 = vst [vmem:[%s229 + $0x120] sm:$0xff] %v302
                %v304 = vld [vmem:[%s228 + $0x488] sm:$0xff]
                %305 = vst [vmem:[%s229 + $0x128] sm:$0xff] %v304
                %v306 = vld [vmem:[%s228 + $0x4c0] sm:$0xff]
                %307 = vst [vmem:[%s229 + $0x130] sm:$0xff] %v306
                %v308 = vld [vmem:[%s228 + $0x4c8] sm:$0xff]
                %309 = vst [vmem:[%s229 + $0x138] sm:$0xff] %v308
                %v310 = vld [vmem:[%s228 + $0x500] sm:$0xff]
                %311 = vst [vmem:[%s229 + $0x140] sm:$0xff] %v310
                %v312 = vld [vmem:[%s228 + $0x508] sm:$0xff]
                %313 = vst [vmem:[%s229 + $0x148] sm:$0xff] %v312
                %v314 = vld [vmem:[%s228 + $0x540] sm:$0xff]
                %315 = vst [vmem:[%s229 + $0x150] sm:$0xff] %v314
                %v316 = vld [vmem:[%s228 + $0x548] sm:$0xff]
                %317 = vst [vmem:[%s229 + $0x158] sm:$0xff] %v316
                %v318 = vld [vmem:[%s228 + $0x580] sm:$0xff]
                %319 = vst [vmem:[%s229 + $0x160] sm:$0xff] %v318
                %v320 = vld [vmem:[%s228 + $0x588] sm:$0xff]
                %321 = vst [vmem:[%s229 + $0x168] sm:$0xff] %v320
                %v322 = vld [vmem:[%s228 + $0x5c0] sm:$0xff]
                %323 = vst [vmem:[%s229 + $0x170] sm:$0xff] %v322
                %v324 = vld [vmem:[%s228 + $0x5c8] sm:$0xff]
                %325 = vst [vmem:[%s229 + $0x178] sm:$0xff] %v324
                %v326 = vld [vmem:[%s228 + $0x600] sm:$0xff]
                %327 = vst [vmem:[%s229 + $0x180] sm:$0xff] %v326
                %v328 = vld [vmem:[%s228 + $0x608] sm:$0xff]
                %329 = vst [vmem:[%s229 + $0x188] sm:$0xff] %v328
                %v330 = vld [vmem:[%s228 + $0x640] sm:$0xff]
                %331 = vst [vmem:[%s229 + $0x190] sm:$0xff] %v330
                %v332 = vld [vmem:[%s228 + $0x648] sm:$0xff]
                %333 = vst [vmem:[%s229 + $0x198] sm:$0xff] %v332
                %v334 = vld [vmem:[%s228 + $0x680] sm:$0xff]
                %335 = vst [vmem:[%s229 + $0x1a0] sm:$0xff] %v334
                %v336 = vld [vmem:[%s228 + $0x688] sm:$0xff]
                %337 = vst [vmem:[%s229 + $0x1a8] sm:$0xff] %v336
                %v338 = vld [vmem:[%s228 + $0x6c0] sm:$0xff]
                %339 = vst [vmem:[%s229 + $0x1b0] sm:$0xff] %v338
                %v340 = vld [vmem:[%s228 + $0x6c8] sm:$0xff]
                %341 = vst [vmem:[%s229 + $0x1b8] sm:$0xff] %v340
                %v342 = vld [vmem:[%s228 + $0x700] sm:$0xff]
                %343 = vst [vmem:[%s229 + $0x1c0] sm:$0xff] %v342
                %v344 = vld [vmem:[%s228 + $0x708] sm:$0xff]
                %345 = vst [vmem:[%s229 + $0x1c8] sm:$0xff] %v344
                %v346 = vld [vmem:[%s228 + $0x740] sm:$0xff]
                %347 = vst [vmem:[%s229 + $0x1d0] sm:$0xff] %v346
                %v348 = vld [vmem:[%s228 + $0x748] sm:$0xff]
                %349 = vst [vmem:[%s229 + $0x1d8] sm:$0xff] %v348
                %v350 = vld [vmem:[%s228 + $0x780] sm:$0xff]
                %351 = vst [vmem:[%s229 + $0x1e0] sm:$0xff] %v350
                %v352 = vld [vmem:[%s228 + $0x788] sm:$0xff]
                %353 = vst [vmem:[%s229 + $0x1e8] sm:$0xff] %v352
                %v354 = vld [vmem:[%s228 + $0x7c0] sm:$0xff]
                %355 = vst [vmem:[%s229 + $0x1f0] sm:$0xff] %v354
                %v356 = vld [vmem:[%s228 + $0x7c8] sm:$0xff]
                %357 = vst [vmem:[%s229 + $0x1f8] sm:$0xff] %v356
                %v358 = vld [vmem:[%s228 + $0x800] sm:$0xff]
                %359 = vst [vmem:[%s229 + $0x200] sm:$0xff] %v358
                %v360 = vld [vmem:[%s228 + $0x808] sm:$0xff]
                %361 = vst [vmem:[%s229 + $0x208] sm:$0xff] %v360
                %v362 = vld [vmem:[%s228 + $0x840] sm:$0xff]
                %363 = vst [vmem:[%s229 + $0x210] sm:$0xff] %v362
                %v364 = vld [vmem:[%s228 + $0x848] sm:$0xff]
                %365 = vst [vmem:[%s229 + $0x218] sm:$0xff] %v364
                %v366 = vld [vmem:[%s228 + $0x880] sm:$0xff]
                %367 = vst [vmem:[%s229 + $0x220] sm:$0xff] %v366
                %v368 = vld [vmem:[%s228 + $0x888] sm:$0xff]
                %369 = vst [vmem:[%s229 + $0x228] sm:$0xff] %v368
                %v370 = vld [vmem:[%s228 + $0x8c0] sm:$0xff]
                %371 = vst [vmem:[%s229 + $0x230] sm:$0xff] %v370
                %v372 = vld [vmem:[%s228 + $0x8c8] sm:$0xff]
                %373 = vst [vmem:[%s229 + $0x238] sm:$0xff] %v372
                %v374 = vld [vmem:[%s228 + $0x900] sm:$0xff]
                %375 = vst [vmem:[%s229 + $0x240] sm:$0xff] %v374
                %v376 = vld [vmem:[%s228 + $0x908] sm:$0xff]
                %377 = vst [vmem:[%s229 + $0x248] sm:$0xff] %v376
                %v378 = vld [vmem:[%s228 + $0x940] sm:$0xff]
                %379 = vst [vmem:[%s229 + $0x250] sm:$0xff] %v378
                %v380 = vld [vmem:[%s228 + $0x948] sm:$0xff]
                %381 = vst [vmem:[%s229 + $0x258] sm:$0xff] %v380
                %v382 = vld [vmem:[%s228 + $0x980] sm:$0xff]
                %383 = vst [vmem:[%s229 + $0x260] sm:$0xff] %v382
                %v384 = vld [vmem:[%s228 + $0x988] sm:$0xff]
                %385 = vst [vmem:[%s229 + $0x268] sm:$0xff] %v384
                %v386 = vld [vmem:[%s228 + $0x9c0] sm:$0xff]
                %387 = vst [vmem:[%s229 + $0x270] sm:$0xff] %v386
                %v388 = vld [vmem:[%s228 + $0x9c8] sm:$0xff]
                %389 = vst [vmem:[%s229 + $0x278] sm:$0xff] %v388
                %v390 = vld [vmem:[%s228 + $0xa00] sm:$0xff]
                %391 = vst [vmem:[%s229 + $0x280] sm:$0xff] %v390
                %v392 = vld [vmem:[%s228 + $0xa08] sm:$0xff]
                %393 = vst [vmem:[%s229 + $0x288] sm:$0xff] %v392
                %v394 = vld [vmem:[%s228 + $0xa40] sm:$0xff]
                %395 = vst [vmem:[%s229 + $0x290] sm:$0xff] %v394
                %v396 = vld [vmem:[%s228 + $0xa48] sm:$0xff]
                %397 = vst [vmem:[%s229 + $0x298] sm:$0xff] %v396
                %v398 = vld [vmem:[%s228 + $0xa80] sm:$0xff]
                %399 = vst [vmem:[%s229 + $0x2a0] sm:$0xff] %v398
                %v400 = vld [vmem:[%s228 + $0xa88] sm:$0xff]
                %401 = vst [vmem:[%s229 + $0x2a8] sm:$0xff] %v400
                %v402 = vld [vmem:[%s228 + $0xac0] sm:$0xff]
                %403 = vst [vmem:[%s229 + $0x2b0] sm:$0xff] %v402
                %v404 = vld [vmem:[%s228 + $0xac8] sm:$0xff]
                %405 = vst [vmem:[%s229 + $0x2b8] sm:$0xff] %v404
                %v406 = vld [vmem:[%s228 + $0xb00] sm:$0xff]
                %407 = vst [vmem:[%s229 + $0x2c0] sm:$0xff] %v406
                %v408 = vld [vmem:[%s228 + $0xb08] sm:$0xff]
                %409 = vst [vmem:[%s229 + $0x2c8] sm:$0xff] %v408
                %v410 = vld [vmem:[%s228 + $0xb40] sm:$0xff]
                %411 = vst [vmem:[%s229 + $0x2d0] sm:$0xff] %v410
                %v412 = vld [vmem:[%s228 + $0xb48] sm:$0xff]
                %413 = vst [vmem:[%s229 + $0x2d8] sm:$0xff] %v412
                %v414 = vld [vmem:[%s228 + $0xb80] sm:$0xff]
                %415 = vst [vmem:[%s229 + $0x2e0] sm:$0xff] %v414
                %v416 = vld [vmem:[%s228 + $0xb88] sm:$0xff]
                %417 = vst [vmem:[%s229 + $0x2e8] sm:$0xff] %v416
                %v418 = vld [vmem:[%s228 + $0xbc0] sm:$0xff]
                %419 = vst [vmem:[%s229 + $0x2f0] sm:$0xff] %v418
                %v420 = vld [vmem:[%s228 + $0xbc8] sm:$0xff]
                %421 = vst [vmem:[%s229 + $0x2f8] sm:$0xff] %v420
                %v422 = vld [vmem:[%s228 + $0xc00] sm:$0xff]
                %423 = vst [vmem:[%s229 + $0x300] sm:$0xff] %v422
                %v424 = vld [vmem:[%s228 + $0xc08] sm:$0xff]
                %425 = vst [vmem:[%s229 + $0x308] sm:$0xff] %v424
              $region41: #{extract_image_feature.1} parent=35 // loop_footer
                %s227 = sadd.s32 1, %s223
              $region42: #{extract_image_feature.1} parent=35 // loop_footer_branch
                %222 = sbr.rel target = $region38
              $region43: #{extract_image_feature.1} parent=35 // loop_exit
                _
            $region36: #{extract_image_feature.1} parent=31 // pred_fallthru
              _
            // Predicated region
            $region44: #{extract_image_feature.1} parent=31 // pred_check
              _
            $region45: #{extract_image_feature.1} parent=31 // pred_check_branch
              %427 = sbr.rel target = $region47
            $region46: #{extract_image_feature.1} parent=31 // pred_region
              _
            $region47: #{extract_image_feature.1} parent=31 // pred_fallthru
              _
          $region32: #{extract_image_feature.1} parent=27 // pred_fallthru
            _
          %428 = vnop
        $region28: #{extract_image_feature.1} parent=23 // pred_fallthru
          _
        // Predicated region
        $region48: #{extract_image_feature.1} parent=23 // pred_check
          %p429 = pneg %p73
        $region49: #{extract_image_feature.1} parent=23 // pred_check_branch
          %431 = sbr.rel (%p429) target = $region51
        $region50: #{extract_image_feature.1} parent=23 // pred_region
          %s432 = sand.u32 %s63, 1
          %s433 = sand.u32 %s63, 1
          %s434 = smul.addr %s433, 2048
          %s435 = scalar_lea.vmem [#allocation3], %s434
          %s436 = smul.u32 128, %s20
          %s437 = smul.u32 4, %s21
          %s438 = smul.addr %s436, 16
          %s439 = sadd.s32 %s437, %s438
          %s440 = smul.addr %s439, 4
          %s441 = scalar_lea.vmem %s1, %s440
          // Predicated region
          $region52: #{extract_image_feature.1} parent=50 // pred_check
            _
          $region53: #{extract_image_feature.1} parent=50 // pred_check_branch
            %443 = sbr.rel (0) target = $region55
          $region54: #{extract_image_feature.1} parent=50 // pred_region
            // Predicated region
            $region56: #{extract_image_feature.1} parent=54 // pred_check
              _
            $region57: #{extract_image_feature.1} parent=54 // pred_check_branch
              %445 = sbr.rel (0) target = $region59
            $region58: #{extract_image_feature.1} parent=54 // pred_region
              loop: start=0, step=1, limit=1
              $region60: #{extract_image_feature.1} parent=58 // loop_pre_header
                _
              $region61: #{extract_image_feature.1} parent=58 // loop_header
                %s447 = sphi 0, %s451
                %p448 = scmp.ge.s32.totalorder %s447, 1
                %s452 = sphi %s441, %s441
                %s453 = sphi %s435, %s435
              $region62: #{extract_image_feature.1} parent=58 // loop_header_branch
                %450 = sbr.rel (%p448) target = $region66
              $region63: #{extract_image_feature.1} parent=58 // loop_body
                %v454 = vld [vmem:[%s452] sm:$0xff]
                %455 = vst [vmem:[%s453] sm:$0xff] %v454
                %v456 = vld [vmem:[%s452 + $0x8] sm:$0xff]
                %457 = vst [vmem:[%s453 + $0x8] sm:$0xff] %v456
                %v458 = vld [vmem:[%s452 + $0x40] sm:$0xff]
                %459 = vst [vmem:[%s453 + $0x10] sm:$0xff] %v458
                %v460 = vld [vmem:[%s452 + $0x48] sm:$0xff]
                %461 = vst [vmem:[%s453 + $0x18] sm:$0xff] %v460
                %v462 = vld [vmem:[%s452 + $0x80] sm:$0xff]
                %463 = vst [vmem:[%s453 + $0x20] sm:$0xff] %v462
                %v464 = vld [vmem:[%s452 + $0x88] sm:$0xff]
                %465 = vst [vmem:[%s453 + $0x28] sm:$0xff] %v464
                %v466 = vld [vmem:[%s452 + $0xc0] sm:$0xff]
                %467 = vst [vmem:[%s453 + $0x30] sm:$0xff] %v466
                %v468 = vld [vmem:[%s452 + $0xc8] sm:$0xff]
                %469 = vst [vmem:[%s453 + $0x38] sm:$0xff] %v468
                %v470 = vld [vmem:[%s452 + $0x100] sm:$0xff]
                %471 = vst [vmem:[%s453 + $0x40] sm:$0xff] %v470
                %v472 = vld [vmem:[%s452 + $0x108] sm:$0xff]
                %473 = vst [vmem:[%s453 + $0x48] sm:$0xff] %v472
                %v474 = vld [vmem:[%s452 + $0x140] sm:$0xff]
                %475 = vst [vmem:[%s453 + $0x50] sm:$0xff] %v474
                %v476 = vld [vmem:[%s452 + $0x148] sm:$0xff]
                %477 = vst [vmem:[%s453 + $0x58] sm:$0xff] %v476
                %v478 = vld [vmem:[%s452 + $0x180] sm:$0xff]
                %479 = vst [vmem:[%s453 + $0x60] sm:$0xff] %v478
                %v480 = vld [vmem:[%s452 + $0x188] sm:$0xff]
                %481 = vst [vmem:[%s453 + $0x68] sm:$0xff] %v480
                %v482 = vld [vmem:[%s452 + $0x1c0] sm:$0xff]
                %483 = vst [vmem:[%s453 + $0x70] sm:$0xff] %v482
                %v484 = vld [vmem:[%s452 + $0x1c8] sm:$0xff]
                %485 = vst [vmem:[%s453 + $0x78] sm:$0xff] %v484
                %v486 = vld [vmem:[%s452 + $0x200] sm:$0xff]
                %487 = vst [vmem:[%s453 + $0x80] sm:$0xff] %v486
                %v488 = vld [vmem:[%s452 + $0x208] sm:$0xff]
                %489 = vst [vmem:[%s453 + $0x88] sm:$0xff] %v488
                %v490 = vld [vmem:[%s452 + $0x240] sm:$0xff]
                %491 = vst [vmem:[%s453 + $0x90] sm:$0xff] %v490
                %v492 = vld [vmem:[%s452 + $0x248] sm:$0xff]
                %493 = vst [vmem:[%s453 + $0x98] sm:$0xff] %v492
                %v494 = vld [vmem:[%s452 + $0x280] sm:$0xff]
                %495 = vst [vmem:[%s453 + $0xa0] sm:$0xff] %v494
                %v496 = vld [vmem:[%s452 + $0x288] sm:$0xff]
                %497 = vst [vmem:[%s453 + $0xa8] sm:$0xff] %v496
                %v498 = vld [vmem:[%s452 + $0x2c0] sm:$0xff]
                %499 = vst [vmem:[%s453 + $0xb0] sm:$0xff] %v498
                %v500 = vld [vmem:[%s452 + $0x2c8] sm:$0xff]
                %501 = vst [vmem:[%s453 + $0xb8] sm:$0xff] %v500
                %v502 = vld [vmem:[%s452 + $0x300] sm:$0xff]
                %503 = vst [vmem:[%s453 + $0xc0] sm:$0xff] %v502
                %v504 = vld [vmem:[%s452 + $0x308] sm:$0xff]
                %505 = vst [vmem:[%s453 + $0xc8] sm:$0xff] %v504
                %v506 = vld [vmem:[%s452 + $0x340] sm:$0xff]
                %507 = vst [vmem:[%s453 + $0xd0] sm:$0xff] %v506
                %v508 = vld [vmem:[%s452 + $0x348] sm:$0xff]
                %509 = vst [vmem:[%s453 + $0xd8] sm:$0xff] %v508
                %v510 = vld [vmem:[%s452 + $0x380] sm:$0xff]
                %511 = vst [vmem:[%s453 + $0xe0] sm:$0xff] %v510
                %v512 = vld [vmem:[%s452 + $0x388] sm:$0xff]
                %513 = vst [vmem:[%s453 + $0xe8] sm:$0xff] %v512
                %v514 = vld [vmem:[%s452 + $0x3c0] sm:$0xff]
                %515 = vst [vmem:[%s453 + $0xf0] sm:$0xff] %v514
                %v516 = vld [vmem:[%s452 + $0x3c8] sm:$0xff]
                %517 = vst [vmem:[%s453 + $0xf8] sm:$0xff] %v516
                %v518 = vld [vmem:[%s452 + $0x400] sm:$0xff]
                %519 = vst [vmem:[%s453 + $0x100] sm:$0xff] %v518
                %v520 = vld [vmem:[%s452 + $0x408] sm:$0xff]
                %521 = vst [vmem:[%s453 + $0x108] sm:$0xff] %v520
                %v522 = vld [vmem:[%s452 + $0x440] sm:$0xff]
                %523 = vst [vmem:[%s453 + $0x110] sm:$0xff] %v522
                %v524 = vld [vmem:[%s452 + $0x448] sm:$0xff]
                %525 = vst [vmem:[%s453 + $0x118] sm:$0xff] %v524
                %v526 = vld [vmem:[%s452 + $0x480] sm:$0xff]
                %527 = vst [vmem:[%s453 + $0x120] sm:$0xff] %v526
                %v528 = vld [vmem:[%s452 + $0x488] sm:$0xff]
                %529 = vst [vmem:[%s453 + $0x128] sm:$0xff] %v528
                %v530 = vld [vmem:[%s452 + $0x4c0] sm:$0xff]
                %531 = vst [vmem:[%s453 + $0x130] sm:$0xff] %v530
                %v532 = vld [vmem:[%s452 + $0x4c8] sm:$0xff]
                %533 = vst [vmem:[%s453 + $0x138] sm:$0xff] %v532
                %v534 = vld [vmem:[%s452 + $0x500] sm:$0xff]
                %535 = vst [vmem:[%s453 + $0x140] sm:$0xff] %v534
                %v536 = vld [vmem:[%s452 + $0x508] sm:$0xff]
                %537 = vst [vmem:[%s453 + $0x148] sm:$0xff] %v536
                %v538 = vld [vmem:[%s452 + $0x540] sm:$0xff]
                %539 = vst [vmem:[%s453 + $0x150] sm:$0xff] %v538
                %v540 = vld [vmem:[%s452 + $0x548] sm:$0xff]
                %541 = vst [vmem:[%s453 + $0x158] sm:$0xff] %v540
                %v542 = vld [vmem:[%s452 + $0x580] sm:$0xff]
                %543 = vst [vmem:[%s453 + $0x160] sm:$0xff] %v542
                %v544 = vld [vmem:[%s452 + $0x588] sm:$0xff]
                %545 = vst [vmem:[%s453 + $0x168] sm:$0xff] %v544
                %v546 = vld [vmem:[%s452 + $0x5c0] sm:$0xff]
                %547 = vst [vmem:[%s453 + $0x170] sm:$0xff] %v546
                %v548 = vld [vmem:[%s452 + $0x5c8] sm:$0xff]
                %549 = vst [vmem:[%s453 + $0x178] sm:$0xff] %v548
                %v550 = vld [vmem:[%s452 + $0x600] sm:$0xff]
                %551 = vst [vmem:[%s453 + $0x180] sm:$0xff] %v550
                %v552 = vld [vmem:[%s452 + $0x608] sm:$0xff]
                %553 = vst [vmem:[%s453 + $0x188] sm:$0xff] %v552
                %v554 = vld [vmem:[%s452 + $0x640] sm:$0xff]
                %555 = vst [vmem:[%s453 + $0x190] sm:$0xff] %v554
                %v556 = vld [vmem:[%s452 + $0x648] sm:$0xff]
                %557 = vst [vmem:[%s453 + $0x198] sm:$0xff] %v556
                %v558 = vld [vmem:[%s452 + $0x680] sm:$0xff]
                %559 = vst [vmem:[%s453 + $0x1a0] sm:$0xff] %v558
                %v560 = vld [vmem:[%s452 + $0x688] sm:$0xff]
                %561 = vst [vmem:[%s453 + $0x1a8] sm:$0xff] %v560
                %v562 = vld [vmem:[%s452 + $0x6c0] sm:$0xff]
                %563 = vst [vmem:[%s453 + $0x1b0] sm:$0xff] %v562
                %v564 = vld [vmem:[%s452 + $0x6c8] sm:$0xff]
                %565 = vst [vmem:[%s453 + $0x1b8] sm:$0xff] %v564
                %v566 = vld [vmem:[%s452 + $0x700] sm:$0xff]
                %567 = vst [vmem:[%s453 + $0x1c0] sm:$0xff] %v566
                %v568 = vld [vmem:[%s452 + $0x708] sm:$0xff]
                %569 = vst [vmem:[%s453 + $0x1c8] sm:$0xff] %v568
                %v570 = vld [vmem:[%s452 + $0x740] sm:$0xff]
                %571 = vst [vmem:[%s453 + $0x1d0] sm:$0xff] %v570
                %v572 = vld [vmem:[%s452 + $0x748] sm:$0xff]
                %573 = vst [vmem:[%s453 + $0x1d8] sm:$0xff] %v572
                %v574 = vld [vmem:[%s452 + $0x780] sm:$0xff]
                %575 = vst [vmem:[%s453 + $0x1e0] sm:$0xff] %v574
                %v576 = vld [vmem:[%s452 + $0x788] sm:$0xff]
                %577 = vst [vmem:[%s453 + $0x1e8] sm:$0xff] %v576
                %v578 = vld [vmem:[%s452 + $0x7c0] sm:$0xff]
                %579 = vst [vmem:[%s453 + $0x1f0] sm:$0xff] %v578
                %v580 = vld [vmem:[%s452 + $0x7c8] sm:$0xff]
                %581 = vst [vmem:[%s453 + $0x1f8] sm:$0xff] %v580
                %v582 = vld [vmem:[%s452 + $0x800] sm:$0xff]
                %583 = vst [vmem:[%s453 + $0x200] sm:$0xff] %v582
                %v584 = vld [vmem:[%s452 + $0x808] sm:$0xff]
                %585 = vst [vmem:[%s453 + $0x208] sm:$0xff] %v584
                %v586 = vld [vmem:[%s452 + $0x840] sm:$0xff]
                %587 = vst [vmem:[%s453 + $0x210] sm:$0xff] %v586
                %v588 = vld [vmem:[%s452 + $0x848] sm:$0xff]
                %589 = vst [vmem:[%s453 + $0x218] sm:$0xff] %v588
                %v590 = vld [vmem:[%s452 + $0x880] sm:$0xff]
                %591 = vst [vmem:[%s453 + $0x220] sm:$0xff] %v590
                %v592 = vld [vmem:[%s452 + $0x888] sm:$0xff]
                %593 = vst [vmem:[%s453 + $0x228] sm:$0xff] %v592
                %v594 = vld [vmem:[%s452 + $0x8c0] sm:$0xff]
                %595 = vst [vmem:[%s453 + $0x230] sm:$0xff] %v594
                %v596 = vld [vmem:[%s452 + $0x8c8] sm:$0xff]
                %597 = vst [vmem:[%s453 + $0x238] sm:$0xff] %v596
                %v598 = vld [vmem:[%s452 + $0x900] sm:$0xff]
                %599 = vst [vmem:[%s453 + $0x240] sm:$0xff] %v598
                %v600 = vld [vmem:[%s452 + $0x908] sm:$0xff]
                %601 = vst [vmem:[%s453 + $0x248] sm:$0xff] %v600
                %v602 = vld [vmem:[%s452 + $0x940] sm:$0xff]
                %603 = vst [vmem:[%s453 + $0x250] sm:$0xff] %v602
                %v604 = vld [vmem:[%s452 + $0x948] sm:$0xff]
                %605 = vst [vmem:[%s453 + $0x258] sm:$0xff] %v604
                %v606 = vld [vmem:[%s452 + $0x980] sm:$0xff]
                %607 = vst [vmem:[%s453 + $0x260] sm:$0xff] %v606
                %v608 = vld [vmem:[%s452 + $0x988] sm:$0xff]
                %609 = vst [vmem:[%s453 + $0x268] sm:$0xff] %v608
                %v610 = vld [vmem:[%s452 + $0x9c0] sm:$0xff]
                %611 = vst [vmem:[%s453 + $0x270] sm:$0xff] %v610
                %v612 = vld [vmem:[%s452 + $0x9c8] sm:$0xff]
                %613 = vst [vmem:[%s453 + $0x278] sm:$0xff] %v612
                %v614 = vld [vmem:[%s452 + $0xa00] sm:$0xff]
                %615 = vst [vmem:[%s453 + $0x280] sm:$0xff] %v614
                %v616 = vld [vmem:[%s452 + $0xa08] sm:$0xff]
                %617 = vst [vmem:[%s453 + $0x288] sm:$0xff] %v616
                %v618 = vld [vmem:[%s452 + $0xa40] sm:$0xff]
                %619 = vst [vmem:[%s453 + $0x290] sm:$0xff] %v618
                %v620 = vld [vmem:[%s452 + $0xa48] sm:$0xff]
                %621 = vst [vmem:[%s453 + $0x298] sm:$0xff] %v620
                %v622 = vld [vmem:[%s452 + $0xa80] sm:$0xff]
                %623 = vst [vmem:[%s453 + $0x2a0] sm:$0xff] %v622
                %v624 = vld [vmem:[%s452 + $0xa88] sm:$0xff]
                %625 = vst [vmem:[%s453 + $0x2a8] sm:$0xff] %v624
                %v626 = vld [vmem:[%s452 + $0xac0] sm:$0xff]
                %627 = vst [vmem:[%s453 + $0x2b0] sm:$0xff] %v626
                %v628 = vld [vmem:[%s452 + $0xac8] sm:$0xff]
                %629 = vst [vmem:[%s453 + $0x2b8] sm:$0xff] %v628
                %v630 = vld [vmem:[%s452 + $0xb00] sm:$0xff]
                %631 = vst [vmem:[%s453 + $0x2c0] sm:$0xff] %v630
                %v632 = vld [vmem:[%s452 + $0xb08] sm:$0xff]
                %633 = vst [vmem:[%s453 + $0x2c8] sm:$0xff] %v632
                %v634 = vld [vmem:[%s452 + $0xb40] sm:$0xff]
                %635 = vst [vmem:[%s453 + $0x2d0] sm:$0xff] %v634
                %v636 = vld [vmem:[%s452 + $0xb48] sm:$0xff]
                %637 = vst [vmem:[%s453 + $0x2d8] sm:$0xff] %v636
                %v638 = vld [vmem:[%s452 + $0xb80] sm:$0xff]
                %639 = vst [vmem:[%s453 + $0x2e0] sm:$0xff] %v638
                %v640 = vld [vmem:[%s452 + $0xb88] sm:$0xff]
                %641 = vst [vmem:[%s453 + $0x2e8] sm:$0xff] %v640
                %v642 = vld [vmem:[%s452 + $0xbc0] sm:$0xff]
                %643 = vst [vmem:[%s453 + $0x2f0] sm:$0xff] %v642
                %v644 = vld [vmem:[%s452 + $0xbc8] sm:$0xff]
                %645 = vst [vmem:[%s453 + $0x2f8] sm:$0xff] %v644
                %v646 = vld [vmem:[%s452 + $0xc00] sm:$0xff]
                %647 = vst [vmem:[%s453 + $0x300] sm:$0xff] %v646
                %v648 = vld [vmem:[%s452 + $0xc08] sm:$0xff]
                %649 = vst [vmem:[%s453 + $0x308] sm:$0xff] %v648
                %v650 = vld [vmem:[%s452 + $0xc40] sm:$0xff]
                %651 = vst [vmem:[%s453 + $0x310] sm:$0xff] %v650
                %v652 = vld [vmem:[%s452 + $0xc48] sm:$0xff]
                %653 = vst [vmem:[%s453 + $0x318] sm:$0xff] %v652
                %v654 = vld [vmem:[%s452 + $0xc80] sm:$0xff]
                %655 = vst [vmem:[%s453 + $0x320] sm:$0xff] %v654
                %v656 = vld [vmem:[%s452 + $0xc88] sm:$0xff]
                %657 = vst [vmem:[%s453 + $0x328] sm:$0xff] %v656
                %v658 = vld [vmem:[%s452 + $0xcc0] sm:$0xff]
                %659 = vst [vmem:[%s453 + $0x330] sm:$0xff] %v658
                %v660 = vld [vmem:[%s452 + $0xcc8] sm:$0xff]
                %661 = vst [vmem:[%s453 + $0x338] sm:$0xff] %v660
                %v662 = vld [vmem:[%s452 + $0xd00] sm:$0xff]
                %663 = vst [vmem:[%s453 + $0x340] sm:$0xff] %v662
                %v664 = vld [vmem:[%s452 + $0xd08] sm:$0xff]
                %665 = vst [vmem:[%s453 + $0x348] sm:$0xff] %v664
                %v666 = vld [vmem:[%s452 + $0xd40] sm:$0xff]
                %667 = vst [vmem:[%s453 + $0x350] sm:$0xff] %v666
                %v668 = vld [vmem:[%s452 + $0xd48] sm:$0xff]
                %669 = vst [vmem:[%s453 + $0x358] sm:$0xff] %v668
                %v670 = vld [vmem:[%s452 + $0xd80] sm:$0xff]
                %671 = vst [vmem:[%s453 + $0x360] sm:$0xff] %v670
                %v672 = vld [vmem:[%s452 + $0xd88] sm:$0xff]
                %673 = vst [vmem:[%s453 + $0x368] sm:$0xff] %v672
                %v674 = vld [vmem:[%s452 + $0xdc0] sm:$0xff]
                %675 = vst [vmem:[%s453 + $0x370] sm:$0xff] %v674
                %v676 = vld [vmem:[%s452 + $0xdc8] sm:$0xff]
                %677 = vst [vmem:[%s453 + $0x378] sm:$0xff] %v676
                %v678 = vld [vmem:[%s452 + $0xe00] sm:$0xff]
                %679 = vst [vmem:[%s453 + $0x380] sm:$0xff] %v678
                %v680 = vld [vmem:[%s452 + $0xe08] sm:$0xff]
                %681 = vst [vmem:[%s453 + $0x388] sm:$0xff] %v680
                %v682 = vld [vmem:[%s452 + $0xe40] sm:$0xff]
                %683 = vst [vmem:[%s453 + $0x390] sm:$0xff] %v682
                %v684 = vld [vmem:[%s452 + $0xe48] sm:$0xff]
                %685 = vst [vmem:[%s453 + $0x398] sm:$0xff] %v684
                %v686 = vld [vmem:[%s452 + $0xe80] sm:$0xff]
                %687 = vst [vmem:[%s453 + $0x3a0] sm:$0xff] %v686
                %v688 = vld [vmem:[%s452 + $0xe88] sm:$0xff]
                %689 = vst [vmem:[%s453 + $0x3a8] sm:$0xff] %v688
                %v690 = vld [vmem:[%s452 + $0xec0] sm:$0xff]
                %691 = vst [vmem:[%s453 + $0x3b0] sm:$0xff] %v690
                %v692 = vld [vmem:[%s452 + $0xec8] sm:$0xff]
                %693 = vst [vmem:[%s453 + $0x3b8] sm:$0xff] %v692
                %v694 = vld [vmem:[%s452 + $0xf00] sm:$0xff]
                %695 = vst [vmem:[%s453 + $0x3c0] sm:$0xff] %v694
                %v696 = vld [vmem:[%s452 + $0xf08] sm:$0xff]
                %697 = vst [vmem:[%s453 + $0x3c8] sm:$0xff] %v696
                %v698 = vld [vmem:[%s452 + $0xf40] sm:$0xff]
                %699 = vst [vmem:[%s453 + $0x3d0] sm:$0xff] %v698
                %v700 = vld [vmem:[%s452 + $0xf48] sm:$0xff]
                %701 = vst [vmem:[%s453 + $0x3d8] sm:$0xff] %v700
                %v702 = vld [vmem:[%s452 + $0xf80] sm:$0xff]
                %703 = vst [vmem:[%s453 + $0x3e0] sm:$0xff] %v702
                %v704 = vld [vmem:[%s452 + $0xf88] sm:$0xff]
                %705 = vst [vmem:[%s453 + $0x3e8] sm:$0xff] %v704
                %v706 = vld [vmem:[%s452 + $0xfc0] sm:$0xff]
                %707 = vst [vmem:[%s453 + $0x3f0] sm:$0xff] %v706
                %v708 = vld [vmem:[%s452 + $0xfc8] sm:$0xff]
                %709 = vst [vmem:[%s453 + $0x3f8] sm:$0xff] %v708
                %v710 = vld [vmem:[%s452 + $0x1000] sm:$0xff]
                %711 = vst [vmem:[%s453 + $0x400] sm:$0xff] %v710
                %v712 = vld [vmem:[%s452 + $0x1008] sm:$0xff]
                %713 = vst [vmem:[%s453 + $0x408] sm:$0xff] %v712
                %v714 = vld [vmem:[%s452 + $0x1040] sm:$0xff]
                %715 = vst [vmem:[%s453 + $0x410] sm:$0xff] %v714
                %v716 = vld [vmem:[%s452 + $0x1048] sm:$0xff]
                %717 = vst [vmem:[%s453 + $0x418] sm:$0xff] %v716
                %v718 = vld [vmem:[%s452 + $0x1080] sm:$0xff]
                %719 = vst [vmem:[%s453 + $0x420] sm:$0xff] %v718
                %v720 = vld [vmem:[%s452 + $0x1088] sm:$0xff]
                %721 = vst [vmem:[%s453 + $0x428] sm:$0xff] %v720
                %v722 = vld [vmem:[%s452 + $0x10c0] sm:$0xff]
                %723 = vst [vmem:[%s453 + $0x430] sm:$0xff] %v722
                %v724 = vld [vmem:[%s452 + $0x10c8] sm:$0xff]
                %725 = vst [vmem:[%s453 + $0x438] sm:$0xff] %v724
                %v726 = vld [vmem:[%s452 + $0x1100] sm:$0xff]
                %727 = vst [vmem:[%s453 + $0x440] sm:$0xff] %v726
                %v728 = vld [vmem:[%s452 + $0x1108] sm:$0xff]
                %729 = vst [vmem:[%s453 + $0x448] sm:$0xff] %v728
                %v730 = vld [vmem:[%s452 + $0x1140] sm:$0xff]
                %731 = vst [vmem:[%s453 + $0x450] sm:$0xff] %v730
                %v732 = vld [vmem:[%s452 + $0x1148] sm:$0xff]
                %733 = vst [vmem:[%s453 + $0x458] sm:$0xff] %v732
                %v734 = vld [vmem:[%s452 + $0x1180] sm:$0xff]
                %735 = vst [vmem:[%s453 + $0x460] sm:$0xff] %v734
                %v736 = vld [vmem:[%s452 + $0x1188] sm:$0xff]
                %737 = vst [vmem:[%s453 + $0x468] sm:$0xff] %v736
                %v738 = vld [vmem:[%s452 + $0x11c0] sm:$0xff]
                %739 = vst [vmem:[%s453 + $0x470] sm:$0xff] %v738
                %v740 = vld [vmem:[%s452 + $0x11c8] sm:$0xff]
                %741 = vst [vmem:[%s453 + $0x478] sm:$0xff] %v740
                %v742 = vld [vmem:[%s452 + $0x1200] sm:$0xff]
                %743 = vst [vmem:[%s453 + $0x480] sm:$0xff] %v742
                %v744 = vld [vmem:[%s452 + $0x1208] sm:$0xff]
                %745 = vst [vmem:[%s453 + $0x488] sm:$0xff] %v744
                %v746 = vld [vmem:[%s452 + $0x1240] sm:$0xff]
                %747 = vst [vmem:[%s453 + $0x490] sm:$0xff] %v746
                %v748 = vld [vmem:[%s452 + $0x1248] sm:$0xff]
                %749 = vst [vmem:[%s453 + $0x498] sm:$0xff] %v748
                %v750 = vld [vmem:[%s452 + $0x1280] sm:$0xff]
                %751 = vst [vmem:[%s453 + $0x4a0] sm:$0xff] %v750
                %v752 = vld [vmem:[%s452 + $0x1288] sm:$0xff]
                %753 = vst [vmem:[%s453 + $0x4a8] sm:$0xff] %v752
                %v754 = vld [vmem:[%s452 + $0x12c0] sm:$0xff]
                %755 = vst [vmem:[%s453 + $0x4b0] sm:$0xff] %v754
                %v756 = vld [vmem:[%s452 + $0x12c8] sm:$0xff]
                %757 = vst [vmem:[%s453 + $0x4b8] sm:$0xff] %v756
                %v758 = vld [vmem:[%s452 + $0x1300] sm:$0xff]
                %759 = vst [vmem:[%s453 + $0x4c0] sm:$0xff] %v758
                %v760 = vld [vmem:[%s452 + $0x1308] sm:$0xff]
                %761 = vst [vmem:[%s453 + $0x4c8] sm:$0xff] %v760
                %v762 = vld [vmem:[%s452 + $0x1340] sm:$0xff]
                %763 = vst [vmem:[%s453 + $0x4d0] sm:$0xff] %v762
                %v764 = vld [vmem:[%s452 + $0x1348] sm:$0xff]
                %765 = vst [vmem:[%s453 + $0x4d8] sm:$0xff] %v764
                %v766 = vld [vmem:[%s452 + $0x1380] sm:$0xff]
                %767 = vst [vmem:[%s453 + $0x4e0] sm:$0xff] %v766
                %v768 = vld [vmem:[%s452 + $0x1388] sm:$0xff]
                %769 = vst [vmem:[%s453 + $0x4e8] sm:$0xff] %v768
                %v770 = vld [vmem:[%s452 + $0x13c0] sm:$0xff]
                %771 = vst [vmem:[%s453 + $0x4f0] sm:$0xff] %v770
                %v772 = vld [vmem:[%s452 + $0x13c8] sm:$0xff]
                %773 = vst [vmem:[%s453 + $0x4f8] sm:$0xff] %v772
                %v774 = vld [vmem:[%s452 + $0x1400] sm:$0xff]
                %775 = vst [vmem:[%s453 + $0x500] sm:$0xff] %v774
                %v776 = vld [vmem:[%s452 + $0x1408] sm:$0xff]
                %777 = vst [vmem:[%s453 + $0x508] sm:$0xff] %v776
                %v778 = vld [vmem:[%s452 + $0x1440] sm:$0xff]
                %779 = vst [vmem:[%s453 + $0x510] sm:$0xff] %v778
                %v780 = vld [vmem:[%s452 + $0x1448] sm:$0xff]
                %781 = vst [vmem:[%s453 + $0x518] sm:$0xff] %v780
                %v782 = vld [vmem:[%s452 + $0x1480] sm:$0xff]
                %783 = vst [vmem:[%s453 + $0x520] sm:$0xff] %v782
                %v784 = vld [vmem:[%s452 + $0x1488] sm:$0xff]
                %785 = vst [vmem:[%s453 + $0x528] sm:$0xff] %v784
                %v786 = vld [vmem:[%s452 + $0x14c0] sm:$0xff]
                %787 = vst [vmem:[%s453 + $0x530] sm:$0xff] %v786
                %v788 = vld [vmem:[%s452 + $0x14c8] sm:$0xff]
                %789 = vst [vmem:[%s453 + $0x538] sm:$0xff] %v788
                %v790 = vld [vmem:[%s452 + $0x1500] sm:$0xff]
                %791 = vst [vmem:[%s453 + $0x540] sm:$0xff] %v790
                %v792 = vld [vmem:[%s452 + $0x1508] sm:$0xff]
                %793 = vst [vmem:[%s453 + $0x548] sm:$0xff] %v792
                %v794 = vld [vmem:[%s452 + $0x1540] sm:$0xff]
                %795 = vst [vmem:[%s453 + $0x550] sm:$0xff] %v794
                %v796 = vld [vmem:[%s452 + $0x1548] sm:$0xff]
                %797 = vst [vmem:[%s453 + $0x558] sm:$0xff] %v796
                %v798 = vld [vmem:[%s452 + $0x1580] sm:$0xff]
                %799 = vst [vmem:[%s453 + $0x560] sm:$0xff] %v798
                %v800 = vld [vmem:[%s452 + $0x1588] sm:$0xff]
                %801 = vst [vmem:[%s453 + $0x568] sm:$0xff] %v800
                %v802 = vld [vmem:[%s452 + $0x15c0] sm:$0xff]
                %803 = vst [vmem:[%s453 + $0x570] sm:$0xff] %v802
                %v804 = vld [vmem:[%s452 + $0x15c8] sm:$0xff]
                %805 = vst [vmem:[%s453 + $0x578] sm:$0xff] %v804
                %v806 = vld [vmem:[%s452 + $0x1600] sm:$0xff]
                %807 = vst [vmem:[%s453 + $0x580] sm:$0xff] %v806
                %v808 = vld [vmem:[%s452 + $0x1608] sm:$0xff]
                %809 = vst [vmem:[%s453 + $0x588] sm:$0xff] %v808
                %v810 = vld [vmem:[%s452 + $0x1640] sm:$0xff]
                %811 = vst [vmem:[%s453 + $0x590] sm:$0xff] %v810
                %v812 = vld [vmem:[%s452 + $0x1648] sm:$0xff]
                %813 = vst [vmem:[%s453 + $0x598] sm:$0xff] %v812
                %v814 = vld [vmem:[%s452 + $0x1680] sm:$0xff]
                %815 = vst [vmem:[%s453 + $0x5a0] sm:$0xff] %v814
                %v816 = vld [vmem:[%s452 + $0x1688] sm:$0xff]
                %817 = vst [vmem:[%s453 + $0x5a8] sm:$0xff] %v816
                %v818 = vld [vmem:[%s452 + $0x16c0] sm:$0xff]
                %819 = vst [vmem:[%s453 + $0x5b0] sm:$0xff] %v818
                %v820 = vld [vmem:[%s452 + $0x16c8] sm:$0xff]
                %821 = vst [vmem:[%s453 + $0x5b8] sm:$0xff] %v820
                %v822 = vld [vmem:[%s452 + $0x1700] sm:$0xff]
                %823 = vst [vmem:[%s453 + $0x5c0] sm:$0xff] %v822
                %v824 = vld [vmem:[%s452 + $0x1708] sm:$0xff]
                %825 = vst [vmem:[%s453 + $0x5c8] sm:$0xff] %v824
                %v826 = vld [vmem:[%s452 + $0x1740] sm:$0xff]
                %827 = vst [vmem:[%s453 + $0x5d0] sm:$0xff] %v826
                %v828 = vld [vmem:[%s452 + $0x1748] sm:$0xff]
                %829 = vst [vmem:[%s453 + $0x5d8] sm:$0xff] %v828
                %v830 = vld [vmem:[%s452 + $0x1780] sm:$0xff]
                %831 = vst [vmem:[%s453 + $0x5e0] sm:$0xff] %v830
                %v832 = vld [vmem:[%s452 + $0x1788] sm:$0xff]
                %833 = vst [vmem:[%s453 + $0x5e8] sm:$0xff] %v832
                %v834 = vld [vmem:[%s452 + $0x17c0] sm:$0xff]
                %835 = vst [vmem:[%s453 + $0x5f0] sm:$0xff] %v834
                %v836 = vld [vmem:[%s452 + $0x17c8] sm:$0xff]
                %837 = vst [vmem:[%s453 + $0x5f8] sm:$0xff] %v836
                %v838 = vld [vmem:[%s452 + $0x1800] sm:$0xff]
                %839 = vst [vmem:[%s453 + $0x600] sm:$0xff] %v838
                %v840 = vld [vmem:[%s452 + $0x1808] sm:$0xff]
                %841 = vst [vmem:[%s453 + $0x608] sm:$0xff] %v840
                %v842 = vld [vmem:[%s452 + $0x1840] sm:$0xff]
                %843 = vst [vmem:[%s453 + $0x610] sm:$0xff] %v842
                %v844 = vld [vmem:[%s452 + $0x1848] sm:$0xff]
                %845 = vst [vmem:[%s453 + $0x618] sm:$0xff] %v844
                %v846 = vld [vmem:[%s452 + $0x1880] sm:$0xff]
                %847 = vst [vmem:[%s453 + $0x620] sm:$0xff] %v846
                %v848 = vld [vmem:[%s452 + $0x1888] sm:$0xff]
                %849 = vst [vmem:[%s453 + $0x628] sm:$0xff] %v848
                %v850 = vld [vmem:[%s452 + $0x18c0] sm:$0xff]
                %851 = vst [vmem:[%s453 + $0x630] sm:$0xff] %v850
                %v852 = vld [vmem:[%s452 + $0x18c8] sm:$0xff]
                %853 = vst [vmem:[%s453 + $0x638] sm:$0xff] %v852
                %v854 = vld [vmem:[%s452 + $0x1900] sm:$0xff]
                %855 = vst [vmem:[%s453 + $0x640] sm:$0xff] %v854
                %v856 = vld [vmem:[%s452 + $0x1908] sm:$0xff]
                %857 = vst [vmem:[%s453 + $0x648] sm:$0xff] %v856
                %v858 = vld [vmem:[%s452 + $0x1940] sm:$0xff]
                %859 = vst [vmem:[%s453 + $0x650] sm:$0xff] %v858
                %v860 = vld [vmem:[%s452 + $0x1948] sm:$0xff]
                %861 = vst [vmem:[%s453 + $0x658] sm:$0xff] %v860
                %v862 = vld [vmem:[%s452 + $0x1980] sm:$0xff]
                %863 = vst [vmem:[%s453 + $0x660] sm:$0xff] %v862
                %v864 = vld [vmem:[%s452 + $0x1988] sm:$0xff]
                %865 = vst [vmem:[%s453 + $0x668] sm:$0xff] %v864
                %v866 = vld [vmem:[%s452 + $0x19c0] sm:$0xff]
                %867 = vst [vmem:[%s453 + $0x670] sm:$0xff] %v866
                %v868 = vld [vmem:[%s452 + $0x19c8] sm:$0xff]
                %869 = vst [vmem:[%s453 + $0x678] sm:$0xff] %v868
                %v870 = vld [vmem:[%s452 + $0x1a00] sm:$0xff]
                %871 = vst [vmem:[%s453 + $0x680] sm:$0xff] %v870
                %v872 = vld [vmem:[%s452 + $0x1a08] sm:$0xff]
                %873 = vst [vmem:[%s453 + $0x688] sm:$0xff] %v872
                %v874 = vld [vmem:[%s452 + $0x1a40] sm:$0xff]
                %875 = vst [vmem:[%s453 + $0x690] sm:$0xff] %v874
                %v876 = vld [vmem:[%s452 + $0x1a48] sm:$0xff]
                %877 = vst [vmem:[%s453 + $0x698] sm:$0xff] %v876
                %v878 = vld [vmem:[%s452 + $0x1a80] sm:$0xff]
                %879 = vst [vmem:[%s453 + $0x6a0] sm:$0xff] %v878
                %v880 = vld [vmem:[%s452 + $0x1a88] sm:$0xff]
                %881 = vst [vmem:[%s453 + $0x6a8] sm:$0xff] %v880
                %v882 = vld [vmem:[%s452 + $0x1ac0] sm:$0xff]
                %883 = vst [vmem:[%s453 + $0x6b0] sm:$0xff] %v882
                %v884 = vld [vmem:[%s452 + $0x1ac8] sm:$0xff]
                %885 = vst [vmem:[%s453 + $0x6b8] sm:$0xff] %v884
                %v886 = vld [vmem:[%s452 + $0x1b00] sm:$0xff]
                %887 = vst [vmem:[%s453 + $0x6c0] sm:$0xff] %v886
                %v888 = vld [vmem:[%s452 + $0x1b08] sm:$0xff]
                %889 = vst [vmem:[%s453 + $0x6c8] sm:$0xff] %v888
                %v890 = vld [vmem:[%s452 + $0x1b40] sm:$0xff]
                %891 = vst [vmem:[%s453 + $0x6d0] sm:$0xff] %v890
                %v892 = vld [vmem:[%s452 + $0x1b48] sm:$0xff]
                %893 = vst [vmem:[%s453 + $0x6d8] sm:$0xff] %v892
                %v894 = vld [vmem:[%s452 + $0x1b80] sm:$0xff]
                %895 = vst [vmem:[%s453 + $0x6e0] sm:$0xff] %v894
                %v896 = vld [vmem:[%s452 + $0x1b88] sm:$0xff]
                %897 = vst [vmem:[%s453 + $0x6e8] sm:$0xff] %v896
                %v898 = vld [vmem:[%s452 + $0x1bc0] sm:$0xff]
                %899 = vst [vmem:[%s453 + $0x6f0] sm:$0xff] %v898
                %v900 = vld [vmem:[%s452 + $0x1bc8] sm:$0xff]
                %901 = vst [vmem:[%s453 + $0x6f8] sm:$0xff] %v900
                %v902 = vld [vmem:[%s452 + $0x1c00] sm:$0xff]
                %903 = vst [vmem:[%s453 + $0x700] sm:$0xff] %v902
                %v904 = vld [vmem:[%s452 + $0x1c08] sm:$0xff]
                %905 = vst [vmem:[%s453 + $0x708] sm:$0xff] %v904
                %v906 = vld [vmem:[%s452 + $0x1c40] sm:$0xff]
                %907 = vst [vmem:[%s453 + $0x710] sm:$0xff] %v906
                %v908 = vld [vmem:[%s452 + $0x1c48] sm:$0xff]
                %909 = vst [vmem:[%s453 + $0x718] sm:$0xff] %v908
                %v910 = vld [vmem:[%s452 + $0x1c80] sm:$0xff]
                %911 = vst [vmem:[%s453 + $0x720] sm:$0xff] %v910
                %v912 = vld [vmem:[%s452 + $0x1c88] sm:$0xff]
                %913 = vst [vmem:[%s453 + $0x728] sm:$0xff] %v912
                %v914 = vld [vmem:[%s452 + $0x1cc0] sm:$0xff]
                %915 = vst [vmem:[%s453 + $0x730] sm:$0xff] %v914
                %v916 = vld [vmem:[%s452 + $0x1cc8] sm:$0xff]
                %917 = vst [vmem:[%s453 + $0x738] sm:$0xff] %v916
                %v918 = vld [vmem:[%s452 + $0x1d00] sm:$0xff]
                %919 = vst [vmem:[%s453 + $0x740] sm:$0xff] %v918
                %v920 = vld [vmem:[%s452 + $0x1d08] sm:$0xff]
                %921 = vst [vmem:[%s453 + $0x748] sm:$0xff] %v920
                %v922 = vld [vmem:[%s452 + $0x1d40] sm:$0xff]
                %923 = vst [vmem:[%s453 + $0x750] sm:$0xff] %v922
                %v924 = vld [vmem:[%s452 + $0x1d48] sm:$0xff]
                %925 = vst [vmem:[%s453 + $0x758] sm:$0xff] %v924
                %v926 = vld [vmem:[%s452 + $0x1d80] sm:$0xff]
                %927 = vst [vmem:[%s453 + $0x760] sm:$0xff] %v926
                %v928 = vld [vmem:[%s452 + $0x1d88] sm:$0xff]
                %929 = vst [vmem:[%s453 + $0x768] sm:$0xff] %v928
                %v930 = vld [vmem:[%s452 + $0x1dc0] sm:$0xff]
                %931 = vst [vmem:[%s453 + $0x770] sm:$0xff] %v930
                %v932 = vld [vmem:[%s452 + $0x1dc8] sm:$0xff]
                %933 = vst [vmem:[%s453 + $0x778] sm:$0xff] %v932
                %v934 = vld [vmem:[%s452 + $0x1e00] sm:$0xff]
                %935 = vst [vmem:[%s453 + $0x780] sm:$0xff] %v934
                %v936 = vld [vmem:[%s452 + $0x1e08] sm:$0xff]
                %937 = vst [vmem:[%s453 + $0x788] sm:$0xff] %v936
                %v938 = vld [vmem:[%s452 + $0x1e40] sm:$0xff]
                %939 = vst [vmem:[%s453 + $0x790] sm:$0xff] %v938
                %v940 = vld [vmem:[%s452 + $0x1e48] sm:$0xff]
                %941 = vst [vmem:[%s453 + $0x798] sm:$0xff] %v940
                %v942 = vld [vmem:[%s452 + $0x1e80] sm:$0xff]
                %943 = vst [vmem:[%s453 + $0x7a0] sm:$0xff] %v942
                %v944 = vld [vmem:[%s452 + $0x1e88] sm:$0xff]
                %945 = vst [vmem:[%s453 + $0x7a8] sm:$0xff] %v944
                %v946 = vld [vmem:[%s452 + $0x1ec0] sm:$0xff]
                %947 = vst [vmem:[%s453 + $0x7b0] sm:$0xff] %v946
                %v948 = vld [vmem:[%s452 + $0x1ec8] sm:$0xff]
                %949 = vst [vmem:[%s453 + $0x7b8] sm:$0xff] %v948
                %v950 = vld [vmem:[%s452 + $0x1f00] sm:$0xff]
                %951 = vst [vmem:[%s453 + $0x7c0] sm:$0xff] %v950
                %v952 = vld [vmem:[%s452 + $0x1f08] sm:$0xff]
                %953 = vst [vmem:[%s453 + $0x7c8] sm:$0xff] %v952
                %v954 = vld [vmem:[%s452 + $0x1f40] sm:$0xff]
                %955 = vst [vmem:[%s453 + $0x7d0] sm:$0xff] %v954
                %v956 = vld [vmem:[%s452 + $0x1f48] sm:$0xff]
                %957 = vst [vmem:[%s453 + $0x7d8] sm:$0xff] %v956
                %v958 = vld [vmem:[%s452 + $0x1f80] sm:$0xff]
                %959 = vst [vmem:[%s453 + $0x7e0] sm:$0xff] %v958
                %v960 = vld [vmem:[%s452 + $0x1f88] sm:$0xff]
                %961 = vst [vmem:[%s453 + $0x7e8] sm:$0xff] %v960
                %v962 = vld [vmem:[%s452 + $0x1fc0] sm:$0xff]
                %963 = vst [vmem:[%s453 + $0x7f0] sm:$0xff] %v962
                %v964 = vld [vmem:[%s452 + $0x1fc8] sm:$0xff]
                %965 = vst [vmem:[%s453 + $0x7f8] sm:$0xff] %v964
              $region64: #{extract_image_feature.1} parent=58 // loop_footer
                %s451 = sadd.s32 1, %s447
              $region65: #{extract_image_feature.1} parent=58 // loop_footer_branch
                %446 = sbr.rel target = $region61
              $region66: #{extract_image_feature.1} parent=58 // loop_exit
                _
            $region59: #{extract_image_feature.1} parent=54 // pred_fallthru
              _
            // Predicated region
            $region67: #{extract_image_feature.1} parent=54 // pred_check
              _
            $region68: #{extract_image_feature.1} parent=54 // pred_check_branch
              %967 = sbr.rel target = $region70
            $region69: #{extract_image_feature.1} parent=54 // pred_region
              _
            $region70: #{extract_image_feature.1} parent=54 // pred_fallthru
              _
          $region55: #{extract_image_feature.1} parent=50 // pred_fallthru
            _
          %968 = vnop
        $region51: #{extract_image_feature.1} parent=23 // pred_fallthru
          _
      $region24: #{extract_image_feature.1} parent=5 // pred_fallthru
        _
      %p969 = scmp.le.s32.totalorder 1, %s13
      %p970 = scmp.lt.s32.totalorder %s13, 5
      %p971 = pnand %p969, %p970
      %p972 = pneg %p971
      // Predicated region
      $region71: #{extract_image_feature.1} parent=5 // pred_check
        _
      $region72: #{extract_image_feature.1} parent=5 // pred_check_branch
        %974 = sbr.rel (%p971) target = $region74
      $region73: #{extract_image_feature.1} parent=5 // pred_region
        %s975 = ssub.s32 %s13, 1
        %s976 = sand.u32 %s38, 1
        %s977 = sand.u32 %s38, 1
        %s978 = smul.addr %s977, 784
        %s979 = scalar_lea.vmem [#allocation2], %s978
        // Predicated region
        $region75: #{extract_image_feature.1} parent=73 // pred_check
          %p980 = pneg %p51
        $region76: #{extract_image_feature.1} parent=73 // pred_check_branch
          %982 = sbr.rel (%p980) target = $region78
        $region77: #{extract_image_feature.1} parent=73 // pred_region
          _
        $region78: #{extract_image_feature.1} parent=73 // pred_fallthru
          _
        %s983 = sand.u32 %s66, 1
        %s984 = sand.u32 %s66, 1
        %s985 = smul.addr %s984, 2048
        %s986 = scalar_lea.vmem [#allocation3], %s985
        // Predicated region
        $region79: #{extract_image_feature.1} parent=73 // pred_check
          %p987 = pneg %p79
        $region80: #{extract_image_feature.1} parent=73 // pred_check_branch
          %989 = sbr.rel (%p987) target = $region82
        $region81: #{extract_image_feature.1} parent=73 // pred_region
          _
        $region82: #{extract_image_feature.1} parent=73 // pred_fallthru
          _
        %s990 = sand.u32 %s38, 1
        %s991 = sand.u32 %s38, 1
        %s992 = smul.addr %s991, 784
        %s993 = scalar_lea.vmem [#allocation2], %s992
        %p994 = pneg %p51
        %p995 = pneg %p48
        %s996 = sand.u32 %s66, 1
        %s997 = sand.u32 %s66, 1
        %s998 = smul.addr %s997, 2048
        %s999 = scalar_lea.vmem [#allocation3], %s998
        %p1000 = pneg %p79
        %p1001 = pneg %p76
        %s1002 = smul.u32 8, %s22
        %p1003 = scmp.lt.s32.totalorder %s1002, 7
        %s1004 = scalar_select %p1003, %s1002, 7
        %s1005 = scalar_lea.vmem %s2, %s1004
        %p1006 = pneg %p105
        %p1007 = pneg %p102
        %p1008 = pneg %p126
        %p1009 = pneg %p123
        %p1010 = pneg %p152
        %p1011 = pneg %p149
        %s1012 = smul.u32 8, %s22
        %p1013 = scmp.lt.s32.totalorder %s1012, 7
        %s1014 = scalar_select %p1013, %s1012, 7
        %s1015 = smul.addr %s1014, 8
        %s1016 = scalar_lea.vmem %s4, %s1015
        %p1017 = pneg %p178
        %p1018 = pneg %p175
        %s1019 = smul.u32 4, %s23
        %s1020 = smul.u32 128, %s22
        %s1021 = smul.u32 4, %s23
        %s1022 = smul.u32 8, %s22
        %p1023 = scmp.lt.s32.totalorder %s1022, 7
        %s1024 = scalar_select %p1023, %s1022, 7
        %s1025 = scalar_lea.vmem %s2, %s1024
        %s1026 = smul.u32 8, %s22
        %s1027 = smul.u32 8, %s22
        %p1028 = scmp.lt.s32.totalorder %s1027, 7
        %s1029 = scalar_select %p1028, %s1027, 7
        %s1030 = smul.addr %s1029, 8
        %s1031 = scalar_lea.vmem %s4, %s1030
        %s1032 = smul.u32 8, %s22
        %s1033 = smul.u32 8, %s22
        %v1034 = vld [vmem:[%s979] sm:$0xff]
        %v1035 = vld [vmem:[%s979 + $0x8] sm:$0xff]
        %v1036 = vld [vmem:[%s979 + $0x10] sm:$0xff]
        %v1037 = vld [vmem:[%s979 + $0x18] sm:$0xff]
        %v1038 = vld [vmem:[%s979 + $0x20] sm:$0xff]
        %v1039 = vld [vmem:[%s979 + $0x28] sm:$0xff]
        %v1040 = vld [vmem:[%s979 + $0x30] sm:$0xff]
        %v1041 = vld [vmem:[%s979 + $0x38] sm:$0xff]
        %v1042 = vld [vmem:[%s979 + $0x40] sm:$0xff]
        %v1043 = vld [vmem:[%s979 + $0x48] sm:$0xff]
        %v1044 = vld [vmem:[%s979 + $0x50] sm:$0xff]
        %v1045 = vld [vmem:[%s979 + $0x58] sm:$0xff]
        %v1046 = vld [vmem:[%s979 + $0x60] sm:$0xff]
        %v1047 = vld [vmem:[%s979 + $0x68] sm:$0xff]
        %v1048 = vld [vmem:[%s979 + $0x70] sm:$0xff]
        %v1049 = vld [vmem:[%s979 + $0x78] sm:$0xff]
        %v1050 = vld [vmem:[%s979 + $0x80] sm:$0xff]
        %v1051 = vld [vmem:[%s979 + $0x88] sm:$0xff]
        %v1052 = vld [vmem:[%s979 + $0x90] sm:$0xff]
        %v1053 = vld [vmem:[%s979 + $0x98] sm:$0xff]
        %v1054 = vld [vmem:[%s979 + $0xa0] sm:$0xff]
        %v1055 = vld [vmem:[%s979 + $0xa8] sm:$0xff]
        %v1056 = vld [vmem:[%s979 + $0xb0] sm:$0xff]
        %v1057 = vld [vmem:[%s979 + $0xb8] sm:$0xff]
        %v1058 = vld [vmem:[%s979 + $0xc0] sm:$0xff]
        %v1059 = vld [vmem:[%s979 + $0xc8] sm:$0xff]
        %v1060 = vld [vmem:[%s979 + $0xd0] sm:$0xff]
        %v1061 = vld [vmem:[%s979 + $0xd8] sm:$0xff]
        %v1062 = vld [vmem:[%s979 + $0xe0] sm:$0xff]
        %v1063 = vld [vmem:[%s979 + $0xe8] sm:$0xff]
        %v1064 = vld [vmem:[%s979 + $0xf0] sm:$0xff]
        %v1065 = vld [vmem:[%s979 + $0xf8] sm:$0xff]
        %v1066 = vld [vmem:[%s979 + $0x100] sm:$0xff]
        %v1067 = vld [vmem:[%s979 + $0x108] sm:$0xff]
        %v1068 = vld [vmem:[%s979 + $0x110] sm:$0xff]
        %v1069 = vld [vmem:[%s979 + $0x118] sm:$0xff]
        %v1070 = vld [vmem:[%s979 + $0x120] sm:$0xff]
        %v1071 = vld [vmem:[%s979 + $0x128] sm:$0xff]
        %v1072 = vld [vmem:[%s979 + $0x130] sm:$0xff]
        %v1073 = vld [vmem:[%s979 + $0x138] sm:$0xff]
        %v1074 = vld [vmem:[%s979 + $0x140] sm:$0xff]
        %v1075 = vld [vmem:[%s979 + $0x148] sm:$0xff]
        %v1076 = vld [vmem:[%s979 + $0x150] sm:$0xff]
        %v1077 = vld [vmem:[%s979 + $0x158] sm:$0xff]
        %v1078 = vld [vmem:[%s979 + $0x160] sm:$0xff]
        %v1079 = vld [vmem:[%s979 + $0x168] sm:$0xff]
        %v1080 = vld [vmem:[%s979 + $0x170] sm:$0xff]
        %v1081 = vld [vmem:[%s979 + $0x178] sm:$0xff]
        %v1082 = vld [vmem:[%s979 + $0x180] sm:$0xff]
        %v1083 = vld [vmem:[%s979 + $0x188] sm:$0xff]
        %v1084 = vld [vmem:[%s979 + $0x190] sm:$0xff]
        %v1085 = vld [vmem:[%s979 + $0x198] sm:$0xff]
        %v1086 = vld [vmem:[%s979 + $0x1a0] sm:$0xff]
        %v1087 = vld [vmem:[%s979 + $0x1a8] sm:$0xff]
        %v1088 = vld [vmem:[%s979 + $0x1b0] sm:$0xff]
        %v1089 = vld [vmem:[%s979 + $0x1b8] sm:$0xff]
        %v1090 = vld [vmem:[%s979 + $0x1c0] sm:$0xff]
        %v1091 = vld [vmem:[%s979 + $0x1c8] sm:$0xff]
        %v1092 = vld [vmem:[%s979 + $0x1d0] sm:$0xff]
        %v1093 = vld [vmem:[%s979 + $0x1d8] sm:$0xff]
        %v1094 = vld [vmem:[%s979 + $0x1e0] sm:$0xff]
        %v1095 = vld [vmem:[%s979 + $0x1e8] sm:$0xff]
        %v1096 = vld [vmem:[%s979 + $0x1f0] sm:$0xff]
        %v1097 = vld [vmem:[%s979 + $0x1f8] sm:$0xff]
        %v1098 = vld [vmem:[%s979 + $0x200] sm:$0xff]
        %v1099 = vld [vmem:[%s979 + $0x208] sm:$0xff]
        %v1100 = vld [vmem:[%s979 + $0x210] sm:$0xff]
        %v1101 = vld [vmem:[%s979 + $0x218] sm:$0xff]
        %v1102 = vld [vmem:[%s979 + $0x220] sm:$0xff]
        %v1103 = vld [vmem:[%s979 + $0x228] sm:$0xff]
        %v1104 = vld [vmem:[%s979 + $0x230] sm:$0xff]
        %v1105 = vld [vmem:[%s979 + $0x238] sm:$0xff]
        %v1106 = vld [vmem:[%s979 + $0x240] sm:$0xff]
        %v1107 = vld [vmem:[%s979 + $0x248] sm:$0xff]
        %v1108 = vld [vmem:[%s979 + $0x250] sm:$0xff]
        %v1109 = vld [vmem:[%s979 + $0x258] sm:$0xff]
        %v1110 = vld [vmem:[%s979 + $0x260] sm:$0xff]
        %v1111 = vld [vmem:[%s979 + $0x268] sm:$0xff]
        %v1112 = vld [vmem:[%s979 + $0x270] sm:$0xff]
        %v1113 = vld [vmem:[%s979 + $0x278] sm:$0xff]
        %v1114 = vld [vmem:[%s979 + $0x280] sm:$0xff]
        %v1115 = vld [vmem:[%s979 + $0x288] sm:$0xff]
        %v1116 = vld [vmem:[%s979 + $0x290] sm:$0xff]
        %v1117 = vld [vmem:[%s979 + $0x298] sm:$0xff]
        %v1118 = vld [vmem:[%s979 + $0x2a0] sm:$0xff]
        %v1119 = vld [vmem:[%s979 + $0x2a8] sm:$0xff]
        %v1120 = vld [vmem:[%s979 + $0x2b0] sm:$0xff]
        %v1121 = vld [vmem:[%s979 + $0x2b8] sm:$0xff]
        %v1122 = vld [vmem:[%s979 + $0x2c0] sm:$0xff]
        %v1123 = vld [vmem:[%s979 + $0x2c8] sm:$0xff]
        %v1124 = vld [vmem:[%s979 + $0x2d0] sm:$0xff]
        %v1125 = vld [vmem:[%s979 + $0x2d8] sm:$0xff]
        %v1126 = vld [vmem:[%s979 + $0x2e0] sm:$0xff]
        %v1127 = vld [vmem:[%s979 + $0x2e8] sm:$0xff]
        %v1128 = vld [vmem:[%s979 + $0x2f0] sm:$0xff]
        %v1129 = vld [vmem:[%s979 + $0x2f8] sm:$0xff]
        %v1130 = vld [vmem:[%s979 + $0x300] sm:$0xff]
        %v1131 = vld [vmem:[%s979 + $0x308] sm:$0xff]
        %v1132 = vld [vmem:[%s986] sm:$0xff]
        %v1133 = vld [vmem:[%s986 + $0x8] sm:$0xff]
        %v1134 = vld [vmem:[%s986 + $0x10] sm:$0xff]
        %v1135 = vld [vmem:[%s986 + $0x18] sm:$0xff]
        %v1136 = vld [vmem:[%s986 + $0x20] sm:$0xff]
        %v1137 = vld [vmem:[%s986 + $0x28] sm:$0xff]
        %v1138 = vld [vmem:[%s986 + $0x30] sm:$0xff]
        %v1139 = vld [vmem:[%s986 + $0x38] sm:$0xff]
        %v1140 = vld [vmem:[%s986 + $0x40] sm:$0xff]
        %v1141 = vld [vmem:[%s986 + $0x48] sm:$0xff]
        %v1142 = vld [vmem:[%s986 + $0x50] sm:$0xff]
        %v1143 = vld [vmem:[%s986 + $0x58] sm:$0xff]
        %v1144 = vld [vmem:[%s986 + $0x60] sm:$0xff]
        %v1145 = vld [vmem:[%s986 + $0x68] sm:$0xff]
        %v1146 = vld [vmem:[%s986 + $0x70] sm:$0xff]
        %v1147 = vld [vmem:[%s986 + $0x78] sm:$0xff]
        %v1148 = vld [vmem:[%s986 + $0x80] sm:$0xff]
        %v1149 = vld [vmem:[%s986 + $0x88] sm:$0xff]
        %v1150 = vld [vmem:[%s986 + $0x90] sm:$0xff]
        %v1151 = vld [vmem:[%s986 + $0x98] sm:$0xff]
        %v1152 = vld [vmem:[%s986 + $0xa0] sm:$0xff]
        %v1153 = vld [vmem:[%s986 + $0xa8] sm:$0xff]
        %v1154 = vld [vmem:[%s986 + $0xb0] sm:$0xff]
        %v1155 = vld [vmem:[%s986 + $0xb8] sm:$0xff]
        %v1156 = vld [vmem:[%s986 + $0xc0] sm:$0xff]
        %v1157 = vld [vmem:[%s986 + $0xc8] sm:$0xff]
        %v1158 = vld [vmem:[%s986 + $0xd0] sm:$0xff]
        %v1159 = vld [vmem:[%s986 + $0xd8] sm:$0xff]
        %v1160 = vld [vmem:[%s986 + $0xe0] sm:$0xff]
        %v1161 = vld [vmem:[%s986 + $0xe8] sm:$0xff]
        %v1162 = vld [vmem:[%s986 + $0xf0] sm:$0xff]
        %v1163 = vld [vmem:[%s986 + $0xf8] sm:$0xff]
        %v1164 = vld [vmem:[%s986 + $0x100] sm:$0xff]
        %v1165 = vld [vmem:[%s986 + $0x108] sm:$0xff]
        %v1166 = vld [vmem:[%s986 + $0x110] sm:$0xff]
        %v1167 = vld [vmem:[%s986 + $0x118] sm:$0xff]
        %v1168 = vld [vmem:[%s986 + $0x120] sm:$0xff]
        %v1169 = vld [vmem:[%s986 + $0x128] sm:$0xff]
        %v1170 = vld [vmem:[%s986 + $0x130] sm:$0xff]
        %v1171 = vld [vmem:[%s986 + $0x138] sm:$0xff]
        %v1172 = vld [vmem:[%s986 + $0x140] sm:$0xff]
        %v1173 = vld [vmem:[%s986 + $0x148] sm:$0xff]
        %v1174 = vld [vmem:[%s986 + $0x150] sm:$0xff]
        %v1175 = vld [vmem:[%s986 + $0x158] sm:$0xff]
        %v1176 = vld [vmem:[%s986 + $0x160] sm:$0xff]
        %v1177 = vld [vmem:[%s986 + $0x168] sm:$0xff]
        %v1178 = vld [vmem:[%s986 + $0x170] sm:$0xff]
        %v1179 = vld [vmem:[%s986 + $0x178] sm:$0xff]
        %v1180 = vld [vmem:[%s986 + $0x180] sm:$0xff]
        %v1181 = vld [vmem:[%s986 + $0x188] sm:$0xff]
        %v1182 = vld [vmem:[%s986 + $0x190] sm:$0xff]
        %v1183 = vld [vmem:[%s986 + $0x198] sm:$0xff]
        %v1184 = vld [vmem:[%s986 + $0x1a0] sm:$0xff]
        %v1185 = vld [vmem:[%s986 + $0x1a8] sm:$0xff]
        %v1186 = vld [vmem:[%s986 + $0x1b0] sm:$0xff]
        %v1187 = vld [vmem:[%s986 + $0x1b8] sm:$0xff]
        %v1188 = vld [vmem:[%s986 + $0x1c0] sm:$0xff]
        %v1189 = vld [vmem:[%s986 + $0x1c8] sm:$0xff]
        %v1190 = vld [vmem:[%s986 + $0x1d0] sm:$0xff]
        %v1191 = vld [vmem:[%s986 + $0x1d8] sm:$0xff]
        %v1192 = vld [vmem:[%s986 + $0x1e0] sm:$0xff]
        %v1193 = vld [vmem:[%s986 + $0x1e8] sm:$0xff]
        %v1194 = vld [vmem:[%s986 + $0x1f0] sm:$0xff]
        %v1195 = vld [vmem:[%s986 + $0x1f8] sm:$0xff]
        %v1196 = vld [vmem:[%s986 + $0x200] sm:$0xff]
        %v1197 = vld [vmem:[%s986 + $0x208] sm:$0xff]
        %v1198 = vld [vmem:[%s986 + $0x210] sm:$0xff]
        %v1199 = vld [vmem:[%s986 + $0x218] sm:$0xff]
        %v1200 = vld [vmem:[%s986 + $0x220] sm:$0xff]
        %v1201 = vld [vmem:[%s986 + $0x228] sm:$0xff]
        %v1202 = vld [vmem:[%s986 + $0x230] sm:$0xff]
        %v1203 = vld [vmem:[%s986 + $0x238] sm:$0xff]
        %v1204 = vld [vmem:[%s986 + $0x240] sm:$0xff]
        %v1205 = vld [vmem:[%s986 + $0x248] sm:$0xff]
        %v1206 = vld [vmem:[%s986 + $0x250] sm:$0xff]
        %v1207 = vld [vmem:[%s986 + $0x258] sm:$0xff]
        %v1208 = vld [vmem:[%s986 + $0x260] sm:$0xff]
        %v1209 = vld [vmem:[%s986 + $0x268] sm:$0xff]
        %v1210 = vld [vmem:[%s986 + $0x270] sm:$0xff]
        %v1211 = vld [vmem:[%s986 + $0x278] sm:$0xff]
        %v1212 = vld [vmem:[%s986 + $0x280] sm:$0xff]
        %v1213 = vld [vmem:[%s986 + $0x288] sm:$0xff]
        %v1214 = vld [vmem:[%s986 + $0x290] sm:$0xff]
        %v1215 = vld [vmem:[%s986 + $0x298] sm:$0xff]
        %v1216 = vld [vmem:[%s986 + $0x2a0] sm:$0xff]
        %v1217 = vld [vmem:[%s986 + $0x2a8] sm:$0xff]
        %v1218 = vld [vmem:[%s986 + $0x2b0] sm:$0xff]
        %v1219 = vld [vmem:[%s986 + $0x2b8] sm:$0xff]
        %v1220 = vld [vmem:[%s986 + $0x2c0] sm:$0xff]
        %v1221 = vld [vmem:[%s986 + $0x2c8] sm:$0xff]
        %v1222 = vld [vmem:[%s986 + $0x2d0] sm:$0xff]
        %v1223 = vld [vmem:[%s986 + $0x2d8] sm:$0xff]
        %v1224 = vld [vmem:[%s986 + $0x2e0] sm:$0xff]
        %v1225 = vld [vmem:[%s986 + $0x2e8] sm:$0xff]
        %v1226 = vld [vmem:[%s986 + $0x2f0] sm:$0xff]
        %v1227 = vld [vmem:[%s986 + $0x2f8] sm:$0xff]
        %v1228 = vld [vmem:[%s986 + $0x300] sm:$0xff]
        %v1229 = vld [vmem:[%s986 + $0x308] sm:$0xff]
        %v1230 = vld [vmem:[%s986 + $0x310] sm:$0xff]
        %v1231 = vld [vmem:[%s986 + $0x318] sm:$0xff]
        %v1232 = vld [vmem:[%s986 + $0x320] sm:$0xff]
        %v1233 = vld [vmem:[%s986 + $0x328] sm:$0xff]
        %v1234 = vld [vmem:[%s986 + $0x330] sm:$0xff]
        %v1235 = vld [vmem:[%s986 + $0x338] sm:$0xff]
        %v1236 = vld [vmem:[%s986 + $0x340] sm:$0xff]
        %v1237 = vld [vmem:[%s986 + $0x348] sm:$0xff]
        %v1238 = vld [vmem:[%s986 + $0x350] sm:$0xff]
        %v1239 = vld [vmem:[%s986 + $0x358] sm:$0xff]
        %v1240 = vld [vmem:[%s986 + $0x360] sm:$0xff]
        %v1241 = vld [vmem:[%s986 + $0x368] sm:$0xff]
        %v1242 = vld [vmem:[%s986 + $0x370] sm:$0xff]
        %v1243 = vld [vmem:[%s986 + $0x378] sm:$0xff]
        %v1244 = vld [vmem:[%s986 + $0x380] sm:$0xff]
        %v1245 = vld [vmem:[%s986 + $0x388] sm:$0xff]
        %v1246 = vld [vmem:[%s986 + $0x390] sm:$0xff]
        %v1247 = vld [vmem:[%s986 + $0x398] sm:$0xff]
        %v1248 = vld [vmem:[%s986 + $0x3a0] sm:$0xff]
        %v1249 = vld [vmem:[%s986 + $0x3a8] sm:$0xff]
        %v1250 = vld [vmem:[%s986 + $0x3b0] sm:$0xff]
        %v1251 = vld [vmem:[%s986 + $0x3b8] sm:$0xff]
        %v1252 = vld [vmem:[%s986 + $0x3c0] sm:$0xff]
        %v1253 = vld [vmem:[%s986 + $0x3c8] sm:$0xff]
        %v1254 = vld [vmem:[%s986 + $0x3d0] sm:$0xff]
        %v1255 = vld [vmem:[%s986 + $0x3d8] sm:$0xff]
        %v1256 = vld [vmem:[%s986 + $0x3e0] sm:$0xff]
        %v1257 = vld [vmem:[%s986 + $0x3e8] sm:$0xff]
        %v1258 = vld [vmem:[%s986 + $0x3f0] sm:$0xff]
        %v1259 = vld [vmem:[%s986 + $0x3f8] sm:$0xff]
        %v1260 = vld [vmem:[%s986 + $0x400] sm:$0xff]
        %v1261 = vld [vmem:[%s986 + $0x408] sm:$0xff]
        %v1262 = vld [vmem:[%s986 + $0x410] sm:$0xff]
        %v1263 = vld [vmem:[%s986 + $0x418] sm:$0xff]
        %v1264 = vld [vmem:[%s986 + $0x420] sm:$0xff]
        %v1265 = vld [vmem:[%s986 + $0x428] sm:$0xff]
        %v1266 = vld [vmem:[%s986 + $0x430] sm:$0xff]
        %v1267 = vld [vmem:[%s986 + $0x438] sm:$0xff]
        %v1268 = vld [vmem:[%s986 + $0x440] sm:$0xff]
        %v1269 = vld [vmem:[%s986 + $0x448] sm:$0xff]
        %v1270 = vld [vmem:[%s986 + $0x450] sm:$0xff]
        %v1271 = vld [vmem:[%s986 + $0x458] sm:$0xff]
        %v1272 = vld [vmem:[%s986 + $0x460] sm:$0xff]
        %v1273 = vld [vmem:[%s986 + $0x468] sm:$0xff]
        %v1274 = vld [vmem:[%s986 + $0x470] sm:$0xff]
        %v1275 = vld [vmem:[%s986 + $0x478] sm:$0xff]
        %v1276 = vld [vmem:[%s986 + $0x480] sm:$0xff]
        %v1277 = vld [vmem:[%s986 + $0x488] sm:$0xff]
        %v1278 = vld [vmem:[%s986 + $0x490] sm:$0xff]
        %v1279 = vld [vmem:[%s986 + $0x498] sm:$0xff]
        %v1280 = vld [vmem:[%s986 + $0x4a0] sm:$0xff]
        %v1281 = vld [vmem:[%s986 + $0x4a8] sm:$0xff]
        %v1282 = vld [vmem:[%s986 + $0x4b0] sm:$0xff]
        %v1283 = vld [vmem:[%s986 + $0x4b8] sm:$0xff]
        %v1284 = vld [vmem:[%s986 + $0x4c0] sm:$0xff]
        %v1285 = vld [vmem:[%s986 + $0x4c8] sm:$0xff]
        %v1286 = vld [vmem:[%s986 + $0x4d0] sm:$0xff]
        %v1287 = vld [vmem:[%s986 + $0x4d8] sm:$0xff]
        %v1288 = vld [vmem:[%s986 + $0x4e0] sm:$0xff]
        %v1289 = vld [vmem:[%s986 + $0x4e8] sm:$0xff]
        %v1290 = vld [vmem:[%s986 + $0x4f0] sm:$0xff]
        %v1291 = vld [vmem:[%s986 + $0x4f8] sm:$0xff]
        %v1292 = vld [vmem:[%s986 + $0x500] sm:$0xff]
        %v1293 = vld [vmem:[%s986 + $0x508] sm:$0xff]
        %v1294 = vld [vmem:[%s986 + $0x510] sm:$0xff]
        %v1295 = vld [vmem:[%s986 + $0x518] sm:$0xff]
        %v1296 = vld [vmem:[%s986 + $0x520] sm:$0xff]
        %v1297 = vld [vmem:[%s986 + $0x528] sm:$0xff]
        %v1298 = vld [vmem:[%s986 + $0x530] sm:$0xff]
        %v1299 = vld [vmem:[%s986 + $0x538] sm:$0xff]
        %v1300 = vld [vmem:[%s986 + $0x540] sm:$0xff]
        %v1301 = vld [vmem:[%s986 + $0x548] sm:$0xff]
        %v1302 = vld [vmem:[%s986 + $0x550] sm:$0xff]
        %v1303 = vld [vmem:[%s986 + $0x558] sm:$0xff]
        %v1304 = vld [vmem:[%s986 + $0x560] sm:$0xff]
        %v1305 = vld [vmem:[%s986 + $0x568] sm:$0xff]
        %v1306 = vld [vmem:[%s986 + $0x570] sm:$0xff]
        %v1307 = vld [vmem:[%s986 + $0x578] sm:$0xff]
        %v1308 = vld [vmem:[%s986 + $0x580] sm:$0xff]
        %v1309 = vld [vmem:[%s986 + $0x588] sm:$0xff]
        %v1310 = vld [vmem:[%s986 + $0x590] sm:$0xff]
        %v1311 = vld [vmem:[%s986 + $0x598] sm:$0xff]
        %v1312 = vld [vmem:[%s986 + $0x5a0] sm:$0xff]
        %v1313 = vld [vmem:[%s986 + $0x5a8] sm:$0xff]
        %v1314 = vld [vmem:[%s986 + $0x5b0] sm:$0xff]
        %v1315 = vld [vmem:[%s986 + $0x5b8] sm:$0xff]
        %v1316 = vld [vmem:[%s986 + $0x5c0] sm:$0xff]
        %v1317 = vld [vmem:[%s986 + $0x5c8] sm:$0xff]
        %v1318 = vld [vmem:[%s986 + $0x5d0] sm:$0xff]
        %v1319 = vld [vmem:[%s986 + $0x5d8] sm:$0xff]
        %v1320 = vld [vmem:[%s986 + $0x5e0] sm:$0xff]
        %v1321 = vld [vmem:[%s986 + $0x5e8] sm:$0xff]
        %v1322 = vld [vmem:[%s986 + $0x5f0] sm:$0xff]
        %v1323 = vld [vmem:[%s986 + $0x5f8] sm:$0xff]
        %v1324 = vld [vmem:[%s986 + $0x600] sm:$0xff]
        %v1325 = vld [vmem:[%s986 + $0x608] sm:$0xff]
        %v1326 = vld [vmem:[%s986 + $0x610] sm:$0xff]
        %v1327 = vld [vmem:[%s986 + $0x618] sm:$0xff]
        %v1328 = vld [vmem:[%s986 + $0x620] sm:$0xff]
        %v1329 = vld [vmem:[%s986 + $0x628] sm:$0xff]
        %v1330 = vld [vmem:[%s986 + $0x630] sm:$0xff]
        %v1331 = vld [vmem:[%s986 + $0x638] sm:$0xff]
        %v1332 = vld [vmem:[%s986 + $0x640] sm:$0xff]
        %v1333 = vld [vmem:[%s986 + $0x648] sm:$0xff]
        %v1334 = vld [vmem:[%s986 + $0x650] sm:$0xff]
        %v1335 = vld [vmem:[%s986 + $0x658] sm:$0xff]
        %v1336 = vld [vmem:[%s986 + $0x660] sm:$0xff]
        %v1337 = vld [vmem:[%s986 + $0x668] sm:$0xff]
        %v1338 = vld [vmem:[%s986 + $0x670] sm:$0xff]
        %v1339 = vld [vmem:[%s986 + $0x678] sm:$0xff]
        %v1340 = vld [vmem:[%s986 + $0x680] sm:$0xff]
        %v1341 = vld [vmem:[%s986 + $0x688] sm:$0xff]
        %v1342 = vld [vmem:[%s986 + $0x690] sm:$0xff]
        %v1343 = vld [vmem:[%s986 + $0x698] sm:$0xff]
        %v1344 = vld [vmem:[%s986 + $0x6a0] sm:$0xff]
        %v1345 = vld [vmem:[%s986 + $0x6a8] sm:$0xff]
        %v1346 = vld [vmem:[%s986 + $0x6b0] sm:$0xff]
        %v1347 = vld [vmem:[%s986 + $0x6b8] sm:$0xff]
        %v1348 = vld [vmem:[%s986 + $0x6c0] sm:$0xff]
        %v1349 = vld [vmem:[%s986 + $0x6c8] sm:$0xff]
        %v1350 = vld [vmem:[%s986 + $0x6d0] sm:$0xff]
        %v1351 = vld [vmem:[%s986 + $0x6d8] sm:$0xff]
        %v1352 = vld [vmem:[%s986 + $0x6e0] sm:$0xff]
        %v1353 = vld [vmem:[%s986 + $0x6e8] sm:$0xff]
        %v1354 = vld [vmem:[%s986 + $0x6f0] sm:$0xff]
        %v1355 = vld [vmem:[%s986 + $0x6f8] sm:$0xff]
        %v1356 = vld [vmem:[%s986 + $0x700] sm:$0xff]
        %v1357 = vld [vmem:[%s986 + $0x708] sm:$0xff]
        %v1358 = vld [vmem:[%s986 + $0x710] sm:$0xff]
        %v1359 = vld [vmem:[%s986 + $0x718] sm:$0xff]
        %v1360 = vld [vmem:[%s986 + $0x720] sm:$0xff]
        %v1361 = vld [vmem:[%s986 + $0x728] sm:$0xff]
        %v1362 = vld [vmem:[%s986 + $0x730] sm:$0xff]
        %v1363 = vld [vmem:[%s986 + $0x738] sm:$0xff]
        %v1364 = vld [vmem:[%s986 + $0x740] sm:$0xff]
        %v1365 = vld [vmem:[%s986 + $0x748] sm:$0xff]
        %v1366 = vld [vmem:[%s986 + $0x750] sm:$0xff]
        %v1367 = vld [vmem:[%s986 + $0x758] sm:$0xff]
        %v1368 = vld [vmem:[%s986 + $0x760] sm:$0xff]
        %v1369 = vld [vmem:[%s986 + $0x768] sm:$0xff]
        %v1370 = vld [vmem:[%s986 + $0x770] sm:$0xff]
        %v1371 = vld [vmem:[%s986 + $0x778] sm:$0xff]
        %v1372 = vld [vmem:[%s986 + $0x780] sm:$0xff]
        %v1373 = vld [vmem:[%s986 + $0x788] sm:$0xff]
        %v1374 = vld [vmem:[%s986 + $0x790] sm:$0xff]
        %v1375 = vld [vmem:[%s986 + $0x798] sm:$0xff]
        %v1376 = vld [vmem:[%s986 + $0x7a0] sm:$0xff]
        %v1377 = vld [vmem:[%s986 + $0x7a8] sm:$0xff]
        %v1378 = vld [vmem:[%s986 + $0x7b0] sm:$0xff]
        %v1379 = vld [vmem:[%s986 + $0x7b8] sm:$0xff]
        %v1380 = vld [vmem:[%s986 + $0x7c0] sm:$0xff]
        %v1381 = vld [vmem:[%s986 + $0x7c8] sm:$0xff]
        %v1382 = vld [vmem:[%s986 + $0x7d0] sm:$0xff]
        %v1383 = vld [vmem:[%s986 + $0x7d8] sm:$0xff]
        %v1384 = vld [vmem:[%s986 + $0x7e0] sm:$0xff]
        %v1385 = vld [vmem:[%s986 + $0x7e8] sm:$0xff]
        %v1386 = vld [vmem:[%s986 + $0x7f0] sm:$0xff]
        %v1387 = vld [vmem:[%s986 + $0x7f8] sm:$0xff]
        %v1486 = vunpack.c.l.b16 %v1034
        %v1487 = vunpack.c.h.b16 %v1034
        %v1488 = vunpack.c.l.b16 %v1035
        %v1489 = vunpack.c.h.b16 %v1035
        %v1490 = vunpack.c.l.b16 %v1036
        %v1491 = vunpack.c.h.b16 %v1036
        %v1492 = vunpack.c.l.b16 %v1037
        %v1493 = vunpack.c.h.b16 %v1037
        %v1494 = vunpack.c.l.b16 %v1038
        %v1495 = vunpack.c.h.b16 %v1038
        %v1496 = vunpack.c.l.b16 %v1039
        %v1497 = vunpack.c.h.b16 %v1039
        %v1498 = vunpack.c.l.b16 %v1040
        %v1499 = vunpack.c.h.b16 %v1040
        %v1500 = vunpack.c.l.b16 %v1041
        %v1501 = vunpack.c.h.b16 %v1041
        %v1502 = vunpack.c.l.b16 %v1042
        %v1503 = vunpack.c.h.b16 %v1042
        %v1504 = vunpack.c.l.b16 %v1043
        %v1505 = vunpack.c.h.b16 %v1043
        %v1506 = vunpack.c.l.b16 %v1044
        %v1507 = vunpack.c.h.b16 %v1044
        %v1508 = vunpack.c.l.b16 %v1045
        %v1509 = vunpack.c.h.b16 %v1045
        %v1510 = vunpack.c.l.b16 %v1046
        %v1511 = vunpack.c.h.b16 %v1046
        %v1512 = vunpack.c.l.b16 %v1047
        %v1513 = vunpack.c.h.b16 %v1047
        %v1514 = vunpack.c.l.b16 %v1048
        %v1515 = vunpack.c.h.b16 %v1048
        %v1516 = vunpack.c.l.b16 %v1049
        %v1517 = vunpack.c.h.b16 %v1049
        %v1518 = vunpack.c.l.b16 %v1050
        %v1519 = vunpack.c.h.b16 %v1050
        %v1520 = vunpack.c.l.b16 %v1051
        %v1521 = vunpack.c.h.b16 %v1051
        %v1522 = vunpack.c.l.b16 %v1052
        %v1523 = vunpack.c.h.b16 %v1052
        %v1524 = vunpack.c.l.b16 %v1053
        %v1525 = vunpack.c.h.b16 %v1053
        %v1526 = vunpack.c.l.b16 %v1054
        %v1527 = vunpack.c.h.b16 %v1054
        %v1528 = vunpack.c.l.b16 %v1055
        %v1529 = vunpack.c.h.b16 %v1055
        %v1530 = vunpack.c.l.b16 %v1056
        %v1531 = vunpack.c.h.b16 %v1056
        %v1532 = vunpack.c.l.b16 %v1057
        %v1533 = vunpack.c.h.b16 %v1057
        %v1534 = vunpack.c.l.b16 %v1058
        %v1535 = vunpack.c.h.b16 %v1058
        %v1536 = vunpack.c.l.b16 %v1059
        %v1537 = vunpack.c.h.b16 %v1059
        %v1538 = vunpack.c.l.b16 %v1060
        %v1539 = vunpack.c.h.b16 %v1060
        %v1540 = vunpack.c.l.b16 %v1061
        %v1541 = vunpack.c.h.b16 %v1061
        %v1542 = vunpack.c.l.b16 %v1062
        %v1543 = vunpack.c.h.b16 %v1062
        %v1544 = vunpack.c.l.b16 %v1063
        %v1545 = vunpack.c.h.b16 %v1063
        %v1546 = vunpack.c.l.b16 %v1064
        %v1547 = vunpack.c.h.b16 %v1064
        %v1548 = vunpack.c.l.b16 %v1065
        %v1549 = vunpack.c.h.b16 %v1065
        %v1550 = vunpack.c.l.b16 %v1066
        %v1551 = vunpack.c.h.b16 %v1066
        %v1552 = vunpack.c.l.b16 %v1067
        %v1553 = vunpack.c.h.b16 %v1067
        %v1554 = vunpack.c.l.b16 %v1068
        %v1555 = vunpack.c.h.b16 %v1068
        %v1556 = vunpack.c.l.b16 %v1069
        %v1557 = vunpack.c.h.b16 %v1069
        %v1558 = vunpack.c.l.b16 %v1070
        %v1559 = vunpack.c.h.b16 %v1070
        %v1560 = vunpack.c.l.b16 %v1071
        %v1561 = vunpack.c.h.b16 %v1071
        %v1562 = vunpack.c.l.b16 %v1072
        %v1563 = vunpack.c.h.b16 %v1072
        %v1564 = vunpack.c.l.b16 %v1073
        %v1565 = vunpack.c.h.b16 %v1073
        %v1566 = vunpack.c.l.b16 %v1074
        %v1567 = vunpack.c.h.b16 %v1074
        %v1568 = vunpack.c.l.b16 %v1075
        %v1569 = vunpack.c.h.b16 %v1075
        %v1570 = vunpack.c.l.b16 %v1076
        %v1571 = vunpack.c.h.b16 %v1076
        %v1572 = vunpack.c.l.b16 %v1077
        %v1573 = vunpack.c.h.b16 %v1077
        %v1574 = vunpack.c.l.b16 %v1078
        %v1575 = vunpack.c.h.b16 %v1078
        %v1576 = vunpack.c.l.b16 %v1079
        %v1577 = vunpack.c.h.b16 %v1079
        %v1578 = vunpack.c.l.b16 %v1080
        %v1579 = vunpack.c.h.b16 %v1080
        %v1580 = vunpack.c.l.b16 %v1081
        %v1581 = vunpack.c.h.b16 %v1081
        %v1582 = vunpack.c.l.b16 %v1082
        %v1583 = vunpack.c.h.b16 %v1082
        %v1584 = vunpack.c.l.b16 %v1083
        %v1585 = vunpack.c.h.b16 %v1083
        %v1586 = vunpack.c.l.b16 %v1084
        %v1587 = vunpack.c.h.b16 %v1084
        %v1588 = vunpack.c.l.b16 %v1085
        %v1589 = vunpack.c.h.b16 %v1085
        %v1590 = vunpack.c.l.b16 %v1086
        %v1591 = vunpack.c.h.b16 %v1086
        %v1592 = vunpack.c.l.b16 %v1087
        %v1593 = vunpack.c.h.b16 %v1087
        %v1594 = vunpack.c.l.b16 %v1088
        %v1595 = vunpack.c.h.b16 %v1088
        %v1596 = vunpack.c.l.b16 %v1089
        %v1597 = vunpack.c.h.b16 %v1089
        %v1598 = vunpack.c.l.b16 %v1090
        %v1599 = vunpack.c.h.b16 %v1090
        %v1600 = vunpack.c.l.b16 %v1091
        %v1601 = vunpack.c.h.b16 %v1091
        %v1602 = vunpack.c.l.b16 %v1092
        %v1603 = vunpack.c.h.b16 %v1092
        %v1604 = vunpack.c.l.b16 %v1093
        %v1605 = vunpack.c.h.b16 %v1093
        %v1606 = vunpack.c.l.b16 %v1094
        %v1607 = vunpack.c.h.b16 %v1094
        %v1608 = vunpack.c.l.b16 %v1095
        %v1609 = vunpack.c.h.b16 %v1095
        %v1610 = vunpack.c.l.b16 %v1096
        %v1611 = vunpack.c.h.b16 %v1096
        %v1612 = vunpack.c.l.b16 %v1097
        %v1613 = vunpack.c.h.b16 %v1097
        %v1614 = vunpack.c.l.b16 %v1098
        %v1615 = vunpack.c.h.b16 %v1098
        %v1616 = vunpack.c.l.b16 %v1099
        %v1617 = vunpack.c.h.b16 %v1099
        %v1618 = vunpack.c.l.b16 %v1100
        %v1619 = vunpack.c.h.b16 %v1100
        %v1620 = vunpack.c.l.b16 %v1101
        %v1621 = vunpack.c.h.b16 %v1101
        %v1622 = vunpack.c.l.b16 %v1102
        %v1623 = vunpack.c.h.b16 %v1102
        %v1624 = vunpack.c.l.b16 %v1103
        %v1625 = vunpack.c.h.b16 %v1103
        %v1626 = vunpack.c.l.b16 %v1104
        %v1627 = vunpack.c.h.b16 %v1104
        %v1628 = vunpack.c.l.b16 %v1105
        %v1629 = vunpack.c.h.b16 %v1105
        %v1630 = vunpack.c.l.b16 %v1106
        %v1631 = vunpack.c.h.b16 %v1106
        %v1632 = vunpack.c.l.b16 %v1107
        %v1633 = vunpack.c.h.b16 %v1107
        %v1634 = vunpack.c.l.b16 %v1108
        %v1635 = vunpack.c.h.b16 %v1108
        %v1636 = vunpack.c.l.b16 %v1109
        %v1637 = vunpack.c.h.b16 %v1109
        %v1638 = vunpack.c.l.b16 %v1110
        %v1639 = vunpack.c.h.b16 %v1110
        %v1640 = vunpack.c.l.b16 %v1111
        %v1641 = vunpack.c.h.b16 %v1111
        %v1642 = vunpack.c.l.b16 %v1112
        %v1643 = vunpack.c.h.b16 %v1112
        %v1644 = vunpack.c.l.b16 %v1113
        %v1645 = vunpack.c.h.b16 %v1113
        %v1646 = vunpack.c.l.b16 %v1114
        %v1647 = vunpack.c.h.b16 %v1114
        %v1648 = vunpack.c.l.b16 %v1115
        %v1649 = vunpack.c.h.b16 %v1115
        %v1650 = vunpack.c.l.b16 %v1116
        %v1651 = vunpack.c.h.b16 %v1116
        %v1652 = vunpack.c.l.b16 %v1117
        %v1653 = vunpack.c.h.b16 %v1117
        %v1654 = vunpack.c.l.b16 %v1118
        %v1655 = vunpack.c.h.b16 %v1118
        %v1656 = vunpack.c.l.b16 %v1119
        %v1657 = vunpack.c.h.b16 %v1119
        %v1658 = vunpack.c.l.b16 %v1120
        %v1659 = vunpack.c.h.b16 %v1120
        %v1660 = vunpack.c.l.b16 %v1121
        %v1661 = vunpack.c.h.b16 %v1121
        %v1662 = vunpack.c.l.b16 %v1122
        %v1663 = vunpack.c.h.b16 %v1122
        %v1664 = vunpack.c.l.b16 %v1123
        %v1665 = vunpack.c.h.b16 %v1123
        %v1666 = vunpack.c.l.b16 %v1124
        %v1667 = vunpack.c.h.b16 %v1124
        %v1668 = vunpack.c.l.b16 %v1125
        %v1669 = vunpack.c.h.b16 %v1125
        %v1670 = vunpack.c.l.b16 %v1126
        %v1671 = vunpack.c.h.b16 %v1126
        %v1672 = vunpack.c.l.b16 %v1127
        %v1673 = vunpack.c.h.b16 %v1127
        %v1674 = vunpack.c.l.b16 %v1128
        %v1675 = vunpack.c.h.b16 %v1128
        %v1676 = vunpack.c.l.b16 %v1129
        %v1677 = vunpack.c.h.b16 %v1129
        %v1678 = vunpack.c.l.b16 %v1130
        %v1679 = vunpack.c.h.b16 %v1130
        %v1680 = vunpack.c.l.b16 %v1131
        %v1681 = vunpack.c.h.b16 %v1131
        %v1682 = vpack.c.b16 %v1490, %v1486
        %v1683 = vpack.c.b16 %v1491, %v1487
        %v1684 = vpack.c.b16 %v1492, %v1488
        %v1685 = vpack.c.b16 %v1493, %v1489
        %v1686 = vpack.c.b16 %v1498, %v1494
        %v1687 = vpack.c.b16 %v1499, %v1495
        %v1688 = vpack.c.b16 %v1500, %v1496
        %v1689 = vpack.c.b16 %v1501, %v1497
        %v1690 = vpack.c.b16 %v1506, %v1502
        %v1691 = vpack.c.b16 %v1507, %v1503
        %v1692 = vpack.c.b16 %v1508, %v1504
        %v1693 = vpack.c.b16 %v1509, %v1505
        %v1694 = vpack.c.b16 %v1514, %v1510
        %v1695 = vpack.c.b16 %v1515, %v1511
        %v1696 = vpack.c.b16 %v1516, %v1512
        %v1697 = vpack.c.b16 %v1517, %v1513
        %v1698 = vpack.c.b16 %v1522, %v1518
        %v1699 = vpack.c.b16 %v1523, %v1519
        %v1700 = vpack.c.b16 %v1524, %v1520
        %v1701 = vpack.c.b16 %v1525, %v1521
        %v1702 = vpack.c.b16 %v1530, %v1526
        %v1703 = vpack.c.b16 %v1531, %v1527
        %v1704 = vpack.c.b16 %v1532, %v1528
        %v1705 = vpack.c.b16 %v1533, %v1529
        %v1706 = vpack.c.b16 %v1538, %v1534
        %v1707 = vpack.c.b16 %v1539, %v1535
        %v1708 = vpack.c.b16 %v1540, %v1536
        %v1709 = vpack.c.b16 %v1541, %v1537
        %v1710 = vpack.c.b16 %v1546, %v1542
        %v1711 = vpack.c.b16 %v1547, %v1543
        %v1712 = vpack.c.b16 %v1548, %v1544
        %v1713 = vpack.c.b16 %v1549, %v1545
        %v1714 = vpack.c.b16 %v1554, %v1550
        %v1715 = vpack.c.b16 %v1555, %v1551
        %v1716 = vpack.c.b16 %v1556, %v1552
        %v1717 = vpack.c.b16 %v1557, %v1553
        %v1718 = vpack.c.b16 %v1562, %v1558
        %v1719 = vpack.c.b16 %v1563, %v1559
        %v1720 = vpack.c.b16 %v1564, %v1560
        %v1721 = vpack.c.b16 %v1565, %v1561
        %v1722 = vpack.c.b16 %v1570, %v1566
        %v1723 = vpack.c.b16 %v1571, %v1567
        %v1724 = vpack.c.b16 %v1572, %v1568
        %v1725 = vpack.c.b16 %v1573, %v1569
        %v1726 = vpack.c.b16 %v1578, %v1574
        %v1727 = vpack.c.b16 %v1579, %v1575
        %v1728 = vpack.c.b16 %v1580, %v1576
        %v1729 = vpack.c.b16 %v1581, %v1577
        %v1730 = vpack.c.b16 %v1586, %v1582
        %v1731 = vpack.c.b16 %v1587, %v1583
        %v1732 = vpack.c.b16 %v1588, %v1584
        %v1733 = vpack.c.b16 %v1589, %v1585
        %v1734 = vpack.c.b16 %v1594, %v1590
        %v1735 = vpack.c.b16 %v1595, %v1591
        %v1736 = vpack.c.b16 %v1596, %v1592
        %v1737 = vpack.c.b16 %v1597, %v1593
        %v1738 = vpack.c.b16 %v1602, %v1598
        %v1739 = vpack.c.b16 %v1603, %v1599
        %v1740 = vpack.c.b16 %v1604, %v1600
        %v1741 = vpack.c.b16 %v1605, %v1601
        %v1742 = vpack.c.b16 %v1610, %v1606
        %v1743 = vpack.c.b16 %v1611, %v1607
        %v1744 = vpack.c.b16 %v1612, %v1608
        %v1745 = vpack.c.b16 %v1613, %v1609
        %v1746 = vpack.c.b16 %v1618, %v1614
        %v1747 = vpack.c.b16 %v1619, %v1615
        %v1748 = vpack.c.b16 %v1620, %v1616
        %v1749 = vpack.c.b16 %v1621, %v1617
        %v1750 = vpack.c.b16 %v1626, %v1622
        %v1751 = vpack.c.b16 %v1627, %v1623
        %v1752 = vpack.c.b16 %v1628, %v1624
        %v1753 = vpack.c.b16 %v1629, %v1625
        %v1754 = vpack.c.b16 %v1634, %v1630
        %v1755 = vpack.c.b16 %v1635, %v1631
        %v1756 = vpack.c.b16 %v1636, %v1632
        %v1757 = vpack.c.b16 %v1637, %v1633
        %v1758 = vpack.c.b16 %v1642, %v1638
        %v1759 = vpack.c.b16 %v1643, %v1639
        %v1760 = vpack.c.b16 %v1644, %v1640
        %v1761 = vpack.c.b16 %v1645, %v1641
        %v1762 = vpack.c.b16 %v1650, %v1646
        %v1763 = vpack.c.b16 %v1651, %v1647
        %v1764 = vpack.c.b16 %v1652, %v1648
        %v1765 = vpack.c.b16 %v1653, %v1649
        %v1766 = vpack.c.b16 %v1658, %v1654
        %v1767 = vpack.c.b16 %v1659, %v1655
        %v1768 = vpack.c.b16 %v1660, %v1656
        %v1769 = vpack.c.b16 %v1661, %v1657
        %v1770 = vpack.c.b16 %v1666, %v1662
        %v1771 = vpack.c.b16 %v1667, %v1663
        %v1772 = vpack.c.b16 %v1668, %v1664
        %v1773 = vpack.c.b16 %v1669, %v1665
        %v1774 = vpack.c.b16 %v1674, %v1670
        %v1775 = vpack.c.b16 %v1675, %v1671
        %v1776 = vpack.c.b16 %v1676, %v1672
        %v1777 = vpack.c.b16 %v1677, %v1673
        %v1778 = vpack.c.b16 %v1678, %v1678
        %v1779 = vpack.c.b16 %v1679, %v1679
        %v1780 = vpack.c.b16 %v1680, %v1680
        %v1781 = vpack.c.b16 %v1681, %v1681
        %v2138 = vunpack.c.l.b16 %v1132
        %v2139 = vunpack.c.h.b16 %v1132
        %v2140 = vunpack.c.l.b16 %v1133
        %v2141 = vunpack.c.h.b16 %v1133
        %v2142 = vunpack.c.l.b16 %v1134
        %v2143 = vunpack.c.h.b16 %v1134
        %v2144 = vunpack.c.l.b16 %v1135
        %v2145 = vunpack.c.h.b16 %v1135
        %v2146 = vunpack.c.l.b16 %v1136
        %v2147 = vunpack.c.h.b16 %v1136
        %v2148 = vunpack.c.l.b16 %v1137
        %v2149 = vunpack.c.h.b16 %v1137
        %v2150 = vunpack.c.l.b16 %v1138
        %v2151 = vunpack.c.h.b16 %v1138
        %v2152 = vunpack.c.l.b16 %v1139
        %v2153 = vunpack.c.h.b16 %v1139
        %v2154 = vunpack.c.l.b16 %v1140
        %v2155 = vunpack.c.h.b16 %v1140
        %v2156 = vunpack.c.l.b16 %v1141
        %v2157 = vunpack.c.h.b16 %v1141
        %v2158 = vunpack.c.l.b16 %v1142
        %v2159 = vunpack.c.h.b16 %v1142
        %v2160 = vunpack.c.l.b16 %v1143
        %v2161 = vunpack.c.h.b16 %v1143
        %v2162 = vunpack.c.l.b16 %v1144
        %v2163 = vunpack.c.h.b16 %v1144
        %v2164 = vunpack.c.l.b16 %v1145
        %v2165 = vunpack.c.h.b16 %v1145
        %v2166 = vunpack.c.l.b16 %v1146
        %v2167 = vunpack.c.h.b16 %v1146
        %v2168 = vunpack.c.l.b16 %v1147
        %v2169 = vunpack.c.h.b16 %v1147
        %v2170 = vunpack.c.l.b16 %v1148
        %v2171 = vunpack.c.h.b16 %v1148
        %v2172 = vunpack.c.l.b16 %v1149
        %v2173 = vunpack.c.h.b16 %v1149
        %v2174 = vunpack.c.l.b16 %v1150
        %v2175 = vunpack.c.h.b16 %v1150
        %v2176 = vunpack.c.l.b16 %v1151
        %v2177 = vunpack.c.h.b16 %v1151
        %v2178 = vunpack.c.l.b16 %v1152
        %v2179 = vunpack.c.h.b16 %v1152
        %v2180 = vunpack.c.l.b16 %v1153
        %v2181 = vunpack.c.h.b16 %v1153
        %v2182 = vunpack.c.l.b16 %v1154
        %v2183 = vunpack.c.h.b16 %v1154
        %v2184 = vunpack.c.l.b16 %v1155
        %v2185 = vunpack.c.h.b16 %v1155
        %v2186 = vunpack.c.l.b16 %v1156
        %v2187 = vunpack.c.h.b16 %v1156
        %v2188 = vunpack.c.l.b16 %v1157
        %v2189 = vunpack.c.h.b16 %v1157
        %v2190 = vunpack.c.l.b16 %v1158
        %v2191 = vunpack.c.h.b16 %v1158
        %v2192 = vunpack.c.l.b16 %v1159
        %v2193 = vunpack.c.h.b16 %v1159
        %v2194 = vunpack.c.l.b16 %v1160
        %v2195 = vunpack.c.h.b16 %v1160
        %v2196 = vunpack.c.l.b16 %v1161
        %v2197 = vunpack.c.h.b16 %v1161
        %v2198 = vunpack.c.l.b16 %v1162
        %v2199 = vunpack.c.h.b16 %v1162
        %v2200 = vunpack.c.l.b16 %v1163
        %v2201 = vunpack.c.h.b16 %v1163
        %v2202 = vunpack.c.l.b16 %v1164
        %v2203 = vunpack.c.h.b16 %v1164
        %v2204 = vunpack.c.l.b16 %v1165
        %v2205 = vunpack.c.h.b16 %v1165
        %v2206 = vunpack.c.l.b16 %v1166
        %v2207 = vunpack.c.h.b16 %v1166
        %v2208 = vunpack.c.l.b16 %v1167
        %v2209 = vunpack.c.h.b16 %v1167
        %v2210 = vunpack.c.l.b16 %v1168
        %v2211 = vunpack.c.h.b16 %v1168
        %v2212 = vunpack.c.l.b16 %v1169
        %v2213 = vunpack.c.h.b16 %v1169
        %v2214 = vunpack.c.l.b16 %v1170
        %v2215 = vunpack.c.h.b16 %v1170
        %v2216 = vunpack.c.l.b16 %v1171
        %v2217 = vunpack.c.h.b16 %v1171
        %v2218 = vunpack.c.l.b16 %v1172
        %v2219 = vunpack.c.h.b16 %v1172
        %v2220 = vunpack.c.l.b16 %v1173
        %v2221 = vunpack.c.h.b16 %v1173
        %v2222 = vunpack.c.l.b16 %v1174
        %v2223 = vunpack.c.h.b16 %v1174
        %v2224 = vunpack.c.l.b16 %v1175
        %v2225 = vunpack.c.h.b16 %v1175
        %v2226 = vunpack.c.l.b16 %v1176
        %v2227 = vunpack.c.h.b16 %v1176
        %v2228 = vunpack.c.l.b16 %v1177
        %v2229 = vunpack.c.h.b16 %v1177
        %v2230 = vunpack.c.l.b16 %v1178
        %v2231 = vunpack.c.h.b16 %v1178
        %v2232 = vunpack.c.l.b16 %v1179
        %v2233 = vunpack.c.h.b16 %v1179
        %v2234 = vunpack.c.l.b16 %v1180
        %v2235 = vunpack.c.h.b16 %v1180
        %v2236 = vunpack.c.l.b16 %v1181
        %v2237 = vunpack.c.h.b16 %v1181
        %v2238 = vunpack.c.l.b16 %v1182
        %v2239 = vunpack.c.h.b16 %v1182
        %v2240 = vunpack.c.l.b16 %v1183
        %v2241 = vunpack.c.h.b16 %v1183
        %v2242 = vunpack.c.l.b16 %v1184
        %v2243 = vunpack.c.h.b16 %v1184
        %v2244 = vunpack.c.l.b16 %v1185
        %v2245 = vunpack.c.h.b16 %v1185
        %v2246 = vunpack.c.l.b16 %v1186
        %v2247 = vunpack.c.h.b16 %v1186
        %v2248 = vunpack.c.l.b16 %v1187
        %v2249 = vunpack.c.h.b16 %v1187
        %v2250 = vunpack.c.l.b16 %v1188
        %v2251 = vunpack.c.h.b16 %v1188
        %v2252 = vunpack.c.l.b16 %v1189
        %v2253 = vunpack.c.h.b16 %v1189
        %v2254 = vunpack.c.l.b16 %v1190
        %v2255 = vunpack.c.h.b16 %v1190
        %v2256 = vunpack.c.l.b16 %v1191
        %v2257 = vunpack.c.h.b16 %v1191
        %v2258 = vunpack.c.l.b16 %v1192
        %v2259 = vunpack.c.h.b16 %v1192
        %v2260 = vunpack.c.l.b16 %v1193
        %v2261 = vunpack.c.h.b16 %v1193
        %v2262 = vunpack.c.l.b16 %v1194
        %v2263 = vunpack.c.h.b16 %v1194
        %v2264 = vunpack.c.l.b16 %v1195
        %v2265 = vunpack.c.h.b16 %v1195
        %v2266 = vunpack.c.l.b16 %v1196
        %v2267 = vunpack.c.h.b16 %v1196
        %v2268 = vunpack.c.l.b16 %v1197
        %v2269 = vunpack.c.h.b16 %v1197
        %v2270 = vunpack.c.l.b16 %v1198
        %v2271 = vunpack.c.h.b16 %v1198
        %v2272 = vunpack.c.l.b16 %v1199
        %v2273 = vunpack.c.h.b16 %v1199
        %v2274 = vunpack.c.l.b16 %v1200
        %v2275 = vunpack.c.h.b16 %v1200
        %v2276 = vunpack.c.l.b16 %v1201
        %v2277 = vunpack.c.h.b16 %v1201
        %v2278 = vunpack.c.l.b16 %v1202
        %v2279 = vunpack.c.h.b16 %v1202
        %v2280 = vunpack.c.l.b16 %v1203
        %v2281 = vunpack.c.h.b16 %v1203
        %v2282 = vunpack.c.l.b16 %v1204
        %v2283 = vunpack.c.h.b16 %v1204
        %v2284 = vunpack.c.l.b16 %v1205
        %v2285 = vunpack.c.h.b16 %v1205
        %v2286 = vunpack.c.l.b16 %v1206
        %v2287 = vunpack.c.h.b16 %v1206
        %v2288 = vunpack.c.l.b16 %v1207
        %v2289 = vunpack.c.h.b16 %v1207
        %v2290 = vunpack.c.l.b16 %v1208
        %v2291 = vunpack.c.h.b16 %v1208
        %v2292 = vunpack.c.l.b16 %v1209
        %v2293 = vunpack.c.h.b16 %v1209
        %v2294 = vunpack.c.l.b16 %v1210
        %v2295 = vunpack.c.h.b16 %v1210
        %v2296 = vunpack.c.l.b16 %v1211
        %v2297 = vunpack.c.h.b16 %v1211
        %v2298 = vunpack.c.l.b16 %v1212
        %v2299 = vunpack.c.h.b16 %v1212
        %v2300 = vunpack.c.l.b16 %v1213
        %v2301 = vunpack.c.h.b16 %v1213
        %v2302 = vunpack.c.l.b16 %v1214
        %v2303 = vunpack.c.h.b16 %v1214
        %v2304 = vunpack.c.l.b16 %v1215
        %v2305 = vunpack.c.h.b16 %v1215
        %v2306 = vunpack.c.l.b16 %v1216
        %v2307 = vunpack.c.h.b16 %v1216
        %v2308 = vunpack.c.l.b16 %v1217
        %v2309 = vunpack.c.h.b16 %v1217
        %v2310 = vunpack.c.l.b16 %v1218
        %v2311 = vunpack.c.h.b16 %v1218
        %v2312 = vunpack.c.l.b16 %v1219
        %v2313 = vunpack.c.h.b16 %v1219
        %v2314 = vunpack.c.l.b16 %v1220
        %v2315 = vunpack.c.h.b16 %v1220
        %v2316 = vunpack.c.l.b16 %v1221
        %v2317 = vunpack.c.h.b16 %v1221
        %v2318 = vunpack.c.l.b16 %v1222
        %v2319 = vunpack.c.h.b16 %v1222
        %v2320 = vunpack.c.l.b16 %v1223
        %v2321 = vunpack.c.h.b16 %v1223
        %v2322 = vunpack.c.l.b16 %v1224
        %v2323 = vunpack.c.h.b16 %v1224
        %v2324 = vunpack.c.l.b16 %v1225
        %v2325 = vunpack.c.h.b16 %v1225
        %v2326 = vunpack.c.l.b16 %v1226
        %v2327 = vunpack.c.h.b16 %v1226
        %v2328 = vunpack.c.l.b16 %v1227
        %v2329 = vunpack.c.h.b16 %v1227
        %v2330 = vunpack.c.l.b16 %v1228
        %v2331 = vunpack.c.h.b16 %v1228
        %v2332 = vunpack.c.l.b16 %v1229
        %v2333 = vunpack.c.h.b16 %v1229
        %v2334 = vunpack.c.l.b16 %v1230
        %v2335 = vunpack.c.h.b16 %v1230
        %v2336 = vunpack.c.l.b16 %v1231
        %v2337 = vunpack.c.h.b16 %v1231
        %v2338 = vunpack.c.l.b16 %v1232
        %v2339 = vunpack.c.h.b16 %v1232
        %v2340 = vunpack.c.l.b16 %v1233
        %v2341 = vunpack.c.h.b16 %v1233
        %v2342 = vunpack.c.l.b16 %v1234
        %v2343 = vunpack.c.h.b16 %v1234
        %v2344 = vunpack.c.l.b16 %v1235
        %v2345 = vunpack.c.h.b16 %v1235
        %v2346 = vunpack.c.l.b16 %v1236
        %v2347 = vunpack.c.h.b16 %v1236
        %v2348 = vunpack.c.l.b16 %v1237
        %v2349 = vunpack.c.h.b16 %v1237
        %v2350 = vunpack.c.l.b16 %v1238
        %v2351 = vunpack.c.h.b16 %v1238
        %v2352 = vunpack.c.l.b16 %v1239
        %v2353 = vunpack.c.h.b16 %v1239
        %v2354 = vunpack.c.l.b16 %v1240
        %v2355 = vunpack.c.h.b16 %v1240
        %v2356 = vunpack.c.l.b16 %v1241
        %v2357 = vunpack.c.h.b16 %v1241
        %v2358 = vunpack.c.l.b16 %v1242
        %v2359 = vunpack.c.h.b16 %v1242
        %v2360 = vunpack.c.l.b16 %v1243
        %v2361 = vunpack.c.h.b16 %v1243
        %v2362 = vunpack.c.l.b16 %v1244
        %v2363 = vunpack.c.h.b16 %v1244
        %v2364 = vunpack.c.l.b16 %v1245
        %v2365 = vunpack.c.h.b16 %v1245
        %v2366 = vunpack.c.l.b16 %v1246
        %v2367 = vunpack.c.h.b16 %v1246
        %v2368 = vunpack.c.l.b16 %v1247
        %v2369 = vunpack.c.h.b16 %v1247
        %v2370 = vunpack.c.l.b16 %v1248
        %v2371 = vunpack.c.h.b16 %v1248
        %v2372 = vunpack.c.l.b16 %v1249
        %v2373 = vunpack.c.h.b16 %v1249
        %v2374 = vunpack.c.l.b16 %v1250
        %v2375 = vunpack.c.h.b16 %v1250
        %v2376 = vunpack.c.l.b16 %v1251
        %v2377 = vunpack.c.h.b16 %v1251
        %v2378 = vunpack.c.l.b16 %v1252
        %v2379 = vunpack.c.h.b16 %v1252
        %v2380 = vunpack.c.l.b16 %v1253
        %v2381 = vunpack.c.h.b16 %v1253
        %v2382 = vunpack.c.l.b16 %v1254
        %v2383 = vunpack.c.h.b16 %v1254
        %v2384 = vunpack.c.l.b16 %v1255
        %v2385 = vunpack.c.h.b16 %v1255
        %v2386 = vunpack.c.l.b16 %v1256
        %v2387 = vunpack.c.h.b16 %v1256
        %v2388 = vunpack.c.l.b16 %v1257
        %v2389 = vunpack.c.h.b16 %v1257
        %v2390 = vunpack.c.l.b16 %v1258
        %v2391 = vunpack.c.h.b16 %v1258
        %v2392 = vunpack.c.l.b16 %v1259
        %v2393 = vunpack.c.h.b16 %v1259
        %v2394 = vunpack.c.l.b16 %v1260
        %v2395 = vunpack.c.h.b16 %v1260
        %v2396 = vunpack.c.l.b16 %v1261
        %v2397 = vunpack.c.h.b16 %v1261
        %v2398 = vunpack.c.l.b16 %v1262
        %v2399 = vunpack.c.h.b16 %v1262
        %v2400 = vunpack.c.l.b16 %v1263
        %v2401 = vunpack.c.h.b16 %v1263
        %v2402 = vunpack.c.l.b16 %v1264
        %v2403 = vunpack.c.h.b16 %v1264
        %v2404 = vunpack.c.l.b16 %v1265
        %v2405 = vunpack.c.h.b16 %v1265
        %v2406 = vunpack.c.l.b16 %v1266
        %v2407 = vunpack.c.h.b16 %v1266
        %v2408 = vunpack.c.l.b16 %v1267
        %v2409 = vunpack.c.h.b16 %v1267
        %v2410 = vunpack.c.l.b16 %v1268
        %v2411 = vunpack.c.h.b16 %v1268
        %v2412 = vunpack.c.l.b16 %v1269
        %v2413 = vunpack.c.h.b16 %v1269
        %v2414 = vunpack.c.l.b16 %v1270
        %v2415 = vunpack.c.h.b16 %v1270
        %v2416 = vunpack.c.l.b16 %v1271
        %v2417 = vunpack.c.h.b16 %v1271
        %v2418 = vunpack.c.l.b16 %v1272
        %v2419 = vunpack.c.h.b16 %v1272
        %v2420 = vunpack.c.l.b16 %v1273
        %v2421 = vunpack.c.h.b16 %v1273
        %v2422 = vunpack.c.l.b16 %v1274
        %v2423 = vunpack.c.h.b16 %v1274
        %v2424 = vunpack.c.l.b16 %v1275
        %v2425 = vunpack.c.h.b16 %v1275
        %v2426 = vunpack.c.l.b16 %v1276
        %v2427 = vunpack.c.h.b16 %v1276
        %v2428 = vunpack.c.l.b16 %v1277
        %v2429 = vunpack.c.h.b16 %v1277
        %v2430 = vunpack.c.l.b16 %v1278
        %v2431 = vunpack.c.h.b16 %v1278
        %v2432 = vunpack.c.l.b16 %v1279
        %v2433 = vunpack.c.h.b16 %v1279
        %v2434 = vunpack.c.l.b16 %v1280
        %v2435 = vunpack.c.h.b16 %v1280
        %v2436 = vunpack.c.l.b16 %v1281
        %v2437 = vunpack.c.h.b16 %v1281
        %v2438 = vunpack.c.l.b16 %v1282
        %v2439 = vunpack.c.h.b16 %v1282
        %v2440 = vunpack.c.l.b16 %v1283
        %v2441 = vunpack.c.h.b16 %v1283
        %v2442 = vunpack.c.l.b16 %v1284
        %v2443 = vunpack.c.h.b16 %v1284
        %v2444 = vunpack.c.l.b16 %v1285
        %v2445 = vunpack.c.h.b16 %v1285
        %v2446 = vunpack.c.l.b16 %v1286
        %v2447 = vunpack.c.h.b16 %v1286
        %v2448 = vunpack.c.l.b16 %v1287
        %v2449 = vunpack.c.h.b16 %v1287
        %v2450 = vunpack.c.l.b16 %v1288
        %v2451 = vunpack.c.h.b16 %v1288
        %v2452 = vunpack.c.l.b16 %v1289
        %v2453 = vunpack.c.h.b16 %v1289
        %v2454 = vunpack.c.l.b16 %v1290
        %v2455 = vunpack.c.h.b16 %v1290
        %v2456 = vunpack.c.l.b16 %v1291
        %v2457 = vunpack.c.h.b16 %v1291
        %v2458 = vunpack.c.l.b16 %v1292
        %v2459 = vunpack.c.h.b16 %v1292
        %v2460 = vunpack.c.l.b16 %v1293
        %v2461 = vunpack.c.h.b16 %v1293
        %v2462 = vunpack.c.l.b16 %v1294
        %v2463 = vunpack.c.h.b16 %v1294
        %v2464 = vunpack.c.l.b16 %v1295
        %v2465 = vunpack.c.h.b16 %v1295
        %v2466 = vunpack.c.l.b16 %v1296
        %v2467 = vunpack.c.h.b16 %v1296
        %v2468 = vunpack.c.l.b16 %v1297
        %v2469 = vunpack.c.h.b16 %v1297
        %v2470 = vunpack.c.l.b16 %v1298
        %v2471 = vunpack.c.h.b16 %v1298
        %v2472 = vunpack.c.l.b16 %v1299
        %v2473 = vunpack.c.h.b16 %v1299
        %v2474 = vunpack.c.l.b16 %v1300
        %v2475 = vunpack.c.h.b16 %v1300
        %v2476 = vunpack.c.l.b16 %v1301
        %v2477 = vunpack.c.h.b16 %v1301
        %v2478 = vunpack.c.l.b16 %v1302
        %v2479 = vunpack.c.h.b16 %v1302
        %v2480 = vunpack.c.l.b16 %v1303
        %v2481 = vunpack.c.h.b16 %v1303
        %v2482 = vunpack.c.l.b16 %v1304
        %v2483 = vunpack.c.h.b16 %v1304
        %v2484 = vunpack.c.l.b16 %v1305
        %v2485 = vunpack.c.h.b16 %v1305
        %v2486 = vunpack.c.l.b16 %v1306
        %v2487 = vunpack.c.h.b16 %v1306
        %v2488 = vunpack.c.l.b16 %v1307
        %v2489 = vunpack.c.h.b16 %v1307
        %v2490 = vunpack.c.l.b16 %v1308
        %v2491 = vunpack.c.h.b16 %v1308
        %v2492 = vunpack.c.l.b16 %v1309
        %v2493 = vunpack.c.h.b16 %v1309
        %v2494 = vunpack.c.l.b16 %v1310
        %v2495 = vunpack.c.h.b16 %v1310
        %v2496 = vunpack.c.l.b16 %v1311
        %v2497 = vunpack.c.h.b16 %v1311
        %v2498 = vunpack.c.l.b16 %v1312
        %v2499 = vunpack.c.h.b16 %v1312
        %v2500 = vunpack.c.l.b16 %v1313
        %v2501 = vunpack.c.h.b16 %v1313
        %v2502 = vunpack.c.l.b16 %v1314
        %v2503 = vunpack.c.h.b16 %v1314
        %v2504 = vunpack.c.l.b16 %v1315
        %v2505 = vunpack.c.h.b16 %v1315
        %v2506 = vunpack.c.l.b16 %v1316
        %v2507 = vunpack.c.h.b16 %v1316
        %v2508 = vunpack.c.l.b16 %v1317
        %v2509 = vunpack.c.h.b16 %v1317
        %v2510 = vunpack.c.l.b16 %v1318
        %v2511 = vunpack.c.h.b16 %v1318
        %v2512 = vunpack.c.l.b16 %v1319
        %v2513 = vunpack.c.h.b16 %v1319
        %v2514 = vunpack.c.l.b16 %v1320
        %v2515 = vunpack.c.h.b16 %v1320
        %v2516 = vunpack.c.l.b16 %v1321
        %v2517 = vunpack.c.h.b16 %v1321
        %v2518 = vunpack.c.l.b16 %v1322
        %v2519 = vunpack.c.h.b16 %v1322
        %v2520 = vunpack.c.l.b16 %v1323
        %v2521 = vunpack.c.h.b16 %v1323
        %v2522 = vunpack.c.l.b16 %v1324
        %v2523 = vunpack.c.h.b16 %v1324
        %v2524 = vunpack.c.l.b16 %v1325
        %v2525 = vunpack.c.h.b16 %v1325
        %v2526 = vunpack.c.l.b16 %v1326
        %v2527 = vunpack.c.h.b16 %v1326
        %v2528 = vunpack.c.l.b16 %v1327
        %v2529 = vunpack.c.h.b16 %v1327
        %v2530 = vunpack.c.l.b16 %v1328
        %v2531 = vunpack.c.h.b16 %v1328
        %v2532 = vunpack.c.l.b16 %v1329
        %v2533 = vunpack.c.h.b16 %v1329
        %v2534 = vunpack.c.l.b16 %v1330
        %v2535 = vunpack.c.h.b16 %v1330
        %v2536 = vunpack.c.l.b16 %v1331
        %v2537 = vunpack.c.h.b16 %v1331
        %v2538 = vunpack.c.l.b16 %v1332
        %v2539 = vunpack.c.h.b16 %v1332
        %v2540 = vunpack.c.l.b16 %v1333
        %v2541 = vunpack.c.h.b16 %v1333
        %v2542 = vunpack.c.l.b16 %v1334
        %v2543 = vunpack.c.h.b16 %v1334
        %v2544 = vunpack.c.l.b16 %v1335
        %v2545 = vunpack.c.h.b16 %v1335
        %v2546 = vunpack.c.l.b16 %v1336
        %v2547 = vunpack.c.h.b16 %v1336
        %v2548 = vunpack.c.l.b16 %v1337
        %v2549 = vunpack.c.h.b16 %v1337
        %v2550 = vunpack.c.l.b16 %v1338
        %v2551 = vunpack.c.h.b16 %v1338
        %v2552 = vunpack.c.l.b16 %v1339
        %v2553 = vunpack.c.h.b16 %v1339
        %v2554 = vunpack.c.l.b16 %v1340
        %v2555 = vunpack.c.h.b16 %v1340
        %v2556 = vunpack.c.l.b16 %v1341
        %v2557 = vunpack.c.h.b16 %v1341
        %v2558 = vunpack.c.l.b16 %v1342
        %v2559 = vunpack.c.h.b16 %v1342
        %v2560 = vunpack.c.l.b16 %v1343
        %v2561 = vunpack.c.h.b16 %v1343
        %v2562 = vunpack.c.l.b16 %v1344
        %v2563 = vunpack.c.h.b16 %v1344
        %v2564 = vunpack.c.l.b16 %v1345
        %v2565 = vunpack.c.h.b16 %v1345
        %v2566 = vunpack.c.l.b16 %v1346
        %v2567 = vunpack.c.h.b16 %v1346
        %v2568 = vunpack.c.l.b16 %v1347
        %v2569 = vunpack.c.h.b16 %v1347
        %v2570 = vunpack.c.l.b16 %v1348
        %v2571 = vunpack.c.h.b16 %v1348
        %v2572 = vunpack.c.l.b16 %v1349
        %v2573 = vunpack.c.h.b16 %v1349
        %v2574 = vunpack.c.l.b16 %v1350
        %v2575 = vunpack.c.h.b16 %v1350
        %v2576 = vunpack.c.l.b16 %v1351
        %v2577 = vunpack.c.h.b16 %v1351
        %v2578 = vunpack.c.l.b16 %v1352
        %v2579 = vunpack.c.h.b16 %v1352
        %v2580 = vunpack.c.l.b16 %v1353
        %v2581 = vunpack.c.h.b16 %v1353
        %v2582 = vunpack.c.l.b16 %v1354
        %v2583 = vunpack.c.h.b16 %v1354
        %v2584 = vunpack.c.l.b16 %v1355
        %v2585 = vunpack.c.h.b16 %v1355
        %v2586 = vunpack.c.l.b16 %v1356
        %v2587 = vunpack.c.h.b16 %v1356
        %v2588 = vunpack.c.l.b16 %v1357
        %v2589 = vunpack.c.h.b16 %v1357
        %v2590 = vunpack.c.l.b16 %v1358
        %v2591 = vunpack.c.h.b16 %v1358
        %v2592 = vunpack.c.l.b16 %v1359
        %v2593 = vunpack.c.h.b16 %v1359
        %v2594 = vunpack.c.l.b16 %v1360
        %v2595 = vunpack.c.h.b16 %v1360
        %v2596 = vunpack.c.l.b16 %v1361
        %v2597 = vunpack.c.h.b16 %v1361
        %v2598 = vunpack.c.l.b16 %v1362
        %v2599 = vunpack.c.h.b16 %v1362
        %v2600 = vunpack.c.l.b16 %v1363
        %v2601 = vunpack.c.h.b16 %v1363
        %v2602 = vunpack.c.l.b16 %v1364
        %v2603 = vunpack.c.h.b16 %v1364
        %v2604 = vunpack.c.l.b16 %v1365
        %v2605 = vunpack.c.h.b16 %v1365
        %v2606 = vunpack.c.l.b16 %v1366
        %v2607 = vunpack.c.h.b16 %v1366
        %v2608 = vunpack.c.l.b16 %v1367
        %v2609 = vunpack.c.h.b16 %v1367
        %v2610 = vunpack.c.l.b16 %v1368
        %v2611 = vunpack.c.h.b16 %v1368
        %v2612 = vunpack.c.l.b16 %v1369
        %v2613 = vunpack.c.h.b16 %v1369
        %v2614 = vunpack.c.l.b16 %v1370
        %v2615 = vunpack.c.h.b16 %v1370
        %v2616 = vunpack.c.l.b16 %v1371
        %v2617 = vunpack.c.h.b16 %v1371
        %v2618 = vunpack.c.l.b16 %v1372
        %v2619 = vunpack.c.h.b16 %v1372
        %v2620 = vunpack.c.l.b16 %v1373
        %v2621 = vunpack.c.h.b16 %v1373
        %v2622 = vunpack.c.l.b16 %v1374
        %v2623 = vunpack.c.h.b16 %v1374
        %v2624 = vunpack.c.l.b16 %v1375
        %v2625 = vunpack.c.h.b16 %v1375
        %v2626 = vunpack.c.l.b16 %v1376
        %v2627 = vunpack.c.h.b16 %v1376
        %v2628 = vunpack.c.l.b16 %v1377
        %v2629 = vunpack.c.h.b16 %v1377
        %v2630 = vunpack.c.l.b16 %v1378
        %v2631 = vunpack.c.h.b16 %v1378
        %v2632 = vunpack.c.l.b16 %v1379
        %v2633 = vunpack.c.h.b16 %v1379
        %v2634 = vunpack.c.l.b16 %v1380
        %v2635 = vunpack.c.h.b16 %v1380
        %v2636 = vunpack.c.l.b16 %v1381
        %v2637 = vunpack.c.h.b16 %v1381
        %v2638 = vunpack.c.l.b16 %v1382
        %v2639 = vunpack.c.h.b16 %v1382
        %v2640 = vunpack.c.l.b16 %v1383
        %v2641 = vunpack.c.h.b16 %v1383
        %v2642 = vunpack.c.l.b16 %v1384
        %v2643 = vunpack.c.h.b16 %v1384
        %v2644 = vunpack.c.l.b16 %v1385
        %v2645 = vunpack.c.h.b16 %v1385
        %v2646 = vunpack.c.l.b16 %v1386
        %v2647 = vunpack.c.h.b16 %v1386
        %v2648 = vunpack.c.l.b16 %v1387
        %v2649 = vunpack.c.h.b16 %v1387
        %v2650 = vpack.c.b16 %v2142, %v2138
        %v2651 = vpack.c.b16 %v2143, %v2139
        %v2652 = vpack.c.b16 %v2144, %v2140
        %v2653 = vpack.c.b16 %v2145, %v2141
        %v2654 = vpack.c.b16 %v2150, %v2146
        %v2655 = vpack.c.b16 %v2151, %v2147
        %v2656 = vpack.c.b16 %v2152, %v2148
        %v2657 = vpack.c.b16 %v2153, %v2149
        %v2658 = vpack.c.b16 %v2158, %v2154
        %v2659 = vpack.c.b16 %v2159, %v2155
        %v2660 = vpack.c.b16 %v2160, %v2156
        %v2661 = vpack.c.b16 %v2161, %v2157
        %v2662 = vpack.c.b16 %v2166, %v2162
        %v2663 = vpack.c.b16 %v2167, %v2163
        %v2664 = vpack.c.b16 %v2168, %v2164
        %v2665 = vpack.c.b16 %v2169, %v2165
        %v2666 = vpack.c.b16 %v2174, %v2170
        %v2667 = vpack.c.b16 %v2175, %v2171
        %v2668 = vpack.c.b16 %v2176, %v2172
        %v2669 = vpack.c.b16 %v2177, %v2173
        %v2670 = vpack.c.b16 %v2182, %v2178
        %v2671 = vpack.c.b16 %v2183, %v2179
        %v2672 = vpack.c.b16 %v2184, %v2180
        %v2673 = vpack.c.b16 %v2185, %v2181
        %v2674 = vpack.c.b16 %v2190, %v2186
        %v2675 = vpack.c.b16 %v2191, %v2187
        %v2676 = vpack.c.b16 %v2192, %v2188
        %v2677 = vpack.c.b16 %v2193, %v2189
        %v2678 = vpack.c.b16 %v2198, %v2194
        %v2679 = vpack.c.b16 %v2199, %v2195
        %v2680 = vpack.c.b16 %v2200, %v2196
        %v2681 = vpack.c.b16 %v2201, %v2197
        %v2682 = vpack.c.b16 %v2206, %v2202
        %v2683 = vpack.c.b16 %v2207, %v2203
        %v2684 = vpack.c.b16 %v2208, %v2204
        %v2685 = vpack.c.b16 %v2209, %v2205
        %v2686 = vpack.c.b16 %v2214, %v2210
        %v2687 = vpack.c.b16 %v2215, %v2211
        %v2688 = vpack.c.b16 %v2216, %v2212
        %v2689 = vpack.c.b16 %v2217, %v2213
        %v2690 = vpack.c.b16 %v2222, %v2218
        %v2691 = vpack.c.b16 %v2223, %v2219
        %v2692 = vpack.c.b16 %v2224, %v2220
        %v2693 = vpack.c.b16 %v2225, %v2221
        %v2694 = vpack.c.b16 %v2230, %v2226
        %v2695 = vpack.c.b16 %v2231, %v2227
        %v2696 = vpack.c.b16 %v2232, %v2228
        %v2697 = vpack.c.b16 %v2233, %v2229
        %v2698 = vpack.c.b16 %v2238, %v2234
        %v2699 = vpack.c.b16 %v2239, %v2235
        %v2700 = vpack.c.b16 %v2240, %v2236
        %v2701 = vpack.c.b16 %v2241, %v2237
        %v2702 = vpack.c.b16 %v2246, %v2242
        %v2703 = vpack.c.b16 %v2247, %v2243
        %v2704 = vpack.c.b16 %v2248, %v2244
        %v2705 = vpack.c.b16 %v2249, %v2245
        %v2706 = vpack.c.b16 %v2254, %v2250
        %v2707 = vpack.c.b16 %v2255, %v2251
        %v2708 = vpack.c.b16 %v2256, %v2252
        %v2709 = vpack.c.b16 %v2257, %v2253
        %v2710 = vpack.c.b16 %v2262, %v2258
        %v2711 = vpack.c.b16 %v2263, %v2259
        %v2712 = vpack.c.b16 %v2264, %v2260
        %v2713 = vpack.c.b16 %v2265, %v2261
        %v2714 = vpack.c.b16 %v2270, %v2266
        %v2715 = vpack.c.b16 %v2271, %v2267
        %v2716 = vpack.c.b16 %v2272, %v2268
        %v2717 = vpack.c.b16 %v2273, %v2269
        %v2718 = vpack.c.b16 %v2278, %v2274
        %v2719 = vpack.c.b16 %v2279, %v2275
        %v2720 = vpack.c.b16 %v2280, %v2276
        %v2721 = vpack.c.b16 %v2281, %v2277
        %v2722 = vpack.c.b16 %v2286, %v2282
        %v2723 = vpack.c.b16 %v2287, %v2283
        %v2724 = vpack.c.b16 %v2288, %v2284
        %v2725 = vpack.c.b16 %v2289, %v2285
        %v2726 = vpack.c.b16 %v2294, %v2290
        %v2727 = vpack.c.b16 %v2295, %v2291
        %v2728 = vpack.c.b16 %v2296, %v2292
        %v2729 = vpack.c.b16 %v2297, %v2293
        %v2730 = vpack.c.b16 %v2302, %v2298
        %v2731 = vpack.c.b16 %v2303, %v2299
        %v2732 = vpack.c.b16 %v2304, %v2300
        %v2733 = vpack.c.b16 %v2305, %v2301
        %v2734 = vpack.c.b16 %v2310, %v2306
        %v2735 = vpack.c.b16 %v2311, %v2307
        %v2736 = vpack.c.b16 %v2312, %v2308
        %v2737 = vpack.c.b16 %v2313, %v2309
        %v2738 = vpack.c.b16 %v2318, %v2314
        %v2739 = vpack.c.b16 %v2319, %v2315
        %v2740 = vpack.c.b16 %v2320, %v2316
        %v2741 = vpack.c.b16 %v2321, %v2317
        %v2742 = vpack.c.b16 %v2326, %v2322
        %v2743 = vpack.c.b16 %v2327, %v2323
        %v2744 = vpack.c.b16 %v2328, %v2324
        %v2745 = vpack.c.b16 %v2329, %v2325
        %v2746 = vpack.c.b16 %v2334, %v2330
        %v2747 = vpack.c.b16 %v2335, %v2331
        %v2748 = vpack.c.b16 %v2336, %v2332
        %v2749 = vpack.c.b16 %v2337, %v2333
        %v2750 = vpack.c.b16 %v2342, %v2338
        %v2751 = vpack.c.b16 %v2343, %v2339
        %v2752 = vpack.c.b16 %v2344, %v2340
        %v2753 = vpack.c.b16 %v2345, %v2341
        %v2754 = vpack.c.b16 %v2350, %v2346
        %v2755 = vpack.c.b16 %v2351, %v2347
        %v2756 = vpack.c.b16 %v2352, %v2348
        %v2757 = vpack.c.b16 %v2353, %v2349
        %v2758 = vpack.c.b16 %v2358, %v2354
        %v2759 = vpack.c.b16 %v2359, %v2355
        %v2760 = vpack.c.b16 %v2360, %v2356
        %v2761 = vpack.c.b16 %v2361, %v2357
        %v2762 = vpack.c.b16 %v2366, %v2362
        %v2763 = vpack.c.b16 %v2367, %v2363
        %v2764 = vpack.c.b16 %v2368, %v2364
        %v2765 = vpack.c.b16 %v2369, %v2365
        %v2766 = vpack.c.b16 %v2374, %v2370
        %v2767 = vpack.c.b16 %v2375, %v2371
        %v2768 = vpack.c.b16 %v2376, %v2372
        %v2769 = vpack.c.b16 %v2377, %v2373
        %v2770 = vpack.c.b16 %v2382, %v2378
        %v2771 = vpack.c.b16 %v2383, %v2379
        %v2772 = vpack.c.b16 %v2384, %v2380
        %v2773 = vpack.c.b16 %v2385, %v2381
        %v2774 = vpack.c.b16 %v2390, %v2386
        %v2775 = vpack.c.b16 %v2391, %v2387
        %v2776 = vpack.c.b16 %v2392, %v2388
        %v2777 = vpack.c.b16 %v2393, %v2389
        %v2778 = vpack.c.b16 %v2398, %v2394
        %v2779 = vpack.c.b16 %v2399, %v2395
        %v2780 = vpack.c.b16 %v2400, %v2396
        %v2781 = vpack.c.b16 %v2401, %v2397
        %v2782 = vpack.c.b16 %v2406, %v2402
        %v2783 = vpack.c.b16 %v2407, %v2403
        %v2784 = vpack.c.b16 %v2408, %v2404
        %v2785 = vpack.c.b16 %v2409, %v2405
        %v2786 = vpack.c.b16 %v2414, %v2410
        %v2787 = vpack.c.b16 %v2415, %v2411
        %v2788 = vpack.c.b16 %v2416, %v2412
        %v2789 = vpack.c.b16 %v2417, %v2413
        %v2790 = vpack.c.b16 %v2422, %v2418
        %v2791 = vpack.c.b16 %v2423, %v2419
        %v2792 = vpack.c.b16 %v2424, %v2420
        %v2793 = vpack.c.b16 %v2425, %v2421
        %v2794 = vpack.c.b16 %v2430, %v2426
        %v2795 = vpack.c.b16 %v2431, %v2427
        %v2796 = vpack.c.b16 %v2432, %v2428
        %v2797 = vpack.c.b16 %v2433, %v2429
        %v2798 = vpack.c.b16 %v2438, %v2434
        %v2799 = vpack.c.b16 %v2439, %v2435
        %v2800 = vpack.c.b16 %v2440, %v2436
        %v2801 = vpack.c.b16 %v2441, %v2437
        %v2802 = vpack.c.b16 %v2446, %v2442
        %v2803 = vpack.c.b16 %v2447, %v2443
        %v2804 = vpack.c.b16 %v2448, %v2444
        %v2805 = vpack.c.b16 %v2449, %v2445
        %v2806 = vpack.c.b16 %v2454, %v2450
        %v2807 = vpack.c.b16 %v2455, %v2451
        %v2808 = vpack.c.b16 %v2456, %v2452
        %v2809 = vpack.c.b16 %v2457, %v2453
        %v2810 = vpack.c.b16 %v2462, %v2458
        %v2811 = vpack.c.b16 %v2463, %v2459
        %v2812 = vpack.c.b16 %v2464, %v2460
        %v2813 = vpack.c.b16 %v2465, %v2461
        %v2814 = vpack.c.b16 %v2470, %v2466
        %v2815 = vpack.c.b16 %v2471, %v2467
        %v2816 = vpack.c.b16 %v2472, %v2468
        %v2817 = vpack.c.b16 %v2473, %v2469
        %v2818 = vpack.c.b16 %v2478, %v2474
        %v2819 = vpack.c.b16 %v2479, %v2475
        %v2820 = vpack.c.b16 %v2480, %v2476
        %v2821 = vpack.c.b16 %v2481, %v2477
        %v2822 = vpack.c.b16 %v2486, %v2482
        %v2823 = vpack.c.b16 %v2487, %v2483
        %v2824 = vpack.c.b16 %v2488, %v2484
        %v2825 = vpack.c.b16 %v2489, %v2485
        %v2826 = vpack.c.b16 %v2494, %v2490
        %v2827 = vpack.c.b16 %v2495, %v2491
        %v2828 = vpack.c.b16 %v2496, %v2492
        %v2829 = vpack.c.b16 %v2497, %v2493
        %v2830 = vpack.c.b16 %v2502, %v2498
        %v2831 = vpack.c.b16 %v2503, %v2499
        %v2832 = vpack.c.b16 %v2504, %v2500
        %v2833 = vpack.c.b16 %v2505, %v2501
        %v2834 = vpack.c.b16 %v2510, %v2506
        %v2835 = vpack.c.b16 %v2511, %v2507
        %v2836 = vpack.c.b16 %v2512, %v2508
        %v2837 = vpack.c.b16 %v2513, %v2509
        %v2838 = vpack.c.b16 %v2518, %v2514
        %v2839 = vpack.c.b16 %v2519, %v2515
        %v2840 = vpack.c.b16 %v2520, %v2516
        %v2841 = vpack.c.b16 %v2521, %v2517
        %v2842 = vpack.c.b16 %v2526, %v2522
        %v2843 = vpack.c.b16 %v2527, %v2523
        %v2844 = vpack.c.b16 %v2528, %v2524
        %v2845 = vpack.c.b16 %v2529, %v2525
        %v2846 = vpack.c.b16 %v2534, %v2530
        %v2847 = vpack.c.b16 %v2535, %v2531
        %v2848 = vpack.c.b16 %v2536, %v2532
        %v2849 = vpack.c.b16 %v2537, %v2533
        %v2850 = vpack.c.b16 %v2542, %v2538
        %v2851 = vpack.c.b16 %v2543, %v2539
        %v2852 = vpack.c.b16 %v2544, %v2540
        %v2853 = vpack.c.b16 %v2545, %v2541
        %v2854 = vpack.c.b16 %v2550, %v2546
        %v2855 = vpack.c.b16 %v2551, %v2547
        %v2856 = vpack.c.b16 %v2552, %v2548
        %v2857 = vpack.c.b16 %v2553, %v2549
        %v2858 = vpack.c.b16 %v2558, %v2554
        %v2859 = vpack.c.b16 %v2559, %v2555
        %v2860 = vpack.c.b16 %v2560, %v2556
        %v2861 = vpack.c.b16 %v2561, %v2557
        %v2862 = vpack.c.b16 %v2566, %v2562
        %v2863 = vpack.c.b16 %v2567, %v2563
        %v2864 = vpack.c.b16 %v2568, %v2564
        %v2865 = vpack.c.b16 %v2569, %v2565
        %v2866 = vpack.c.b16 %v2574, %v2570
        %v2867 = vpack.c.b16 %v2575, %v2571
        %v2868 = vpack.c.b16 %v2576, %v2572
        %v2869 = vpack.c.b16 %v2577, %v2573
        %v2870 = vpack.c.b16 %v2582, %v2578
        %v2871 = vpack.c.b16 %v2583, %v2579
        %v2872 = vpack.c.b16 %v2584, %v2580
        %v2873 = vpack.c.b16 %v2585, %v2581
        %v2874 = vpack.c.b16 %v2590, %v2586
        %v2875 = vpack.c.b16 %v2591, %v2587
        %v2876 = vpack.c.b16 %v2592, %v2588
        %v2877 = vpack.c.b16 %v2593, %v2589
        %v2878 = vpack.c.b16 %v2598, %v2594
        %v2879 = vpack.c.b16 %v2599, %v2595
        %v2880 = vpack.c.b16 %v2600, %v2596
        %v2881 = vpack.c.b16 %v2601, %v2597
        %v2882 = vpack.c.b16 %v2606, %v2602
        %v2883 = vpack.c.b16 %v2607, %v2603
        %v2884 = vpack.c.b16 %v2608, %v2604
        %v2885 = vpack.c.b16 %v2609, %v2605
        %v2886 = vpack.c.b16 %v2614, %v2610
        %v2887 = vpack.c.b16 %v2615, %v2611
        %v2888 = vpack.c.b16 %v2616, %v2612
        %v2889 = vpack.c.b16 %v2617, %v2613
        %v2890 = vpack.c.b16 %v2622, %v2618
        %v2891 = vpack.c.b16 %v2623, %v2619
        %v2892 = vpack.c.b16 %v2624, %v2620
        %v2893 = vpack.c.b16 %v2625, %v2621
        %v2894 = vpack.c.b16 %v2630, %v2626
        %v2895 = vpack.c.b16 %v2631, %v2627
        %v2896 = vpack.c.b16 %v2632, %v2628
        %v2897 = vpack.c.b16 %v2633, %v2629
        %v2898 = vpack.c.b16 %v2638, %v2634
        %v2899 = vpack.c.b16 %v2639, %v2635
        %v2900 = vpack.c.b16 %v2640, %v2636
        %v2901 = vpack.c.b16 %v2641, %v2637
        %v2902 = vpack.c.b16 %v2646, %v2642
        %v2903 = vpack.c.b16 %v2647, %v2643
        %v2904 = vpack.c.b16 %v2648, %v2644
        %v2905 = vpack.c.b16 %v2649, %v2645
        %3162 = vmatprep.subr.bf16.mxu0 %v2651
        %3163 = vmatpush1.bf16.xpose.msra.mxu0 %v2650
        %3164 = vmatprep.subr.bf16.mxu0 %v2655
        %3165 = vmatpush1.bf16.xpose.msra.mxu0 %v2654
        %3166 = vmatprep.subr.bf16.mxu0 %v2659
        %3167 = vmatpush1.bf16.xpose.msra.mxu0 %v2658
        %3168 = vmatprep.subr.bf16.mxu0 %v2663
        %3169 = vmatpush1.bf16.xpose.msra.mxu0 %v2662
        %3170 = vmatprep.subr.bf16.mxu0 %v2667
        %3171 = vmatpush1.bf16.xpose.msra.mxu0 %v2666
        %3172 = vmatprep.subr.bf16.mxu0 %v2671
        %3173 = vmatpush1.bf16.xpose.msra.mxu0 %v2670
        %3174 = vmatprep.subr.bf16.mxu0 %v2675
        %3175 = vmatpush1.bf16.xpose.msra.mxu0 %v2674
        %3176 = vmatprep.subr.bf16.mxu0 %v2679
        %3177 = vmatpush1.bf16.xpose.msra.mxu0 %v2678
        %3178 = vmatprep.subr.bf16.mxu0 %v2683
        %3179 = vmatpush1.bf16.xpose.msra.mxu0 %v2682
        %3180 = vmatprep.subr.bf16.mxu0 %v2687
        %3181 = vmatpush1.bf16.xpose.msra.mxu0 %v2686
        %3182 = vmatprep.subr.bf16.mxu0 %v2691
        %3183 = vmatpush1.bf16.xpose.msra.mxu0 %v2690
        %3184 = vmatprep.subr.bf16.mxu0 %v2695
        %3185 = vmatpush1.bf16.xpose.msra.mxu0 %v2694
        %3186 = vmatprep.subr.bf16.mxu0 %v2699
        %3187 = vmatpush1.bf16.xpose.msra.mxu0 %v2698
        %3188 = vmatprep.subr.bf16.mxu0 %v2703
        %3189 = vmatpush1.bf16.xpose.msra.mxu0 %v2702
        %3190 = vmatprep.subr.bf16.mxu0 %v2707
        %3191 = vmatpush1.bf16.xpose.msra.mxu0 %v2706
        %3192 = vmatprep.subr.bf16.mxu0 %v2711
        %3193 = vmatpush1.bf16.xpose.msra.mxu0 %v2710
        %3194 = vmatprep.mubr.bf16.mxu0 %v1683
        %3195 = vmatmul.mubr.bf16.gmra.mrb[0].mxu0 %v1682
        %v3196 = vpop.f32.mrb[0].mxu0
        %v3197 = vadd.f32 0.0, %v3196
        %v3198 = vpop.f32.mrb[0].mxu0
        %v3199 = vadd.f32 0.0, %v3198
        %v3200 = vpop.f32.mrb[0].mxu0
        %v3201 = vadd.f32 0.0, %v3200
        %v3202 = vpop.f32.mrb[0].mxu0
        %v3203 = vadd.f32 0.0, %v3202
        %3204 = vmatprep.mubr.bf16.mxu0 %v1687
        %3205 = vmatmul.mubr.bf16.gmra.mrb[0].mxu0 %v1686
        %v3206 = vpop.f32.mrb[0].mxu0
        %v3207 = vadd.f32 0.0, %v3206
        %v3208 = vpop.f32.mrb[0].mxu0
        %v3209 = vadd.f32 0.0, %v3208
        %v3210 = vpop.f32.mrb[0].mxu0
        %v3211 = vadd.f32 0.0, %v3210
        %v3212 = vpop.f32.mrb[0].mxu0
        %v3213 = vadd.f32 0.0, %v3212
        %3214 = vmatprep.mubr.bf16.mxu0 %v1691
        %3215 = vmatmul.mubr.bf16.gmra.mrb[0].mxu0 %v1690
        %v3216 = vpop.f32.mrb[0].mxu0
        %v3217 = vadd.f32 0.0, %v3216
        %v3218 = vpop.f32.mrb[0].mxu0
        %v3219 = vadd.f32 0.0, %v3218
        %v3220 = vpop.f32.mrb[0].mxu0
        %v3221 = vadd.f32 0.0, %v3220
        %v3222 = vpop.f32.mrb[0].mxu0
        %v3223 = vadd.f32 0.0, %v3222
        %3224 = vmatprep.mubr.bf16.mxu0 %v1695
        %3225 = vmatmul.mubr.bf16.gmra.mrb[0].mxu0 %v1694
        %v3226 = vpop.f32.mrb[0].mxu0
        %v3227 = vadd.f32 0.0, %v3226
        %v3228 = vpop.f32.mrb[0].mxu0
        %v3229 = vadd.f32 0.0, %v3228
        %v3230 = vpop.f32.mrb[0].mxu0
        %v3231 = vadd.f32 0.0, %v3230
        %v3232 = vpop.f32.mrb[0].mxu0
        %v3233 = vadd.f32 0.0, %v3232
        %3234 = vmatprep.mubr.bf16.mxu0 %v1699
        %3235 = vmatmul.mubr.bf16.gmra.mrb[0].mxu0 %v1698
        %v3236 = vpop.f32.mrb[0].mxu0
        %v3237 = vadd.f32 0.0, %v3236
        %v3238 = vpop.f32.mrb[0].mxu0
        %v3239 = vadd.f32 0.0, %v3238
        %v3240 = vpop.f32.mrb[0].mxu0
        %v3241 = vadd.f32 0.0, %v3240
        %v3242 = vpop.f32.mrb[0].mxu0
        %v3243 = vadd.f32 0.0, %v3242
        %3244 = vmatprep.mubr.bf16.mxu0 %v1703
        %3245 = vmatmul.mubr.bf16.gmra.mrb[0].mxu0 %v1702
        %v3246 = vpop.f32.mrb[0].mxu0
        %v3247 = vadd.f32 0.0, %v3246
        %v3248 = vpop.f32.mrb[0].mxu0
        %v3249 = vadd.f32 0.0, %v3248
        %v3250 = vpop.f32.mrb[0].mxu0
        %v3251 = vadd.f32 0.0, %v3250
        %v3252 = vpop.f32.mrb[0].mxu0
        %v3253 = vadd.f32 0.0, %v3252
        %3254 = vmatprep.mubr.bf16.mxu0 %v1707
        %3255 = vmatmul.mubr.bf16.gmra.mrb[0].mxu0 %v1706
        %v3256 = vpop.f32.mrb[0].mxu0
        %v3257 = vadd.f32 0.0, %v3256
        %v3258 = vpop.f32.mrb[0].mxu0
        %v3259 = vadd.f32 0.0, %v3258
        %v3260 = vpop.f32.mrb[0].mxu0
        %v3261 = vadd.f32 0.0, %v3260
        %v3262 = vpop.f32.mrb[0].mxu0
        %v3263 = vadd.f32 0.0, %v3262
        %3264 = vmatprep.mubr.bf16.mxu0 %v1711
        %3265 = vmatmul.mubr.bf16.gmra.mrb[0].mxu0 %v1710
        %v3266 = vpop.f32.mrb[0].mxu0
        %v3267 = vadd.f32 0.0, %v3266
        %v3268 = vpop.f32.mrb[0].mxu0
        %v3269 = vadd.f32 0.0, %v3268
        %v3270 = vpop.f32.mrb[0].mxu0
        %v3271 = vadd.f32 0.0, %v3270
        %v3272 = vpop.f32.mrb[0].mxu0
        %v3273 = vadd.f32 0.0, %v3272
        %3274 = vmatprep.mubr.bf16.mxu0 %v1715
        %3275 = vmatmul.mubr.bf16.gmra.mrb[0].mxu0 %v1714
        %v3276 = vpop.f32.mrb[0].mxu0
        %v3277 = vadd.f32 0.0, %v3276
        %v3278 = vpop.f32.mrb[0].mxu0
        %v3279 = vadd.f32 0.0, %v3278
        %v3280 = vpop.f32.mrb[0].mxu0
        %v3281 = vadd.f32 0.0, %v3280
        %v3282 = vpop.f32.mrb[0].mxu0
        %v3283 = vadd.f32 0.0, %v3282
        %3284 = vmatprep.mubr.bf16.mxu0 %v1719
        %3285 = vmatmul.mubr.bf16.gmra.mrb[0].mxu0 %v1718
        %v3286 = vpop.f32.mrb[0].mxu0
        %v3287 = vadd.f32 0.0, %v3286
        %v3288 = vpop.f32.mrb[0].mxu0
        %v3289 = vadd.f32 0.0, %v3288
        %v3290 = vpop.f32.mrb[0].mxu0
        %v3291 = vadd.f32 0.0, %v3290
        %v3292 = vpop.f32.mrb[0].mxu0
        %v3293 = vadd.f32 0.0, %v3292
        %3294 = vmatprep.mubr.bf16.mxu0 %v1723
        %3295 = vmatmul.mubr.bf16.gmra.mrb[0].mxu0 %v1722
        %v3296 = vpop.f32.mrb[0].mxu0
        %v3297 = vadd.f32 0.0, %v3296
        %v3298 = vpop.f32.mrb[0].mxu0
        %v3299 = vadd.f32 0.0, %v3298
        %v3300 = vpop.f32.mrb[0].mxu0
        %v3301 = vadd.f32 0.0, %v3300
        %v3302 = vpop.f32.mrb[0].mxu0
        %v3303 = vadd.f32 0.0, %v3302
        %3304 = vmatprep.mubr.bf16.mxu0 %v1727
        %3305 = vmatmul.mubr.bf16.gmra.mrb[0].mxu0 %v1726
        %v3306 = vpop.f32.mrb[0].mxu0
        %v3307 = vadd.f32 0.0, %v3306
        %v3308 = vpop.f32.mrb[0].mxu0
        %v3309 = vadd.f32 0.0, %v3308
        %v3310 = vpop.f32.mrb[0].mxu0
        %v3311 = vadd.f32 0.0, %v3310
        %v3312 = vpop.f32.mrb[0].mxu0
        %v3313 = vadd.f32 0.0, %v3312
        %3314 = vmatprep.mubr.bf16.mxu0 %v1731
        %3315 = vmatmul.mubr.bf16.gmra.mrb[0].mxu0 %v1730
        %v3316 = vpop.f32.mrb[0].mxu0
        %v3317 = vadd.f32 0.0, %v3316
        %v3318 = vpop.f32.mrb[0].mxu0
        %v3319 = vadd.f32 0.0, %v3318
        %v3320 = vpop.f32.mrb[0].mxu0
        %v3321 = vadd.f32 0.0, %v3320
        %v3322 = vpop.f32.mrb[0].mxu0
        %v3323 = vadd.f32 0.0, %v3322
        %3324 = vmatprep.mubr.bf16.mxu0 %v1735
        %3325 = vmatmul.mubr.bf16.gmra.mrb[0].mxu0 %v1734
        %v3326 = vpop.f32.mrb[0].mxu0
        %v3327 = vadd.f32 0.0, %v3326
        %v3328 = vpop.f32.mrb[0].mxu0
        %v3329 = vadd.f32 0.0, %v3328
        %v3330 = vpop.f32.mrb[0].mxu0
        %v3331 = vadd.f32 0.0, %v3330
        %v3332 = vpop.f32.mrb[0].mxu0
        %v3333 = vadd.f32 0.0, %v3332
        %3334 = vmatprep.mubr.bf16.mxu0 %v1739
        %3335 = vmatmul.mubr.bf16.gmra.mrb[0].mxu0 %v1738
        %v3336 = vpop.f32.mrb[0].mxu0
        %v3337 = vadd.f32 0.0, %v3336
        %v3338 = vpop.f32.mrb[0].mxu0
        %v3339 = vadd.f32 0.0, %v3338
        %v3340 = vpop.f32.mrb[0].mxu0
        %v3341 = vadd.f32 0.0, %v3340
        %v3342 = vpop.f32.mrb[0].mxu0
        %v3343 = vadd.f32 0.0, %v3342
        %3344 = vmatprep.mubr.bf16.mxu0 %v1743
        %3345 = vmatmul.mubr.bf16.gmra.mrb[0].mxu0 %v1742
        %v3346 = vpop.f32.mrb[0].mxu0
        %v3347 = vadd.f32 0.0, %v3346
        %v3348 = vpop.f32.mrb[0].mxu0
        %v3349 = vadd.f32 0.0, %v3348
        %v3350 = vpop.f32.mrb[0].mxu0
        %v3351 = vadd.f32 0.0, %v3350
        %v3352 = vpop.f32.mrb[0].mxu0
        %v3353 = vadd.f32 0.0, %v3352
        %3354 = vmatprep.mubr.bf16.mxu0 %v1747
        %3355 = vmatmul.mubr.bf16.gmra.mrb[0].mxu0 %v1746
        %v3356 = vpop.f32.mrb[0].mxu0
        %v3357 = vadd.f32 0.0, %v3356
        %v3358 = vpop.f32.mrb[0].mxu0
        %v3359 = vadd.f32 0.0, %v3358
        %v3360 = vpop.f32.mrb[0].mxu0
        %v3361 = vadd.f32 0.0, %v3360
        %v3362 = vpop.f32.mrb[0].mxu0
        %v3363 = vadd.f32 0.0, %v3362
        %3364 = vmatprep.mubr.bf16.mxu0 %v1751
        %3365 = vmatmul.mubr.bf16.gmra.mrb[0].mxu0 %v1750
        %v3366 = vpop.f32.mrb[0].mxu0
        %v3367 = vadd.f32 0.0, %v3366
        %v3368 = vpop.f32.mrb[0].mxu0
        %v3369 = vadd.f32 0.0, %v3368
        %v3370 = vpop.f32.mrb[0].mxu0
        %v3371 = vadd.f32 0.0, %v3370
        %v3372 = vpop.f32.mrb[0].mxu0
        %v3373 = vadd.f32 0.0, %v3372
        %3374 = vmatprep.mubr.bf16.mxu0 %v1755
        %3375 = vmatmul.mubr.bf16.gmra.mrb[0].mxu0 %v1754
        %v3376 = vpop.f32.mrb[0].mxu0
        %v3377 = vadd.f32 0.0, %v3376
        %v3378 = vpop.f32.mrb[0].mxu0
        %v3379 = vadd.f32 0.0, %v3378
        %v3380 = vpop.f32.mrb[0].mxu0
        %v3381 = vadd.f32 0.0, %v3380
        %v3382 = vpop.f32.mrb[0].mxu0
        %v3383 = vadd.f32 0.0, %v3382
        %3384 = vmatprep.mubr.bf16.mxu0 %v1759
        %3385 = vmatmul.mubr.bf16.gmra.mrb[0].mxu0 %v1758
        %v3386 = vpop.f32.mrb[0].mxu0
        %v3387 = vadd.f32 0.0, %v3386
        %v3388 = vpop.f32.mrb[0].mxu0
        %v3389 = vadd.f32 0.0, %v3388
        %v3390 = vpop.f32.mrb[0].mxu0
        %v3391 = vadd.f32 0.0, %v3390
        %v3392 = vpop.f32.mrb[0].mxu0
        %v3393 = vadd.f32 0.0, %v3392
        %3394 = vmatprep.mubr.bf16.mxu0 %v1763
        %3395 = vmatmul.mubr.bf16.gmra.mrb[0].mxu0 %v1762
        %v3396 = vpop.f32.mrb[0].mxu0
        %v3397 = vadd.f32 0.0, %v3396
        %v3398 = vpop.f32.mrb[0].mxu0
        %v3399 = vadd.f32 0.0, %v3398
        %v3400 = vpop.f32.mrb[0].mxu0
        %v3401 = vadd.f32 0.0, %v3400
        %v3402 = vpop.f32.mrb[0].mxu0
        %v3403 = vadd.f32 0.0, %v3402
        %3404 = vmatprep.mubr.bf16.mxu0 %v1767
        %3405 = vmatmul.mubr.bf16.gmra.mrb[0].mxu0 %v1766
        %v3406 = vpop.f32.mrb[0].mxu0
        %v3407 = vadd.f32 0.0, %v3406
        %v3408 = vpop.f32.mrb[0].mxu0
        %v3409 = vadd.f32 0.0, %v3408
        %v3410 = vpop.f32.mrb[0].mxu0
        %v3411 = vadd.f32 0.0, %v3410
        %v3412 = vpop.f32.mrb[0].mxu0
        %v3413 = vadd.f32 0.0, %v3412
        %3414 = vmatprep.mubr.bf16.mxu0 %v1771
        %3415 = vmatmul.mubr.bf16.gmra.mrb[0].mxu0 %v1770
        %v3416 = vpop.f32.mrb[0].mxu0
        %v3417 = vadd.f32 0.0, %v3416
        %v3418 = vpop.f32.mrb[0].mxu0
        %v3419 = vadd.f32 0.0, %v3418
        %v3420 = vpop.f32.mrb[0].mxu0
        %v3421 = vadd.f32 0.0, %v3420
        %v3422 = vpop.f32.mrb[0].mxu0
        %v3423 = vadd.f32 0.0, %v3422
        %3424 = vmatprep.mubr.bf16.mxu0 %v1775
        %3425 = vmatmul.mubr.bf16.gmra.mrb[0].mxu0 %v1774
        %v3426 = vpop.f32.mrb[0].mxu0
        %v3427 = vadd.f32 0.0, %v3426
        %v3428 = vpop.f32.mrb[0].mxu0
        %v3429 = vadd.f32 0.0, %v3428
        %v3430 = vpop.f32.mrb[0].mxu0
        %v3431 = vadd.f32 0.0, %v3430
        %v3432 = vpop.f32.mrb[0].mxu0
        %v3433 = vadd.f32 0.0, %v3432
        %3434 = vmatprep.mubr.bf16.mxu0 %v1779
        %3435 = vmatmul.mubr.bf16.gmra.mrb[0].mxu0 %v1778
        %v3436 = vpop.f32.mrb[0].mxu0
        %v3437 = vadd.f32 0.0, %v3436
        %v3438 = vpop.f32.mrb[0].mxu0
        %v3439 = vadd.f32 0.0, %v3438
        %v3440 = vpop.f32.mrb[0].mxu0
        %v3441 = vpop.f32.mrb[0].mxu0
        %3442 = vdwg.mxu0
        %3443 = vmatprep.subr.bf16.mxu0 %v2653
        %3444 = vmatpush1.bf16.xpose.msra.mxu0 %v2652
        %3445 = vmatprep.subr.bf16.mxu0 %v2657
        %3446 = vmatpush1.bf16.xpose.msra.mxu0 %v2656
        %3447 = vmatprep.subr.bf16.mxu0 %v2661
        %3448 = vmatpush1.bf16.xpose.msra.mxu0 %v2660
        %3449 = vmatprep.subr.bf16.mxu0 %v2665
        %3450 = vmatpush1.bf16.xpose.msra.mxu0 %v2664
        %3451 = vmatprep.subr.bf16.mxu0 %v2669
        %3452 = vmatpush1.bf16.xpose.msra.mxu0 %v2668
        %3453 = vmatprep.subr.bf16.mxu0 %v2673
        %3454 = vmatpush1.bf16.xpose.msra.mxu0 %v2672
        %3455 = vmatprep.subr.bf16.mxu0 %v2677
        %3456 = vmatpush1.bf16.xpose.msra.mxu0 %v2676
        %3457 = vmatprep.subr.bf16.mxu0 %v2681
        %3458 = vmatpush1.bf16.xpose.msra.mxu0 %v2680
        %3459 = vmatprep.subr.bf16.mxu0 %v2685
        %3460 = vmatpush1.bf16.xpose.msra.mxu0 %v2684
        %3461 = vmatprep.subr.bf16.mxu0 %v2689
        %3462 = vmatpush1.bf16.xpose.msra.mxu0 %v2688
        %3463 = vmatprep.subr.bf16.mxu0 %v2693
        %3464 = vmatpush1.bf16.xpose.msra.mxu0 %v2692
        %3465 = vmatprep.subr.bf16.mxu0 %v2697
        %3466 = vmatpush1.bf16.xpose.msra.mxu0 %v2696
        %3467 = vmatprep.subr.bf16.mxu0 %v2701
        %3468 = vmatpush1.bf16.xpose.msra.mxu0 %v2700
        %3469 = vmatprep.subr.bf16.mxu0 %v2705
        %3470 = vmatpush1.bf16.xpose.msra.mxu0 %v2704
        %3471 = vmatprep.subr.bf16.mxu0 %v2709
        %3472 = vmatpush1.bf16.xpose.msra.mxu0 %v2708
        %3473 = vmatprep.subr.bf16.mxu0 %v2713
        %3474 = vmatpush1.bf16.xpose.msra.mxu0 %v2712
        %3475 = vmatprep.mubr.bf16.mxu0 %v1685
        %3476 = vmatmul.mubr.bf16.gmra.mrb[0].mxu0 %v1684
        %v3477 = vpop.f32.mrb[0].mxu0
        %v3478 = vadd.f32 %v3197, %v3477
        %v3479 = vpop.f32.mrb[0].mxu0
        %v3480 = vadd.f32 %v3199, %v3479
        %v3481 = vpop.f32.mrb[0].mxu0
        %v3482 = vadd.f32 %v3201, %v3481
        %v3483 = vpop.f32.mrb[0].mxu0
        %v3484 = vadd.f32 %v3203, %v3483
        %3485 = vmatprep.mubr.bf16.mxu0 %v1689
        %3486 = vmatmul.mubr.bf16.gmra.mrb[0].mxu0 %v1688
        %v3487 = vpop.f32.mrb[0].mxu0
        %v3488 = vadd.f32 %v3207, %v3487
        %v3489 = vpop.f32.mrb[0].mxu0
        %v3490 = vadd.f32 %v3209, %v3489
        %v3491 = vpop.f32.mrb[0].mxu0
        %v3492 = vadd.f32 %v3211, %v3491
        %v3493 = vpop.f32.mrb[0].mxu0
        %v3494 = vadd.f32 %v3213, %v3493
        %3495 = vmatprep.mubr.bf16.mxu0 %v1693
        %3496 = vmatmul.mubr.bf16.gmra.mrb[0].mxu0 %v1692
        %v3497 = vpop.f32.mrb[0].mxu0
        %v3498 = vadd.f32 %v3217, %v3497
        %v3499 = vpop.f32.mrb[0].mxu0
        %v3500 = vadd.f32 %v3219, %v3499
        %v3501 = vpop.f32.mrb[0].mxu0
        %v3502 = vadd.f32 %v3221, %v3501
        %v3503 = vpop.f32.mrb[0].mxu0
        %v3504 = vadd.f32 %v3223, %v3503
        %3505 = vmatprep.mubr.bf16.mxu0 %v1697
        %3506 = vmatmul.mubr.bf16.gmra.mrb[0].mxu0 %v1696
        %v3507 = vpop.f32.mrb[0].mxu0
        %v3508 = vadd.f32 %v3227, %v3507
        %v3509 = vpop.f32.mrb[0].mxu0
        %v3510 = vadd.f32 %v3229, %v3509
        %v3511 = vpop.f32.mrb[0].mxu0
        %v3512 = vadd.f32 %v3231, %v3511
        %v3513 = vpop.f32.mrb[0].mxu0
        %v3514 = vadd.f32 %v3233, %v3513
        %3515 = vmatprep.mubr.bf16.mxu0 %v1701
        %3516 = vmatmul.mubr.bf16.gmra.mrb[0].mxu0 %v1700
        %v3517 = vpop.f32.mrb[0].mxu0
        %v3518 = vadd.f32 %v3237, %v3517
        %v3519 = vpop.f32.mrb[0].mxu0
        %v3520 = vadd.f32 %v3239, %v3519
        %v3521 = vpop.f32.mrb[0].mxu0
        %v3522 = vadd.f32 %v3241, %v3521
        %v3523 = vpop.f32.mrb[0].mxu0
        %v3524 = vadd.f32 %v3243, %v3523
        %3525 = vmatprep.mubr.bf16.mxu0 %v1705
        %3526 = vmatmul.mubr.bf16.gmra.mrb[0].mxu0 %v1704
        %v3527 = vpop.f32.mrb[0].mxu0
        %v3528 = vadd.f32 %v3247, %v3527
        %v3529 = vpop.f32.mrb[0].mxu0
        %v3530 = vadd.f32 %v3249, %v3529
        %v3531 = vpop.f32.mrb[0].mxu0
        %v3532 = vadd.f32 %v3251, %v3531
        %v3533 = vpop.f32.mrb[0].mxu0
        %v3534 = vadd.f32 %v3253, %v3533
        %3535 = vmatprep.mubr.bf16.mxu0 %v1709
        %3536 = vmatmul.mubr.bf16.gmra.mrb[0].mxu0 %v1708
        %v3537 = vpop.f32.mrb[0].mxu0
        %v3538 = vadd.f32 %v3257, %v3537
        %v3539 = vpop.f32.mrb[0].mxu0
        %v3540 = vadd.f32 %v3259, %v3539
        %v3541 = vpop.f32.mrb[0].mxu0
        %v3542 = vadd.f32 %v3261, %v3541
        %v3543 = vpop.f32.mrb[0].mxu0
        %v3544 = vadd.f32 %v3263, %v3543
        %3545 = vmatprep.mubr.bf16.mxu0 %v1713
        %3546 = vmatmul.mubr.bf16.gmra.mrb[0].mxu0 %v1712
        %v3547 = vpop.f32.mrb[0].mxu0
        %v3548 = vadd.f32 %v3267, %v3547
        %v3549 = vpop.f32.mrb[0].mxu0
        %v3550 = vadd.f32 %v3269, %v3549
        %v3551 = vpop.f32.mrb[0].mxu0
        %v3552 = vadd.f32 %v3271, %v3551
        %v3553 = vpop.f32.mrb[0].mxu0
        %v3554 = vadd.f32 %v3273, %v3553
        %3555 = vmatprep.mubr.bf16.mxu0 %v1717
        %3556 = vmatmul.mubr.bf16.gmra.mrb[0].mxu0 %v1716
        %v3557 = vpop.f32.mrb[0].mxu0
        %v3558 = vadd.f32 %v3277, %v3557
        %v3559 = vpop.f32.mrb[0].mxu0
        %v3560 = vadd.f32 %v3279, %v3559
        %v3561 = vpop.f32.mrb[0].mxu0
        %v3562 = vadd.f32 %v3281, %v3561
        %v3563 = vpop.f32.mrb[0].mxu0
        %v3564 = vadd.f32 %v3283, %v3563
        %3565 = vmatprep.mubr.bf16.mxu0 %v1721
        %3566 = vmatmul.mubr.bf16.gmra.mrb[0].mxu0 %v1720
        %v3567 = vpop.f32.mrb[0].mxu0
        %v3568 = vadd.f32 %v3287, %v3567
        %v3569 = vpop.f32.mrb[0].mxu0
        %v3570 = vadd.f32 %v3289, %v3569
        %v3571 = vpop.f32.mrb[0].mxu0
        %v3572 = vadd.f32 %v3291, %v3571
        %v3573 = vpop.f32.mrb[0].mxu0
        %v3574 = vadd.f32 %v3293, %v3573
        %3575 = vmatprep.mubr.bf16.mxu0 %v1725
        %3576 = vmatmul.mubr.bf16.gmra.mrb[0].mxu0 %v1724
        %v3577 = vpop.f32.mrb[0].mxu0
        %v3578 = vadd.f32 %v3297, %v3577
        %v3579 = vpop.f32.mrb[0].mxu0
        %v3580 = vadd.f32 %v3299, %v3579
        %v3581 = vpop.f32.mrb[0].mxu0
        %v3582 = vadd.f32 %v3301, %v3581
        %v3583 = vpop.f32.mrb[0].mxu0
        %v3584 = vadd.f32 %v3303, %v3583
        %3585 = vmatprep.mubr.bf16.mxu0 %v1729
        %3586 = vmatmul.mubr.bf16.gmra.mrb[0].mxu0 %v1728
        %v3587 = vpop.f32.mrb[0].mxu0
        %v3588 = vadd.f32 %v3307, %v3587
        %v3589 = vpop.f32.mrb[0].mxu0
        %v3590 = vadd.f32 %v3309, %v3589
        %v3591 = vpop.f32.mrb[0].mxu0
        %v3592 = vadd.f32 %v3311, %v3591
        %v3593 = vpop.f32.mrb[0].mxu0
        %v3594 = vadd.f32 %v3313, %v3593
        %3595 = vmatprep.mubr.bf16.mxu0 %v1733
        %3596 = vmatmul.mubr.bf16.gmra.mrb[0].mxu0 %v1732
        %v3597 = vpop.f32.mrb[0].mxu0
        %v3598 = vadd.f32 %v3317, %v3597
        %v3599 = vpop.f32.mrb[0].mxu0
        %v3600 = vadd.f32 %v3319, %v3599
        %v3601 = vpop.f32.mrb[0].mxu0
        %v3602 = vadd.f32 %v3321, %v3601
        %v3603 = vpop.f32.mrb[0].mxu0
        %v3604 = vadd.f32 %v3323, %v3603
        %3605 = vmatprep.mubr.bf16.mxu0 %v1737
        %3606 = vmatmul.mubr.bf16.gmra.mrb[0].mxu0 %v1736
        %v3607 = vpop.f32.mrb[0].mxu0
        %v3608 = vadd.f32 %v3327, %v3607
        %v3609 = vpop.f32.mrb[0].mxu0
        %v3610 = vadd.f32 %v3329, %v3609
        %v3611 = vpop.f32.mrb[0].mxu0
        %v3612 = vadd.f32 %v3331, %v3611
        %v3613 = vpop.f32.mrb[0].mxu0
        %v3614 = vadd.f32 %v3333, %v3613
        %3615 = vmatprep.mubr.bf16.mxu0 %v1741
        %3616 = vmatmul.mubr.bf16.gmra.mrb[0].mxu0 %v1740
        %v3617 = vpop.f32.mrb[0].mxu0
        %v3618 = vadd.f32 %v3337, %v3617
        %v3619 = vpop.f32.mrb[0].mxu0
        %v3620 = vadd.f32 %v3339, %v3619
        %v3621 = vpop.f32.mrb[0].mxu0
        %v3622 = vadd.f32 %v3341, %v3621
        %v3623 = vpop.f32.mrb[0].mxu0
        %v3624 = vadd.f32 %v3343, %v3623
        %3625 = vmatprep.mubr.bf16.mxu0 %v1745
        %3626 = vmatmul.mubr.bf16.gmra.mrb[0].mxu0 %v1744
        %v3627 = vpop.f32.mrb[0].mxu0
        %v3628 = vadd.f32 %v3347, %v3627
        %v3629 = vpop.f32.mrb[0].mxu0
        %v3630 = vadd.f32 %v3349, %v3629
        %v3631 = vpop.f32.mrb[0].mxu0
        %v3632 = vadd.f32 %v3351, %v3631
        %v3633 = vpop.f32.mrb[0].mxu0
        %v3634 = vadd.f32 %v3353, %v3633
        %3635 = vmatprep.mubr.bf16.mxu0 %v1749
        %3636 = vmatmul.mubr.bf16.gmra.mrb[0].mxu0 %v1748
        %v3637 = vpop.f32.mrb[0].mxu0
        %v3638 = vadd.f32 %v3357, %v3637
        %v3639 = vpop.f32.mrb[0].mxu0
        %v3640 = vadd.f32 %v3359, %v3639
        %v3641 = vpop.f32.mrb[0].mxu0
        %v3642 = vadd.f32 %v3361, %v3641
        %v3643 = vpop.f32.mrb[0].mxu0
        %v3644 = vadd.f32 %v3363, %v3643
        %3645 = vmatprep.mubr.bf16.mxu0 %v1753
        %3646 = vmatmul.mubr.bf16.gmra.mrb[0].mxu0 %v1752
        %v3647 = vpop.f32.mrb[0].mxu0
        %v3648 = vadd.f32 %v3367, %v3647
        %v3649 = vpop.f32.mrb[0].mxu0
        %v3650 = vadd.f32 %v3369, %v3649
        %v3651 = vpop.f32.mrb[0].mxu0
        %v3652 = vadd.f32 %v3371, %v3651
        %v3653 = vpop.f32.mrb[0].mxu0
        %v3654 = vadd.f32 %v3373, %v3653
        %3655 = vmatprep.mubr.bf16.mxu0 %v1757
        %3656 = vmatmul.mubr.bf16.gmra.mrb[0].mxu0 %v1756
        %v3657 = vpop.f32.mrb[0].mxu0
        %v3658 = vadd.f32 %v3377, %v3657
        %v3659 = vpop.f32.mrb[0].mxu0
        %v3660 = vadd.f32 %v3379, %v3659
        %v3661 = vpop.f32.mrb[0].mxu0
        %v3662 = vadd.f32 %v3381, %v3661
        %v3663 = vpop.f32.mrb[0].mxu0
        %v3664 = vadd.f32 %v3383, %v3663
        %3665 = vmatprep.mubr.bf16.mxu0 %v1761
        %3666 = vmatmul.mubr.bf16.gmra.mrb[0].mxu0 %v1760
        %v3667 = vpop.f32.mrb[0].mxu0
        %v3668 = vadd.f32 %v3387, %v3667
        %v3669 = vpop.f32.mrb[0].mxu0
        %v3670 = vadd.f32 %v3389, %v3669
        %v3671 = vpop.f32.mrb[0].mxu0
        %v3672 = vadd.f32 %v3391, %v3671
        %v3673 = vpop.f32.mrb[0].mxu0
        %v3674 = vadd.f32 %v3393, %v3673
        %3675 = vmatprep.mubr.bf16.mxu0 %v1765
        %3676 = vmatmul.mubr.bf16.gmra.mrb[0].mxu0 %v1764
        %v3677 = vpop.f32.mrb[0].mxu0
        %v3678 = vadd.f32 %v3397, %v3677
        %v3679 = vpop.f32.mrb[0].mxu0
        %v3680 = vadd.f32 %v3399, %v3679
        %v3681 = vpop.f32.mrb[0].mxu0
        %v3682 = vadd.f32 %v3401, %v3681
        %v3683 = vpop.f32.mrb[0].mxu0
        %v3684 = vadd.f32 %v3403, %v3683
        %3685 = vmatprep.mubr.bf16.mxu0 %v1769
        %3686 = vmatmul.mubr.bf16.gmra.mrb[0].mxu0 %v1768
        %v3687 = vpop.f32.mrb[0].mxu0
        %v3688 = vadd.f32 %v3407, %v3687
        %v3689 = vpop.f32.mrb[0].mxu0
        %v3690 = vadd.f32 %v3409, %v3689
        %v3691 = vpop.f32.mrb[0].mxu0
        %v3692 = vadd.f32 %v3411, %v3691
        %v3693 = vpop.f32.mrb[0].mxu0
        %v3694 = vadd.f32 %v3413, %v3693
        %3695 = vmatprep.mubr.bf16.mxu0 %v1773
        %3696 = vmatmul.mubr.bf16.gmra.mrb[0].mxu0 %v1772
        %v3697 = vpop.f32.mrb[0].mxu0
        %v3698 = vadd.f32 %v3417, %v3697
        %v3699 = vpop.f32.mrb[0].mxu0
        %v3700 = vadd.f32 %v3419, %v3699
        %v3701 = vpop.f32.mrb[0].mxu0
        %v3702 = vadd.f32 %v3421, %v3701
        %v3703 = vpop.f32.mrb[0].mxu0
        %v3704 = vadd.f32 %v3423, %v3703
        %3705 = vmatprep.mubr.bf16.mxu0 %v1777
        %3706 = vmatmul.mubr.bf16.gmra.mrb[0].mxu0 %v1776
        %v3707 = vpop.f32.mrb[0].mxu0
        %v3708 = vadd.f32 %v3427, %v3707
        %v3709 = vpop.f32.mrb[0].mxu0
        %v3710 = vadd.f32 %v3429, %v3709
        %v3711 = vpop.f32.mrb[0].mxu0
        %v3712 = vadd.f32 %v3431, %v3711
        %v3713 = vpop.f32.mrb[0].mxu0
        %v3714 = vadd.f32 %v3433, %v3713
        %3715 = vmatprep.mubr.bf16.mxu0 %v1781
        %3716 = vmatmul.mubr.bf16.gmra.mrb[0].mxu0 %v1780
        %v3717 = vpop.f32.mrb[0].mxu0
        %v3718 = vadd.f32 %v3437, %v3717
        %v3719 = vpop.f32.mrb[0].mxu0
        %v3720 = vadd.f32 %v3439, %v3719
        %v3721 = vpop.f32.mrb[0].mxu0
        %v3722 = vpop.f32.mrb[0].mxu0
        %3723 = vdwg.mxu0
        %3724 = vmatprep.subr.bf16.mxu0 %v2715
        %3725 = vmatpush1.bf16.xpose.msra.mxu0 %v2714
        %3726 = vmatprep.subr.bf16.mxu0 %v2719
        %3727 = vmatpush1.bf16.xpose.msra.mxu0 %v2718
        %3728 = vmatprep.subr.bf16.mxu0 %v2723
        %3729 = vmatpush1.bf16.xpose.msra.mxu0 %v2722
        %3730 = vmatprep.subr.bf16.mxu0 %v2727
        %3731 = vmatpush1.bf16.xpose.msra.mxu0 %v2726
        %3732 = vmatprep.subr.bf16.mxu0 %v2731
        %3733 = vmatpush1.bf16.xpose.msra.mxu0 %v2730
        %3734 = vmatprep.subr.bf16.mxu0 %v2735
        %3735 = vmatpush1.bf16.xpose.msra.mxu0 %v2734
        %3736 = vmatprep.subr.bf16.mxu0 %v2739
        %3737 = vmatpush1.bf16.xpose.msra.mxu0 %v2738
        %3738 = vmatprep.subr.bf16.mxu0 %v2743
        %3739 = vmatpush1.bf16.xpose.msra.mxu0 %v2742
        %3740 = vmatprep.subr.bf16.mxu0 %v2747
        %3741 = vmatpush1.bf16.xpose.msra.mxu0 %v2746
        %3742 = vmatprep.subr.bf16.mxu0 %v2751
        %3743 = vmatpush1.bf16.xpose.msra.mxu0 %v2750
        %3744 = vmatprep.subr.bf16.mxu0 %v2755
        %3745 = vmatpush1.bf16.xpose.msra.mxu0 %v2754
        %3746 = vmatprep.subr.bf16.mxu0 %v2759
        %3747 = vmatpush1.bf16.xpose.msra.mxu0 %v2758
        %3748 = vmatprep.subr.bf16.mxu0 %v2763
        %3749 = vmatpush1.bf16.xpose.msra.mxu0 %v2762
        %3750 = vmatprep.subr.bf16.mxu0 %v2767
        %3751 = vmatpush1.bf16.xpose.msra.mxu0 %v2766
        %3752 = vmatprep.subr.bf16.mxu0 %v2771
        %3753 = vmatpush1.bf16.xpose.msra.mxu0 %v2770
        %3754 = vmatprep.subr.bf16.mxu0 %v2775
        %3755 = vmatpush1.bf16.xpose.msra.mxu0 %v2774
        %3756 = vmatprep.mubr.bf16.mxu0 %v1683
        %3757 = vmatmul.mubr.bf16.gmra.mrb[0].mxu0 %v1682
        %v3758 = vpop.f32.mrb[0].mxu0
        %v3759 = vadd.f32 0.0, %v3758
        %v3760 = vpop.f32.mrb[0].mxu0
        %v3761 = vadd.f32 0.0, %v3760
        %v3762 = vpop.f32.mrb[0].mxu0
        %v3763 = vadd.f32 0.0, %v3762
        %v3764 = vpop.f32.mrb[0].mxu0
        %v3765 = vadd.f32 0.0, %v3764
        %3766 = vmatprep.mubr.bf16.mxu0 %v1687
        %3767 = vmatmul.mubr.bf16.gmra.mrb[0].mxu0 %v1686
        %v3768 = vpop.f32.mrb[0].mxu0
        %v3769 = vadd.f32 0.0, %v3768
        %v3770 = vpop.f32.mrb[0].mxu0
        %v3771 = vadd.f32 0.0, %v3770
        %v3772 = vpop.f32.mrb[0].mxu0
        %v3773 = vadd.f32 0.0, %v3772
        %v3774 = vpop.f32.mrb[0].mxu0
        %v3775 = vadd.f32 0.0, %v3774
        %3776 = vmatprep.mubr.bf16.mxu0 %v1691
        %3777 = vmatmul.mubr.bf16.gmra.mrb[0].mxu0 %v1690
        %v3778 = vpop.f32.mrb[0].mxu0
        %v3779 = vadd.f32 0.0, %v3778
        %v3780 = vpop.f32.mrb[0].mxu0
        %v3781 = vadd.f32 0.0, %v3780
        %v3782 = vpop.f32.mrb[0].mxu0
        %v3783 = vadd.f32 0.0, %v3782
        %v3784 = vpop.f32.mrb[0].mxu0
        %v3785 = vadd.f32 0.0, %v3784
        %3786 = vmatprep.mubr.bf16.mxu0 %v1695
        %3787 = vmatmul.mubr.bf16.gmra.mrb[0].mxu0 %v1694
        %v3788 = vpop.f32.mrb[0].mxu0
        %v3789 = vadd.f32 0.0, %v3788
        %v3790 = vpop.f32.mrb[0].mxu0
        %v3791 = vadd.f32 0.0, %v3790
        %v3792 = vpop.f32.mrb[0].mxu0
        %v3793 = vadd.f32 0.0, %v3792
        %v3794 = vpop.f32.mrb[0].mxu0
        %v3795 = vadd.f32 0.0, %v3794
        %3796 = vmatprep.mubr.bf16.mxu0 %v1699
        %3797 = vmatmul.mubr.bf16.gmra.mrb[0].mxu0 %v1698
        %v3798 = vpop.f32.mrb[0].mxu0
        %v3799 = vadd.f32 0.0, %v3798
        %v3800 = vpop.f32.mrb[0].mxu0
        %v3801 = vadd.f32 0.0, %v3800
        %v3802 = vpop.f32.mrb[0].mxu0
        %v3803 = vadd.f32 0.0, %v3802
        %v3804 = vpop.f32.mrb[0].mxu0
        %v3805 = vadd.f32 0.0, %v3804
        %3806 = vmatprep.mubr.bf16.mxu0 %v1703
        %3807 = vmatmul.mubr.bf16.gmra.mrb[0].mxu0 %v1702
        %v3808 = vpop.f32.mrb[0].mxu0
        %v3809 = vadd.f32 0.0, %v3808
        %v3810 = vpop.f32.mrb[0].mxu0
        %v3811 = vadd.f32 0.0, %v3810
        %v3812 = vpop.f32.mrb[0].mxu0
        %v3813 = vadd.f32 0.0, %v3812
        %v3814 = vpop.f32.mrb[0].mxu0
        %v3815 = vadd.f32 0.0, %v3814
        %3816 = vmatprep.mubr.bf16.mxu0 %v1707
        %3817 = vmatmul.mubr.bf16.gmra.mrb[0].mxu0 %v1706
        %v3818 = vpop.f32.mrb[0].mxu0
        %v3819 = vadd.f32 0.0, %v3818
        %v3820 = vpop.f32.mrb[0].mxu0
        %v3821 = vadd.f32 0.0, %v3820
        %v3822 = vpop.f32.mrb[0].mxu0
        %v3823 = vadd.f32 0.0, %v3822
        %v3824 = vpop.f32.mrb[0].mxu0
        %v3825 = vadd.f32 0.0, %v3824
        %3826 = vmatprep.mubr.bf16.mxu0 %v1711
        %3827 = vmatmul.mubr.bf16.gmra.mrb[0].mxu0 %v1710
        %v3828 = vpop.f32.mrb[0].mxu0
        %v3829 = vadd.f32 0.0, %v3828
        %v3830 = vpop.f32.mrb[0].mxu0
        %v3831 = vadd.f32 0.0, %v3830
        %v3832 = vpop.f32.mrb[0].mxu0
        %v3833 = vadd.f32 0.0, %v3832
        %v3834 = vpop.f32.mrb[0].mxu0
        %v3835 = vadd.f32 0.0, %v3834
        %3836 = vmatprep.mubr.bf16.mxu0 %v1715
        %3837 = vmatmul.mubr.bf16.gmra.mrb[0].mxu0 %v1714
        %v3838 = vpop.f32.mrb[0].mxu0
        %v3839 = vadd.f32 0.0, %v3838
        %v3840 = vpop.f32.mrb[0].mxu0
        %v3841 = vadd.f32 0.0, %v3840
        %v3842 = vpop.f32.mrb[0].mxu0
        %v3843 = vadd.f32 0.0, %v3842
        %v3844 = vpop.f32.mrb[0].mxu0
        %v3845 = vadd.f32 0.0, %v3844
        %3846 = vmatprep.mubr.bf16.mxu0 %v1719
        %3847 = vmatmul.mubr.bf16.gmra.mrb[0].mxu0 %v1718
        %v3848 = vpop.f32.mrb[0].mxu0
        %v3849 = vadd.f32 0.0, %v3848
        %v3850 = vpop.f32.mrb[0].mxu0
        %v3851 = vadd.f32 0.0, %v3850
        %v3852 = vpop.f32.mrb[0].mxu0
        %v3853 = vadd.f32 0.0, %v3852
        %v3854 = vpop.f32.mrb[0].mxu0
        %v3855 = vadd.f32 0.0, %v3854
        %3856 = vmatprep.mubr.bf16.mxu0 %v1723
        %3857 = vmatmul.mubr.bf16.gmra.mrb[0].mxu0 %v1722
        %v3858 = vpop.f32.mrb[0].mxu0
        %v3859 = vadd.f32 0.0, %v3858
        %v3860 = vpop.f32.mrb[0].mxu0
        %v3861 = vadd.f32 0.0, %v3860
        %v3862 = vpop.f32.mrb[0].mxu0
        %v3863 = vadd.f32 0.0, %v3862
        %v3864 = vpop.f32.mrb[0].mxu0
        %v3865 = vadd.f32 0.0, %v3864
        %3866 = vmatprep.mubr.bf16.mxu0 %v1727
        %3867 = vmatmul.mubr.bf16.gmra.mrb[0].mxu0 %v1726
        %v3868 = vpop.f32.mrb[0].mxu0
        %v3869 = vadd.f32 0.0, %v3868
        %v3870 = vpop.f32.mrb[0].mxu0
        %v3871 = vadd.f32 0.0, %v3870
        %v3872 = vpop.f32.mrb[0].mxu0
        %v3873 = vadd.f32 0.0, %v3872
        %v3874 = vpop.f32.mrb[0].mxu0
        %v3875 = vadd.f32 0.0, %v3874
        %3876 = vmatprep.mubr.bf16.mxu0 %v1731
        %3877 = vmatmul.mubr.bf16.gmra.mrb[0].mxu0 %v1730
        %v3878 = vpop.f32.mrb[0].mxu0
        %v3879 = vadd.f32 0.0, %v3878
        %v3880 = vpop.f32.mrb[0].mxu0
        %v3881 = vadd.f32 0.0, %v3880
        %v3882 = vpop.f32.mrb[0].mxu0
        %v3883 = vadd.f32 0.0, %v3882
        %v3884 = vpop.f32.mrb[0].mxu0
        %v3885 = vadd.f32 0.0, %v3884
        %3886 = vmatprep.mubr.bf16.mxu0 %v1735
        %3887 = vmatmul.mubr.bf16.gmra.mrb[0].mxu0 %v1734
        %v3888 = vpop.f32.mrb[0].mxu0
        %v3889 = vadd.f32 0.0, %v3888
        %v3890 = vpop.f32.mrb[0].mxu0
        %v3891 = vadd.f32 0.0, %v3890
        %v3892 = vpop.f32.mrb[0].mxu0
        %v3893 = vadd.f32 0.0, %v3892
        %v3894 = vpop.f32.mrb[0].mxu0
        %v3895 = vadd.f32 0.0, %v3894
        %3896 = vmatprep.mubr.bf16.mxu0 %v1739
        %3897 = vmatmul.mubr.bf16.gmra.mrb[0].mxu0 %v1738
        %v3898 = vpop.f32.mrb[0].mxu0
        %v3899 = vadd.f32 0.0, %v3898
        %v3900 = vpop.f32.mrb[0].mxu0
        %v3901 = vadd.f32 0.0, %v3900
        %v3902 = vpop.f32.mrb[0].mxu0
        %v3903 = vadd.f32 0.0, %v3902
        %v3904 = vpop.f32.mrb[0].mxu0
        %v3905 = vadd.f32 0.0, %v3904
        %3906 = vmatprep.mubr.bf16.mxu0 %v1743
        %3907 = vmatmul.mubr.bf16.gmra.mrb[0].mxu0 %v1742
        %v3908 = vpop.f32.mrb[0].mxu0
        %v3909 = vadd.f32 0.0, %v3908
        %v3910 = vpop.f32.mrb[0].mxu0
        %v3911 = vadd.f32 0.0, %v3910
        %v3912 = vpop.f32.mrb[0].mxu0
        %v3913 = vadd.f32 0.0, %v3912
        %v3914 = vpop.f32.mrb[0].mxu0
        %v3915 = vadd.f32 0.0, %v3914
        %3916 = vmatprep.mubr.bf16.mxu0 %v1747
        %3917 = vmatmul.mubr.bf16.gmra.mrb[0].mxu0 %v1746
        %v3918 = vpop.f32.mrb[0].mxu0
        %v3919 = vadd.f32 0.0, %v3918
        %v3920 = vpop.f32.mrb[0].mxu0
        %v3921 = vadd.f32 0.0, %v3920
        %v3922 = vpop.f32.mrb[0].mxu0
        %v3923 = vadd.f32 0.0, %v3922
        %v3924 = vpop.f32.mrb[0].mxu0
        %v3925 = vadd.f32 0.0, %v3924
        %3926 = vmatprep.mubr.bf16.mxu0 %v1751
        %3927 = vmatmul.mubr.bf16.gmra.mrb[0].mxu0 %v1750
        %v3928 = vpop.f32.mrb[0].mxu0
        %v3929 = vadd.f32 0.0, %v3928
        %v3930 = vpop.f32.mrb[0].mxu0
        %v3931 = vadd.f32 0.0, %v3930
        %v3932 = vpop.f32.mrb[0].mxu0
        %v3933 = vadd.f32 0.0, %v3932
        %v3934 = vpop.f32.mrb[0].mxu0
        %v3935 = vadd.f32 0.0, %v3934
        %3936 = vmatprep.mubr.bf16.mxu0 %v1755
        %3937 = vmatmul.mubr.bf16.gmra.mrb[0].mxu0 %v1754
        %v3938 = vpop.f32.mrb[0].mxu0
        %v3939 = vadd.f32 0.0, %v3938
        %v3940 = vpop.f32.mrb[0].mxu0
        %v3941 = vadd.f32 0.0, %v3940
        %v3942 = vpop.f32.mrb[0].mxu0
        %v3943 = vadd.f32 0.0, %v3942
        %v3944 = vpop.f32.mrb[0].mxu0
        %v3945 = vadd.f32 0.0, %v3944
        %3946 = vmatprep.mubr.bf16.mxu0 %v1759
        %3947 = vmatmul.mubr.bf16.gmra.mrb[0].mxu0 %v1758
        %v3948 = vpop.f32.mrb[0].mxu0
        %v3949 = vadd.f32 0.0, %v3948
        %v3950 = vpop.f32.mrb[0].mxu0
        %v3951 = vadd.f32 0.0, %v3950
        %v3952 = vpop.f32.mrb[0].mxu0
        %v3953 = vadd.f32 0.0, %v3952
        %v3954 = vpop.f32.mrb[0].mxu0
        %v3955 = vadd.f32 0.0, %v3954
        %3956 = vmatprep.mubr.bf16.mxu0 %v1763
        %3957 = vmatmul.mubr.bf16.gmra.mrb[0].mxu0 %v1762
        %v3958 = vpop.f32.mrb[0].mxu0
        %v3959 = vadd.f32 0.0, %v3958
        %v3960 = vpop.f32.mrb[0].mxu0
        %v3961 = vadd.f32 0.0, %v3960
        %v3962 = vpop.f32.mrb[0].mxu0
        %v3963 = vadd.f32 0.0, %v3962
        %v3964 = vpop.f32.mrb[0].mxu0
        %v3965 = vadd.f32 0.0, %v3964
        %3966 = vmatprep.mubr.bf16.mxu0 %v1767
        %3967 = vmatmul.mubr.bf16.gmra.mrb[0].mxu0 %v1766
        %v3968 = vpop.f32.mrb[0].mxu0
        %v3969 = vadd.f32 0.0, %v3968
        %v3970 = vpop.f32.mrb[0].mxu0
        %v3971 = vadd.f32 0.0, %v3970
        %v3972 = vpop.f32.mrb[0].mxu0
        %v3973 = vadd.f32 0.0, %v3972
        %v3974 = vpop.f32.mrb[0].mxu0
        %v3975 = vadd.f32 0.0, %v3974
        %3976 = vmatprep.mubr.bf16.mxu0 %v1771
        %3977 = vmatmul.mubr.bf16.gmra.mrb[0].mxu0 %v1770
        %v3978 = vpop.f32.mrb[0].mxu0
        %v3979 = vadd.f32 0.0, %v3978
        %v3980 = vpop.f32.mrb[0].mxu0
        %v3981 = vadd.f32 0.0, %v3980
        %v3982 = vpop.f32.mrb[0].mxu0
        %v3983 = vadd.f32 0.0, %v3982
        %v3984 = vpop.f32.mrb[0].mxu0
        %v3985 = vadd.f32 0.0, %v3984
        %3986 = vmatprep.mubr.bf16.mxu0 %v1775
        %3987 = vmatmul.mubr.bf16.gmra.mrb[0].mxu0 %v1774
        %v3988 = vpop.f32.mrb[0].mxu0
        %v3989 = vadd.f32 0.0, %v3988
        %v3990 = vpop.f32.mrb[0].mxu0
        %v3991 = vadd.f32 0.0, %v3990
        %v3992 = vpop.f32.mrb[0].mxu0
        %v3993 = vadd.f32 0.0, %v3992
        %v3994 = vpop.f32.mrb[0].mxu0
        %v3995 = vadd.f32 0.0, %v3994
        %3996 = vmatprep.mubr.bf16.mxu0 %v1779
        %3997 = vmatmul.mubr.bf16.gmra.mrb[0].mxu0 %v1778
        %v3998 = vpop.f32.mrb[0].mxu0
        %v3999 = vadd.f32 0.0, %v3998
        %v4000 = vpop.f32.mrb[0].mxu0
        %v4001 = vadd.f32 0.0, %v4000
        %v4002 = vpop.f32.mrb[0].mxu0
        %v4003 = vpop.f32.mrb[0].mxu0
        %4004 = vdwg.mxu0
        %4005 = vmatprep.subr.bf16.mxu0 %v2717
        %4006 = vmatpush1.bf16.xpose.msra.mxu0 %v2716
        %4007 = vmatprep.subr.bf16.mxu0 %v2721
        %4008 = vmatpush1.bf16.xpose.msra.mxu0 %v2720
        %4009 = vmatprep.subr.bf16.mxu0 %v2725
        %4010 = vmatpush1.bf16.xpose.msra.mxu0 %v2724
        %4011 = vmatprep.subr.bf16.mxu0 %v2729
        %4012 = vmatpush1.bf16.xpose.msra.mxu0 %v2728
        %4013 = vmatprep.subr.bf16.mxu0 %v2733
        %4014 = vmatpush1.bf16.xpose.msra.mxu0 %v2732
        %4015 = vmatprep.subr.bf16.mxu0 %v2737
        %4016 = vmatpush1.bf16.xpose.msra.mxu0 %v2736
        %4017 = vmatprep.subr.bf16.mxu0 %v2741
        %4018 = vmatpush1.bf16.xpose.msra.mxu0 %v2740
        %4019 = vmatprep.subr.bf16.mxu0 %v2745
        %4020 = vmatpush1.bf16.xpose.msra.mxu0 %v2744
        %4021 = vmatprep.subr.bf16.mxu0 %v2749
        %4022 = vmatpush1.bf16.xpose.msra.mxu0 %v2748
        %4023 = vmatprep.subr.bf16.mxu0 %v2753
        %4024 = vmatpush1.bf16.xpose.msra.mxu0 %v2752
        %4025 = vmatprep.subr.bf16.mxu0 %v2757
        %4026 = vmatpush1.bf16.xpose.msra.mxu0 %v2756
        %4027 = vmatprep.subr.bf16.mxu0 %v2761
        %4028 = vmatpush1.bf16.xpose.msra.mxu0 %v2760
        %4029 = vmatprep.subr.bf16.mxu0 %v2765
        %4030 = vmatpush1.bf16.xpose.msra.mxu0 %v2764
        %4031 = vmatprep.subr.bf16.mxu0 %v2769
        %4032 = vmatpush1.bf16.xpose.msra.mxu0 %v2768
        %4033 = vmatprep.subr.bf16.mxu0 %v2773
        %4034 = vmatpush1.bf16.xpose.msra.mxu0 %v2772
        %4035 = vmatprep.subr.bf16.mxu0 %v2777
        %4036 = vmatpush1.bf16.xpose.msra.mxu0 %v2776
        %4037 = vmatprep.mubr.bf16.mxu0 %v1685
        %4038 = vmatmul.mubr.bf16.gmra.mrb[0].mxu0 %v1684
        %v4039 = vpop.f32.mrb[0].mxu0
        %v4040 = vadd.f32 %v3759, %v4039
        %v4041 = vpop.f32.mrb[0].mxu0
        %v4042 = vadd.f32 %v3761, %v4041
        %v4043 = vpop.f32.mrb[0].mxu0
        %v4044 = vadd.f32 %v3763, %v4043
        %v4045 = vpop.f32.mrb[0].mxu0
        %v4046 = vadd.f32 %v3765, %v4045
        %4047 = vmatprep.mubr.bf16.mxu0 %v1689
        %4048 = vmatmul.mubr.bf16.gmra.mrb[0].mxu0 %v1688
        %v4049 = vpop.f32.mrb[0].mxu0
        %v4050 = vadd.f32 %v3769, %v4049
        %v4051 = vpop.f32.mrb[0].mxu0
        %v4052 = vadd.f32 %v3771, %v4051
        %v4053 = vpop.f32.mrb[0].mxu0
        %v4054 = vadd.f32 %v3773, %v4053
        %v4055 = vpop.f32.mrb[0].mxu0
        %v4056 = vadd.f32 %v3775, %v4055
        %4057 = vmatprep.mubr.bf16.mxu0 %v1693
        %4058 = vmatmul.mubr.bf16.gmra.mrb[0].mxu0 %v1692
        %v4059 = vpop.f32.mrb[0].mxu0
        %v4060 = vadd.f32 %v3779, %v4059
        %v4061 = vpop.f32.mrb[0].mxu0
        %v4062 = vadd.f32 %v3781, %v4061
        %v4063 = vpop.f32.mrb[0].mxu0
        %v4064 = vadd.f32 %v3783, %v4063
        %v4065 = vpop.f32.mrb[0].mxu0
        %v4066 = vadd.f32 %v3785, %v4065
        %4067 = vmatprep.mubr.bf16.mxu0 %v1697
        %4068 = vmatmul.mubr.bf16.gmra.mrb[0].mxu0 %v1696
        %v4069 = vpop.f32.mrb[0].mxu0
        %v4070 = vadd.f32 %v3789, %v4069
        %v4071 = vpop.f32.mrb[0].mxu0
        %v4072 = vadd.f32 %v3791, %v4071
        %v4073 = vpop.f32.mrb[0].mxu0
        %v4074 = vadd.f32 %v3793, %v4073
        %v4075 = vpop.f32.mrb[0].mxu0
        %v4076 = vadd.f32 %v3795, %v4075
        %4077 = vmatprep.mubr.bf16.mxu0 %v1701
        %4078 = vmatmul.mubr.bf16.gmra.mrb[0].mxu0 %v1700
        %v4079 = vpop.f32.mrb[0].mxu0
        %v4080 = vadd.f32 %v3799, %v4079
        %v4081 = vpop.f32.mrb[0].mxu0
        %v4082 = vadd.f32 %v3801, %v4081
        %v4083 = vpop.f32.mrb[0].mxu0
        %v4084 = vadd.f32 %v3803, %v4083
        %v4085 = vpop.f32.mrb[0].mxu0
        %v4086 = vadd.f32 %v3805, %v4085
        %4087 = vmatprep.mubr.bf16.mxu0 %v1705
        %4088 = vmatmul.mubr.bf16.gmra.mrb[0].mxu0 %v1704
        %v4089 = vpop.f32.mrb[0].mxu0
        %v4090 = vadd.f32 %v3809, %v4089
        %v4091 = vpop.f32.mrb[0].mxu0
        %v4092 = vadd.f32 %v3811, %v4091
        %v4093 = vpop.f32.mrb[0].mxu0
        %v4094 = vadd.f32 %v3813, %v4093
        %v4095 = vpop.f32.mrb[0].mxu0
        %v4096 = vadd.f32 %v3815, %v4095
        %4097 = vmatprep.mubr.bf16.mxu0 %v1709
        %4098 = vmatmul.mubr.bf16.gmra.mrb[0].mxu0 %v1708
        %v4099 = vpop.f32.mrb[0].mxu0
        %v4100 = vadd.f32 %v3819, %v4099
        %v4101 = vpop.f32.mrb[0].mxu0
        %v4102 = vadd.f32 %v3821, %v4101
        %v4103 = vpop.f32.mrb[0].mxu0
        %v4104 = vadd.f32 %v3823, %v4103
        %v4105 = vpop.f32.mrb[0].mxu0
        %v4106 = vadd.f32 %v3825, %v4105
        %4107 = vmatprep.mubr.bf16.mxu0 %v1713
        %4108 = vmatmul.mubr.bf16.gmra.mrb[0].mxu0 %v1712
        %v4109 = vpop.f32.mrb[0].mxu0
        %v4110 = vadd.f32 %v3829, %v4109
        %v4111 = vpop.f32.mrb[0].mxu0
        %v4112 = vadd.f32 %v3831, %v4111
        %v4113 = vpop.f32.mrb[0].mxu0
        %v4114 = vadd.f32 %v3833, %v4113
        %v4115 = vpop.f32.mrb[0].mxu0
        %v4116 = vadd.f32 %v3835, %v4115
        %4117 = vmatprep.mubr.bf16.mxu0 %v1717
        %4118 = vmatmul.mubr.bf16.gmra.mrb[0].mxu0 %v1716
        %v4119 = vpop.f32.mrb[0].mxu0
        %v4120 = vadd.f32 %v3839, %v4119
        %v4121 = vpop.f32.mrb[0].mxu0
        %v4122 = vadd.f32 %v3841, %v4121
        %v4123 = vpop.f32.mrb[0].mxu0
        %v4124 = vadd.f32 %v3843, %v4123
        %v4125 = vpop.f32.mrb[0].mxu0
        %v4126 = vadd.f32 %v3845, %v4125
        %4127 = vmatprep.mubr.bf16.mxu0 %v1721
        %4128 = vmatmul.mubr.bf16.gmra.mrb[0].mxu0 %v1720
        %v4129 = vpop.f32.mrb[0].mxu0
        %v4130 = vadd.f32 %v3849, %v4129
        %v4131 = vpop.f32.mrb[0].mxu0
        %v4132 = vadd.f32 %v3851, %v4131
        %v4133 = vpop.f32.mrb[0].mxu0
        %v4134 = vadd.f32 %v3853, %v4133
        %v4135 = vpop.f32.mrb[0].mxu0
        %v4136 = vadd.f32 %v3855, %v4135
        %4137 = vmatprep.mubr.bf16.mxu0 %v1725
        %4138 = vmatmul.mubr.bf16.gmra.mrb[0].mxu0 %v1724
        %v4139 = vpop.f32.mrb[0].mxu0
        %v4140 = vadd.f32 %v3859, %v4139
        %v4141 = vpop.f32.mrb[0].mxu0
        %v4142 = vadd.f32 %v3861, %v4141
        %v4143 = vpop.f32.mrb[0].mxu0
        %v4144 = vadd.f32 %v3863, %v4143
        %v4145 = vpop.f32.mrb[0].mxu0
        %v4146 = vadd.f32 %v3865, %v4145
        %4147 = vmatprep.mubr.bf16.mxu0 %v1729
        %4148 = vmatmul.mubr.bf16.gmra.mrb[0].mxu0 %v1728
        %v4149 = vpop.f32.mrb[0].mxu0
        %v4150 = vadd.f32 %v3869, %v4149
        %v4151 = vpop.f32.mrb[0].mxu0
        %v4152 = vadd.f32 %v3871, %v4151
        %v4153 = vpop.f32.mrb[0].mxu0
        %v4154 = vadd.f32 %v3873, %v4153
        %v4155 = vpop.f32.mrb[0].mxu0
        %v4156 = vadd.f32 %v3875, %v4155
        %4157 = vmatprep.mubr.bf16.mxu0 %v1733
        %4158 = vmatmul.mubr.bf16.gmra.mrb[0].mxu0 %v1732
        %v4159 = vpop.f32.mrb[0].mxu0
        %v4160 = vadd.f32 %v3879, %v4159
        %v4161 = vpop.f32.mrb[0].mxu0
        %v4162 = vadd.f32 %v3881, %v4161
        %v4163 = vpop.f32.mrb[0].mxu0
        %v4164 = vadd.f32 %v3883, %v4163
        %v4165 = vpop.f32.mrb[0].mxu0
        %v4166 = vadd.f32 %v3885, %v4165
        %4167 = vmatprep.mubr.bf16.mxu0 %v1737
        %4168 = vmatmul.mubr.bf16.gmra.mrb[0].mxu0 %v1736
        %v4169 = vpop.f32.mrb[0].mxu0
        %v4170 = vadd.f32 %v3889, %v4169
        %v4171 = vpop.f32.mrb[0].mxu0
        %v4172 = vadd.f32 %v3891, %v4171
        %v4173 = vpop.f32.mrb[0].mxu0
        %v4174 = vadd.f32 %v3893, %v4173
        %v4175 = vpop.f32.mrb[0].mxu0
        %v4176 = vadd.f32 %v3895, %v4175
        %4177 = vmatprep.mubr.bf16.mxu0 %v1741
        %4178 = vmatmul.mubr.bf16.gmra.mrb[0].mxu0 %v1740
        %v4179 = vpop.f32.mrb[0].mxu0
        %v4180 = vadd.f32 %v3899, %v4179
        %v4181 = vpop.f32.mrb[0].mxu0
        %v4182 = vadd.f32 %v3901, %v4181
        %v4183 = vpop.f32.mrb[0].mxu0
        %v4184 = vadd.f32 %v3903, %v4183
        %v4185 = vpop.f32.mrb[0].mxu0
        %v4186 = vadd.f32 %v3905, %v4185
        %4187 = vmatprep.mubr.bf16.mxu0 %v1745
        %4188 = vmatmul.mubr.bf16.gmra.mrb[0].mxu0 %v1744
        %v4189 = vpop.f32.mrb[0].mxu0
        %v4190 = vadd.f32 %v3909, %v4189
        %v4191 = vpop.f32.mrb[0].mxu0
        %v4192 = vadd.f32 %v3911, %v4191
        %v4193 = vpop.f32.mrb[0].mxu0
        %v4194 = vadd.f32 %v3913, %v4193
        %v4195 = vpop.f32.mrb[0].mxu0
        %v4196 = vadd.f32 %v3915, %v4195
        %4197 = vmatprep.mubr.bf16.mxu0 %v1749
        %4198 = vmatmul.mubr.bf16.gmra.mrb[0].mxu0 %v1748
        %v4199 = vpop.f32.mrb[0].mxu0
        %v4200 = vadd.f32 %v3919, %v4199
        %v4201 = vpop.f32.mrb[0].mxu0
        %v4202 = vadd.f32 %v3921, %v4201
        %v4203 = vpop.f32.mrb[0].mxu0
        %v4204 = vadd.f32 %v3923, %v4203
        %v4205 = vpop.f32.mrb[0].mxu0
        %v4206 = vadd.f32 %v3925, %v4205
        %4207 = vmatprep.mubr.bf16.mxu0 %v1753
        %4208 = vmatmul.mubr.bf16.gmra.mrb[0].mxu0 %v1752
        %v4209 = vpop.f32.mrb[0].mxu0
        %v4210 = vadd.f32 %v3929, %v4209
        %v4211 = vpop.f32.mrb[0].mxu0
        %v4212 = vadd.f32 %v3931, %v4211
        %v4213 = vpop.f32.mrb[0].mxu0
        %v4214 = vadd.f32 %v3933, %v4213
        %v4215 = vpop.f32.mrb[0].mxu0
        %v4216 = vadd.f32 %v3935, %v4215
        %4217 = vmatprep.mubr.bf16.mxu0 %v1757
        %4218 = vmatmul.mubr.bf16.gmra.mrb[0].mxu0 %v1756
        %v4219 = vpop.f32.mrb[0].mxu0
        %v4220 = vadd.f32 %v3939, %v4219
        %v4221 = vpop.f32.mrb[0].mxu0
        %v4222 = vadd.f32 %v3941, %v4221
        %v4223 = vpop.f32.mrb[0].mxu0
        %v4224 = vadd.f32 %v3943, %v4223
        %v4225 = vpop.f32.mrb[0].mxu0
        %v4226 = vadd.f32 %v3945, %v4225
        %4227 = vmatprep.mubr.bf16.mxu0 %v1761
        %4228 = vmatmul.mubr.bf16.gmra.mrb[0].mxu0 %v1760
        %v4229 = vpop.f32.mrb[0].mxu0
        %v4230 = vadd.f32 %v3949, %v4229
        %v4231 = vpop.f32.mrb[0].mxu0
        %v4232 = vadd.f32 %v3951, %v4231
        %v4233 = vpop.f32.mrb[0].mxu0
        %v4234 = vadd.f32 %v3953, %v4233
        %v4235 = vpop.f32.mrb[0].mxu0
        %v4236 = vadd.f32 %v3955, %v4235
        %4237 = vmatprep.mubr.bf16.mxu0 %v1765
        %4238 = vmatmul.mubr.bf16.gmra.mrb[0].mxu0 %v1764
        %v4239 = vpop.f32.mrb[0].mxu0
        %v4240 = vadd.f32 %v3959, %v4239
        %v4241 = vpop.f32.mrb[0].mxu0
        %v4242 = vadd.f32 %v3961, %v4241
        %v4243 = vpop.f32.mrb[0].mxu0
        %v4244 = vadd.f32 %v3963, %v4243
        %v4245 = vpop.f32.mrb[0].mxu0
        %v4246 = vadd.f32 %v3965, %v4245
        %4247 = vmatprep.mubr.bf16.mxu0 %v1769
        %4248 = vmatmul.mubr.bf16.gmra.mrb[0].mxu0 %v1768
        %v4249 = vpop.f32.mrb[0].mxu0
        %v4250 = vadd.f32 %v3969, %v4249
        %v4251 = vpop.f32.mrb[0].mxu0
        %v4252 = vadd.f32 %v3971, %v4251
        %v4253 = vpop.f32.mrb[0].mxu0
        %v4254 = vadd.f32 %v3973, %v4253
        %v4255 = vpop.f32.mrb[0].mxu0
        %v4256 = vadd.f32 %v3975, %v4255
        %4257 = vmatprep.mubr.bf16.mxu0 %v1773
        %4258 = vmatmul.mubr.bf16.gmra.mrb[0].mxu0 %v1772
        %v4259 = vpop.f32.mrb[0].mxu0
        %v4260 = vadd.f32 %v3979, %v4259
        %v4261 = vpop.f32.mrb[0].mxu0
        %v4262 = vadd.f32 %v3981, %v4261
        %v4263 = vpop.f32.mrb[0].mxu0
        %v4264 = vadd.f32 %v3983, %v4263
        %v4265 = vpop.f32.mrb[0].mxu0
        %v4266 = vadd.f32 %v3985, %v4265
        %4267 = vmatprep.mubr.bf16.mxu0 %v1777
        %4268 = vmatmul.mubr.bf16.gmra.mrb[0].mxu0 %v1776
        %v4269 = vpop.f32.mrb[0].mxu0
        %v4270 = vadd.f32 %v3989, %v4269
        %v4271 = vpop.f32.mrb[0].mxu0
        %v4272 = vadd.f32 %v3991, %v4271
        %v4273 = vpop.f32.mrb[0].mxu0
        %v4274 = vadd.f32 %v3993, %v4273
        %v4275 = vpop.f32.mrb[0].mxu0
        %v4276 = vadd.f32 %v3995, %v4275
        %4277 = vmatprep.mubr.bf16.mxu0 %v1781
        %4278 = vmatmul.mubr.bf16.gmra.mrb[0].mxu0 %v1780
        %v4279 = vpop.f32.mrb[0].mxu0
        %v4280 = vadd.f32 %v3999, %v4279
        %v4281 = vpop.f32.mrb[0].mxu0
        %v4282 = vadd.f32 %v4001, %v4281
        %v4283 = vpop.f32.mrb[0].mxu0
        %v4284 = vpop.f32.mrb[0].mxu0
        %4285 = vdwg.mxu0
        %4286 = vmatprep.subr.bf16.mxu0 %v2779
        %4287 = vmatpush1.bf16.xpose.msra.mxu0 %v2778
        %4288 = vmatprep.subr.bf16.mxu0 %v2783
        %4289 = vmatpush1.bf16.xpose.msra.mxu0 %v2782
        %4290 = vmatprep.subr.bf16.mxu0 %v2787
        %4291 = vmatpush1.bf16.xpose.msra.mxu0 %v2786
        %4292 = vmatprep.subr.bf16.mxu0 %v2791
        %4293 = vmatpush1.bf16.xpose.msra.mxu0 %v2790
        %4294 = vmatprep.subr.bf16.mxu0 %v2795
        %4295 = vmatpush1.bf16.xpose.msra.mxu0 %v2794
        %4296 = vmatprep.subr.bf16.mxu0 %v2799
        %4297 = vmatpush1.bf16.xpose.msra.mxu0 %v2798
        %4298 = vmatprep.subr.bf16.mxu0 %v2803
        %4299 = vmatpush1.bf16.xpose.msra.mxu0 %v2802
        %4300 = vmatprep.subr.bf16.mxu0 %v2807
        %4301 = vmatpush1.bf16.xpose.msra.mxu0 %v2806
        %4302 = vmatprep.subr.bf16.mxu0 %v2811
        %4303 = vmatpush1.bf16.xpose.msra.mxu0 %v2810
        %4304 = vmatprep.subr.bf16.mxu0 %v2815
        %4305 = vmatpush1.bf16.xpose.msra.mxu0 %v2814
        %4306 = vmatprep.subr.bf16.mxu0 %v2819
        %4307 = vmatpush1.bf16.xpose.msra.mxu0 %v2818
        %4308 = vmatprep.subr.bf16.mxu0 %v2823
        %4309 = vmatpush1.bf16.xpose.msra.mxu0 %v2822
        %4310 = vmatprep.subr.bf16.mxu0 %v2827
        %4311 = vmatpush1.bf16.xpose.msra.mxu0 %v2826
        %4312 = vmatprep.subr.bf16.mxu0 %v2831
        %4313 = vmatpush1.bf16.xpose.msra.mxu0 %v2830
        %4314 = vmatprep.subr.bf16.mxu0 %v2835
        %4315 = vmatpush1.bf16.xpose.msra.mxu0 %v2834
        %4316 = vmatprep.subr.bf16.mxu0 %v2839
        %4317 = vmatpush1.bf16.xpose.msra.mxu0 %v2838
        %4318 = vmatprep.mubr.bf16.mxu0 %v1683
        %4319 = vmatmul.mubr.bf16.gmra.mrb[0].mxu0 %v1682
        %v4320 = vpop.f32.mrb[0].mxu0
        %v4321 = vadd.f32 0.0, %v4320
        %v4322 = vpop.f32.mrb[0].mxu0
        %v4323 = vadd.f32 0.0, %v4322
        %v4324 = vpop.f32.mrb[0].mxu0
        %v4325 = vadd.f32 0.0, %v4324
        %v4326 = vpop.f32.mrb[0].mxu0
        %v4327 = vadd.f32 0.0, %v4326
        %4328 = vmatprep.mubr.bf16.mxu0 %v1687
        %4329 = vmatmul.mubr.bf16.gmra.mrb[0].mxu0 %v1686
        %v4330 = vpop.f32.mrb[0].mxu0
        %v4331 = vadd.f32 0.0, %v4330
        %v4332 = vpop.f32.mrb[0].mxu0
        %v4333 = vadd.f32 0.0, %v4332
        %v4334 = vpop.f32.mrb[0].mxu0
        %v4335 = vadd.f32 0.0, %v4334
        %v4336 = vpop.f32.mrb[0].mxu0
        %v4337 = vadd.f32 0.0, %v4336
        %4338 = vmatprep.mubr.bf16.mxu0 %v1691
        %4339 = vmatmul.mubr.bf16.gmra.mrb[0].mxu0 %v1690
        %v4340 = vpop.f32.mrb[0].mxu0
        %v4341 = vadd.f32 0.0, %v4340
        %v4342 = vpop.f32.mrb[0].mxu0
        %v4343 = vadd.f32 0.0, %v4342
        %v4344 = vpop.f32.mrb[0].mxu0
        %v4345 = vadd.f32 0.0, %v4344
        %v4346 = vpop.f32.mrb[0].mxu0
        %v4347 = vadd.f32 0.0, %v4346
        %4348 = vmatprep.mubr.bf16.mxu0 %v1695
        %4349 = vmatmul.mubr.bf16.gmra.mrb[0].mxu0 %v1694
        %v4350 = vpop.f32.mrb[0].mxu0
        %v4351 = vadd.f32 0.0, %v4350
        %v4352 = vpop.f32.mrb[0].mxu0
        %v4353 = vadd.f32 0.0, %v4352
        %v4354 = vpop.f32.mrb[0].mxu0
        %v4355 = vadd.f32 0.0, %v4354
        %v4356 = vpop.f32.mrb[0].mxu0
        %v4357 = vadd.f32 0.0, %v4356
        %4358 = vmatprep.mubr.bf16.mxu0 %v1699
        %4359 = vmatmul.mubr.bf16.gmra.mrb[0].mxu0 %v1698
        %v4360 = vpop.f32.mrb[0].mxu0
        %v4361 = vadd.f32 0.0, %v4360
        %v4362 = vpop.f32.mrb[0].mxu0
        %v4363 = vadd.f32 0.0, %v4362
        %v4364 = vpop.f32.mrb[0].mxu0
        %v4365 = vadd.f32 0.0, %v4364
        %v4366 = vpop.f32.mrb[0].mxu0
        %v4367 = vadd.f32 0.0, %v4366
        %4368 = vmatprep.mubr.bf16.mxu0 %v1703
        %4369 = vmatmul.mubr.bf16.gmra.mrb[0].mxu0 %v1702
        %v4370 = vpop.f32.mrb[0].mxu0
        %v4371 = vadd.f32 0.0, %v4370
        %v4372 = vpop.f32.mrb[0].mxu0
        %v4373 = vadd.f32 0.0, %v4372
        %v4374 = vpop.f32.mrb[0].mxu0
        %v4375 = vadd.f32 0.0, %v4374
        %v4376 = vpop.f32.mrb[0].mxu0
        %v4377 = vadd.f32 0.0, %v4376
        %4378 = vmatprep.mubr.bf16.mxu0 %v1707
        %4379 = vmatmul.mubr.bf16.gmra.mrb[0].mxu0 %v1706
        %v4380 = vpop.f32.mrb[0].mxu0
        %v4381 = vadd.f32 0.0, %v4380
        %v4382 = vpop.f32.mrb[0].mxu0
        %v4383 = vadd.f32 0.0, %v4382
        %v4384 = vpop.f32.mrb[0].mxu0
        %v4385 = vadd.f32 0.0, %v4384
        %v4386 = vpop.f32.mrb[0].mxu0
        %v4387 = vadd.f32 0.0, %v4386
        %4388 = vmatprep.mubr.bf16.mxu0 %v1711
        %4389 = vmatmul.mubr.bf16.gmra.mrb[0].mxu0 %v1710
        %v4390 = vpop.f32.mrb[0].mxu0
        %v4391 = vadd.f32 0.0, %v4390
        %v4392 = vpop.f32.mrb[0].mxu0
        %v4393 = vadd.f32 0.0, %v4392
        %v4394 = vpop.f32.mrb[0].mxu0
        %v4395 = vadd.f32 0.0, %v4394
        %v4396 = vpop.f32.mrb[0].mxu0
        %v4397 = vadd.f32 0.0, %v4396
        %4398 = vmatprep.mubr.bf16.mxu0 %v1715
        %4399 = vmatmul.mubr.bf16.gmra.mrb[0].mxu0 %v1714
        %v4400 = vpop.f32.mrb[0].mxu0
        %v4401 = vadd.f32 0.0, %v4400
        %v4402 = vpop.f32.mrb[0].mxu0
        %v4403 = vadd.f32 0.0, %v4402
        %v4404 = vpop.f32.mrb[0].mxu0
        %v4405 = vadd.f32 0.0, %v4404
        %v4406 = vpop.f32.mrb[0].mxu0
        %v4407 = vadd.f32 0.0, %v4406
        %4408 = vmatprep.mubr.bf16.mxu0 %v1719
        %4409 = vmatmul.mubr.bf16.gmra.mrb[0].mxu0 %v1718
        %v4410 = vpop.f32.mrb[0].mxu0
        %v4411 = vadd.f32 0.0, %v4410
        %v4412 = vpop.f32.mrb[0].mxu0
        %v4413 = vadd.f32 0.0, %v4412
        %v4414 = vpop.f32.mrb[0].mxu0
        %v4415 = vadd.f32 0.0, %v4414
        %v4416 = vpop.f32.mrb[0].mxu0
        %v4417 = vadd.f32 0.0, %v4416
        %4418 = vmatprep.mubr.bf16.mxu0 %v1723
        %4419 = vmatmul.mubr.bf16.gmra.mrb[0].mxu0 %v1722
        %v4420 = vpop.f32.mrb[0].mxu0
        %v4421 = vadd.f32 0.0, %v4420
        %v4422 = vpop.f32.mrb[0].mxu0
        %v4423 = vadd.f32 0.0, %v4422
        %v4424 = vpop.f32.mrb[0].mxu0
        %v4425 = vadd.f32 0.0, %v4424
        %v4426 = vpop.f32.mrb[0].mxu0
        %v4427 = vadd.f32 0.0, %v4426
        %4428 = vmatprep.mubr.bf16.mxu0 %v1727
        %4429 = vmatmul.mubr.bf16.gmra.mrb[0].mxu0 %v1726
        %v4430 = vpop.f32.mrb[0].mxu0
        %v4431 = vadd.f32 0.0, %v4430
        %v4432 = vpop.f32.mrb[0].mxu0
        %v4433 = vadd.f32 0.0, %v4432
        %v4434 = vpop.f32.mrb[0].mxu0
        %v4435 = vadd.f32 0.0, %v4434
        %v4436 = vpop.f32.mrb[0].mxu0
        %v4437 = vadd.f32 0.0, %v4436
        %4438 = vmatprep.mubr.bf16.mxu0 %v1731
        %4439 = vmatmul.mubr.bf16.gmra.mrb[0].mxu0 %v1730
        %v4440 = vpop.f32.mrb[0].mxu0
        %v4441 = vadd.f32 0.0, %v4440
        %v4442 = vpop.f32.mrb[0].mxu0
        %v4443 = vadd.f32 0.0, %v4442
        %v4444 = vpop.f32.mrb[0].mxu0
        %v4445 = vadd.f32 0.0, %v4444
        %v4446 = vpop.f32.mrb[0].mxu0
        %v4447 = vadd.f32 0.0, %v4446
        %4448 = vmatprep.mubr.bf16.mxu0 %v1735
        %4449 = vmatmul.mubr.bf16.gmra.mrb[0].mxu0 %v1734
        %v4450 = vpop.f32.mrb[0].mxu0
        %v4451 = vadd.f32 0.0, %v4450
        %v4452 = vpop.f32.mrb[0].mxu0
        %v4453 = vadd.f32 0.0, %v4452
        %v4454 = vpop.f32.mrb[0].mxu0
        %v4455 = vadd.f32 0.0, %v4454
        %v4456 = vpop.f32.mrb[0].mxu0
        %v4457 = vadd.f32 0.0, %v4456
        %4458 = vmatprep.mubr.bf16.mxu0 %v1739
        %4459 = vmatmul.mubr.bf16.gmra.mrb[0].mxu0 %v1738
        %v4460 = vpop.f32.mrb[0].mxu0
        %v4461 = vadd.f32 0.0, %v4460
        %v4462 = vpop.f32.mrb[0].mxu0
        %v4463 = vadd.f32 0.0, %v4462
        %v4464 = vpop.f32.mrb[0].mxu0
        %v4465 = vadd.f32 0.0, %v4464
        %v4466 = vpop.f32.mrb[0].mxu0
        %v4467 = vadd.f32 0.0, %v4466
        %4468 = vmatprep.mubr.bf16.mxu0 %v1743
        %4469 = vmatmul.mubr.bf16.gmra.mrb[0].mxu0 %v1742
        %v4470 = vpop.f32.mrb[0].mxu0
        %v4471 = vadd.f32 0.0, %v4470
        %v4472 = vpop.f32.mrb[0].mxu0
        %v4473 = vadd.f32 0.0, %v4472
        %v4474 = vpop.f32.mrb[0].mxu0
        %v4475 = vadd.f32 0.0, %v4474
        %v4476 = vpop.f32.mrb[0].mxu0
        %v4477 = vadd.f32 0.0, %v4476
        %4478 = vmatprep.mubr.bf16.mxu0 %v1747
        %4479 = vmatmul.mubr.bf16.gmra.mrb[0].mxu0 %v1746
        %v4480 = vpop.f32.mrb[0].mxu0
        %v4481 = vadd.f32 0.0, %v4480
        %v4482 = vpop.f32.mrb[0].mxu0
        %v4483 = vadd.f32 0.0, %v4482
        %v4484 = vpop.f32.mrb[0].mxu0
        %v4485 = vadd.f32 0.0, %v4484
        %v4486 = vpop.f32.mrb[0].mxu0
        %v4487 = vadd.f32 0.0, %v4486
        %4488 = vmatprep.mubr.bf16.mxu0 %v1751
        %4489 = vmatmul.mubr.bf16.gmra.mrb[0].mxu0 %v1750
        %v4490 = vpop.f32.mrb[0].mxu0
        %v4491 = vadd.f32 0.0, %v4490
        %v4492 = vpop.f32.mrb[0].mxu0
        %v4493 = vadd.f32 0.0, %v4492
        %v4494 = vpop.f32.mrb[0].mxu0
        %v4495 = vadd.f32 0.0, %v4494
        %v4496 = vpop.f32.mrb[0].mxu0
        %v4497 = vadd.f32 0.0, %v4496
        %4498 = vmatprep.mubr.bf16.mxu0 %v1755
        %4499 = vmatmul.mubr.bf16.gmra.mrb[0].mxu0 %v1754
        %v4500 = vpop.f32.mrb[0].mxu0
        %v4501 = vadd.f32 0.0, %v4500
        %v4502 = vpop.f32.mrb[0].mxu0
        %v4503 = vadd.f32 0.0, %v4502
        %v4504 = vpop.f32.mrb[0].mxu0
        %v4505 = vadd.f32 0.0, %v4504
        %v4506 = vpop.f32.mrb[0].mxu0
        %v4507 = vadd.f32 0.0, %v4506
        %4508 = vmatprep.mubr.bf16.mxu0 %v1759
        %4509 = vmatmul.mubr.bf16.gmra.mrb[0].mxu0 %v1758
        %v4510 = vpop.f32.mrb[0].mxu0
        %v4511 = vadd.f32 0.0, %v4510
        %v4512 = vpop.f32.mrb[0].mxu0
        %v4513 = vadd.f32 0.0, %v4512
        %v4514 = vpop.f32.mrb[0].mxu0
        %v4515 = vadd.f32 0.0, %v4514
        %v4516 = vpop.f32.mrb[0].mxu0
        %v4517 = vadd.f32 0.0, %v4516
        %4518 = vmatprep.mubr.bf16.mxu0 %v1763
        %4519 = vmatmul.mubr.bf16.gmra.mrb[0].mxu0 %v1762
        %v4520 = vpop.f32.mrb[0].mxu0
        %v4521 = vadd.f32 0.0, %v4520
        %v4522 = vpop.f32.mrb[0].mxu0
        %v4523 = vadd.f32 0.0, %v4522
        %v4524 = vpop.f32.mrb[0].mxu0
        %v4525 = vadd.f32 0.0, %v4524
        %v4526 = vpop.f32.mrb[0].mxu0
        %v4527 = vadd.f32 0.0, %v4526
        %4528 = vmatprep.mubr.bf16.mxu0 %v1767
        %4529 = vmatmul.mubr.bf16.gmra.mrb[0].mxu0 %v1766
        %v4530 = vpop.f32.mrb[0].mxu0
        %v4531 = vadd.f32 0.0, %v4530
        %v4532 = vpop.f32.mrb[0].mxu0
        %v4533 = vadd.f32 0.0, %v4532
        %v4534 = vpop.f32.mrb[0].mxu0
        %v4535 = vadd.f32 0.0, %v4534
        %v4536 = vpop.f32.mrb[0].mxu0
        %v4537 = vadd.f32 0.0, %v4536
        %4538 = vmatprep.mubr.bf16.mxu0 %v1771
        %4539 = vmatmul.mubr.bf16.gmra.mrb[0].mxu0 %v1770
        %v4540 = vpop.f32.mrb[0].mxu0
        %v4541 = vadd.f32 0.0, %v4540
        %v4542 = vpop.f32.mrb[0].mxu0
        %v4543 = vadd.f32 0.0, %v4542
        %v4544 = vpop.f32.mrb[0].mxu0
        %v4545 = vadd.f32 0.0, %v4544
        %v4546 = vpop.f32.mrb[0].mxu0
        %v4547 = vadd.f32 0.0, %v4546
        %4548 = vmatprep.mubr.bf16.mxu0 %v1775
        %4549 = vmatmul.mubr.bf16.gmra.mrb[0].mxu0 %v1774
        %v4550 = vpop.f32.mrb[0].mxu0
        %v4551 = vadd.f32 0.0, %v4550
        %v4552 = vpop.f32.mrb[0].mxu0
        %v4553 = vadd.f32 0.0, %v4552
        %v4554 = vpop.f32.mrb[0].mxu0
        %v4555 = vadd.f32 0.0, %v4554
        %v4556 = vpop.f32.mrb[0].mxu0
        %v4557 = vadd.f32 0.0, %v4556
        %4558 = vmatprep.mubr.bf16.mxu0 %v1779
        %4559 = vmatmul.mubr.bf16.gmra.mrb[0].mxu0 %v1778
        %v4560 = vpop.f32.mrb[0].mxu0
        %v4561 = vadd.f32 0.0, %v4560
        %v4562 = vpop.f32.mrb[0].mxu0
        %v4563 = vadd.f32 0.0, %v4562
        %v4564 = vpop.f32.mrb[0].mxu0
        %v4565 = vpop.f32.mrb[0].mxu0
        %4566 = vdwg.mxu0
        %4567 = vmatprep.subr.bf16.mxu0 %v2781
        %4568 = vmatpush1.bf16.xpose.msra.mxu0 %v2780
        %4569 = vmatprep.subr.bf16.mxu0 %v2785
        %4570 = vmatpush1.bf16.xpose.msra.mxu0 %v2784
        %4571 = vmatprep.subr.bf16.mxu0 %v2789
        %4572 = vmatpush1.bf16.xpose.msra.mxu0 %v2788
        %4573 = vmatprep.subr.bf16.mxu0 %v2793
        %4574 = vmatpush1.bf16.xpose.msra.mxu0 %v2792
        %4575 = vmatprep.subr.bf16.mxu0 %v2797
        %4576 = vmatpush1.bf16.xpose.msra.mxu0 %v2796
        %4577 = vmatprep.subr.bf16.mxu0 %v2801
        %4578 = vmatpush1.bf16.xpose.msra.mxu0 %v2800
        %4579 = vmatprep.subr.bf16.mxu0 %v2805
        %4580 = vmatpush1.bf16.xpose.msra.mxu0 %v2804
        %4581 = vmatprep.subr.bf16.mxu0 %v2809
        %4582 = vmatpush1.bf16.xpose.msra.mxu0 %v2808
        %4583 = vmatprep.subr.bf16.mxu0 %v2813
        %4584 = vmatpush1.bf16.xpose.msra.mxu0 %v2812
        %4585 = vmatprep.subr.bf16.mxu0 %v2817
        %4586 = vmatpush1.bf16.xpose.msra.mxu0 %v2816
        %4587 = vmatprep.subr.bf16.mxu0 %v2821
        %4588 = vmatpush1.bf16.xpose.msra.mxu0 %v2820
        %4589 = vmatprep.subr.bf16.mxu0 %v2825
        %4590 = vmatpush1.bf16.xpose.msra.mxu0 %v2824
        %4591 = vmatprep.subr.bf16.mxu0 %v2829
        %4592 = vmatpush1.bf16.xpose.msra.mxu0 %v2828
        %4593 = vmatprep.subr.bf16.mxu0 %v2833
        %4594 = vmatpush1.bf16.xpose.msra.mxu0 %v2832
        %4595 = vmatprep.subr.bf16.mxu0 %v2837
        %4596 = vmatpush1.bf16.xpose.msra.mxu0 %v2836
        %4597 = vmatprep.subr.bf16.mxu0 %v2841
        %4598 = vmatpush1.bf16.xpose.msra.mxu0 %v2840
        %4599 = vmatprep.mubr.bf16.mxu0 %v1685
        %4600 = vmatmul.mubr.bf16.gmra.mrb[0].mxu0 %v1684
        %v4601 = vpop.f32.mrb[0].mxu0
        %v4602 = vadd.f32 %v4321, %v4601
        %v4603 = vpop.f32.mrb[0].mxu0
        %v4604 = vadd.f32 %v4323, %v4603
        %v4605 = vpop.f32.mrb[0].mxu0
        %v4606 = vadd.f32 %v4325, %v4605
        %v4607 = vpop.f32.mrb[0].mxu0
        %v4608 = vadd.f32 %v4327, %v4607
        %4609 = vmatprep.mubr.bf16.mxu0 %v1689
        %4610 = vmatmul.mubr.bf16.gmra.mrb[0].mxu0 %v1688
        %v4611 = vpop.f32.mrb[0].mxu0
        %v4612 = vadd.f32 %v4331, %v4611
        %v4613 = vpop.f32.mrb[0].mxu0
        %v4614 = vadd.f32 %v4333, %v4613
        %v4615 = vpop.f32.mrb[0].mxu0
        %v4616 = vadd.f32 %v4335, %v4615
        %v4617 = vpop.f32.mrb[0].mxu0
        %v4618 = vadd.f32 %v4337, %v4617
        %4619 = vmatprep.mubr.bf16.mxu0 %v1693
        %4620 = vmatmul.mubr.bf16.gmra.mrb[0].mxu0 %v1692
        %v4621 = vpop.f32.mrb[0].mxu0
        %v4622 = vadd.f32 %v4341, %v4621
        %v4623 = vpop.f32.mrb[0].mxu0
        %v4624 = vadd.f32 %v4343, %v4623
        %v4625 = vpop.f32.mrb[0].mxu0
        %v4626 = vadd.f32 %v4345, %v4625
        %v4627 = vpop.f32.mrb[0].mxu0
        %v4628 = vadd.f32 %v4347, %v4627
        %4629 = vmatprep.mubr.bf16.mxu0 %v1697
        %4630 = vmatmul.mubr.bf16.gmra.mrb[0].mxu0 %v1696
        %v4631 = vpop.f32.mrb[0].mxu0
        %v4632 = vadd.f32 %v4351, %v4631
        %v4633 = vpop.f32.mrb[0].mxu0
        %v4634 = vadd.f32 %v4353, %v4633
        %v4635 = vpop.f32.mrb[0].mxu0
        %v4636 = vadd.f32 %v4355, %v4635
        %v4637 = vpop.f32.mrb[0].mxu0
        %v4638 = vadd.f32 %v4357, %v4637
        %4639 = vmatprep.mubr.bf16.mxu0 %v1701
        %4640 = vmatmul.mubr.bf16.gmra.mrb[0].mxu0 %v1700
        %v4641 = vpop.f32.mrb[0].mxu0
        %v4642 = vadd.f32 %v4361, %v4641
        %v4643 = vpop.f32.mrb[0].mxu0
        %v4644 = vadd.f32 %v4363, %v4643
        %v4645 = vpop.f32.mrb[0].mxu0
        %v4646 = vadd.f32 %v4365, %v4645
        %v4647 = vpop.f32.mrb[0].mxu0
        %v4648 = vadd.f32 %v4367, %v4647
        %4649 = vmatprep.mubr.bf16.mxu0 %v1705
        %4650 = vmatmul.mubr.bf16.gmra.mrb[0].mxu0 %v1704
        %v4651 = vpop.f32.mrb[0].mxu0
        %v4652 = vadd.f32 %v4371, %v4651
        %v4653 = vpop.f32.mrb[0].mxu0
        %v4654 = vadd.f32 %v4373, %v4653
        %v4655 = vpop.f32.mrb[0].mxu0
        %v4656 = vadd.f32 %v4375, %v4655
        %v4657 = vpop.f32.mrb[0].mxu0
        %v4658 = vadd.f32 %v4377, %v4657
        %4659 = vmatprep.mubr.bf16.mxu0 %v1709
        %4660 = vmatmul.mubr.bf16.gmra.mrb[0].mxu0 %v1708
        %v4661 = vpop.f32.mrb[0].mxu0
        %v4662 = vadd.f32 %v4381, %v4661
        %v4663 = vpop.f32.mrb[0].mxu0
        %v4664 = vadd.f32 %v4383, %v4663
        %v4665 = vpop.f32.mrb[0].mxu0
        %v4666 = vadd.f32 %v4385, %v4665
        %v4667 = vpop.f32.mrb[0].mxu0
        %v4668 = vadd.f32 %v4387, %v4667
        %4669 = vmatprep.mubr.bf16.mxu0 %v1713
        %4670 = vmatmul.mubr.bf16.gmra.mrb[0].mxu0 %v1712
        %v4671 = vpop.f32.mrb[0].mxu0
        %v4672 = vadd.f32 %v4391, %v4671
        %v4673 = vpop.f32.mrb[0].mxu0
        %v4674 = vadd.f32 %v4393, %v4673
        %v4675 = vpop.f32.mrb[0].mxu0
        %v4676 = vadd.f32 %v4395, %v4675
        %v4677 = vpop.f32.mrb[0].mxu0
        %v4678 = vadd.f32 %v4397, %v4677
        %4679 = vmatprep.mubr.bf16.mxu0 %v1717
        %4680 = vmatmul.mubr.bf16.gmra.mrb[0].mxu0 %v1716
        %v4681 = vpop.f32.mrb[0].mxu0
        %v4682 = vadd.f32 %v4401, %v4681
        %v4683 = vpop.f32.mrb[0].mxu0
        %v4684 = vadd.f32 %v4403, %v4683
        %v4685 = vpop.f32.mrb[0].mxu0
        %v4686 = vadd.f32 %v4405, %v4685
        %v4687 = vpop.f32.mrb[0].mxu0
        %v4688 = vadd.f32 %v4407, %v4687
        %4689 = vmatprep.mubr.bf16.mxu0 %v1721
        %4690 = vmatmul.mubr.bf16.gmra.mrb[0].mxu0 %v1720
        %v4691 = vpop.f32.mrb[0].mxu0
        %v4692 = vadd.f32 %v4411, %v4691
        %v4693 = vpop.f32.mrb[0].mxu0
        %v4694 = vadd.f32 %v4413, %v4693
        %v4695 = vpop.f32.mrb[0].mxu0
        %v4696 = vadd.f32 %v4415, %v4695
        %v4697 = vpop.f32.mrb[0].mxu0
        %v4698 = vadd.f32 %v4417, %v4697
        %4699 = vmatprep.mubr.bf16.mxu0 %v1725
        %4700 = vmatmul.mubr.bf16.gmra.mrb[0].mxu0 %v1724
        %v4701 = vpop.f32.mrb[0].mxu0
        %v4702 = vadd.f32 %v4421, %v4701
        %v4703 = vpop.f32.mrb[0].mxu0
        %v4704 = vadd.f32 %v4423, %v4703
        %v4705 = vpop.f32.mrb[0].mxu0
        %v4706 = vadd.f32 %v4425, %v4705
        %v4707 = vpop.f32.mrb[0].mxu0
        %v4708 = vadd.f32 %v4427, %v4707
        %4709 = vmatprep.mubr.bf16.mxu0 %v1729
        %4710 = vmatmul.mubr.bf16.gmra.mrb[0].mxu0 %v1728
        %v4711 = vpop.f32.mrb[0].mxu0
        %v4712 = vadd.f32 %v4431, %v4711
        %v4713 = vpop.f32.mrb[0].mxu0
        %v4714 = vadd.f32 %v4433, %v4713
        %v4715 = vpop.f32.mrb[0].mxu0
        %v4716 = vadd.f32 %v4435, %v4715
        %v4717 = vpop.f32.mrb[0].mxu0
        %v4718 = vadd.f32 %v4437, %v4717
        %4719 = vmatprep.mubr.bf16.mxu0 %v1733
        %4720 = vmatmul.mubr.bf16.gmra.mrb[0].mxu0 %v1732
        %v4721 = vpop.f32.mrb[0].mxu0
        %v4722 = vadd.f32 %v4441, %v4721
        %v4723 = vpop.f32.mrb[0].mxu0
        %v4724 = vadd.f32 %v4443, %v4723
        %v4725 = vpop.f32.mrb[0].mxu0
        %v4726 = vadd.f32 %v4445, %v4725
        %v4727 = vpop.f32.mrb[0].mxu0
        %v4728 = vadd.f32 %v4447, %v4727
        %4729 = vmatprep.mubr.bf16.mxu0 %v1737
        %4730 = vmatmul.mubr.bf16.gmra.mrb[0].mxu0 %v1736
        %v4731 = vpop.f32.mrb[0].mxu0
        %v4732 = vadd.f32 %v4451, %v4731
        %v4733 = vpop.f32.mrb[0].mxu0
        %v4734 = vadd.f32 %v4453, %v4733
        %v4735 = vpop.f32.mrb[0].mxu0
        %v4736 = vadd.f32 %v4455, %v4735
        %v4737 = vpop.f32.mrb[0].mxu0
        %v4738 = vadd.f32 %v4457, %v4737
        %4739 = vmatprep.mubr.bf16.mxu0 %v1741
        %4740 = vmatmul.mubr.bf16.gmra.mrb[0].mxu0 %v1740
        %v4741 = vpop.f32.mrb[0].mxu0
        %v4742 = vadd.f32 %v4461, %v4741
        %v4743 = vpop.f32.mrb[0].mxu0
        %v4744 = vadd.f32 %v4463, %v4743
        %v4745 = vpop.f32.mrb[0].mxu0
        %v4746 = vadd.f32 %v4465, %v4745
        %v4747 = vpop.f32.mrb[0].mxu0
        %v4748 = vadd.f32 %v4467, %v4747
        %4749 = vmatprep.mubr.bf16.mxu0 %v1745
        %4750 = vmatmul.mubr.bf16.gmra.mrb[0].mxu0 %v1744
        %v4751 = vpop.f32.mrb[0].mxu0
        %v4752 = vadd.f32 %v4471, %v4751
        %v4753 = vpop.f32.mrb[0].mxu0
        %v4754 = vadd.f32 %v4473, %v4753
        %v4755 = vpop.f32.mrb[0].mxu0
        %v4756 = vadd.f32 %v4475, %v4755
        %v4757 = vpop.f32.mrb[0].mxu0
        %v4758 = vadd.f32 %v4477, %v4757
        %4759 = vmatprep.mubr.bf16.mxu0 %v1749
        %4760 = vmatmul.mubr.bf16.gmra.mrb[0].mxu0 %v1748
        %v4761 = vpop.f32.mrb[0].mxu0
        %v4762 = vadd.f32 %v4481, %v4761
        %v4763 = vpop.f32.mrb[0].mxu0
        %v4764 = vadd.f32 %v4483, %v4763
        %v4765 = vpop.f32.mrb[0].mxu0
        %v4766 = vadd.f32 %v4485, %v4765
        %v4767 = vpop.f32.mrb[0].mxu0
        %v4768 = vadd.f32 %v4487, %v4767
        %4769 = vmatprep.mubr.bf16.mxu0 %v1753
        %4770 = vmatmul.mubr.bf16.gmra.mrb[0].mxu0 %v1752
        %v4771 = vpop.f32.mrb[0].mxu0
        %v4772 = vadd.f32 %v4491, %v4771
        %v4773 = vpop.f32.mrb[0].mxu0
        %v4774 = vadd.f32 %v4493, %v4773
        %v4775 = vpop.f32.mrb[0].mxu0
        %v4776 = vadd.f32 %v4495, %v4775
        %v4777 = vpop.f32.mrb[0].mxu0
        %v4778 = vadd.f32 %v4497, %v4777
        %4779 = vmatprep.mubr.bf16.mxu0 %v1757
        %4780 = vmatmul.mubr.bf16.gmra.mrb[0].mxu0 %v1756
        %v4781 = vpop.f32.mrb[0].mxu0
        %v4782 = vadd.f32 %v4501, %v4781
        %v4783 = vpop.f32.mrb[0].mxu0
        %v4784 = vadd.f32 %v4503, %v4783
        %v4785 = vpop.f32.mrb[0].mxu0
        %v4786 = vadd.f32 %v4505, %v4785
        %v4787 = vpop.f32.mrb[0].mxu0
        %v4788 = vadd.f32 %v4507, %v4787
        %4789 = vmatprep.mubr.bf16.mxu0 %v1761
        %4790 = vmatmul.mubr.bf16.gmra.mrb[0].mxu0 %v1760
        %v4791 = vpop.f32.mrb[0].mxu0
        %v4792 = vadd.f32 %v4511, %v4791
        %v4793 = vpop.f32.mrb[0].mxu0
        %v4794 = vadd.f32 %v4513, %v4793
        %v4795 = vpop.f32.mrb[0].mxu0
        %v4796 = vadd.f32 %v4515, %v4795
        %v4797 = vpop.f32.mrb[0].mxu0
        %v4798 = vadd.f32 %v4517, %v4797
        %4799 = vmatprep.mubr.bf16.mxu0 %v1765
        %4800 = vmatmul.mubr.bf16.gmra.mrb[0].mxu0 %v1764
        %v4801 = vpop.f32.mrb[0].mxu0
        %v4802 = vadd.f32 %v4521, %v4801
        %v4803 = vpop.f32.mrb[0].mxu0
        %v4804 = vadd.f32 %v4523, %v4803
        %v4805 = vpop.f32.mrb[0].mxu0
        %v4806 = vadd.f32 %v4525, %v4805
        %v4807 = vpop.f32.mrb[0].mxu0
        %v4808 = vadd.f32 %v4527, %v4807
        %4809 = vmatprep.mubr.bf16.mxu0 %v1769
        %4810 = vmatmul.mubr.bf16.gmra.mrb[0].mxu0 %v1768
        %v4811 = vpop.f32.mrb[0].mxu0
        %v4812 = vadd.f32 %v4531, %v4811
        %v4813 = vpop.f32.mrb[0].mxu0
        %v4814 = vadd.f32 %v4533, %v4813
        %v4815 = vpop.f32.mrb[0].mxu0
        %v4816 = vadd.f32 %v4535, %v4815
        %v4817 = vpop.f32.mrb[0].mxu0
        %v4818 = vadd.f32 %v4537, %v4817
        %4819 = vmatprep.mubr.bf16.mxu0 %v1773
        %4820 = vmatmul.mubr.bf16.gmra.mrb[0].mxu0 %v1772
        %v4821 = vpop.f32.mrb[0].mxu0
        %v4822 = vadd.f32 %v4541, %v4821
        %v4823 = vpop.f32.mrb[0].mxu0
        %v4824 = vadd.f32 %v4543, %v4823
        %v4825 = vpop.f32.mrb[0].mxu0
        %v4826 = vadd.f32 %v4545, %v4825
        %v4827 = vpop.f32.mrb[0].mxu0
        %v4828 = vadd.f32 %v4547, %v4827
        %4829 = vmatprep.mubr.bf16.mxu0 %v1777
        %4830 = vmatmul.mubr.bf16.gmra.mrb[0].mxu0 %v1776
        %v4831 = vpop.f32.mrb[0].mxu0
        %v4832 = vadd.f32 %v4551, %v4831
        %v4833 = vpop.f32.mrb[0].mxu0
        %v4834 = vadd.f32 %v4553, %v4833
        %v4835 = vpop.f32.mrb[0].mxu0
        %v4836 = vadd.f32 %v4555, %v4835
        %v4837 = vpop.f32.mrb[0].mxu0
        %v4838 = vadd.f32 %v4557, %v4837
        %4839 = vmatprep.mubr.bf16.mxu0 %v1781
        %4840 = vmatmul.mubr.bf16.gmra.mrb[0].mxu0 %v1780
        %v4841 = vpop.f32.mrb[0].mxu0
        %v4842 = vadd.f32 %v4561, %v4841
        %v4843 = vpop.f32.mrb[0].mxu0
        %v4844 = vadd.f32 %v4563, %v4843
        %v4845 = vpop.f32.mrb[0].mxu0
        %v4846 = vpop.f32.mrb[0].mxu0
        %4847 = vdwg.mxu0
        %4848 = vmatprep.subr.bf16.mxu0 %v2843
        %4849 = vmatpush1.bf16.xpose.msra.mxu0 %v2842
        %4850 = vmatprep.subr.bf16.mxu0 %v2847
        %4851 = vmatpush1.bf16.xpose.msra.mxu0 %v2846
        %4852 = vmatprep.subr.bf16.mxu0 %v2851
        %4853 = vmatpush1.bf16.xpose.msra.mxu0 %v2850
        %4854 = vmatprep.subr.bf16.mxu0 %v2855
        %4855 = vmatpush1.bf16.xpose.msra.mxu0 %v2854
        %4856 = vmatprep.subr.bf16.mxu0 %v2859
        %4857 = vmatpush1.bf16.xpose.msra.mxu0 %v2858
        %4858 = vmatprep.subr.bf16.mxu0 %v2863
        %4859 = vmatpush1.bf16.xpose.msra.mxu0 %v2862
        %4860 = vmatprep.subr.bf16.mxu0 %v2867
        %4861 = vmatpush1.bf16.xpose.msra.mxu0 %v2866
        %4862 = vmatprep.subr.bf16.mxu0 %v2871
        %4863 = vmatpush1.bf16.xpose.msra.mxu0 %v2870
        %4864 = vmatprep.subr.bf16.mxu0 %v2875
        %4865 = vmatpush1.bf16.xpose.msra.mxu0 %v2874
        %4866 = vmatprep.subr.bf16.mxu0 %v2879
        %4867 = vmatpush1.bf16.xpose.msra.mxu0 %v2878
        %4868 = vmatprep.subr.bf16.mxu0 %v2883
        %4869 = vmatpush1.bf16.xpose.msra.mxu0 %v2882
        %4870 = vmatprep.subr.bf16.mxu0 %v2887
        %4871 = vmatpush1.bf16.xpose.msra.mxu0 %v2886
        %4872 = vmatprep.subr.bf16.mxu0 %v2891
        %4873 = vmatpush1.bf16.xpose.msra.mxu0 %v2890
        %4874 = vmatprep.subr.bf16.mxu0 %v2895
        %4875 = vmatpush1.bf16.xpose.msra.mxu0 %v2894
        %4876 = vmatprep.subr.bf16.mxu0 %v2899
        %4877 = vmatpush1.bf16.xpose.msra.mxu0 %v2898
        %4878 = vmatprep.subr.bf16.mxu0 %v2903
        %4879 = vmatpush1.bf16.xpose.msra.mxu0 %v2902
        %4880 = vmatprep.mubr.bf16.mxu0 %v1683
        %4881 = vmatmul.mubr.bf16.gmra.mrb[0].mxu0 %v1682
        %v4882 = vpop.f32.mrb[0].mxu0
        %v4883 = vadd.f32 0.0, %v4882
        %v4884 = vpop.f32.mrb[0].mxu0
        %v4885 = vadd.f32 0.0, %v4884
        %v4886 = vpop.f32.mrb[0].mxu0
        %v4887 = vadd.f32 0.0, %v4886
        %v4888 = vpop.f32.mrb[0].mxu0
        %v4889 = vadd.f32 0.0, %v4888
        %4890 = vmatprep.mubr.bf16.mxu0 %v1687
        %4891 = vmatmul.mubr.bf16.gmra.mrb[0].mxu0 %v1686
        %v4892 = vpop.f32.mrb[0].mxu0
        %v4893 = vadd.f32 0.0, %v4892
        %v4894 = vpop.f32.mrb[0].mxu0
        %v4895 = vadd.f32 0.0, %v4894
        %v4896 = vpop.f32.mrb[0].mxu0
        %v4897 = vadd.f32 0.0, %v4896
        %v4898 = vpop.f32.mrb[0].mxu0
        %v4899 = vadd.f32 0.0, %v4898
        %4900 = vmatprep.mubr.bf16.mxu0 %v1691
        %4901 = vmatmul.mubr.bf16.gmra.mrb[0].mxu0 %v1690
        %v4902 = vpop.f32.mrb[0].mxu0
        %v4903 = vadd.f32 0.0, %v4902
        %v4904 = vpop.f32.mrb[0].mxu0
        %v4905 = vadd.f32 0.0, %v4904
        %v4906 = vpop.f32.mrb[0].mxu0
        %v4907 = vadd.f32 0.0, %v4906
        %v4908 = vpop.f32.mrb[0].mxu0
        %v4909 = vadd.f32 0.0, %v4908
        %4910 = vmatprep.mubr.bf16.mxu0 %v1695
        %4911 = vmatmul.mubr.bf16.gmra.mrb[0].mxu0 %v1694
        %v4912 = vpop.f32.mrb[0].mxu0
        %v4913 = vadd.f32 0.0, %v4912
        %v4914 = vpop.f32.mrb[0].mxu0
        %v4915 = vadd.f32 0.0, %v4914
        %v4916 = vpop.f32.mrb[0].mxu0
        %v4917 = vadd.f32 0.0, %v4916
        %v4918 = vpop.f32.mrb[0].mxu0
        %v4919 = vadd.f32 0.0, %v4918
        %4920 = vmatprep.mubr.bf16.mxu0 %v1699
        %4921 = vmatmul.mubr.bf16.gmra.mrb[0].mxu0 %v1698
        %v4922 = vpop.f32.mrb[0].mxu0
        %v4923 = vadd.f32 0.0, %v4922
        %v4924 = vpop.f32.mrb[0].mxu0
        %v4925 = vadd.f32 0.0, %v4924
        %v4926 = vpop.f32.mrb[0].mxu0
        %v4927 = vadd.f32 0.0, %v4926
        %v4928 = vpop.f32.mrb[0].mxu0
        %v4929 = vadd.f32 0.0, %v4928
        %4930 = vmatprep.mubr.bf16.mxu0 %v1703
        %4931 = vmatmul.mubr.bf16.gmra.mrb[0].mxu0 %v1702
        %v4932 = vpop.f32.mrb[0].mxu0
        %v4933 = vadd.f32 0.0, %v4932
        %v4934 = vpop.f32.mrb[0].mxu0
        %v4935 = vadd.f32 0.0, %v4934
        %v4936 = vpop.f32.mrb[0].mxu0
        %v4937 = vadd.f32 0.0, %v4936
        %v4938 = vpop.f32.mrb[0].mxu0
        %v4939 = vadd.f32 0.0, %v4938
        %4940 = vmatprep.mubr.bf16.mxu0 %v1707
        %4941 = vmatmul.mubr.bf16.gmra.mrb[0].mxu0 %v1706
        %v4942 = vpop.f32.mrb[0].mxu0
        %v4943 = vadd.f32 0.0, %v4942
        %v4944 = vpop.f32.mrb[0].mxu0
        %v4945 = vadd.f32 0.0, %v4944
        %v4946 = vpop.f32.mrb[0].mxu0
        %v4947 = vadd.f32 0.0, %v4946
        %v4948 = vpop.f32.mrb[0].mxu0
        %v4949 = vadd.f32 0.0, %v4948
        %4950 = vmatprep.mubr.bf16.mxu0 %v1711
        %4951 = vmatmul.mubr.bf16.gmra.mrb[0].mxu0 %v1710
        %v4952 = vpop.f32.mrb[0].mxu0
        %v4953 = vadd.f32 0.0, %v4952
        %v4954 = vpop.f32.mrb[0].mxu0
        %v4955 = vadd.f32 0.0, %v4954
        %v4956 = vpop.f32.mrb[0].mxu0
        %v4957 = vadd.f32 0.0, %v4956
        %v4958 = vpop.f32.mrb[0].mxu0
        %v4959 = vadd.f32 0.0, %v4958
        %4960 = vmatprep.mubr.bf16.mxu0 %v1715
        %4961 = vmatmul.mubr.bf16.gmra.mrb[0].mxu0 %v1714
        %v4962 = vpop.f32.mrb[0].mxu0
        %v4963 = vadd.f32 0.0, %v4962
        %v4964 = vpop.f32.mrb[0].mxu0
        %v4965 = vadd.f32 0.0, %v4964
        %v4966 = vpop.f32.mrb[0].mxu0
        %v4967 = vadd.f32 0.0, %v4966
        %v4968 = vpop.f32.mrb[0].mxu0
        %v4969 = vadd.f32 0.0, %v4968
        %4970 = vmatprep.mubr.bf16.mxu0 %v1719
        %4971 = vmatmul.mubr.bf16.gmra.mrb[0].mxu0 %v1718
        %v4972 = vpop.f32.mrb[0].mxu0
        %v4973 = vadd.f32 0.0, %v4972
        %v4974 = vpop.f32.mrb[0].mxu0
        %v4975 = vadd.f32 0.0, %v4974
        %v4976 = vpop.f32.mrb[0].mxu0
        %v4977 = vadd.f32 0.0, %v4976
        %v4978 = vpop.f32.mrb[0].mxu0
        %v4979 = vadd.f32 0.0, %v4978
        %4980 = vmatprep.mubr.bf16.mxu0 %v1723
        %4981 = vmatmul.mubr.bf16.gmra.mrb[0].mxu0 %v1722
        %v4982 = vpop.f32.mrb[0].mxu0
        %v4983 = vadd.f32 0.0, %v4982
        %v4984 = vpop.f32.mrb[0].mxu0
        %v4985 = vadd.f32 0.0, %v4984
        %v4986 = vpop.f32.mrb[0].mxu0
        %v4987 = vadd.f32 0.0, %v4986
        %v4988 = vpop.f32.mrb[0].mxu0
        %v4989 = vadd.f32 0.0, %v4988
        %4990 = vmatprep.mubr.bf16.mxu0 %v1727
        %4991 = vmatmul.mubr.bf16.gmra.mrb[0].mxu0 %v1726
        %v4992 = vpop.f32.mrb[0].mxu0
        %v4993 = vadd.f32 0.0, %v4992
        %v4994 = vpop.f32.mrb[0].mxu0
        %v4995 = vadd.f32 0.0, %v4994
        %v4996 = vpop.f32.mrb[0].mxu0
        %v4997 = vadd.f32 0.0, %v4996
        %v4998 = vpop.f32.mrb[0].mxu0
        %v4999 = vadd.f32 0.0, %v4998
        %5000 = vmatprep.mubr.bf16.mxu0 %v1731
        %5001 = vmatmul.mubr.bf16.gmra.mrb[0].mxu0 %v1730
        %v5002 = vpop.f32.mrb[0].mxu0
        %v5003 = vadd.f32 0.0, %v5002
        %v5004 = vpop.f32.mrb[0].mxu0
        %v5005 = vadd.f32 0.0, %v5004
        %v5006 = vpop.f32.mrb[0].mxu0
        %v5007 = vadd.f32 0.0, %v5006
        %v5008 = vpop.f32.mrb[0].mxu0
        %v5009 = vadd.f32 0.0, %v5008
        %5010 = vmatprep.mubr.bf16.mxu0 %v1735
        %5011 = vmatmul.mubr.bf16.gmra.mrb[0].mxu0 %v1734
        %v5012 = vpop.f32.mrb[0].mxu0
        %v5013 = vadd.f32 0.0, %v5012
        %v5014 = vpop.f32.mrb[0].mxu0
        %v5015 = vadd.f32 0.0, %v5014
        %v5016 = vpop.f32.mrb[0].mxu0
        %v5017 = vadd.f32 0.0, %v5016
        %v5018 = vpop.f32.mrb[0].mxu0
        %v5019 = vadd.f32 0.0, %v5018
        %5020 = vmatprep.mubr.bf16.mxu0 %v1739
        %5021 = vmatmul.mubr.bf16.gmra.mrb[0].mxu0 %v1738
        %v5022 = vpop.f32.mrb[0].mxu0
        %v5023 = vadd.f32 0.0, %v5022
        %v5024 = vpop.f32.mrb[0].mxu0
        %v5025 = vadd.f32 0.0, %v5024
        %v5026 = vpop.f32.mrb[0].mxu0
        %v5027 = vadd.f32 0.0, %v5026
        %v5028 = vpop.f32.mrb[0].mxu0
        %v5029 = vadd.f32 0.0, %v5028
        %5030 = vmatprep.mubr.bf16.mxu0 %v1743
        %5031 = vmatmul.mubr.bf16.gmra.mrb[0].mxu0 %v1742
        %v5032 = vpop.f32.mrb[0].mxu0
        %v5033 = vadd.f32 0.0, %v5032
        %v5034 = vpop.f32.mrb[0].mxu0
        %v5035 = vadd.f32 0.0, %v5034
        %v5036 = vpop.f32.mrb[0].mxu0
        %v5037 = vadd.f32 0.0, %v5036
        %v5038 = vpop.f32.mrb[0].mxu0
        %v5039 = vadd.f32 0.0, %v5038
        %5040 = vmatprep.mubr.bf16.mxu0 %v1747
        %5041 = vmatmul.mubr.bf16.gmra.mrb[0].mxu0 %v1746
        %v5042 = vpop.f32.mrb[0].mxu0
        %v5043 = vadd.f32 0.0, %v5042
        %v5044 = vpop.f32.mrb[0].mxu0
        %v5045 = vadd.f32 0.0, %v5044
        %v5046 = vpop.f32.mrb[0].mxu0
        %v5047 = vadd.f32 0.0, %v5046
        %v5048 = vpop.f32.mrb[0].mxu0
        %v5049 = vadd.f32 0.0, %v5048
        %5050 = vmatprep.mubr.bf16.mxu0 %v1751
        %5051 = vmatmul.mubr.bf16.gmra.mrb[0].mxu0 %v1750
        %v5052 = vpop.f32.mrb[0].mxu0
        %v5053 = vadd.f32 0.0, %v5052
        %v5054 = vpop.f32.mrb[0].mxu0
        %v5055 = vadd.f32 0.0, %v5054
        %v5056 = vpop.f32.mrb[0].mxu0
        %v5057 = vadd.f32 0.0, %v5056
        %v5058 = vpop.f32.mrb[0].mxu0
        %v5059 = vadd.f32 0.0, %v5058
        %5060 = vmatprep.mubr.bf16.mxu0 %v1755
        %5061 = vmatmul.mubr.bf16.gmra.mrb[0].mxu0 %v1754
        %v5062 = vpop.f32.mrb[0].mxu0
        %v5063 = vadd.f32 0.0, %v5062
        %v5064 = vpop.f32.mrb[0].mxu0
        %v5065 = vadd.f32 0.0, %v5064
        %v5066 = vpop.f32.mrb[0].mxu0
        %v5067 = vadd.f32 0.0, %v5066
        %v5068 = vpop.f32.mrb[0].mxu0
        %v5069 = vadd.f32 0.0, %v5068
        %5070 = vmatprep.mubr.bf16.mxu0 %v1759
        %5071 = vmatmul.mubr.bf16.gmra.mrb[0].mxu0 %v1758
        %v5072 = vpop.f32.mrb[0].mxu0
        %v5073 = vadd.f32 0.0, %v5072
        %v5074 = vpop.f32.mrb[0].mxu0
        %v5075 = vadd.f32 0.0, %v5074
        %v5076 = vpop.f32.mrb[0].mxu0
        %v5077 = vadd.f32 0.0, %v5076
        %v5078 = vpop.f32.mrb[0].mxu0
        %v5079 = vadd.f32 0.0, %v5078
        %5080 = vmatprep.mubr.bf16.mxu0 %v1763
        %5081 = vmatmul.mubr.bf16.gmra.mrb[0].mxu0 %v1762
        %v5082 = vpop.f32.mrb[0].mxu0
        %v5083 = vadd.f32 0.0, %v5082
        %v5084 = vpop.f32.mrb[0].mxu0
        %v5085 = vadd.f32 0.0, %v5084
        %v5086 = vpop.f32.mrb[0].mxu0
        %v5087 = vadd.f32 0.0, %v5086
        %v5088 = vpop.f32.mrb[0].mxu0
        %v5089 = vadd.f32 0.0, %v5088
        %5090 = vmatprep.mubr.bf16.mxu0 %v1767
        %5091 = vmatmul.mubr.bf16.gmra.mrb[0].mxu0 %v1766
        %v5092 = vpop.f32.mrb[0].mxu0
        %v5093 = vadd.f32 0.0, %v5092
        %v5094 = vpop.f32.mrb[0].mxu0
        %v5095 = vadd.f32 0.0, %v5094
        %v5096 = vpop.f32.mrb[0].mxu0
        %v5097 = vadd.f32 0.0, %v5096
        %v5098 = vpop.f32.mrb[0].mxu0
        %v5099 = vadd.f32 0.0, %v5098
        %5100 = vmatprep.mubr.bf16.mxu0 %v1771
        %5101 = vmatmul.mubr.bf16.gmra.mrb[0].mxu0 %v1770
        %v5102 = vpop.f32.mrb[0].mxu0
        %v5103 = vadd.f32 0.0, %v5102
        %v5104 = vpop.f32.mrb[0].mxu0
        %v5105 = vadd.f32 0.0, %v5104
        %v5106 = vpop.f32.mrb[0].mxu0
        %v5107 = vadd.f32 0.0, %v5106
        %v5108 = vpop.f32.mrb[0].mxu0
        %v5109 = vadd.f32 0.0, %v5108
        %5110 = vmatprep.mubr.bf16.mxu0 %v1775
        %5111 = vmatmul.mubr.bf16.gmra.mrb[0].mxu0 %v1774
        %v5112 = vpop.f32.mrb[0].mxu0
        %v5113 = vadd.f32 0.0, %v5112
        %v5114 = vpop.f32.mrb[0].mxu0
        %v5115 = vadd.f32 0.0, %v5114
        %v5116 = vpop.f32.mrb[0].mxu0
        %v5117 = vadd.f32 0.0, %v5116
        %v5118 = vpop.f32.mrb[0].mxu0
        %v5119 = vadd.f32 0.0, %v5118
        %5120 = vmatprep.mubr.bf16.mxu0 %v1779
        %5121 = vmatmul.mubr.bf16.gmra.mrb[0].mxu0 %v1778
        %v5122 = vpop.f32.mrb[0].mxu0
        %v5123 = vadd.f32 0.0, %v5122
        %v5124 = vpop.f32.mrb[0].mxu0
        %v5125 = vadd.f32 0.0, %v5124
        %v5126 = vpop.f32.mrb[0].mxu0
        %v5127 = vpop.f32.mrb[0].mxu0
        %5128 = vdwg.mxu0
        %5129 = vmatprep.subr.bf16.mxu0 %v2845
        %5130 = vmatpush1.bf16.xpose.msra.mxu0 %v2844
        %5131 = vmatprep.subr.bf16.mxu0 %v2849
        %5132 = vmatpush1.bf16.xpose.msra.mxu0 %v2848
        %5133 = vmatprep.subr.bf16.mxu0 %v2853
        %5134 = vmatpush1.bf16.xpose.msra.mxu0 %v2852
        %5135 = vmatprep.subr.bf16.mxu0 %v2857
        %5136 = vmatpush1.bf16.xpose.msra.mxu0 %v2856
        %5137 = vmatprep.subr.bf16.mxu0 %v2861
        %5138 = vmatpush1.bf16.xpose.msra.mxu0 %v2860
        %5139 = vmatprep.subr.bf16.mxu0 %v2865
        %5140 = vmatpush1.bf16.xpose.msra.mxu0 %v2864
        %5141 = vmatprep.subr.bf16.mxu0 %v2869
        %5142 = vmatpush1.bf16.xpose.msra.mxu0 %v2868
        %5143 = vmatprep.subr.bf16.mxu0 %v2873
        %5144 = vmatpush1.bf16.xpose.msra.mxu0 %v2872
        %5145 = vmatprep.subr.bf16.mxu0 %v2877
        %5146 = vmatpush1.bf16.xpose.msra.mxu0 %v2876
        %5147 = vmatprep.subr.bf16.mxu0 %v2881
        %5148 = vmatpush1.bf16.xpose.msra.mxu0 %v2880
        %5149 = vmatprep.subr.bf16.mxu0 %v2885
        %5150 = vmatpush1.bf16.xpose.msra.mxu0 %v2884
        %5151 = vmatprep.subr.bf16.mxu0 %v2889
        %5152 = vmatpush1.bf16.xpose.msra.mxu0 %v2888
        %5153 = vmatprep.subr.bf16.mxu0 %v2893
        %5154 = vmatpush1.bf16.xpose.msra.mxu0 %v2892
        %5155 = vmatprep.subr.bf16.mxu0 %v2897
        %5156 = vmatpush1.bf16.xpose.msra.mxu0 %v2896
        %5157 = vmatprep.subr.bf16.mxu0 %v2901
        %5158 = vmatpush1.bf16.xpose.msra.mxu0 %v2900
        %5159 = vmatprep.subr.bf16.mxu0 %v2905
        %5160 = vmatpush1.bf16.xpose.msra.mxu0 %v2904
        %5161 = vmatprep.mubr.bf16.mxu0 %v1685
        %5162 = vmatmul.mubr.bf16.gmra.mrb[0].mxu0 %v1684
        %v5163 = vpop.f32.mrb[0].mxu0
        %v5164 = vadd.f32 %v4883, %v5163
        %v5165 = vpop.f32.mrb[0].mxu0
        %v5166 = vadd.f32 %v4885, %v5165
        %v5167 = vpop.f32.mrb[0].mxu0
        %v5168 = vadd.f32 %v4887, %v5167
        %v5169 = vpop.f32.mrb[0].mxu0
        %v5170 = vadd.f32 %v4889, %v5169
        %5171 = vmatprep.mubr.bf16.mxu0 %v1689
        %5172 = vmatmul.mubr.bf16.gmra.mrb[0].mxu0 %v1688
        %v5173 = vpop.f32.mrb[0].mxu0
        %v5174 = vadd.f32 %v4893, %v5173
        %v5175 = vpop.f32.mrb[0].mxu0
        %v5176 = vadd.f32 %v4895, %v5175
        %v5177 = vpop.f32.mrb[0].mxu0
        %v5178 = vadd.f32 %v4897, %v5177
        %v5179 = vpop.f32.mrb[0].mxu0
        %v5180 = vadd.f32 %v4899, %v5179
        %5181 = vmatprep.mubr.bf16.mxu0 %v1693
        %5182 = vmatmul.mubr.bf16.gmra.mrb[0].mxu0 %v1692
        %v5183 = vpop.f32.mrb[0].mxu0
        %v5184 = vadd.f32 %v4903, %v5183
        %v5185 = vpop.f32.mrb[0].mxu0
        %v5186 = vadd.f32 %v4905, %v5185
        %v5187 = vpop.f32.mrb[0].mxu0
        %v5188 = vadd.f32 %v4907, %v5187
        %v5189 = vpop.f32.mrb[0].mxu0
        %v5190 = vadd.f32 %v4909, %v5189
        %5191 = vmatprep.mubr.bf16.mxu0 %v1697
        %5192 = vmatmul.mubr.bf16.gmra.mrb[0].mxu0 %v1696
        %v5193 = vpop.f32.mrb[0].mxu0
        %v5194 = vadd.f32 %v4913, %v5193
        %v5195 = vpop.f32.mrb[0].mxu0
        %v5196 = vadd.f32 %v4915, %v5195
        %v5197 = vpop.f32.mrb[0].mxu0
        %v5198 = vadd.f32 %v4917, %v5197
        %v5199 = vpop.f32.mrb[0].mxu0
        %v5200 = vadd.f32 %v4919, %v5199
        %5201 = vmatprep.mubr.bf16.mxu0 %v1701
        %5202 = vmatmul.mubr.bf16.gmra.mrb[0].mxu0 %v1700
        %v5203 = vpop.f32.mrb[0].mxu0
        %v5204 = vadd.f32 %v4923, %v5203
        %v5205 = vpop.f32.mrb[0].mxu0
        %v5206 = vadd.f32 %v4925, %v5205
        %v5207 = vpop.f32.mrb[0].mxu0
        %v5208 = vadd.f32 %v4927, %v5207
        %v5209 = vpop.f32.mrb[0].mxu0
        %v5210 = vadd.f32 %v4929, %v5209
        %5211 = vmatprep.mubr.bf16.mxu0 %v1705
        %5212 = vmatmul.mubr.bf16.gmra.mrb[0].mxu0 %v1704
        %v5213 = vpop.f32.mrb[0].mxu0
        %v5214 = vadd.f32 %v4933, %v5213
        %v5215 = vpop.f32.mrb[0].mxu0
        %v5216 = vadd.f32 %v4935, %v5215
        %v5217 = vpop.f32.mrb[0].mxu0
        %v5218 = vadd.f32 %v4937, %v5217
        %v5219 = vpop.f32.mrb[0].mxu0
        %v5220 = vadd.f32 %v4939, %v5219
        %5221 = vmatprep.mubr.bf16.mxu0 %v1709
        %5222 = vmatmul.mubr.bf16.gmra.mrb[0].mxu0 %v1708
        %v5223 = vpop.f32.mrb[0].mxu0
        %v5224 = vadd.f32 %v4943, %v5223
        %v5225 = vpop.f32.mrb[0].mxu0
        %v5226 = vadd.f32 %v4945, %v5225
        %v5227 = vpop.f32.mrb[0].mxu0
        %v5228 = vadd.f32 %v4947, %v5227
        %v5229 = vpop.f32.mrb[0].mxu0
        %v5230 = vadd.f32 %v4949, %v5229
        %5231 = vmatprep.mubr.bf16.mxu0 %v1713
        %5232 = vmatmul.mubr.bf16.gmra.mrb[0].mxu0 %v1712
        %v5233 = vpop.f32.mrb[0].mxu0
        %v5234 = vadd.f32 %v4953, %v5233
        %v5235 = vpop.f32.mrb[0].mxu0
        %v5236 = vadd.f32 %v4955, %v5235
        %v5237 = vpop.f32.mrb[0].mxu0
        %v5238 = vadd.f32 %v4957, %v5237
        %v5239 = vpop.f32.mrb[0].mxu0
        %v5240 = vadd.f32 %v4959, %v5239
        %5241 = vmatprep.mubr.bf16.mxu0 %v1717
        %5242 = vmatmul.mubr.bf16.gmra.mrb[0].mxu0 %v1716
        %v5243 = vpop.f32.mrb[0].mxu0
        %v5244 = vadd.f32 %v4963, %v5243
        %v5245 = vpop.f32.mrb[0].mxu0
        %v5246 = vadd.f32 %v4965, %v5245
        %v5247 = vpop.f32.mrb[0].mxu0
        %v5248 = vadd.f32 %v4967, %v5247
        %v5249 = vpop.f32.mrb[0].mxu0
        %v5250 = vadd.f32 %v4969, %v5249
        %5251 = vmatprep.mubr.bf16.mxu0 %v1721
        %5252 = vmatmul.mubr.bf16.gmra.mrb[0].mxu0 %v1720
        %v5253 = vpop.f32.mrb[0].mxu0
        %v5254 = vadd.f32 %v4973, %v5253
        %v5255 = vpop.f32.mrb[0].mxu0
        %v5256 = vadd.f32 %v4975, %v5255
        %v5257 = vpop.f32.mrb[0].mxu0
        %v5258 = vadd.f32 %v4977, %v5257
        %v5259 = vpop.f32.mrb[0].mxu0
        %v5260 = vadd.f32 %v4979, %v5259
        %5261 = vmatprep.mubr.bf16.mxu0 %v1725
        %5262 = vmatmul.mubr.bf16.gmra.mrb[0].mxu0 %v1724
        %v5263 = vpop.f32.mrb[0].mxu0
        %v5264 = vadd.f32 %v4983, %v5263
        %v5265 = vpop.f32.mrb[0].mxu0
        %v5266 = vadd.f32 %v4985, %v5265
        %v5267 = vpop.f32.mrb[0].mxu0
        %v5268 = vadd.f32 %v4987, %v5267
        %v5269 = vpop.f32.mrb[0].mxu0
        %v5270 = vadd.f32 %v4989, %v5269
        %5271 = vmatprep.mubr.bf16.mxu0 %v1729
        %5272 = vmatmul.mubr.bf16.gmra.mrb[0].mxu0 %v1728
        %v5273 = vpop.f32.mrb[0].mxu0
        %v5274 = vadd.f32 %v4993, %v5273
        %v5275 = vpop.f32.mrb[0].mxu0
        %v5276 = vadd.f32 %v4995, %v5275
        %v5277 = vpop.f32.mrb[0].mxu0
        %v5278 = vadd.f32 %v4997, %v5277
        %v5279 = vpop.f32.mrb[0].mxu0
        %v5280 = vadd.f32 %v4999, %v5279
        %5281 = vmatprep.mubr.bf16.mxu0 %v1733
        %5282 = vmatmul.mubr.bf16.gmra.mrb[0].mxu0 %v1732
        %v5283 = vpop.f32.mrb[0].mxu0
        %v5284 = vadd.f32 %v5003, %v5283
        %v5285 = vpop.f32.mrb[0].mxu0
        %v5286 = vadd.f32 %v5005, %v5285
        %v5287 = vpop.f32.mrb[0].mxu0
        %v5288 = vadd.f32 %v5007, %v5287
        %v5289 = vpop.f32.mrb[0].mxu0
        %v5290 = vadd.f32 %v5009, %v5289
        %5291 = vmatprep.mubr.bf16.mxu0 %v1737
        %5292 = vmatmul.mubr.bf16.gmra.mrb[0].mxu0 %v1736
        %v5293 = vpop.f32.mrb[0].mxu0
        %v5294 = vadd.f32 %v5013, %v5293
        %v5295 = vpop.f32.mrb[0].mxu0
        %v5296 = vadd.f32 %v5015, %v5295
        %v5297 = vpop.f32.mrb[0].mxu0
        %v5298 = vadd.f32 %v5017, %v5297
        %v5299 = vpop.f32.mrb[0].mxu0
        %v5300 = vadd.f32 %v5019, %v5299
        %5301 = vmatprep.mubr.bf16.mxu0 %v1741
        %5302 = vmatmul.mubr.bf16.gmra.mrb[0].mxu0 %v1740
        %v5303 = vpop.f32.mrb[0].mxu0
        %v5304 = vadd.f32 %v5023, %v5303
        %v5305 = vpop.f32.mrb[0].mxu0
        %v5306 = vadd.f32 %v5025, %v5305
        %v5307 = vpop.f32.mrb[0].mxu0
        %v5308 = vadd.f32 %v5027, %v5307
        %v5309 = vpop.f32.mrb[0].mxu0
        %v5310 = vadd.f32 %v5029, %v5309
        %5311 = vmatprep.mubr.bf16.mxu0 %v1745
        %5312 = vmatmul.mubr.bf16.gmra.mrb[0].mxu0 %v1744
        %v5313 = vpop.f32.mrb[0].mxu0
        %v5314 = vadd.f32 %v5033, %v5313
        %v5315 = vpop.f32.mrb[0].mxu0
        %v5316 = vadd.f32 %v5035, %v5315
        %v5317 = vpop.f32.mrb[0].mxu0
        %v5318 = vadd.f32 %v5037, %v5317
        %v5319 = vpop.f32.mrb[0].mxu0
        %v5320 = vadd.f32 %v5039, %v5319
        %5321 = vmatprep.mubr.bf16.mxu0 %v1749
        %5322 = vmatmul.mubr.bf16.gmra.mrb[0].mxu0 %v1748
        %v5323 = vpop.f32.mrb[0].mxu0
        %v5324 = vadd.f32 %v5043, %v5323
        %v5325 = vpop.f32.mrb[0].mxu0
        %v5326 = vadd.f32 %v5045, %v5325
        %v5327 = vpop.f32.mrb[0].mxu0
        %v5328 = vadd.f32 %v5047, %v5327
        %v5329 = vpop.f32.mrb[0].mxu0
        %v5330 = vadd.f32 %v5049, %v5329
        %5331 = vmatprep.mubr.bf16.mxu0 %v1753
        %5332 = vmatmul.mubr.bf16.gmra.mrb[0].mxu0 %v1752
        %v5333 = vpop.f32.mrb[0].mxu0
        %v5334 = vadd.f32 %v5053, %v5333
        %v5335 = vpop.f32.mrb[0].mxu0
        %v5336 = vadd.f32 %v5055, %v5335
        %v5337 = vpop.f32.mrb[0].mxu0
        %v5338 = vadd.f32 %v5057, %v5337
        %v5339 = vpop.f32.mrb[0].mxu0
        %v5340 = vadd.f32 %v5059, %v5339
        %5341 = vmatprep.mubr.bf16.mxu0 %v1757
        %5342 = vmatmul.mubr.bf16.gmra.mrb[0].mxu0 %v1756
        %v5343 = vpop.f32.mrb[0].mxu0
        %v5344 = vadd.f32 %v5063, %v5343
        %v5345 = vpop.f32.mrb[0].mxu0
        %v5346 = vadd.f32 %v5065, %v5345
        %v5347 = vpop.f32.mrb[0].mxu0
        %v5348 = vadd.f32 %v5067, %v5347
        %v5349 = vpop.f32.mrb[0].mxu0
        %v5350 = vadd.f32 %v5069, %v5349
        %5351 = vmatprep.mubr.bf16.mxu0 %v1761
        %5352 = vmatmul.mubr.bf16.gmra.mrb[0].mxu0 %v1760
        %v5353 = vpop.f32.mrb[0].mxu0
        %v5354 = vadd.f32 %v5073, %v5353
        %v5355 = vpop.f32.mrb[0].mxu0
        %v5356 = vadd.f32 %v5075, %v5355
        %v5357 = vpop.f32.mrb[0].mxu0
        %v5358 = vadd.f32 %v5077, %v5357
        %v5359 = vpop.f32.mrb[0].mxu0
        %v5360 = vadd.f32 %v5079, %v5359
        %5361 = vmatprep.mubr.bf16.mxu0 %v1765
        %5362 = vmatmul.mubr.bf16.gmra.mrb[0].mxu0 %v1764
        %v5363 = vpop.f32.mrb[0].mxu0
        %v5364 = vadd.f32 %v5083, %v5363
        %v5365 = vpop.f32.mrb[0].mxu0
        %v5366 = vadd.f32 %v5085, %v5365
        %v5367 = vpop.f32.mrb[0].mxu0
        %v5368 = vadd.f32 %v5087, %v5367
        %v5369 = vpop.f32.mrb[0].mxu0
        %v5370 = vadd.f32 %v5089, %v5369
        %5371 = vmatprep.mubr.bf16.mxu0 %v1769
        %5372 = vmatmul.mubr.bf16.gmra.mrb[0].mxu0 %v1768
        %v5373 = vpop.f32.mrb[0].mxu0
        %v5374 = vadd.f32 %v5093, %v5373
        %v5375 = vpop.f32.mrb[0].mxu0
        %v5376 = vadd.f32 %v5095, %v5375
        %v5377 = vpop.f32.mrb[0].mxu0
        %v5378 = vadd.f32 %v5097, %v5377
        %v5379 = vpop.f32.mrb[0].mxu0
        %v5380 = vadd.f32 %v5099, %v5379
        %5381 = vmatprep.mubr.bf16.mxu0 %v1773
        %5382 = vmatmul.mubr.bf16.gmra.mrb[0].mxu0 %v1772
        %v5383 = vpop.f32.mrb[0].mxu0
        %v5384 = vadd.f32 %v5103, %v5383
        %v5385 = vpop.f32.mrb[0].mxu0
        %v5386 = vadd.f32 %v5105, %v5385
        %v5387 = vpop.f32.mrb[0].mxu0
        %v5388 = vadd.f32 %v5107, %v5387
        %v5389 = vpop.f32.mrb[0].mxu0
        %v5390 = vadd.f32 %v5109, %v5389
        %5391 = vmatprep.mubr.bf16.mxu0 %v1777
        %5392 = vmatmul.mubr.bf16.gmra.mrb[0].mxu0 %v1776
        %v5393 = vpop.f32.mrb[0].mxu0
        %v5394 = vadd.f32 %v5113, %v5393
        %v5395 = vpop.f32.mrb[0].mxu0
        %v5396 = vadd.f32 %v5115, %v5395
        %v5397 = vpop.f32.mrb[0].mxu0
        %v5398 = vadd.f32 %v5117, %v5397
        %v5399 = vpop.f32.mrb[0].mxu0
        %v5400 = vadd.f32 %v5119, %v5399
        %5401 = vmatprep.mubr.bf16.mxu0 %v1781
        %5402 = vmatmul.mubr.bf16.gmra.mrb[0].mxu0 %v1780
        %v5403 = vpop.f32.mrb[0].mxu0
        %v5404 = vadd.f32 %v5123, %v5403
        %v5405 = vpop.f32.mrb[0].mxu0
        %v5406 = vadd.f32 %v5125, %v5405
        %v5407 = vpop.f32.mrb[0].mxu0
        %v5408 = vpop.f32.mrb[0].mxu0
        %5409 = vdwg.mxu0
        %p5410 = scmp.eq.s32.totalorder %s23, 0
        // Predicated region
        $region83: #{extract_image_feature.1} parent=73 // pred_check
          %p5411 = pneg %p5410
        $region84: #{extract_image_feature.1} parent=73 // pred_check_branch
          %5413 = sbr.rel (%p5411) target = $region86
        $region85: #{extract_image_feature.1} parent=73 // pred_region
          %5414 = vst [vmem:[%s1031] sm:$0xff] %v3478
          %5415 = vst [vmem:[%s1031 + $0x8] sm:$0xff] %v3480
          %5416 = vst [vmem:[%s1031 + $0x10] sm:$0xff] %v4040
          %5417 = vst [vmem:[%s1031 + $0x18] sm:$0xff] %v4042
          %5418 = vst [vmem:[%s1031 + $0x20] sm:$0xff] %v4602
          %5419 = vst [vmem:[%s1031 + $0x28] sm:$0xff] %v4604
          %5420 = vst [vmem:[%s1031 + $0x30] sm:$0xff] %v5164
          %5421 = vst [vmem:[%s1031 + $0x38] sm:$0xff] %v5166
          %5422 = vst [vmem:[%s1031 + $0x40] sm:$0xff] %v3482
          %5423 = vst [vmem:[%s1031 + $0x48] sm:$0xff] %v3484
          %5424 = vst [vmem:[%s1031 + $0x50] sm:$0xff] %v4044
          %5425 = vst [vmem:[%s1031 + $0x58] sm:$0xff] %v4046
          %5426 = vst [vmem:[%s1031 + $0x60] sm:$0xff] %v4606
          %5427 = vst [vmem:[%s1031 + $0x68] sm:$0xff] %v4608
          %5428 = vst [vmem:[%s1031 + $0x70] sm:$0xff] %v5168
          %5429 = vst [vmem:[%s1031 + $0x78] sm:$0xff] %v5170
          %5430 = vst [vmem:[%s1031 + $0x80] sm:$0xff] %v3488
          %5431 = vst [vmem:[%s1031 + $0x88] sm:$0xff] %v3490
          %5432 = vst [vmem:[%s1031 + $0x90] sm:$0xff] %v4050
          %5433 = vst [vmem:[%s1031 + $0x98] sm:$0xff] %v4052
          %5434 = vst [vmem:[%s1031 + $0xa0] sm:$0xff] %v4612
          %5435 = vst [vmem:[%s1031 + $0xa8] sm:$0xff] %v4614
          %5436 = vst [vmem:[%s1031 + $0xb0] sm:$0xff] %v5174
          %5437 = vst [vmem:[%s1031 + $0xb8] sm:$0xff] %v5176
          %5438 = vst [vmem:[%s1031 + $0xc0] sm:$0xff] %v3492
          %5439 = vst [vmem:[%s1031 + $0xc8] sm:$0xff] %v3494
          %5440 = vst [vmem:[%s1031 + $0xd0] sm:$0xff] %v4054
          %5441 = vst [vmem:[%s1031 + $0xd8] sm:$0xff] %v4056
          %5442 = vst [vmem:[%s1031 + $0xe0] sm:$0xff] %v4616
          %5443 = vst [vmem:[%s1031 + $0xe8] sm:$0xff] %v4618
          %5444 = vst [vmem:[%s1031 + $0xf0] sm:$0xff] %v5178
          %5445 = vst [vmem:[%s1031 + $0xf8] sm:$0xff] %v5180
          %5446 = vst [vmem:[%s1031 + $0x100] sm:$0xff] %v3498
          %5447 = vst [vmem:[%s1031 + $0x108] sm:$0xff] %v3500
          %5448 = vst [vmem:[%s1031 + $0x110] sm:$0xff] %v4060
          %5449 = vst [vmem:[%s1031 + $0x118] sm:$0xff] %v4062
          %5450 = vst [vmem:[%s1031 + $0x120] sm:$0xff] %v4622
          %5451 = vst [vmem:[%s1031 + $0x128] sm:$0xff] %v4624
          %5452 = vst [vmem:[%s1031 + $0x130] sm:$0xff] %v5184
          %5453 = vst [vmem:[%s1031 + $0x138] sm:$0xff] %v5186
          %5454 = vst [vmem:[%s1031 + $0x140] sm:$0xff] %v3502
          %5455 = vst [vmem:[%s1031 + $0x148] sm:$0xff] %v3504
          %5456 = vst [vmem:[%s1031 + $0x150] sm:$0xff] %v4064
          %5457 = vst [vmem:[%s1031 + $0x158] sm:$0xff] %v4066
          %5458 = vst [vmem:[%s1031 + $0x160] sm:$0xff] %v4626
          %5459 = vst [vmem:[%s1031 + $0x168] sm:$0xff] %v4628
          %5460 = vst [vmem:[%s1031 + $0x170] sm:$0xff] %v5188
          %5461 = vst [vmem:[%s1031 + $0x178] sm:$0xff] %v5190
          %5462 = vst [vmem:[%s1031 + $0x180] sm:$0xff] %v3508
          %5463 = vst [vmem:[%s1031 + $0x188] sm:$0xff] %v3510
          %5464 = vst [vmem:[%s1031 + $0x190] sm:$0xff] %v4070
          %5465 = vst [vmem:[%s1031 + $0x198] sm:$0xff] %v4072
          %5466 = vst [vmem:[%s1031 + $0x1a0] sm:$0xff] %v4632
          %5467 = vst [vmem:[%s1031 + $0x1a8] sm:$0xff] %v4634
          %5468 = vst [vmem:[%s1031 + $0x1b0] sm:$0xff] %v5194
          %5469 = vst [vmem:[%s1031 + $0x1b8] sm:$0xff] %v5196
          %5470 = vst [vmem:[%s1031 + $0x1c0] sm:$0xff] %v3512
          %5471 = vst [vmem:[%s1031 + $0x1c8] sm:$0xff] %v3514
          %5472 = vst [vmem:[%s1031 + $0x1d0] sm:$0xff] %v4074
          %5473 = vst [vmem:[%s1031 + $0x1d8] sm:$0xff] %v4076
          %5474 = vst [vmem:[%s1031 + $0x1e0] sm:$0xff] %v4636
          %5475 = vst [vmem:[%s1031 + $0x1e8] sm:$0xff] %v4638
          %5476 = vst [vmem:[%s1031 + $0x1f0] sm:$0xff] %v5198
          %5477 = vst [vmem:[%s1031 + $0x1f8] sm:$0xff] %v5200
          %5478 = vst [vmem:[%s1031 + $0x200] sm:$0xff] %v3518
          %5479 = vst [vmem:[%s1031 + $0x208] sm:$0xff] %v3520
          %5480 = vst [vmem:[%s1031 + $0x210] sm:$0xff] %v4080
          %5481 = vst [vmem:[%s1031 + $0x218] sm:$0xff] %v4082
          %5482 = vst [vmem:[%s1031 + $0x220] sm:$0xff] %v4642
          %5483 = vst [vmem:[%s1031 + $0x228] sm:$0xff] %v4644
          %5484 = vst [vmem:[%s1031 + $0x230] sm:$0xff] %v5204
          %5485 = vst [vmem:[%s1031 + $0x238] sm:$0xff] %v5206
          %5486 = vst [vmem:[%s1031 + $0x240] sm:$0xff] %v3522
          %5487 = vst [vmem:[%s1031 + $0x248] sm:$0xff] %v3524
          %5488 = vst [vmem:[%s1031 + $0x250] sm:$0xff] %v4084
          %5489 = vst [vmem:[%s1031 + $0x258] sm:$0xff] %v4086
          %5490 = vst [vmem:[%s1031 + $0x260] sm:$0xff] %v4646
          %5491 = vst [vmem:[%s1031 + $0x268] sm:$0xff] %v4648
          %5492 = vst [vmem:[%s1031 + $0x270] sm:$0xff] %v5208
          %5493 = vst [vmem:[%s1031 + $0x278] sm:$0xff] %v5210
          %5494 = vst [vmem:[%s1031 + $0x280] sm:$0xff] %v3528
          %5495 = vst [vmem:[%s1031 + $0x288] sm:$0xff] %v3530
          %5496 = vst [vmem:[%s1031 + $0x290] sm:$0xff] %v4090
          %5497 = vst [vmem:[%s1031 + $0x298] sm:$0xff] %v4092
          %5498 = vst [vmem:[%s1031 + $0x2a0] sm:$0xff] %v4652
          %5499 = vst [vmem:[%s1031 + $0x2a8] sm:$0xff] %v4654
          %5500 = vst [vmem:[%s1031 + $0x2b0] sm:$0xff] %v5214
          %5501 = vst [vmem:[%s1031 + $0x2b8] sm:$0xff] %v5216
          %5502 = vst [vmem:[%s1031 + $0x2c0] sm:$0xff] %v3532
          %5503 = vst [vmem:[%s1031 + $0x2c8] sm:$0xff] %v3534
          %5504 = vst [vmem:[%s1031 + $0x2d0] sm:$0xff] %v4094
          %5505 = vst [vmem:[%s1031 + $0x2d8] sm:$0xff] %v4096
          %5506 = vst [vmem:[%s1031 + $0x2e0] sm:$0xff] %v4656
          %5507 = vst [vmem:[%s1031 + $0x2e8] sm:$0xff] %v4658
          %5508 = vst [vmem:[%s1031 + $0x2f0] sm:$0xff] %v5218
          %5509 = vst [vmem:[%s1031 + $0x2f8] sm:$0xff] %v5220
          %5510 = vst [vmem:[%s1031 + $0x300] sm:$0xff] %v3538
          %5511 = vst [vmem:[%s1031 + $0x308] sm:$0xff] %v3540
          %5512 = vst [vmem:[%s1031 + $0x310] sm:$0xff] %v4100
          %5513 = vst [vmem:[%s1031 + $0x318] sm:$0xff] %v4102
          %5514 = vst [vmem:[%s1031 + $0x320] sm:$0xff] %v4662
          %5515 = vst [vmem:[%s1031 + $0x328] sm:$0xff] %v4664
          %5516 = vst [vmem:[%s1031 + $0x330] sm:$0xff] %v5224
          %5517 = vst [vmem:[%s1031 + $0x338] sm:$0xff] %v5226
          %5518 = vst [vmem:[%s1031 + $0x340] sm:$0xff] %v3542
          %5519 = vst [vmem:[%s1031 + $0x348] sm:$0xff] %v3544
          %5520 = vst [vmem:[%s1031 + $0x350] sm:$0xff] %v4104
          %5521 = vst [vmem:[%s1031 + $0x358] sm:$0xff] %v4106
          %5522 = vst [vmem:[%s1031 + $0x360] sm:$0xff] %v4666
          %5523 = vst [vmem:[%s1031 + $0x368] sm:$0xff] %v4668
          %5524 = vst [vmem:[%s1031 + $0x370] sm:$0xff] %v5228
          %5525 = vst [vmem:[%s1031 + $0x378] sm:$0xff] %v5230
          %5526 = vst [vmem:[%s1031 + $0x380] sm:$0xff] %v3548
          %5527 = vst [vmem:[%s1031 + $0x388] sm:$0xff] %v3550
          %5528 = vst [vmem:[%s1031 + $0x390] sm:$0xff] %v4110
          %5529 = vst [vmem:[%s1031 + $0x398] sm:$0xff] %v4112
          %5530 = vst [vmem:[%s1031 + $0x3a0] sm:$0xff] %v4672
          %5531 = vst [vmem:[%s1031 + $0x3a8] sm:$0xff] %v4674
          %5532 = vst [vmem:[%s1031 + $0x3b0] sm:$0xff] %v5234
          %5533 = vst [vmem:[%s1031 + $0x3b8] sm:$0xff] %v5236
          %5534 = vst [vmem:[%s1031 + $0x3c0] sm:$0xff] %v3552
          %5535 = vst [vmem:[%s1031 + $0x3c8] sm:$0xff] %v3554
          %5536 = vst [vmem:[%s1031 + $0x3d0] sm:$0xff] %v4114
          %5537 = vst [vmem:[%s1031 + $0x3d8] sm:$0xff] %v4116
          %5538 = vst [vmem:[%s1031 + $0x3e0] sm:$0xff] %v4676
          %5539 = vst [vmem:[%s1031 + $0x3e8] sm:$0xff] %v4678
          %5540 = vst [vmem:[%s1031 + $0x3f0] sm:$0xff] %v5238
          %5541 = vst [vmem:[%s1031 + $0x3f8] sm:$0xff] %v5240
          %5542 = vst [vmem:[%s1031 + $0x400] sm:$0xff] %v3558
          %5543 = vst [vmem:[%s1031 + $0x408] sm:$0xff] %v3560
          %5544 = vst [vmem:[%s1031 + $0x410] sm:$0xff] %v4120
          %5545 = vst [vmem:[%s1031 + $0x418] sm:$0xff] %v4122
          %5546 = vst [vmem:[%s1031 + $0x420] sm:$0xff] %v4682
          %5547 = vst [vmem:[%s1031 + $0x428] sm:$0xff] %v4684
          %5548 = vst [vmem:[%s1031 + $0x430] sm:$0xff] %v5244
          %5549 = vst [vmem:[%s1031 + $0x438] sm:$0xff] %v5246
          %5550 = vst [vmem:[%s1031 + $0x440] sm:$0xff] %v3562
          %5551 = vst [vmem:[%s1031 + $0x448] sm:$0xff] %v3564
          %5552 = vst [vmem:[%s1031 + $0x450] sm:$0xff] %v4124
          %5553 = vst [vmem:[%s1031 + $0x458] sm:$0xff] %v4126
          %5554 = vst [vmem:[%s1031 + $0x460] sm:$0xff] %v4686
          %5555 = vst [vmem:[%s1031 + $0x468] sm:$0xff] %v4688
          %5556 = vst [vmem:[%s1031 + $0x470] sm:$0xff] %v5248
          %5557 = vst [vmem:[%s1031 + $0x478] sm:$0xff] %v5250
          %5558 = vst [vmem:[%s1031 + $0x480] sm:$0xff] %v3568
          %5559 = vst [vmem:[%s1031 + $0x488] sm:$0xff] %v3570
          %5560 = vst [vmem:[%s1031 + $0x490] sm:$0xff] %v4130
          %5561 = vst [vmem:[%s1031 + $0x498] sm:$0xff] %v4132
          %5562 = vst [vmem:[%s1031 + $0x4a0] sm:$0xff] %v4692
          %5563 = vst [vmem:[%s1031 + $0x4a8] sm:$0xff] %v4694
          %5564 = vst [vmem:[%s1031 + $0x4b0] sm:$0xff] %v5254
          %5565 = vst [vmem:[%s1031 + $0x4b8] sm:$0xff] %v5256
          %5566 = vst [vmem:[%s1031 + $0x4c0] sm:$0xff] %v3572
          %5567 = vst [vmem:[%s1031 + $0x4c8] sm:$0xff] %v3574
          %5568 = vst [vmem:[%s1031 + $0x4d0] sm:$0xff] %v4134
          %5569 = vst [vmem:[%s1031 + $0x4d8] sm:$0xff] %v4136
          %5570 = vst [vmem:[%s1031 + $0x4e0] sm:$0xff] %v4696
          %5571 = vst [vmem:[%s1031 + $0x4e8] sm:$0xff] %v4698
          %5572 = vst [vmem:[%s1031 + $0x4f0] sm:$0xff] %v5258
          %5573 = vst [vmem:[%s1031 + $0x4f8] sm:$0xff] %v5260
          %5574 = vst [vmem:[%s1031 + $0x500] sm:$0xff] %v3578
          %5575 = vst [vmem:[%s1031 + $0x508] sm:$0xff] %v3580
          %5576 = vst [vmem:[%s1031 + $0x510] sm:$0xff] %v4140
          %5577 = vst [vmem:[%s1031 + $0x518] sm:$0xff] %v4142
          %5578 = vst [vmem:[%s1031 + $0x520] sm:$0xff] %v4702
          %5579 = vst [vmem:[%s1031 + $0x528] sm:$0xff] %v4704
          %5580 = vst [vmem:[%s1031 + $0x530] sm:$0xff] %v5264
          %5581 = vst [vmem:[%s1031 + $0x538] sm:$0xff] %v5266
          %5582 = vst [vmem:[%s1031 + $0x540] sm:$0xff] %v3582
          %5583 = vst [vmem:[%s1031 + $0x548] sm:$0xff] %v3584
          %5584 = vst [vmem:[%s1031 + $0x550] sm:$0xff] %v4144
          %5585 = vst [vmem:[%s1031 + $0x558] sm:$0xff] %v4146
          %5586 = vst [vmem:[%s1031 + $0x560] sm:$0xff] %v4706
          %5587 = vst [vmem:[%s1031 + $0x568] sm:$0xff] %v4708
          %5588 = vst [vmem:[%s1031 + $0x570] sm:$0xff] %v5268
          %5589 = vst [vmem:[%s1031 + $0x578] sm:$0xff] %v5270
          %5590 = vst [vmem:[%s1031 + $0x580] sm:$0xff] %v3588
          %5591 = vst [vmem:[%s1031 + $0x588] sm:$0xff] %v3590
          %5592 = vst [vmem:[%s1031 + $0x590] sm:$0xff] %v4150
          %5593 = vst [vmem:[%s1031 + $0x598] sm:$0xff] %v4152
          %5594 = vst [vmem:[%s1031 + $0x5a0] sm:$0xff] %v4712
          %5595 = vst [vmem:[%s1031 + $0x5a8] sm:$0xff] %v4714
          %5596 = vst [vmem:[%s1031 + $0x5b0] sm:$0xff] %v5274
          %5597 = vst [vmem:[%s1031 + $0x5b8] sm:$0xff] %v5276
          %5598 = vst [vmem:[%s1031 + $0x5c0] sm:$0xff] %v3592
          %5599 = vst [vmem:[%s1031 + $0x5c8] sm:$0xff] %v3594
          %5600 = vst [vmem:[%s1031 + $0x5d0] sm:$0xff] %v4154
          %5601 = vst [vmem:[%s1031 + $0x5d8] sm:$0xff] %v4156
          %5602 = vst [vmem:[%s1031 + $0x5e0] sm:$0xff] %v4716
          %5603 = vst [vmem:[%s1031 + $0x5e8] sm:$0xff] %v4718
          %5604 = vst [vmem:[%s1031 + $0x5f0] sm:$0xff] %v5278
          %5605 = vst [vmem:[%s1031 + $0x5f8] sm:$0xff] %v5280
          %5606 = vst [vmem:[%s1031 + $0x600] sm:$0xff] %v3598
          %5607 = vst [vmem:[%s1031 + $0x608] sm:$0xff] %v3600
          %5608 = vst [vmem:[%s1031 + $0x610] sm:$0xff] %v4160
          %5609 = vst [vmem:[%s1031 + $0x618] sm:$0xff] %v4162
          %5610 = vst [vmem:[%s1031 + $0x620] sm:$0xff] %v4722
          %5611 = vst [vmem:[%s1031 + $0x628] sm:$0xff] %v4724
          %5612 = vst [vmem:[%s1031 + $0x630] sm:$0xff] %v5284
          %5613 = vst [vmem:[%s1031 + $0x638] sm:$0xff] %v5286
          %5614 = vst [vmem:[%s1031 + $0x640] sm:$0xff] %v3602
          %5615 = vst [vmem:[%s1031 + $0x648] sm:$0xff] %v3604
          %5616 = vst [vmem:[%s1031 + $0x650] sm:$0xff] %v4164
          %5617 = vst [vmem:[%s1031 + $0x658] sm:$0xff] %v4166
          %5618 = vst [vmem:[%s1031 + $0x660] sm:$0xff] %v4726
          %5619 = vst [vmem:[%s1031 + $0x668] sm:$0xff] %v4728
          %5620 = vst [vmem:[%s1031 + $0x670] sm:$0xff] %v5288
          %5621 = vst [vmem:[%s1031 + $0x678] sm:$0xff] %v5290
          %5622 = vst [vmem:[%s1031 + $0x680] sm:$0xff] %v3608
          %5623 = vst [vmem:[%s1031 + $0x688] sm:$0xff] %v3610
          %5624 = vst [vmem:[%s1031 + $0x690] sm:$0xff] %v4170
          %5625 = vst [vmem:[%s1031 + $0x698] sm:$0xff] %v4172
          %5626 = vst [vmem:[%s1031 + $0x6a0] sm:$0xff] %v4732
          %5627 = vst [vmem:[%s1031 + $0x6a8] sm:$0xff] %v4734
          %5628 = vst [vmem:[%s1031 + $0x6b0] sm:$0xff] %v5294
          %5629 = vst [vmem:[%s1031 + $0x6b8] sm:$0xff] %v5296
          %5630 = vst [vmem:[%s1031 + $0x6c0] sm:$0xff] %v3612
          %5631 = vst [vmem:[%s1031 + $0x6c8] sm:$0xff] %v3614
          %5632 = vst [vmem:[%s1031 + $0x6d0] sm:$0xff] %v4174
          %5633 = vst [vmem:[%s1031 + $0x6d8] sm:$0xff] %v4176
          %5634 = vst [vmem:[%s1031 + $0x6e0] sm:$0xff] %v4736
          %5635 = vst [vmem:[%s1031 + $0x6e8] sm:$0xff] %v4738
          %5636 = vst [vmem:[%s1031 + $0x6f0] sm:$0xff] %v5298
          %5637 = vst [vmem:[%s1031 + $0x6f8] sm:$0xff] %v5300
          %5638 = vst [vmem:[%s1031 + $0x700] sm:$0xff] %v3618
          %5639 = vst [vmem:[%s1031 + $0x708] sm:$0xff] %v3620
          %5640 = vst [vmem:[%s1031 + $0x710] sm:$0xff] %v4180
          %5641 = vst [vmem:[%s1031 + $0x718] sm:$0xff] %v4182
          %5642 = vst [vmem:[%s1031 + $0x720] sm:$0xff] %v4742
          %5643 = vst [vmem:[%s1031 + $0x728] sm:$0xff] %v4744
          %5644 = vst [vmem:[%s1031 + $0x730] sm:$0xff] %v5304
          %5645 = vst [vmem:[%s1031 + $0x738] sm:$0xff] %v5306
          %5646 = vst [vmem:[%s1031 + $0x740] sm:$0xff] %v3622
          %5647 = vst [vmem:[%s1031 + $0x748] sm:$0xff] %v3624
          %5648 = vst [vmem:[%s1031 + $0x750] sm:$0xff] %v4184
          %5649 = vst [vmem:[%s1031 + $0x758] sm:$0xff] %v4186
          %5650 = vst [vmem:[%s1031 + $0x760] sm:$0xff] %v4746
          %5651 = vst [vmem:[%s1031 + $0x768] sm:$0xff] %v4748
          %5652 = vst [vmem:[%s1031 + $0x770] sm:$0xff] %v5308
          %5653 = vst [vmem:[%s1031 + $0x778] sm:$0xff] %v5310
          %5654 = vst [vmem:[%s1031 + $0x780] sm:$0xff] %v3628
          %5655 = vst [vmem:[%s1031 + $0x788] sm:$0xff] %v3630
          %5656 = vst [vmem:[%s1031 + $0x790] sm:$0xff] %v4190
          %5657 = vst [vmem:[%s1031 + $0x798] sm:$0xff] %v4192
          %5658 = vst [vmem:[%s1031 + $0x7a0] sm:$0xff] %v4752
          %5659 = vst [vmem:[%s1031 + $0x7a8] sm:$0xff] %v4754
          %5660 = vst [vmem:[%s1031 + $0x7b0] sm:$0xff] %v5314
          %5661 = vst [vmem:[%s1031 + $0x7b8] sm:$0xff] %v5316
          %5662 = vst [vmem:[%s1031 + $0x7c0] sm:$0xff] %v3632
          %5663 = vst [vmem:[%s1031 + $0x7c8] sm:$0xff] %v3634
          %5664 = vst [vmem:[%s1031 + $0x7d0] sm:$0xff] %v4194
          %5665 = vst [vmem:[%s1031 + $0x7d8] sm:$0xff] %v4196
          %5666 = vst [vmem:[%s1031 + $0x7e0] sm:$0xff] %v4756
          %5667 = vst [vmem:[%s1031 + $0x7e8] sm:$0xff] %v4758
          %5668 = vst [vmem:[%s1031 + $0x7f0] sm:$0xff] %v5318
          %5669 = vst [vmem:[%s1031 + $0x7f8] sm:$0xff] %v5320
          %5670 = vst [vmem:[%s1031 + $0x800] sm:$0xff] %v3638
          %5671 = vst [vmem:[%s1031 + $0x808] sm:$0xff] %v3640
          %5672 = vst [vmem:[%s1031 + $0x810] sm:$0xff] %v4200
          %5673 = vst [vmem:[%s1031 + $0x818] sm:$0xff] %v4202
          %5674 = vst [vmem:[%s1031 + $0x820] sm:$0xff] %v4762
          %5675 = vst [vmem:[%s1031 + $0x828] sm:$0xff] %v4764
          %5676 = vst [vmem:[%s1031 + $0x830] sm:$0xff] %v5324
          %5677 = vst [vmem:[%s1031 + $0x838] sm:$0xff] %v5326
          %5678 = vst [vmem:[%s1031 + $0x840] sm:$0xff] %v3642
          %5679 = vst [vmem:[%s1031 + $0x848] sm:$0xff] %v3644
          %5680 = vst [vmem:[%s1031 + $0x850] sm:$0xff] %v4204
          %5681 = vst [vmem:[%s1031 + $0x858] sm:$0xff] %v4206
          %5682 = vst [vmem:[%s1031 + $0x860] sm:$0xff] %v4766
          %5683 = vst [vmem:[%s1031 + $0x868] sm:$0xff] %v4768
          %5684 = vst [vmem:[%s1031 + $0x870] sm:$0xff] %v5328
          %5685 = vst [vmem:[%s1031 + $0x878] sm:$0xff] %v5330
          %5686 = vst [vmem:[%s1031 + $0x880] sm:$0xff] %v3648
          %5687 = vst [vmem:[%s1031 + $0x888] sm:$0xff] %v3650
          %5688 = vst [vmem:[%s1031 + $0x890] sm:$0xff] %v4210
          %5689 = vst [vmem:[%s1031 + $0x898] sm:$0xff] %v4212
          %5690 = vst [vmem:[%s1031 + $0x8a0] sm:$0xff] %v4772
          %5691 = vst [vmem:[%s1031 + $0x8a8] sm:$0xff] %v4774
          %5692 = vst [vmem:[%s1031 + $0x8b0] sm:$0xff] %v5334
          %5693 = vst [vmem:[%s1031 + $0x8b8] sm:$0xff] %v5336
          %5694 = vst [vmem:[%s1031 + $0x8c0] sm:$0xff] %v3652
          %5695 = vst [vmem:[%s1031 + $0x8c8] sm:$0xff] %v3654
          %5696 = vst [vmem:[%s1031 + $0x8d0] sm:$0xff] %v4214
          %5697 = vst [vmem:[%s1031 + $0x8d8] sm:$0xff] %v4216
          %5698 = vst [vmem:[%s1031 + $0x8e0] sm:$0xff] %v4776
          %5699 = vst [vmem:[%s1031 + $0x8e8] sm:$0xff] %v4778
          %5700 = vst [vmem:[%s1031 + $0x8f0] sm:$0xff] %v5338
          %5701 = vst [vmem:[%s1031 + $0x8f8] sm:$0xff] %v5340
          %5702 = vst [vmem:[%s1031 + $0x900] sm:$0xff] %v3658
          %5703 = vst [vmem:[%s1031 + $0x908] sm:$0xff] %v3660
          %5704 = vst [vmem:[%s1031 + $0x910] sm:$0xff] %v4220
          %5705 = vst [vmem:[%s1031 + $0x918] sm:$0xff] %v4222
          %5706 = vst [vmem:[%s1031 + $0x920] sm:$0xff] %v4782
          %5707 = vst [vmem:[%s1031 + $0x928] sm:$0xff] %v4784
          %5708 = vst [vmem:[%s1031 + $0x930] sm:$0xff] %v5344
          %5709 = vst [vmem:[%s1031 + $0x938] sm:$0xff] %v5346
          %5710 = vst [vmem:[%s1031 + $0x940] sm:$0xff] %v3662
          %5711 = vst [vmem:[%s1031 + $0x948] sm:$0xff] %v3664
          %5712 = vst [vmem:[%s1031 + $0x950] sm:$0xff] %v4224
          %5713 = vst [vmem:[%s1031 + $0x958] sm:$0xff] %v4226
          %5714 = vst [vmem:[%s1031 + $0x960] sm:$0xff] %v4786
          %5715 = vst [vmem:[%s1031 + $0x968] sm:$0xff] %v4788
          %5716 = vst [vmem:[%s1031 + $0x970] sm:$0xff] %v5348
          %5717 = vst [vmem:[%s1031 + $0x978] sm:$0xff] %v5350
          %5718 = vst [vmem:[%s1031 + $0x980] sm:$0xff] %v3668
          %5719 = vst [vmem:[%s1031 + $0x988] sm:$0xff] %v3670
          %5720 = vst [vmem:[%s1031 + $0x990] sm:$0xff] %v4230
          %5721 = vst [vmem:[%s1031 + $0x998] sm:$0xff] %v4232
          %5722 = vst [vmem:[%s1031 + $0x9a0] sm:$0xff] %v4792
          %5723 = vst [vmem:[%s1031 + $0x9a8] sm:$0xff] %v4794
          %5724 = vst [vmem:[%s1031 + $0x9b0] sm:$0xff] %v5354
          %5725 = vst [vmem:[%s1031 + $0x9b8] sm:$0xff] %v5356
          %5726 = vst [vmem:[%s1031 + $0x9c0] sm:$0xff] %v3672
          %5727 = vst [vmem:[%s1031 + $0x9c8] sm:$0xff] %v3674
          %5728 = vst [vmem:[%s1031 + $0x9d0] sm:$0xff] %v4234
          %5729 = vst [vmem:[%s1031 + $0x9d8] sm:$0xff] %v4236
          %5730 = vst [vmem:[%s1031 + $0x9e0] sm:$0xff] %v4796
          %5731 = vst [vmem:[%s1031 + $0x9e8] sm:$0xff] %v4798
          %5732 = vst [vmem:[%s1031 + $0x9f0] sm:$0xff] %v5358
          %5733 = vst [vmem:[%s1031 + $0x9f8] sm:$0xff] %v5360
          %5734 = vst [vmem:[%s1031 + $0xa00] sm:$0xff] %v3678
          %5735 = vst [vmem:[%s1031 + $0xa08] sm:$0xff] %v3680
          %5736 = vst [vmem:[%s1031 + $0xa10] sm:$0xff] %v4240
          %5737 = vst [vmem:[%s1031 + $0xa18] sm:$0xff] %v4242
          %5738 = vst [vmem:[%s1031 + $0xa20] sm:$0xff] %v4802
          %5739 = vst [vmem:[%s1031 + $0xa28] sm:$0xff] %v4804
          %5740 = vst [vmem:[%s1031 + $0xa30] sm:$0xff] %v5364
          %5741 = vst [vmem:[%s1031 + $0xa38] sm:$0xff] %v5366
          %5742 = vst [vmem:[%s1031 + $0xa40] sm:$0xff] %v3682
          %5743 = vst [vmem:[%s1031 + $0xa48] sm:$0xff] %v3684
          %5744 = vst [vmem:[%s1031 + $0xa50] sm:$0xff] %v4244
          %5745 = vst [vmem:[%s1031 + $0xa58] sm:$0xff] %v4246
          %5746 = vst [vmem:[%s1031 + $0xa60] sm:$0xff] %v4806
          %5747 = vst [vmem:[%s1031 + $0xa68] sm:$0xff] %v4808
          %5748 = vst [vmem:[%s1031 + $0xa70] sm:$0xff] %v5368
          %5749 = vst [vmem:[%s1031 + $0xa78] sm:$0xff] %v5370
          %5750 = vst [vmem:[%s1031 + $0xa80] sm:$0xff] %v3688
          %5751 = vst [vmem:[%s1031 + $0xa88] sm:$0xff] %v3690
          %5752 = vst [vmem:[%s1031 + $0xa90] sm:$0xff] %v4250
          %5753 = vst [vmem:[%s1031 + $0xa98] sm:$0xff] %v4252
          %5754 = vst [vmem:[%s1031 + $0xaa0] sm:$0xff] %v4812
          %5755 = vst [vmem:[%s1031 + $0xaa8] sm:$0xff] %v4814
          %5756 = vst [vmem:[%s1031 + $0xab0] sm:$0xff] %v5374
          %5757 = vst [vmem:[%s1031 + $0xab8] sm:$0xff] %v5376
          %5758 = vst [vmem:[%s1031 + $0xac0] sm:$0xff] %v3692
          %5759 = vst [vmem:[%s1031 + $0xac8] sm:$0xff] %v3694
          %5760 = vst [vmem:[%s1031 + $0xad0] sm:$0xff] %v4254
          %5761 = vst [vmem:[%s1031 + $0xad8] sm:$0xff] %v4256
          %5762 = vst [vmem:[%s1031 + $0xae0] sm:$0xff] %v4816
          %5763 = vst [vmem:[%s1031 + $0xae8] sm:$0xff] %v4818
          %5764 = vst [vmem:[%s1031 + $0xaf0] sm:$0xff] %v5378
          %5765 = vst [vmem:[%s1031 + $0xaf8] sm:$0xff] %v5380
          %5766 = vst [vmem:[%s1031 + $0xb00] sm:$0xff] %v3698
          %5767 = vst [vmem:[%s1031 + $0xb08] sm:$0xff] %v3700
          %5768 = vst [vmem:[%s1031 + $0xb10] sm:$0xff] %v4260
          %5769 = vst [vmem:[%s1031 + $0xb18] sm:$0xff] %v4262
          %5770 = vst [vmem:[%s1031 + $0xb20] sm:$0xff] %v4822
          %5771 = vst [vmem:[%s1031 + $0xb28] sm:$0xff] %v4824
          %5772 = vst [vmem:[%s1031 + $0xb30] sm:$0xff] %v5384
          %5773 = vst [vmem:[%s1031 + $0xb38] sm:$0xff] %v5386
          %5774 = vst [vmem:[%s1031 + $0xb40] sm:$0xff] %v3702
          %5775 = vst [vmem:[%s1031 + $0xb48] sm:$0xff] %v3704
          %5776 = vst [vmem:[%s1031 + $0xb50] sm:$0xff] %v4264
          %5777 = vst [vmem:[%s1031 + $0xb58] sm:$0xff] %v4266
          %5778 = vst [vmem:[%s1031 + $0xb60] sm:$0xff] %v4826
          %5779 = vst [vmem:[%s1031 + $0xb68] sm:$0xff] %v4828
          %5780 = vst [vmem:[%s1031 + $0xb70] sm:$0xff] %v5388
          %5781 = vst [vmem:[%s1031 + $0xb78] sm:$0xff] %v5390
          %5782 = vst [vmem:[%s1031 + $0xb80] sm:$0xff] %v3708
          %5783 = vst [vmem:[%s1031 + $0xb88] sm:$0xff] %v3710
          %5784 = vst [vmem:[%s1031 + $0xb90] sm:$0xff] %v4270
          %5785 = vst [vmem:[%s1031 + $0xb98] sm:$0xff] %v4272
          %5786 = vst [vmem:[%s1031 + $0xba0] sm:$0xff] %v4832
          %5787 = vst [vmem:[%s1031 + $0xba8] sm:$0xff] %v4834
          %5788 = vst [vmem:[%s1031 + $0xbb0] sm:$0xff] %v5394
          %5789 = vst [vmem:[%s1031 + $0xbb8] sm:$0xff] %v5396
          %5790 = vst [vmem:[%s1031 + $0xbc0] sm:$0xff] %v3712
          %5791 = vst [vmem:[%s1031 + $0xbc8] sm:$0xff] %v3714
          %5792 = vst [vmem:[%s1031 + $0xbd0] sm:$0xff] %v4274
          %5793 = vst [vmem:[%s1031 + $0xbd8] sm:$0xff] %v4276
          %5794 = vst [vmem:[%s1031 + $0xbe0] sm:$0xff] %v4836
          %5795 = vst [vmem:[%s1031 + $0xbe8] sm:$0xff] %v4838
          %5796 = vst [vmem:[%s1031 + $0xbf0] sm:$0xff] %v5398
          %5797 = vst [vmem:[%s1031 + $0xbf8] sm:$0xff] %v5400
          %5798 = vst [vmem:[%s1031 + $0xc00] sm:$0xff] %v3718
          %5799 = vst [vmem:[%s1031 + $0xc08] sm:$0xff] %v3720
          %5800 = vst [vmem:[%s1031 + $0xc10] sm:$0xff] %v4280
          %5801 = vst [vmem:[%s1031 + $0xc18] sm:$0xff] %v4282
          %5802 = vst [vmem:[%s1031 + $0xc20] sm:$0xff] %v4842
          %5803 = vst [vmem:[%s1031 + $0xc28] sm:$0xff] %v4844
          %5804 = vst [vmem:[%s1031 + $0xc30] sm:$0xff] %v5404
          %5805 = vst [vmem:[%s1031 + $0xc38] sm:$0xff] %v5406
        $region86: #{extract_image_feature.1} parent=73 // pred_fallthru
          _
        %p5806 = scmp.ne.s32.totalorder %s23, 0
        // Predicated region
        $region87: #{extract_image_feature.1} parent=73 // pred_check
          %p5807 = pneg %p5806
        $region88: #{extract_image_feature.1} parent=73 // pred_check_branch
          %5809 = sbr.rel (%p5807) target = $region90
        $region89: #{extract_image_feature.1} parent=73 // pred_region
          %v5810 = vld [vmem:[%s1031] sm:$0xff]
          %v5811 = vld [vmem:[%s1031 + $0x8] sm:$0xff]
          %v5812 = vld [vmem:[%s1031 + $0x10] sm:$0xff]
          %v5813 = vld [vmem:[%s1031 + $0x18] sm:$0xff]
          %v5814 = vld [vmem:[%s1031 + $0x20] sm:$0xff]
          %v5815 = vld [vmem:[%s1031 + $0x28] sm:$0xff]
          %v5816 = vld [vmem:[%s1031 + $0x30] sm:$0xff]
          %v5817 = vld [vmem:[%s1031 + $0x38] sm:$0xff]
          %v5818 = vld [vmem:[%s1031 + $0x40] sm:$0xff]
          %v5819 = vld [vmem:[%s1031 + $0x48] sm:$0xff]
          %v5820 = vld [vmem:[%s1031 + $0x50] sm:$0xff]
          %v5821 = vld [vmem:[%s1031 + $0x58] sm:$0xff]
          %v5822 = vld [vmem:[%s1031 + $0x60] sm:$0xff]
          %v5823 = vld [vmem:[%s1031 + $0x68] sm:$0xff]
          %v5824 = vld [vmem:[%s1031 + $0x70] sm:$0xff]
          %v5825 = vld [vmem:[%s1031 + $0x78] sm:$0xff]
          %v5826 = vld [vmem:[%s1031 + $0x80] sm:$0xff]
          %v5827 = vld [vmem:[%s1031 + $0x88] sm:$0xff]
          %v5828 = vld [vmem:[%s1031 + $0x90] sm:$0xff]
          %v5829 = vld [vmem:[%s1031 + $0x98] sm:$0xff]
          %v5830 = vld [vmem:[%s1031 + $0xa0] sm:$0xff]
          %v5831 = vld [vmem:[%s1031 + $0xa8] sm:$0xff]
          %v5832 = vld [vmem:[%s1031 + $0xb0] sm:$0xff]
          %v5833 = vld [vmem:[%s1031 + $0xb8] sm:$0xff]
          %v5834 = vld [vmem:[%s1031 + $0xc0] sm:$0xff]
          %v5835 = vld [vmem:[%s1031 + $0xc8] sm:$0xff]
          %v5836 = vld [vmem:[%s1031 + $0xd0] sm:$0xff]
          %v5837 = vld [vmem:[%s1031 + $0xd8] sm:$0xff]
          %v5838 = vld [vmem:[%s1031 + $0xe0] sm:$0xff]
          %v5839 = vld [vmem:[%s1031 + $0xe8] sm:$0xff]
          %v5840 = vld [vmem:[%s1031 + $0xf0] sm:$0xff]
          %v5841 = vld [vmem:[%s1031 + $0xf8] sm:$0xff]
          %v5842 = vld [vmem:[%s1031 + $0x100] sm:$0xff]
          %v5843 = vld [vmem:[%s1031 + $0x108] sm:$0xff]
          %v5844 = vld [vmem:[%s1031 + $0x110] sm:$0xff]
          %v5845 = vld [vmem:[%s1031 + $0x118] sm:$0xff]
          %v5846 = vld [vmem:[%s1031 + $0x120] sm:$0xff]
          %v5847 = vld [vmem:[%s1031 + $0x128] sm:$0xff]
          %v5848 = vld [vmem:[%s1031 + $0x130] sm:$0xff]
          %v5849 = vld [vmem:[%s1031 + $0x138] sm:$0xff]
          %v5850 = vld [vmem:[%s1031 + $0x140] sm:$0xff]
          %v5851 = vld [vmem:[%s1031 + $0x148] sm:$0xff]
          %v5852 = vld [vmem:[%s1031 + $0x150] sm:$0xff]
          %v5853 = vld [vmem:[%s1031 + $0x158] sm:$0xff]
          %v5854 = vld [vmem:[%s1031 + $0x160] sm:$0xff]
          %v5855 = vld [vmem:[%s1031 + $0x168] sm:$0xff]
          %v5856 = vld [vmem:[%s1031 + $0x170] sm:$0xff]
          %v5857 = vld [vmem:[%s1031 + $0x178] sm:$0xff]
          %v5858 = vld [vmem:[%s1031 + $0x180] sm:$0xff]
          %v5859 = vld [vmem:[%s1031 + $0x188] sm:$0xff]
          %v5860 = vld [vmem:[%s1031 + $0x190] sm:$0xff]
          %v5861 = vld [vmem:[%s1031 + $0x198] sm:$0xff]
          %v5862 = vld [vmem:[%s1031 + $0x1a0] sm:$0xff]
          %v5863 = vld [vmem:[%s1031 + $0x1a8] sm:$0xff]
          %v5864 = vld [vmem:[%s1031 + $0x1b0] sm:$0xff]
          %v5865 = vld [vmem:[%s1031 + $0x1b8] sm:$0xff]
          %v5866 = vld [vmem:[%s1031 + $0x1c0] sm:$0xff]
          %v5867 = vld [vmem:[%s1031 + $0x1c8] sm:$0xff]
          %v5868 = vld [vmem:[%s1031 + $0x1d0] sm:$0xff]
          %v5869 = vld [vmem:[%s1031 + $0x1d8] sm:$0xff]
          %v5870 = vld [vmem:[%s1031 + $0x1e0] sm:$0xff]
          %v5871 = vld [vmem:[%s1031 + $0x1e8] sm:$0xff]
          %v5872 = vld [vmem:[%s1031 + $0x1f0] sm:$0xff]
          %v5873 = vld [vmem:[%s1031 + $0x1f8] sm:$0xff]
          %v5874 = vld [vmem:[%s1031 + $0x200] sm:$0xff]
          %v5875 = vld [vmem:[%s1031 + $0x208] sm:$0xff]
          %v5876 = vld [vmem:[%s1031 + $0x210] sm:$0xff]
          %v5877 = vld [vmem:[%s1031 + $0x218] sm:$0xff]
          %v5878 = vld [vmem:[%s1031 + $0x220] sm:$0xff]
          %v5879 = vld [vmem:[%s1031 + $0x228] sm:$0xff]
          %v5880 = vld [vmem:[%s1031 + $0x230] sm:$0xff]
          %v5881 = vld [vmem:[%s1031 + $0x238] sm:$0xff]
          %v5882 = vld [vmem:[%s1031 + $0x240] sm:$0xff]
          %v5883 = vld [vmem:[%s1031 + $0x248] sm:$0xff]
          %v5884 = vld [vmem:[%s1031 + $0x250] sm:$0xff]
          %v5885 = vld [vmem:[%s1031 + $0x258] sm:$0xff]
          %v5886 = vld [vmem:[%s1031 + $0x260] sm:$0xff]
          %v5887 = vld [vmem:[%s1031 + $0x268] sm:$0xff]
          %v5888 = vld [vmem:[%s1031 + $0x270] sm:$0xff]
          %v5889 = vld [vmem:[%s1031 + $0x278] sm:$0xff]
          %v5890 = vld [vmem:[%s1031 + $0x280] sm:$0xff]
          %v5891 = vld [vmem:[%s1031 + $0x288] sm:$0xff]
          %v5892 = vld [vmem:[%s1031 + $0x290] sm:$0xff]
          %v5893 = vld [vmem:[%s1031 + $0x298] sm:$0xff]
          %v5894 = vld [vmem:[%s1031 + $0x2a0] sm:$0xff]
          %v5895 = vld [vmem:[%s1031 + $0x2a8] sm:$0xff]
          %v5896 = vld [vmem:[%s1031 + $0x2b0] sm:$0xff]
          %v5897 = vld [vmem:[%s1031 + $0x2b8] sm:$0xff]
          %v5898 = vld [vmem:[%s1031 + $0x2c0] sm:$0xff]
          %v5899 = vld [vmem:[%s1031 + $0x2c8] sm:$0xff]
          %v5900 = vld [vmem:[%s1031 + $0x2d0] sm:$0xff]
          %v5901 = vld [vmem:[%s1031 + $0x2d8] sm:$0xff]
          %v5902 = vld [vmem:[%s1031 + $0x2e0] sm:$0xff]
          %v5903 = vld [vmem:[%s1031 + $0x2e8] sm:$0xff]
          %v5904 = vld [vmem:[%s1031 + $0x2f0] sm:$0xff]
          %v5905 = vld [vmem:[%s1031 + $0x2f8] sm:$0xff]
          %v5906 = vld [vmem:[%s1031 + $0x300] sm:$0xff]
          %v5907 = vld [vmem:[%s1031 + $0x308] sm:$0xff]
          %v5908 = vld [vmem:[%s1031 + $0x310] sm:$0xff]
          %v5909 = vld [vmem:[%s1031 + $0x318] sm:$0xff]
          %v5910 = vld [vmem:[%s1031 + $0x320] sm:$0xff]
          %v5911 = vld [vmem:[%s1031 + $0x328] sm:$0xff]
          %v5912 = vld [vmem:[%s1031 + $0x330] sm:$0xff]
          %v5913 = vld [vmem:[%s1031 + $0x338] sm:$0xff]
          %v5914 = vld [vmem:[%s1031 + $0x340] sm:$0xff]
          %v5915 = vld [vmem:[%s1031 + $0x348] sm:$0xff]
          %v5916 = vld [vmem:[%s1031 + $0x350] sm:$0xff]
          %v5917 = vld [vmem:[%s1031 + $0x358] sm:$0xff]
          %v5918 = vld [vmem:[%s1031 + $0x360] sm:$0xff]
          %v5919 = vld [vmem:[%s1031 + $0x368] sm:$0xff]
          %v5920 = vld [vmem:[%s1031 + $0x370] sm:$0xff]
          %v5921 = vld [vmem:[%s1031 + $0x378] sm:$0xff]
          %v5922 = vld [vmem:[%s1031 + $0x380] sm:$0xff]
          %v5923 = vld [vmem:[%s1031 + $0x388] sm:$0xff]
          %v5924 = vld [vmem:[%s1031 + $0x390] sm:$0xff]
          %v5925 = vld [vmem:[%s1031 + $0x398] sm:$0xff]
          %v5926 = vld [vmem:[%s1031 + $0x3a0] sm:$0xff]
          %v5927 = vld [vmem:[%s1031 + $0x3a8] sm:$0xff]
          %v5928 = vld [vmem:[%s1031 + $0x3b0] sm:$0xff]
          %v5929 = vld [vmem:[%s1031 + $0x3b8] sm:$0xff]
          %v5930 = vld [vmem:[%s1031 + $0x3c0] sm:$0xff]
          %v5931 = vld [vmem:[%s1031 + $0x3c8] sm:$0xff]
          %v5932 = vld [vmem:[%s1031 + $0x3d0] sm:$0xff]
          %v5933 = vld [vmem:[%s1031 + $0x3d8] sm:$0xff]
          %v5934 = vld [vmem:[%s1031 + $0x3e0] sm:$0xff]
          %v5935 = vld [vmem:[%s1031 + $0x3e8] sm:$0xff]
          %v5936 = vld [vmem:[%s1031 + $0x3f0] sm:$0xff]
          %v5937 = vld [vmem:[%s1031 + $0x3f8] sm:$0xff]
          %v5938 = vld [vmem:[%s1031 + $0x400] sm:$0xff]
          %v5939 = vld [vmem:[%s1031 + $0x408] sm:$0xff]
          %v5940 = vld [vmem:[%s1031 + $0x410] sm:$0xff]
          %v5941 = vld [vmem:[%s1031 + $0x418] sm:$0xff]
          %v5942 = vld [vmem:[%s1031 + $0x420] sm:$0xff]
          %v5943 = vld [vmem:[%s1031 + $0x428] sm:$0xff]
          %v5944 = vld [vmem:[%s1031 + $0x430] sm:$0xff]
          %v5945 = vld [vmem:[%s1031 + $0x438] sm:$0xff]
          %v5946 = vld [vmem:[%s1031 + $0x440] sm:$0xff]
          %v5947 = vld [vmem:[%s1031 + $0x448] sm:$0xff]
          %v5948 = vld [vmem:[%s1031 + $0x450] sm:$0xff]
          %v5949 = vld [vmem:[%s1031 + $0x458] sm:$0xff]
          %v5950 = vld [vmem:[%s1031 + $0x460] sm:$0xff]
          %v5951 = vld [vmem:[%s1031 + $0x468] sm:$0xff]
          %v5952 = vld [vmem:[%s1031 + $0x470] sm:$0xff]
          %v5953 = vld [vmem:[%s1031 + $0x478] sm:$0xff]
          %v5954 = vld [vmem:[%s1031 + $0x480] sm:$0xff]
          %v5955 = vld [vmem:[%s1031 + $0x488] sm:$0xff]
          %v5956 = vld [vmem:[%s1031 + $0x490] sm:$0xff]
          %v5957 = vld [vmem:[%s1031 + $0x498] sm:$0xff]
          %v5958 = vld [vmem:[%s1031 + $0x4a0] sm:$0xff]
          %v5959 = vld [vmem:[%s1031 + $0x4a8] sm:$0xff]
          %v5960 = vld [vmem:[%s1031 + $0x4b0] sm:$0xff]
          %v5961 = vld [vmem:[%s1031 + $0x4b8] sm:$0xff]
          %v5962 = vld [vmem:[%s1031 + $0x4c0] sm:$0xff]
          %v5963 = vld [vmem:[%s1031 + $0x4c8] sm:$0xff]
          %v5964 = vld [vmem:[%s1031 + $0x4d0] sm:$0xff]
          %v5965 = vld [vmem:[%s1031 + $0x4d8] sm:$0xff]
          %v5966 = vld [vmem:[%s1031 + $0x4e0] sm:$0xff]
          %v5967 = vld [vmem:[%s1031 + $0x4e8] sm:$0xff]
          %v5968 = vld [vmem:[%s1031 + $0x4f0] sm:$0xff]
          %v5969 = vld [vmem:[%s1031 + $0x4f8] sm:$0xff]
          %v5970 = vld [vmem:[%s1031 + $0x500] sm:$0xff]
          %v5971 = vld [vmem:[%s1031 + $0x508] sm:$0xff]
          %v5972 = vld [vmem:[%s1031 + $0x510] sm:$0xff]
          %v5973 = vld [vmem:[%s1031 + $0x518] sm:$0xff]
          %v5974 = vld [vmem:[%s1031 + $0x520] sm:$0xff]
          %v5975 = vld [vmem:[%s1031 + $0x528] sm:$0xff]
          %v5976 = vld [vmem:[%s1031 + $0x530] sm:$0xff]
          %v5977 = vld [vmem:[%s1031 + $0x538] sm:$0xff]
          %v5978 = vld [vmem:[%s1031 + $0x540] sm:$0xff]
          %v5979 = vld [vmem:[%s1031 + $0x548] sm:$0xff]
          %v5980 = vld [vmem:[%s1031 + $0x550] sm:$0xff]
          %v5981 = vld [vmem:[%s1031 + $0x558] sm:$0xff]
          %v5982 = vld [vmem:[%s1031 + $0x560] sm:$0xff]
          %v5983 = vld [vmem:[%s1031 + $0x568] sm:$0xff]
          %v5984 = vld [vmem:[%s1031 + $0x570] sm:$0xff]
          %v5985 = vld [vmem:[%s1031 + $0x578] sm:$0xff]
          %v5986 = vld [vmem:[%s1031 + $0x580] sm:$0xff]
          %v5987 = vld [vmem:[%s1031 + $0x588] sm:$0xff]
          %v5988 = vld [vmem:[%s1031 + $0x590] sm:$0xff]
          %v5989 = vld [vmem:[%s1031 + $0x598] sm:$0xff]
          %v5990 = vld [vmem:[%s1031 + $0x5a0] sm:$0xff]
          %v5991 = vld [vmem:[%s1031 + $0x5a8] sm:$0xff]
          %v5992 = vld [vmem:[%s1031 + $0x5b0] sm:$0xff]
          %v5993 = vld [vmem:[%s1031 + $0x5b8] sm:$0xff]
          %v5994 = vld [vmem:[%s1031 + $0x5c0] sm:$0xff]
          %v5995 = vld [vmem:[%s1031 + $0x5c8] sm:$0xff]
          %v5996 = vld [vmem:[%s1031 + $0x5d0] sm:$0xff]
          %v5997 = vld [vmem:[%s1031 + $0x5d8] sm:$0xff]
          %v5998 = vld [vmem:[%s1031 + $0x5e0] sm:$0xff]
          %v5999 = vld [vmem:[%s1031 + $0x5e8] sm:$0xff]
          %v6000 = vld [vmem:[%s1031 + $0x5f0] sm:$0xff]
          %v6001 = vld [vmem:[%s1031 + $0x5f8] sm:$0xff]
          %v6002 = vld [vmem:[%s1031 + $0x600] sm:$0xff]
          %v6003 = vld [vmem:[%s1031 + $0x608] sm:$0xff]
          %v6004 = vld [vmem:[%s1031 + $0x610] sm:$0xff]
          %v6005 = vld [vmem:[%s1031 + $0x618] sm:$0xff]
          %v6006 = vld [vmem:[%s1031 + $0x620] sm:$0xff]
          %v6007 = vld [vmem:[%s1031 + $0x628] sm:$0xff]
          %v6008 = vld [vmem:[%s1031 + $0x630] sm:$0xff]
          %v6009 = vld [vmem:[%s1031 + $0x638] sm:$0xff]
          %v6010 = vld [vmem:[%s1031 + $0x640] sm:$0xff]
          %v6011 = vld [vmem:[%s1031 + $0x648] sm:$0xff]
          %v6012 = vld [vmem:[%s1031 + $0x650] sm:$0xff]
          %v6013 = vld [vmem:[%s1031 + $0x658] sm:$0xff]
          %v6014 = vld [vmem:[%s1031 + $0x660] sm:$0xff]
          %v6015 = vld [vmem:[%s1031 + $0x668] sm:$0xff]
          %v6016 = vld [vmem:[%s1031 + $0x670] sm:$0xff]
          %v6017 = vld [vmem:[%s1031 + $0x678] sm:$0xff]
          %v6018 = vld [vmem:[%s1031 + $0x680] sm:$0xff]
          %v6019 = vld [vmem:[%s1031 + $0x688] sm:$0xff]
          %v6020 = vld [vmem:[%s1031 + $0x690] sm:$0xff]
          %v6021 = vld [vmem:[%s1031 + $0x698] sm:$0xff]
          %v6022 = vld [vmem:[%s1031 + $0x6a0] sm:$0xff]
          %v6023 = vld [vmem:[%s1031 + $0x6a8] sm:$0xff]
          %v6024 = vld [vmem:[%s1031 + $0x6b0] sm:$0xff]
          %v6025 = vld [vmem:[%s1031 + $0x6b8] sm:$0xff]
          %v6026 = vld [vmem:[%s1031 + $0x6c0] sm:$0xff]
          %v6027 = vld [vmem:[%s1031 + $0x6c8] sm:$0xff]
          %v6028 = vld [vmem:[%s1031 + $0x6d0] sm:$0xff]
          %v6029 = vld [vmem:[%s1031 + $0x6d8] sm:$0xff]
          %v6030 = vld [vmem:[%s1031 + $0x6e0] sm:$0xff]
          %v6031 = vld [vmem:[%s1031 + $0x6e8] sm:$0xff]
          %v6032 = vld [vmem:[%s1031 + $0x6f0] sm:$0xff]
          %v6033 = vld [vmem:[%s1031 + $0x6f8] sm:$0xff]
          %v6034 = vld [vmem:[%s1031 + $0x700] sm:$0xff]
          %v6035 = vld [vmem:[%s1031 + $0x708] sm:$0xff]
          %v6036 = vld [vmem:[%s1031 + $0x710] sm:$0xff]
          %v6037 = vld [vmem:[%s1031 + $0x718] sm:$0xff]
          %v6038 = vld [vmem:[%s1031 + $0x720] sm:$0xff]
          %v6039 = vld [vmem:[%s1031 + $0x728] sm:$0xff]
          %v6040 = vld [vmem:[%s1031 + $0x730] sm:$0xff]
          %v6041 = vld [vmem:[%s1031 + $0x738] sm:$0xff]
          %v6042 = vld [vmem:[%s1031 + $0x740] sm:$0xff]
          %v6043 = vld [vmem:[%s1031 + $0x748] sm:$0xff]
          %v6044 = vld [vmem:[%s1031 + $0x750] sm:$0xff]
          %v6045 = vld [vmem:[%s1031 + $0x758] sm:$0xff]
          %v6046 = vld [vmem:[%s1031 + $0x760] sm:$0xff]
          %v6047 = vld [vmem:[%s1031 + $0x768] sm:$0xff]
          %v6048 = vld [vmem:[%s1031 + $0x770] sm:$0xff]
          %v6049 = vld [vmem:[%s1031 + $0x778] sm:$0xff]
          %v6050 = vld [vmem:[%s1031 + $0x780] sm:$0xff]
          %v6051 = vld [vmem:[%s1031 + $0x788] sm:$0xff]
          %v6052 = vld [vmem:[%s1031 + $0x790] sm:$0xff]
          %v6053 = vld [vmem:[%s1031 + $0x798] sm:$0xff]
          %v6054 = vld [vmem:[%s1031 + $0x7a0] sm:$0xff]
          %v6055 = vld [vmem:[%s1031 + $0x7a8] sm:$0xff]
          %v6056 = vld [vmem:[%s1031 + $0x7b0] sm:$0xff]
          %v6057 = vld [vmem:[%s1031 + $0x7b8] sm:$0xff]
          %v6058 = vld [vmem:[%s1031 + $0x7c0] sm:$0xff]
          %v6059 = vld [vmem:[%s1031 + $0x7c8] sm:$0xff]
          %v6060 = vld [vmem:[%s1031 + $0x7d0] sm:$0xff]
          %v6061 = vld [vmem:[%s1031 + $0x7d8] sm:$0xff]
          %v6062 = vld [vmem:[%s1031 + $0x7e0] sm:$0xff]
          %v6063 = vld [vmem:[%s1031 + $0x7e8] sm:$0xff]
          %v6064 = vld [vmem:[%s1031 + $0x7f0] sm:$0xff]
          %v6065 = vld [vmem:[%s1031 + $0x7f8] sm:$0xff]
          %v6066 = vld [vmem:[%s1031 + $0x800] sm:$0xff]
          %v6067 = vld [vmem:[%s1031 + $0x808] sm:$0xff]
          %v6068 = vld [vmem:[%s1031 + $0x810] sm:$0xff]
          %v6069 = vld [vmem:[%s1031 + $0x818] sm:$0xff]
          %v6070 = vld [vmem:[%s1031 + $0x820] sm:$0xff]
          %v6071 = vld [vmem:[%s1031 + $0x828] sm:$0xff]
          %v6072 = vld [vmem:[%s1031 + $0x830] sm:$0xff]
          %v6073 = vld [vmem:[%s1031 + $0x838] sm:$0xff]
          %v6074 = vld [vmem:[%s1031 + $0x840] sm:$0xff]
          %v6075 = vld [vmem:[%s1031 + $0x848] sm:$0xff]
          %v6076 = vld [vmem:[%s1031 + $0x850] sm:$0xff]
          %v6077 = vld [vmem:[%s1031 + $0x858] sm:$0xff]
          %v6078 = vld [vmem:[%s1031 + $0x860] sm:$0xff]
          %v6079 = vld [vmem:[%s1031 + $0x868] sm:$0xff]
          %v6080 = vld [vmem:[%s1031 + $0x870] sm:$0xff]
          %v6081 = vld [vmem:[%s1031 + $0x878] sm:$0xff]
          %v6082 = vld [vmem:[%s1031 + $0x880] sm:$0xff]
          %v6083 = vld [vmem:[%s1031 + $0x888] sm:$0xff]
          %v6084 = vld [vmem:[%s1031 + $0x890] sm:$0xff]
          %v6085 = vld [vmem:[%s1031 + $0x898] sm:$0xff]
          %v6086 = vld [vmem:[%s1031 + $0x8a0] sm:$0xff]
          %v6087 = vld [vmem:[%s1031 + $0x8a8] sm:$0xff]
          %v6088 = vld [vmem:[%s1031 + $0x8b0] sm:$0xff]
          %v6089 = vld [vmem:[%s1031 + $0x8b8] sm:$0xff]
          %v6090 = vld [vmem:[%s1031 + $0x8c0] sm:$0xff]
          %v6091 = vld [vmem:[%s1031 + $0x8c8] sm:$0xff]
          %v6092 = vld [vmem:[%s1031 + $0x8d0] sm:$0xff]
          %v6093 = vld [vmem:[%s1031 + $0x8d8] sm:$0xff]
          %v6094 = vld [vmem:[%s1031 + $0x8e0] sm:$0xff]
          %v6095 = vld [vmem:[%s1031 + $0x8e8] sm:$0xff]
          %v6096 = vld [vmem:[%s1031 + $0x8f0] sm:$0xff]
          %v6097 = vld [vmem:[%s1031 + $0x8f8] sm:$0xff]
          %v6098 = vld [vmem:[%s1031 + $0x900] sm:$0xff]
          %v6099 = vld [vmem:[%s1031 + $0x908] sm:$0xff]
          %v6100 = vld [vmem:[%s1031 + $0x910] sm:$0xff]
          %v6101 = vld [vmem:[%s1031 + $0x918] sm:$0xff]
          %v6102 = vld [vmem:[%s1031 + $0x920] sm:$0xff]
          %v6103 = vld [vmem:[%s1031 + $0x928] sm:$0xff]
          %v6104 = vld [vmem:[%s1031 + $0x930] sm:$0xff]
          %v6105 = vld [vmem:[%s1031 + $0x938] sm:$0xff]
          %v6106 = vld [vmem:[%s1031 + $0x940] sm:$0xff]
          %v6107 = vld [vmem:[%s1031 + $0x948] sm:$0xff]
          %v6108 = vld [vmem:[%s1031 + $0x950] sm:$0xff]
          %v6109 = vld [vmem:[%s1031 + $0x958] sm:$0xff]
          %v6110 = vld [vmem:[%s1031 + $0x960] sm:$0xff]
          %v6111 = vld [vmem:[%s1031 + $0x968] sm:$0xff]
          %v6112 = vld [vmem:[%s1031 + $0x970] sm:$0xff]
          %v6113 = vld [vmem:[%s1031 + $0x978] sm:$0xff]
          %v6114 = vld [vmem:[%s1031 + $0x980] sm:$0xff]
          %v6115 = vld [vmem:[%s1031 + $0x988] sm:$0xff]
          %v6116 = vld [vmem:[%s1031 + $0x990] sm:$0xff]
          %v6117 = vld [vmem:[%s1031 + $0x998] sm:$0xff]
          %v6118 = vld [vmem:[%s1031 + $0x9a0] sm:$0xff]
          %v6119 = vld [vmem:[%s1031 + $0x9a8] sm:$0xff]
          %v6120 = vld [vmem:[%s1031 + $0x9b0] sm:$0xff]
          %v6121 = vld [vmem:[%s1031 + $0x9b8] sm:$0xff]
          %v6122 = vld [vmem:[%s1031 + $0x9c0] sm:$0xff]
          %v6123 = vld [vmem:[%s1031 + $0x9c8] sm:$0xff]
          %v6124 = vld [vmem:[%s1031 + $0x9d0] sm:$0xff]
          %v6125 = vld [vmem:[%s1031 + $0x9d8] sm:$0xff]
          %v6126 = vld [vmem:[%s1031 + $0x9e0] sm:$0xff]
          %v6127 = vld [vmem:[%s1031 + $0x9e8] sm:$0xff]
          %v6128 = vld [vmem:[%s1031 + $0x9f0] sm:$0xff]
          %v6129 = vld [vmem:[%s1031 + $0x9f8] sm:$0xff]
          %v6130 = vld [vmem:[%s1031 + $0xa00] sm:$0xff]
          %v6131 = vld [vmem:[%s1031 + $0xa08] sm:$0xff]
          %v6132 = vld [vmem:[%s1031 + $0xa10] sm:$0xff]
          %v6133 = vld [vmem:[%s1031 + $0xa18] sm:$0xff]
          %v6134 = vld [vmem:[%s1031 + $0xa20] sm:$0xff]
          %v6135 = vld [vmem:[%s1031 + $0xa28] sm:$0xff]
          %v6136 = vld [vmem:[%s1031 + $0xa30] sm:$0xff]
          %v6137 = vld [vmem:[%s1031 + $0xa38] sm:$0xff]
          %v6138 = vld [vmem:[%s1031 + $0xa40] sm:$0xff]
          %v6139 = vld [vmem:[%s1031 + $0xa48] sm:$0xff]
          %v6140 = vld [vmem:[%s1031 + $0xa50] sm:$0xff]
          %v6141 = vld [vmem:[%s1031 + $0xa58] sm:$0xff]
          %v6142 = vld [vmem:[%s1031 + $0xa60] sm:$0xff]
          %v6143 = vld [vmem:[%s1031 + $0xa68] sm:$0xff]
          %v6144 = vld [vmem:[%s1031 + $0xa70] sm:$0xff]
          %v6145 = vld [vmem:[%s1031 + $0xa78] sm:$0xff]
          %v6146 = vld [vmem:[%s1031 + $0xa80] sm:$0xff]
          %v6147 = vld [vmem:[%s1031 + $0xa88] sm:$0xff]
          %v6148 = vld [vmem:[%s1031 + $0xa90] sm:$0xff]
          %v6149 = vld [vmem:[%s1031 + $0xa98] sm:$0xff]
          %v6150 = vld [vmem:[%s1031 + $0xaa0] sm:$0xff]
          %v6151 = vld [vmem:[%s1031 + $0xaa8] sm:$0xff]
          %v6152 = vld [vmem:[%s1031 + $0xab0] sm:$0xff]
          %v6153 = vld [vmem:[%s1031 + $0xab8] sm:$0xff]
          %v6154 = vld [vmem:[%s1031 + $0xac0] sm:$0xff]
          %v6155 = vld [vmem:[%s1031 + $0xac8] sm:$0xff]
          %v6156 = vld [vmem:[%s1031 + $0xad0] sm:$0xff]
          %v6157 = vld [vmem:[%s1031 + $0xad8] sm:$0xff]
          %v6158 = vld [vmem:[%s1031 + $0xae0] sm:$0xff]
          %v6159 = vld [vmem:[%s1031 + $0xae8] sm:$0xff]
          %v6160 = vld [vmem:[%s1031 + $0xaf0] sm:$0xff]
          %v6161 = vld [vmem:[%s1031 + $0xaf8] sm:$0xff]
          %v6162 = vld [vmem:[%s1031 + $0xb00] sm:$0xff]
          %v6163 = vld [vmem:[%s1031 + $0xb08] sm:$0xff]
          %v6164 = vld [vmem:[%s1031 + $0xb10] sm:$0xff]
          %v6165 = vld [vmem:[%s1031 + $0xb18] sm:$0xff]
          %v6166 = vld [vmem:[%s1031 + $0xb20] sm:$0xff]
          %v6167 = vld [vmem:[%s1031 + $0xb28] sm:$0xff]
          %v6168 = vld [vmem:[%s1031 + $0xb30] sm:$0xff]
          %v6169 = vld [vmem:[%s1031 + $0xb38] sm:$0xff]
          %v6170 = vld [vmem:[%s1031 + $0xb40] sm:$0xff]
          %v6171 = vld [vmem:[%s1031 + $0xb48] sm:$0xff]
          %v6172 = vld [vmem:[%s1031 + $0xb50] sm:$0xff]
          %v6173 = vld [vmem:[%s1031 + $0xb58] sm:$0xff]
          %v6174 = vld [vmem:[%s1031 + $0xb60] sm:$0xff]
          %v6175 = vld [vmem:[%s1031 + $0xb68] sm:$0xff]
          %v6176 = vld [vmem:[%s1031 + $0xb70] sm:$0xff]
          %v6177 = vld [vmem:[%s1031 + $0xb78] sm:$0xff]
          %v6178 = vld [vmem:[%s1031 + $0xb80] sm:$0xff]
          %v6179 = vld [vmem:[%s1031 + $0xb88] sm:$0xff]
          %v6180 = vld [vmem:[%s1031 + $0xb90] sm:$0xff]
          %v6181 = vld [vmem:[%s1031 + $0xb98] sm:$0xff]
          %v6182 = vld [vmem:[%s1031 + $0xba0] sm:$0xff]
          %v6183 = vld [vmem:[%s1031 + $0xba8] sm:$0xff]
          %v6184 = vld [vmem:[%s1031 + $0xbb0] sm:$0xff]
          %v6185 = vld [vmem:[%s1031 + $0xbb8] sm:$0xff]
          %v6186 = vld [vmem:[%s1031 + $0xbc0] sm:$0xff]
          %v6187 = vld [vmem:[%s1031 + $0xbc8] sm:$0xff]
          %v6188 = vld [vmem:[%s1031 + $0xbd0] sm:$0xff]
          %v6189 = vld [vmem:[%s1031 + $0xbd8] sm:$0xff]
          %v6190 = vld [vmem:[%s1031 + $0xbe0] sm:$0xff]
          %v6191 = vld [vmem:[%s1031 + $0xbe8] sm:$0xff]
          %v6192 = vld [vmem:[%s1031 + $0xbf0] sm:$0xff]
          %v6193 = vld [vmem:[%s1031 + $0xbf8] sm:$0xff]
          %v6194 = vld [vmem:[%s1031 + $0xc00] sm:$0xff]
          %v6195 = vld [vmem:[%s1031 + $0xc08] sm:$0xff]
          %v6196 = vld [vmem:[%s1031 + $0xc10] sm:$0xff]
          %v6197 = vld [vmem:[%s1031 + $0xc18] sm:$0xff]
          %v6198 = vld [vmem:[%s1031 + $0xc20] sm:$0xff]
          %v6199 = vld [vmem:[%s1031 + $0xc28] sm:$0xff]
          %v6200 = vld [vmem:[%s1031 + $0xc30] sm:$0xff]
          %v6201 = vld [vmem:[%s1031 + $0xc38] sm:$0xff]
          %v6202 = vadd.f32 %v5810, %v3478
          %v6203 = vadd.f32 %v5811, %v3480
          %v6204 = vadd.f32 %v5812, %v4040
          %v6205 = vadd.f32 %v5813, %v4042
          %v6206 = vadd.f32 %v5814, %v4602
          %v6207 = vadd.f32 %v5815, %v4604
          %v6208 = vadd.f32 %v5816, %v5164
          %v6209 = vadd.f32 %v5817, %v5166
          %v6210 = vadd.f32 %v5818, %v3482
          %v6211 = vadd.f32 %v5819, %v3484
          %v6212 = vadd.f32 %v5820, %v4044
          %v6213 = vadd.f32 %v5821, %v4046
          %v6214 = vadd.f32 %v5822, %v4606
          %v6215 = vadd.f32 %v5823, %v4608
          %v6216 = vadd.f32 %v5824, %v5168
          %v6217 = vadd.f32 %v5825, %v5170
          %v6218 = vadd.f32 %v5826, %v3488
          %v6219 = vadd.f32 %v5827, %v3490
          %v6220 = vadd.f32 %v5828, %v4050
          %v6221 = vadd.f32 %v5829, %v4052
          %v6222 = vadd.f32 %v5830, %v4612
          %v6223 = vadd.f32 %v5831, %v4614
          %v6224 = vadd.f32 %v5832, %v5174
          %v6225 = vadd.f32 %v5833, %v5176
          %v6226 = vadd.f32 %v5834, %v3492
          %v6227 = vadd.f32 %v5835, %v3494
          %v6228 = vadd.f32 %v5836, %v4054
          %v6229 = vadd.f32 %v5837, %v4056
          %v6230 = vadd.f32 %v5838, %v4616
          %v6231 = vadd.f32 %v5839, %v4618
          %v6232 = vadd.f32 %v5840, %v5178
          %v6233 = vadd.f32 %v5841, %v5180
          %v6234 = vadd.f32 %v5842, %v3498
          %v6235 = vadd.f32 %v5843, %v3500
          %v6236 = vadd.f32 %v5844, %v4060
          %v6237 = vadd.f32 %v5845, %v4062
          %v6238 = vadd.f32 %v5846, %v4622
          %v6239 = vadd.f32 %v5847, %v4624
          %v6240 = vadd.f32 %v5848, %v5184
          %v6241 = vadd.f32 %v5849, %v5186
          %v6242 = vadd.f32 %v5850, %v3502
          %v6243 = vadd.f32 %v5851, %v3504
          %v6244 = vadd.f32 %v5852, %v4064
          %v6245 = vadd.f32 %v5853, %v4066
          %v6246 = vadd.f32 %v5854, %v4626
          %v6247 = vadd.f32 %v5855, %v4628
          %v6248 = vadd.f32 %v5856, %v5188
          %v6249 = vadd.f32 %v5857, %v5190
          %v6250 = vadd.f32 %v5858, %v3508
          %v6251 = vadd.f32 %v5859, %v3510
          %v6252 = vadd.f32 %v5860, %v4070
          %v6253 = vadd.f32 %v5861, %v4072
          %v6254 = vadd.f32 %v5862, %v4632
          %v6255 = vadd.f32 %v5863, %v4634
          %v6256 = vadd.f32 %v5864, %v5194
          %v6257 = vadd.f32 %v5865, %v5196
          %v6258 = vadd.f32 %v5866, %v3512
          %v6259 = vadd.f32 %v5867, %v3514
          %v6260 = vadd.f32 %v5868, %v4074
          %v6261 = vadd.f32 %v5869, %v4076
          %v6262 = vadd.f32 %v5870, %v4636
          %v6263 = vadd.f32 %v5871, %v4638
          %v6264 = vadd.f32 %v5872, %v5198
          %v6265 = vadd.f32 %v5873, %v5200
          %v6266 = vadd.f32 %v5874, %v3518
          %v6267 = vadd.f32 %v5875, %v3520
          %v6268 = vadd.f32 %v5876, %v4080
          %v6269 = vadd.f32 %v5877, %v4082
          %v6270 = vadd.f32 %v5878, %v4642
          %v6271 = vadd.f32 %v5879, %v4644
          %v6272 = vadd.f32 %v5880, %v5204
          %v6273 = vadd.f32 %v5881, %v5206
          %v6274 = vadd.f32 %v5882, %v3522
          %v6275 = vadd.f32 %v5883, %v3524
          %v6276 = vadd.f32 %v5884, %v4084
          %v6277 = vadd.f32 %v5885, %v4086
          %v6278 = vadd.f32 %v5886, %v4646
          %v6279 = vadd.f32 %v5887, %v4648
          %v6280 = vadd.f32 %v5888, %v5208
          %v6281 = vadd.f32 %v5889, %v5210
          %v6282 = vadd.f32 %v5890, %v3528
          %v6283 = vadd.f32 %v5891, %v3530
          %v6284 = vadd.f32 %v5892, %v4090
          %v6285 = vadd.f32 %v5893, %v4092
          %v6286 = vadd.f32 %v5894, %v4652
          %v6287 = vadd.f32 %v5895, %v4654
          %v6288 = vadd.f32 %v5896, %v5214
          %v6289 = vadd.f32 %v5897, %v5216
          %v6290 = vadd.f32 %v5898, %v3532
          %v6291 = vadd.f32 %v5899, %v3534
          %v6292 = vadd.f32 %v5900, %v4094
          %v6293 = vadd.f32 %v5901, %v4096
          %v6294 = vadd.f32 %v5902, %v4656
          %v6295 = vadd.f32 %v5903, %v4658
          %v6296 = vadd.f32 %v5904, %v5218
          %v6297 = vadd.f32 %v5905, %v5220
          %v6298 = vadd.f32 %v5906, %v3538
          %v6299 = vadd.f32 %v5907, %v3540
          %v6300 = vadd.f32 %v5908, %v4100
          %v6301 = vadd.f32 %v5909, %v4102
          %v6302 = vadd.f32 %v5910, %v4662
          %v6303 = vadd.f32 %v5911, %v4664
          %v6304 = vadd.f32 %v5912, %v5224
          %v6305 = vadd.f32 %v5913, %v5226
          %v6306 = vadd.f32 %v5914, %v3542
          %v6307 = vadd.f32 %v5915, %v3544
          %v6308 = vadd.f32 %v5916, %v4104
          %v6309 = vadd.f32 %v5917, %v4106
          %v6310 = vadd.f32 %v5918, %v4666
          %v6311 = vadd.f32 %v5919, %v4668
          %v6312 = vadd.f32 %v5920, %v5228
          %v6313 = vadd.f32 %v5921, %v5230
          %v6314 = vadd.f32 %v5922, %v3548
          %v6315 = vadd.f32 %v5923, %v3550
          %v6316 = vadd.f32 %v5924, %v4110
          %v6317 = vadd.f32 %v5925, %v4112
          %v6318 = vadd.f32 %v5926, %v4672
          %v6319 = vadd.f32 %v5927, %v4674
          %v6320 = vadd.f32 %v5928, %v5234
          %v6321 = vadd.f32 %v5929, %v5236
          %v6322 = vadd.f32 %v5930, %v3552
          %v6323 = vadd.f32 %v5931, %v3554
          %v6324 = vadd.f32 %v5932, %v4114
          %v6325 = vadd.f32 %v5933, %v4116
          %v6326 = vadd.f32 %v5934, %v4676
          %v6327 = vadd.f32 %v5935, %v4678
          %v6328 = vadd.f32 %v5936, %v5238
          %v6329 = vadd.f32 %v5937, %v5240
          %v6330 = vadd.f32 %v5938, %v3558
          %v6331 = vadd.f32 %v5939, %v3560
          %v6332 = vadd.f32 %v5940, %v4120
          %v6333 = vadd.f32 %v5941, %v4122
          %v6334 = vadd.f32 %v5942, %v4682
          %v6335 = vadd.f32 %v5943, %v4684
          %v6336 = vadd.f32 %v5944, %v5244
          %v6337 = vadd.f32 %v5945, %v5246
          %v6338 = vadd.f32 %v5946, %v3562
          %v6339 = vadd.f32 %v5947, %v3564
          %v6340 = vadd.f32 %v5948, %v4124
          %v6341 = vadd.f32 %v5949, %v4126
          %v6342 = vadd.f32 %v5950, %v4686
          %v6343 = vadd.f32 %v5951, %v4688
          %v6344 = vadd.f32 %v5952, %v5248
          %v6345 = vadd.f32 %v5953, %v5250
          %v6346 = vadd.f32 %v5954, %v3568
          %v6347 = vadd.f32 %v5955, %v3570
          %v6348 = vadd.f32 %v5956, %v4130
          %v6349 = vadd.f32 %v5957, %v4132
          %v6350 = vadd.f32 %v5958, %v4692
          %v6351 = vadd.f32 %v5959, %v4694
          %v6352 = vadd.f32 %v5960, %v5254
          %v6353 = vadd.f32 %v5961, %v5256
          %v6354 = vadd.f32 %v5962, %v3572
          %v6355 = vadd.f32 %v5963, %v3574
          %v6356 = vadd.f32 %v5964, %v4134
          %v6357 = vadd.f32 %v5965, %v4136
          %v6358 = vadd.f32 %v5966, %v4696
          %v6359 = vadd.f32 %v5967, %v4698
          %v6360 = vadd.f32 %v5968, %v5258
          %v6361 = vadd.f32 %v5969, %v5260
          %v6362 = vadd.f32 %v5970, %v3578
          %v6363 = vadd.f32 %v5971, %v3580
          %v6364 = vadd.f32 %v5972, %v4140
          %v6365 = vadd.f32 %v5973, %v4142
          %v6366 = vadd.f32 %v5974, %v4702
          %v6367 = vadd.f32 %v5975, %v4704
          %v6368 = vadd.f32 %v5976, %v5264
          %v6369 = vadd.f32 %v5977, %v5266
          %v6370 = vadd.f32 %v5978, %v3582
          %v6371 = vadd.f32 %v5979, %v3584
          %v6372 = vadd.f32 %v5980, %v4144
          %v6373 = vadd.f32 %v5981, %v4146
          %v6374 = vadd.f32 %v5982, %v4706
          %v6375 = vadd.f32 %v5983, %v4708
          %v6376 = vadd.f32 %v5984, %v5268
          %v6377 = vadd.f32 %v5985, %v5270
          %v6378 = vadd.f32 %v5986, %v3588
          %v6379 = vadd.f32 %v5987, %v3590
          %v6380 = vadd.f32 %v5988, %v4150
          %v6381 = vadd.f32 %v5989, %v4152
          %v6382 = vadd.f32 %v5990, %v4712
          %v6383 = vadd.f32 %v5991, %v4714
          %v6384 = vadd.f32 %v5992, %v5274
          %v6385 = vadd.f32 %v5993, %v5276
          %v6386 = vadd.f32 %v5994, %v3592
          %v6387 = vadd.f32 %v5995, %v3594
          %v6388 = vadd.f32 %v5996, %v4154
          %v6389 = vadd.f32 %v5997, %v4156
          %v6390 = vadd.f32 %v5998, %v4716
          %v6391 = vadd.f32 %v5999, %v4718
          %v6392 = vadd.f32 %v6000, %v5278
          %v6393 = vadd.f32 %v6001, %v5280
          %v6394 = vadd.f32 %v6002, %v3598
          %v6395 = vadd.f32 %v6003, %v3600
          %v6396 = vadd.f32 %v6004, %v4160
          %v6397 = vadd.f32 %v6005, %v4162
          %v6398 = vadd.f32 %v6006, %v4722
          %v6399 = vadd.f32 %v6007, %v4724
          %v6400 = vadd.f32 %v6008, %v5284
          %v6401 = vadd.f32 %v6009, %v5286
          %v6402 = vadd.f32 %v6010, %v3602
          %v6403 = vadd.f32 %v6011, %v3604
          %v6404 = vadd.f32 %v6012, %v4164
          %v6405 = vadd.f32 %v6013, %v4166
          %v6406 = vadd.f32 %v6014, %v4726
          %v6407 = vadd.f32 %v6015, %v4728
          %v6408 = vadd.f32 %v6016, %v5288
          %v6409 = vadd.f32 %v6017, %v5290
          %v6410 = vadd.f32 %v6018, %v3608
          %v6411 = vadd.f32 %v6019, %v3610
          %v6412 = vadd.f32 %v6020, %v4170
          %v6413 = vadd.f32 %v6021, %v4172
          %v6414 = vadd.f32 %v6022, %v4732
          %v6415 = vadd.f32 %v6023, %v4734
          %v6416 = vadd.f32 %v6024, %v5294
          %v6417 = vadd.f32 %v6025, %v5296
          %v6418 = vadd.f32 %v6026, %v3612
          %v6419 = vadd.f32 %v6027, %v3614
          %v6420 = vadd.f32 %v6028, %v4174
          %v6421 = vadd.f32 %v6029, %v4176
          %v6422 = vadd.f32 %v6030, %v4736
          %v6423 = vadd.f32 %v6031, %v4738
          %v6424 = vadd.f32 %v6032, %v5298
          %v6425 = vadd.f32 %v6033, %v5300
          %v6426 = vadd.f32 %v6034, %v3618
          %v6427 = vadd.f32 %v6035, %v3620
          %v6428 = vadd.f32 %v6036, %v4180
          %v6429 = vadd.f32 %v6037, %v4182
          %v6430 = vadd.f32 %v6038, %v4742
          %v6431 = vadd.f32 %v6039, %v4744
          %v6432 = vadd.f32 %v6040, %v5304
          %v6433 = vadd.f32 %v6041, %v5306
          %v6434 = vadd.f32 %v6042, %v3622
          %v6435 = vadd.f32 %v6043, %v3624
          %v6436 = vadd.f32 %v6044, %v4184
          %v6437 = vadd.f32 %v6045, %v4186
          %v6438 = vadd.f32 %v6046, %v4746
          %v6439 = vadd.f32 %v6047, %v4748
          %v6440 = vadd.f32 %v6048, %v5308
          %v6441 = vadd.f32 %v6049, %v5310
          %v6442 = vadd.f32 %v6050, %v3628
          %v6443 = vadd.f32 %v6051, %v3630
          %v6444 = vadd.f32 %v6052, %v4190
          %v6445 = vadd.f32 %v6053, %v4192
          %v6446 = vadd.f32 %v6054, %v4752
          %v6447 = vadd.f32 %v6055, %v4754
          %v6448 = vadd.f32 %v6056, %v5314
          %v6449 = vadd.f32 %v6057, %v5316
          %v6450 = vadd.f32 %v6058, %v3632
          %v6451 = vadd.f32 %v6059, %v3634
          %v6452 = vadd.f32 %v6060, %v4194
          %v6453 = vadd.f32 %v6061, %v4196
          %v6454 = vadd.f32 %v6062, %v4756
          %v6455 = vadd.f32 %v6063, %v4758
          %v6456 = vadd.f32 %v6064, %v5318
          %v6457 = vadd.f32 %v6065, %v5320
          %v6458 = vadd.f32 %v6066, %v3638
          %v6459 = vadd.f32 %v6067, %v3640
          %v6460 = vadd.f32 %v6068, %v4200
          %v6461 = vadd.f32 %v6069, %v4202
          %v6462 = vadd.f32 %v6070, %v4762
          %v6463 = vadd.f32 %v6071, %v4764
          %v6464 = vadd.f32 %v6072, %v5324
          %v6465 = vadd.f32 %v6073, %v5326
          %v6466 = vadd.f32 %v6074, %v3642
          %v6467 = vadd.f32 %v6075, %v3644
          %v6468 = vadd.f32 %v6076, %v4204
          %v6469 = vadd.f32 %v6077, %v4206
          %v6470 = vadd.f32 %v6078, %v4766
          %v6471 = vadd.f32 %v6079, %v4768
          %v6472 = vadd.f32 %v6080, %v5328
          %v6473 = vadd.f32 %v6081, %v5330
          %v6474 = vadd.f32 %v6082, %v3648
          %v6475 = vadd.f32 %v6083, %v3650
          %v6476 = vadd.f32 %v6084, %v4210
          %v6477 = vadd.f32 %v6085, %v4212
          %v6478 = vadd.f32 %v6086, %v4772
          %v6479 = vadd.f32 %v6087, %v4774
          %v6480 = vadd.f32 %v6088, %v5334
          %v6481 = vadd.f32 %v6089, %v5336
          %v6482 = vadd.f32 %v6090, %v3652
          %v6483 = vadd.f32 %v6091, %v3654
          %v6484 = vadd.f32 %v6092, %v4214
          %v6485 = vadd.f32 %v6093, %v4216
          %v6486 = vadd.f32 %v6094, %v4776
          %v6487 = vadd.f32 %v6095, %v4778
          %v6488 = vadd.f32 %v6096, %v5338
          %v6489 = vadd.f32 %v6097, %v5340
          %v6490 = vadd.f32 %v6098, %v3658
          %v6491 = vadd.f32 %v6099, %v3660
          %v6492 = vadd.f32 %v6100, %v4220
          %v6493 = vadd.f32 %v6101, %v4222
          %v6494 = vadd.f32 %v6102, %v4782
          %v6495 = vadd.f32 %v6103, %v4784
          %v6496 = vadd.f32 %v6104, %v5344
          %v6497 = vadd.f32 %v6105, %v5346
          %v6498 = vadd.f32 %v6106, %v3662
          %v6499 = vadd.f32 %v6107, %v3664
          %v6500 = vadd.f32 %v6108, %v4224
          %v6501 = vadd.f32 %v6109, %v4226
          %v6502 = vadd.f32 %v6110, %v4786
          %v6503 = vadd.f32 %v6111, %v4788
          %v6504 = vadd.f32 %v6112, %v5348
          %v6505 = vadd.f32 %v6113, %v5350
          %v6506 = vadd.f32 %v6114, %v3668
          %v6507 = vadd.f32 %v6115, %v3670
          %v6508 = vadd.f32 %v6116, %v4230
          %v6509 = vadd.f32 %v6117, %v4232
          %v6510 = vadd.f32 %v6118, %v4792
          %v6511 = vadd.f32 %v6119, %v4794
          %v6512 = vadd.f32 %v6120, %v5354
          %v6513 = vadd.f32 %v6121, %v5356
          %v6514 = vadd.f32 %v6122, %v3672
          %v6515 = vadd.f32 %v6123, %v3674
          %v6516 = vadd.f32 %v6124, %v4234
          %v6517 = vadd.f32 %v6125, %v4236
          %v6518 = vadd.f32 %v6126, %v4796
          %v6519 = vadd.f32 %v6127, %v4798
          %v6520 = vadd.f32 %v6128, %v5358
          %v6521 = vadd.f32 %v6129, %v5360
          %v6522 = vadd.f32 %v6130, %v3678
          %v6523 = vadd.f32 %v6131, %v3680
          %v6524 = vadd.f32 %v6132, %v4240
          %v6525 = vadd.f32 %v6133, %v4242
          %v6526 = vadd.f32 %v6134, %v4802
          %v6527 = vadd.f32 %v6135, %v4804
          %v6528 = vadd.f32 %v6136, %v5364
          %v6529 = vadd.f32 %v6137, %v5366
          %v6530 = vadd.f32 %v6138, %v3682
          %v6531 = vadd.f32 %v6139, %v3684
          %v6532 = vadd.f32 %v6140, %v4244
          %v6533 = vadd.f32 %v6141, %v4246
          %v6534 = vadd.f32 %v6142, %v4806
          %v6535 = vadd.f32 %v6143, %v4808
          %v6536 = vadd.f32 %v6144, %v5368
          %v6537 = vadd.f32 %v6145, %v5370
          %v6538 = vadd.f32 %v6146, %v3688
          %v6539 = vadd.f32 %v6147, %v3690
          %v6540 = vadd.f32 %v6148, %v4250
          %v6541 = vadd.f32 %v6149, %v4252
          %v6542 = vadd.f32 %v6150, %v4812
          %v6543 = vadd.f32 %v6151, %v4814
          %v6544 = vadd.f32 %v6152, %v5374
          %v6545 = vadd.f32 %v6153, %v5376
          %v6546 = vadd.f32 %v6154, %v3692
          %v6547 = vadd.f32 %v6155, %v3694
          %v6548 = vadd.f32 %v6156, %v4254
          %v6549 = vadd.f32 %v6157, %v4256
          %v6550 = vadd.f32 %v6158, %v4816
          %v6551 = vadd.f32 %v6159, %v4818
          %v6552 = vadd.f32 %v6160, %v5378
          %v6553 = vadd.f32 %v6161, %v5380
          %v6554 = vadd.f32 %v6162, %v3698
          %v6555 = vadd.f32 %v6163, %v3700
          %v6556 = vadd.f32 %v6164, %v4260
          %v6557 = vadd.f32 %v6165, %v4262
          %v6558 = vadd.f32 %v6166, %v4822
          %v6559 = vadd.f32 %v6167, %v4824
          %v6560 = vadd.f32 %v6168, %v5384
          %v6561 = vadd.f32 %v6169, %v5386
          %v6562 = vadd.f32 %v6170, %v3702
          %v6563 = vadd.f32 %v6171, %v3704
          %v6564 = vadd.f32 %v6172, %v4264
          %v6565 = vadd.f32 %v6173, %v4266
          %v6566 = vadd.f32 %v6174, %v4826
          %v6567 = vadd.f32 %v6175, %v4828
          %v6568 = vadd.f32 %v6176, %v5388
          %v6569 = vadd.f32 %v6177, %v5390
          %v6570 = vadd.f32 %v6178, %v3708
          %v6571 = vadd.f32 %v6179, %v3710
          %v6572 = vadd.f32 %v6180, %v4270
          %v6573 = vadd.f32 %v6181, %v4272
          %v6574 = vadd.f32 %v6182, %v4832
          %v6575 = vadd.f32 %v6183, %v4834
          %v6576 = vadd.f32 %v6184, %v5394
          %v6577 = vadd.f32 %v6185, %v5396
          %v6578 = vadd.f32 %v6186, %v3712
          %v6579 = vadd.f32 %v6187, %v3714
          %v6580 = vadd.f32 %v6188, %v4274
          %v6581 = vadd.f32 %v6189, %v4276
          %v6582 = vadd.f32 %v6190, %v4836
          %v6583 = vadd.f32 %v6191, %v4838
          %v6584 = vadd.f32 %v6192, %v5398
          %v6585 = vadd.f32 %v6193, %v5400
          %v6586 = vadd.f32 %v6194, %v3718
          %v6587 = vadd.f32 %v6195, %v3720
          %v6588 = vadd.f32 %v6196, %v4280
          %v6589 = vadd.f32 %v6197, %v4282
          %v6590 = vadd.f32 %v6198, %v4842
          %v6591 = vadd.f32 %v6199, %v4844
          %v6592 = vadd.f32 %v6200, %v5404
          %v6593 = vadd.f32 %v6201, %v5406
          %6594 = vst [vmem:[%s1031] sm:$0xff] %v6202
          %6595 = vst [vmem:[%s1031 + $0x8] sm:$0xff] %v6203
          %6596 = vst [vmem:[%s1031 + $0x10] sm:$0xff] %v6204
          %6597 = vst [vmem:[%s1031 + $0x18] sm:$0xff] %v6205
          %6598 = vst [vmem:[%s1031 + $0x20] sm:$0xff] %v6206
          %6599 = vst [vmem:[%s1031 + $0x28] sm:$0xff] %v6207
          %6600 = vst [vmem:[%s1031 + $0x30] sm:$0xff] %v6208
          %6601 = vst [vmem:[%s1031 + $0x38] sm:$0xff] %v6209
          %6602 = vst [vmem:[%s1031 + $0x40] sm:$0xff] %v6210
          %6603 = vst [vmem:[%s1031 + $0x48] sm:$0xff] %v6211
          %6604 = vst [vmem:[%s1031 + $0x50] sm:$0xff] %v6212
          %6605 = vst [vmem:[%s1031 + $0x58] sm:$0xff] %v6213
          %6606 = vst [vmem:[%s1031 + $0x60] sm:$0xff] %v6214
          %6607 = vst [vmem:[%s1031 + $0x68] sm:$0xff] %v6215
          %6608 = vst [vmem:[%s1031 + $0x70] sm:$0xff] %v6216
          %6609 = vst [vmem:[%s1031 + $0x78] sm:$0xff] %v6217
          %6610 = vst [vmem:[%s1031 + $0x80] sm:$0xff] %v6218
          %6611 = vst [vmem:[%s1031 + $0x88] sm:$0xff] %v6219
          %6612 = vst [vmem:[%s1031 + $0x90] sm:$0xff] %v6220
          %6613 = vst [vmem:[%s1031 + $0x98] sm:$0xff] %v6221
          %6614 = vst [vmem:[%s1031 + $0xa0] sm:$0xff] %v6222
          %6615 = vst [vmem:[%s1031 + $0xa8] sm:$0xff] %v6223
          %6616 = vst [vmem:[%s1031 + $0xb0] sm:$0xff] %v6224
          %6617 = vst [vmem:[%s1031 + $0xb8] sm:$0xff] %v6225
          %6618 = vst [vmem:[%s1031 + $0xc0] sm:$0xff] %v6226
          %6619 = vst [vmem:[%s1031 + $0xc8] sm:$0xff] %v6227
          %6620 = vst [vmem:[%s1031 + $0xd0] sm:$0xff] %v6228
          %6621 = vst [vmem:[%s1031 + $0xd8] sm:$0xff] %v6229
          %6622 = vst [vmem:[%s1031 + $0xe0] sm:$0xff] %v6230
          %6623 = vst [vmem:[%s1031 + $0xe8] sm:$0xff] %v6231
          %6624 = vst [vmem:[%s1031 + $0xf0] sm:$0xff] %v6232
          %6625 = vst [vmem:[%s1031 + $0xf8] sm:$0xff] %v6233
          %6626 = vst [vmem:[%s1031 + $0x100] sm:$0xff] %v6234
          %6627 = vst [vmem:[%s1031 + $0x108] sm:$0xff] %v6235
          %6628 = vst [vmem:[%s1031 + $0x110] sm:$0xff] %v6236
          %6629 = vst [vmem:[%s1031 + $0x118] sm:$0xff] %v6237
          %6630 = vst [vmem:[%s1031 + $0x120] sm:$0xff] %v6238
          %6631 = vst [vmem:[%s1031 + $0x128] sm:$0xff] %v6239
          %6632 = vst [vmem:[%s1031 + $0x130] sm:$0xff] %v6240
          %6633 = vst [vmem:[%s1031 + $0x138] sm:$0xff] %v6241
          %6634 = vst [vmem:[%s1031 + $0x140] sm:$0xff] %v6242
          %6635 = vst [vmem:[%s1031 + $0x148] sm:$0xff] %v6243
          %6636 = vst [vmem:[%s1031 + $0x150] sm:$0xff] %v6244
          %6637 = vst [vmem:[%s1031 + $0x158] sm:$0xff] %v6245
          %6638 = vst [vmem:[%s1031 + $0x160] sm:$0xff] %v6246
          %6639 = vst [vmem:[%s1031 + $0x168] sm:$0xff] %v6247
          %6640 = vst [vmem:[%s1031 + $0x170] sm:$0xff] %v6248
          %6641 = vst [vmem:[%s1031 + $0x178] sm:$0xff] %v6249
          %6642 = vst [vmem:[%s1031 + $0x180] sm:$0xff] %v6250
          %6643 = vst [vmem:[%s1031 + $0x188] sm:$0xff] %v6251
          %6644 = vst [vmem:[%s1031 + $0x190] sm:$0xff] %v6252
          %6645 = vst [vmem:[%s1031 + $0x198] sm:$0xff] %v6253
          %6646 = vst [vmem:[%s1031 + $0x1a0] sm:$0xff] %v6254
          %6647 = vst [vmem:[%s1031 + $0x1a8] sm:$0xff] %v6255
          %6648 = vst [vmem:[%s1031 + $0x1b0] sm:$0xff] %v6256
          %6649 = vst [vmem:[%s1031 + $0x1b8] sm:$0xff] %v6257
          %6650 = vst [vmem:[%s1031 + $0x1c0] sm:$0xff] %v6258
          %6651 = vst [vmem:[%s1031 + $0x1c8] sm:$0xff] %v6259
          %6652 = vst [vmem:[%s1031 + $0x1d0] sm:$0xff] %v6260
          %6653 = vst [vmem:[%s1031 + $0x1d8] sm:$0xff] %v6261
          %6654 = vst [vmem:[%s1031 + $0x1e0] sm:$0xff] %v6262
          %6655 = vst [vmem:[%s1031 + $0x1e8] sm:$0xff] %v6263
          %6656 = vst [vmem:[%s1031 + $0x1f0] sm:$0xff] %v6264
          %6657 = vst [vmem:[%s1031 + $0x1f8] sm:$0xff] %v6265
          %6658 = vst [vmem:[%s1031 + $0x200] sm:$0xff] %v6266
          %6659 = vst [vmem:[%s1031 + $0x208] sm:$0xff] %v6267
          %6660 = vst [vmem:[%s1031 + $0x210] sm:$0xff] %v6268
          %6661 = vst [vmem:[%s1031 + $0x218] sm:$0xff] %v6269
          %6662 = vst [vmem:[%s1031 + $0x220] sm:$0xff] %v6270
          %6663 = vst [vmem:[%s1031 + $0x228] sm:$0xff] %v6271
          %6664 = vst [vmem:[%s1031 + $0x230] sm:$0xff] %v6272
          %6665 = vst [vmem:[%s1031 + $0x238] sm:$0xff] %v6273
          %6666 = vst [vmem:[%s1031 + $0x240] sm:$0xff] %v6274
          %6667 = vst [vmem:[%s1031 + $0x248] sm:$0xff] %v6275
          %6668 = vst [vmem:[%s1031 + $0x250] sm:$0xff] %v6276
          %6669 = vst [vmem:[%s1031 + $0x258] sm:$0xff] %v6277
          %6670 = vst [vmem:[%s1031 + $0x260] sm:$0xff] %v6278
          %6671 = vst [vmem:[%s1031 + $0x268] sm:$0xff] %v6279
          %6672 = vst [vmem:[%s1031 + $0x270] sm:$0xff] %v6280
          %6673 = vst [vmem:[%s1031 + $0x278] sm:$0xff] %v6281
          %6674 = vst [vmem:[%s1031 + $0x280] sm:$0xff] %v6282
          %6675 = vst [vmem:[%s1031 + $0x288] sm:$0xff] %v6283
          %6676 = vst [vmem:[%s1031 + $0x290] sm:$0xff] %v6284
          %6677 = vst [vmem:[%s1031 + $0x298] sm:$0xff] %v6285
          %6678 = vst [vmem:[%s1031 + $0x2a0] sm:$0xff] %v6286
          %6679 = vst [vmem:[%s1031 + $0x2a8] sm:$0xff] %v6287
          %6680 = vst [vmem:[%s1031 + $0x2b0] sm:$0xff] %v6288
          %6681 = vst [vmem:[%s1031 + $0x2b8] sm:$0xff] %v6289
          %6682 = vst [vmem:[%s1031 + $0x2c0] sm:$0xff] %v6290
          %6683 = vst [vmem:[%s1031 + $0x2c8] sm:$0xff] %v6291
          %6684 = vst [vmem:[%s1031 + $0x2d0] sm:$0xff] %v6292
          %6685 = vst [vmem:[%s1031 + $0x2d8] sm:$0xff] %v6293
          %6686 = vst [vmem:[%s1031 + $0x2e0] sm:$0xff] %v6294
          %6687 = vst [vmem:[%s1031 + $0x2e8] sm:$0xff] %v6295
          %6688 = vst [vmem:[%s1031 + $0x2f0] sm:$0xff] %v6296
          %6689 = vst [vmem:[%s1031 + $0x2f8] sm:$0xff] %v6297
          %6690 = vst [vmem:[%s1031 + $0x300] sm:$0xff] %v6298
          %6691 = vst [vmem:[%s1031 + $0x308] sm:$0xff] %v6299
          %6692 = vst [vmem:[%s1031 + $0x310] sm:$0xff] %v6300
          %6693 = vst [vmem:[%s1031 + $0x318] sm:$0xff] %v6301
          %6694 = vst [vmem:[%s1031 + $0x320] sm:$0xff] %v6302
          %6695 = vst [vmem:[%s1031 + $0x328] sm:$0xff] %v6303
          %6696 = vst [vmem:[%s1031 + $0x330] sm:$0xff] %v6304
          %6697 = vst [vmem:[%s1031 + $0x338] sm:$0xff] %v6305
          %6698 = vst [vmem:[%s1031 + $0x340] sm:$0xff] %v6306
          %6699 = vst [vmem:[%s1031 + $0x348] sm:$0xff] %v6307
          %6700 = vst [vmem:[%s1031 + $0x350] sm:$0xff] %v6308
          %6701 = vst [vmem:[%s1031 + $0x358] sm:$0xff] %v6309
          %6702 = vst [vmem:[%s1031 + $0x360] sm:$0xff] %v6310
          %6703 = vst [vmem:[%s1031 + $0x368] sm:$0xff] %v6311
          %6704 = vst [vmem:[%s1031 + $0x370] sm:$0xff] %v6312
          %6705 = vst [vmem:[%s1031 + $0x378] sm:$0xff] %v6313
          %6706 = vst [vmem:[%s1031 + $0x380] sm:$0xff] %v6314
          %6707 = vst [vmem:[%s1031 + $0x388] sm:$0xff] %v6315
          %6708 = vst [vmem:[%s1031 + $0x390] sm:$0xff] %v6316
          %6709 = vst [vmem:[%s1031 + $0x398] sm:$0xff] %v6317
          %6710 = vst [vmem:[%s1031 + $0x3a0] sm:$0xff] %v6318
          %6711 = vst [vmem:[%s1031 + $0x3a8] sm:$0xff] %v6319
          %6712 = vst [vmem:[%s1031 + $0x3b0] sm:$0xff] %v6320
          %6713 = vst [vmem:[%s1031 + $0x3b8] sm:$0xff] %v6321
          %6714 = vst [vmem:[%s1031 + $0x3c0] sm:$0xff] %v6322
          %6715 = vst [vmem:[%s1031 + $0x3c8] sm:$0xff] %v6323
          %6716 = vst [vmem:[%s1031 + $0x3d0] sm:$0xff] %v6324
          %6717 = vst [vmem:[%s1031 + $0x3d8] sm:$0xff] %v6325
          %6718 = vst [vmem:[%s1031 + $0x3e0] sm:$0xff] %v6326
          %6719 = vst [vmem:[%s1031 + $0x3e8] sm:$0xff] %v6327
          %6720 = vst [vmem:[%s1031 + $0x3f0] sm:$0xff] %v6328
          %6721 = vst [vmem:[%s1031 + $0x3f8] sm:$0xff] %v6329
          %6722 = vst [vmem:[%s1031 + $0x400] sm:$0xff] %v6330
          %6723 = vst [vmem:[%s1031 + $0x408] sm:$0xff] %v6331
          %6724 = vst [vmem:[%s1031 + $0x410] sm:$0xff] %v6332
          %6725 = vst [vmem:[%s1031 + $0x418] sm:$0xff] %v6333
          %6726 = vst [vmem:[%s1031 + $0x420] sm:$0xff] %v6334
          %6727 = vst [vmem:[%s1031 + $0x428] sm:$0xff] %v6335
          %6728 = vst [vmem:[%s1031 + $0x430] sm:$0xff] %v6336
          %6729 = vst [vmem:[%s1031 + $0x438] sm:$0xff] %v6337
          %6730 = vst [vmem:[%s1031 + $0x440] sm:$0xff] %v6338
          %6731 = vst [vmem:[%s1031 + $0x448] sm:$0xff] %v6339
          %6732 = vst [vmem:[%s1031 + $0x450] sm:$0xff] %v6340
          %6733 = vst [vmem:[%s1031 + $0x458] sm:$0xff] %v6341
          %6734 = vst [vmem:[%s1031 + $0x460] sm:$0xff] %v6342
          %6735 = vst [vmem:[%s1031 + $0x468] sm:$0xff] %v6343
          %6736 = vst [vmem:[%s1031 + $0x470] sm:$0xff] %v6344
          %6737 = vst [vmem:[%s1031 + $0x478] sm:$0xff] %v6345
          %6738 = vst [vmem:[%s1031 + $0x480] sm:$0xff] %v6346
          %6739 = vst [vmem:[%s1031 + $0x488] sm:$0xff] %v6347
          %6740 = vst [vmem:[%s1031 + $0x490] sm:$0xff] %v6348
          %6741 = vst [vmem:[%s1031 + $0x498] sm:$0xff] %v6349
          %6742 = vst [vmem:[%s1031 + $0x4a0] sm:$0xff] %v6350
          %6743 = vst [vmem:[%s1031 + $0x4a8] sm:$0xff] %v6351
          %6744 = vst [vmem:[%s1031 + $0x4b0] sm:$0xff] %v6352
          %6745 = vst [vmem:[%s1031 + $0x4b8] sm:$0xff] %v6353
          %6746 = vst [vmem:[%s1031 + $0x4c0] sm:$0xff] %v6354
          %6747 = vst [vmem:[%s1031 + $0x4c8] sm:$0xff] %v6355
          %6748 = vst [vmem:[%s1031 + $0x4d0] sm:$0xff] %v6356
          %6749 = vst [vmem:[%s1031 + $0x4d8] sm:$0xff] %v6357
          %6750 = vst [vmem:[%s1031 + $0x4e0] sm:$0xff] %v6358
          %6751 = vst [vmem:[%s1031 + $0x4e8] sm:$0xff] %v6359
          %6752 = vst [vmem:[%s1031 + $0x4f0] sm:$0xff] %v6360
          %6753 = vst [vmem:[%s1031 + $0x4f8] sm:$0xff] %v6361
          %6754 = vst [vmem:[%s1031 + $0x500] sm:$0xff] %v6362
          %6755 = vst [vmem:[%s1031 + $0x508] sm:$0xff] %v6363
          %6756 = vst [vmem:[%s1031 + $0x510] sm:$0xff] %v6364
          %6757 = vst [vmem:[%s1031 + $0x518] sm:$0xff] %v6365
          %6758 = vst [vmem:[%s1031 + $0x520] sm:$0xff] %v6366
          %6759 = vst [vmem:[%s1031 + $0x528] sm:$0xff] %v6367
          %6760 = vst [vmem:[%s1031 + $0x530] sm:$0xff] %v6368
          %6761 = vst [vmem:[%s1031 + $0x538] sm:$0xff] %v6369
          %6762 = vst [vmem:[%s1031 + $0x540] sm:$0xff] %v6370
          %6763 = vst [vmem:[%s1031 + $0x548] sm:$0xff] %v6371
          %6764 = vst [vmem:[%s1031 + $0x550] sm:$0xff] %v6372
          %6765 = vst [vmem:[%s1031 + $0x558] sm:$0xff] %v6373
          %6766 = vst [vmem:[%s1031 + $0x560] sm:$0xff] %v6374
          %6767 = vst [vmem:[%s1031 + $0x568] sm:$0xff] %v6375
          %6768 = vst [vmem:[%s1031 + $0x570] sm:$0xff] %v6376
          %6769 = vst [vmem:[%s1031 + $0x578] sm:$0xff] %v6377
          %6770 = vst [vmem:[%s1031 + $0x580] sm:$0xff] %v6378
          %6771 = vst [vmem:[%s1031 + $0x588] sm:$0xff] %v6379
          %6772 = vst [vmem:[%s1031 + $0x590] sm:$0xff] %v6380
          %6773 = vst [vmem:[%s1031 + $0x598] sm:$0xff] %v6381
          %6774 = vst [vmem:[%s1031 + $0x5a0] sm:$0xff] %v6382
          %6775 = vst [vmem:[%s1031 + $0x5a8] sm:$0xff] %v6383
          %6776 = vst [vmem:[%s1031 + $0x5b0] sm:$0xff] %v6384
          %6777 = vst [vmem:[%s1031 + $0x5b8] sm:$0xff] %v6385
          %6778 = vst [vmem:[%s1031 + $0x5c0] sm:$0xff] %v6386
          %6779 = vst [vmem:[%s1031 + $0x5c8] sm:$0xff] %v6387
          %6780 = vst [vmem:[%s1031 + $0x5d0] sm:$0xff] %v6388
          %6781 = vst [vmem:[%s1031 + $0x5d8] sm:$0xff] %v6389
          %6782 = vst [vmem:[%s1031 + $0x5e0] sm:$0xff] %v6390
          %6783 = vst [vmem:[%s1031 + $0x5e8] sm:$0xff] %v6391
          %6784 = vst [vmem:[%s1031 + $0x5f0] sm:$0xff] %v6392
          %6785 = vst [vmem:[%s1031 + $0x5f8] sm:$0xff] %v6393
          %6786 = vst [vmem:[%s1031 + $0x600] sm:$0xff] %v6394
          %6787 = vst [vmem:[%s1031 + $0x608] sm:$0xff] %v6395
          %6788 = vst [vmem:[%s1031 + $0x610] sm:$0xff] %v6396
          %6789 = vst [vmem:[%s1031 + $0x618] sm:$0xff] %v6397
          %6790 = vst [vmem:[%s1031 + $0x620] sm:$0xff] %v6398
          %6791 = vst [vmem:[%s1031 + $0x628] sm:$0xff] %v6399
          %6792 = vst [vmem:[%s1031 + $0x630] sm:$0xff] %v6400
          %6793 = vst [vmem:[%s1031 + $0x638] sm:$0xff] %v6401
          %6794 = vst [vmem:[%s1031 + $0x640] sm:$0xff] %v6402
          %6795 = vst [vmem:[%s1031 + $0x648] sm:$0xff] %v6403
          %6796 = vst [vmem:[%s1031 + $0x650] sm:$0xff] %v6404
          %6797 = vst [vmem:[%s1031 + $0x658] sm:$0xff] %v6405
          %6798 = vst [vmem:[%s1031 + $0x660] sm:$0xff] %v6406
          %6799 = vst [vmem:[%s1031 + $0x668] sm:$0xff] %v6407
          %6800 = vst [vmem:[%s1031 + $0x670] sm:$0xff] %v6408
          %6801 = vst [vmem:[%s1031 + $0x678] sm:$0xff] %v6409
          %6802 = vst [vmem:[%s1031 + $0x680] sm:$0xff] %v6410
          %6803 = vst [vmem:[%s1031 + $0x688] sm:$0xff] %v6411
          %6804 = vst [vmem:[%s1031 + $0x690] sm:$0xff] %v6412
          %6805 = vst [vmem:[%s1031 + $0x698] sm:$0xff] %v6413
          %6806 = vst [vmem:[%s1031 + $0x6a0] sm:$0xff] %v6414
          %6807 = vst [vmem:[%s1031 + $0x6a8] sm:$0xff] %v6415
          %6808 = vst [vmem:[%s1031 + $0x6b0] sm:$0xff] %v6416
          %6809 = vst [vmem:[%s1031 + $0x6b8] sm:$0xff] %v6417
          %6810 = vst [vmem:[%s1031 + $0x6c0] sm:$0xff] %v6418
          %6811 = vst [vmem:[%s1031 + $0x6c8] sm:$0xff] %v6419
          %6812 = vst [vmem:[%s1031 + $0x6d0] sm:$0xff] %v6420
          %6813 = vst [vmem:[%s1031 + $0x6d8] sm:$0xff] %v6421
          %6814 = vst [vmem:[%s1031 + $0x6e0] sm:$0xff] %v6422
          %6815 = vst [vmem:[%s1031 + $0x6e8] sm:$0xff] %v6423
          %6816 = vst [vmem:[%s1031 + $0x6f0] sm:$0xff] %v6424
          %6817 = vst [vmem:[%s1031 + $0x6f8] sm:$0xff] %v6425
          %6818 = vst [vmem:[%s1031 + $0x700] sm:$0xff] %v6426
          %6819 = vst [vmem:[%s1031 + $0x708] sm:$0xff] %v6427
          %6820 = vst [vmem:[%s1031 + $0x710] sm:$0xff] %v6428
          %6821 = vst [vmem:[%s1031 + $0x718] sm:$0xff] %v6429
          %6822 = vst [vmem:[%s1031 + $0x720] sm:$0xff] %v6430
          %6823 = vst [vmem:[%s1031 + $0x728] sm:$0xff] %v6431
          %6824 = vst [vmem:[%s1031 + $0x730] sm:$0xff] %v6432
          %6825 = vst [vmem:[%s1031 + $0x738] sm:$0xff] %v6433
          %6826 = vst [vmem:[%s1031 + $0x740] sm:$0xff] %v6434
          %6827 = vst [vmem:[%s1031 + $0x748] sm:$0xff] %v6435
          %6828 = vst [vmem:[%s1031 + $0x750] sm:$0xff] %v6436
          %6829 = vst [vmem:[%s1031 + $0x758] sm:$0xff] %v6437
          %6830 = vst [vmem:[%s1031 + $0x760] sm:$0xff] %v6438
          %6831 = vst [vmem:[%s1031 + $0x768] sm:$0xff] %v6439
          %6832 = vst [vmem:[%s1031 + $0x770] sm:$0xff] %v6440
          %6833 = vst [vmem:[%s1031 + $0x778] sm:$0xff] %v6441
          %6834 = vst [vmem:[%s1031 + $0x780] sm:$0xff] %v6442
          %6835 = vst [vmem:[%s1031 + $0x788] sm:$0xff] %v6443
          %6836 = vst [vmem:[%s1031 + $0x790] sm:$0xff] %v6444
          %6837 = vst [vmem:[%s1031 + $0x798] sm:$0xff] %v6445
          %6838 = vst [vmem:[%s1031 + $0x7a0] sm:$0xff] %v6446
          %6839 = vst [vmem:[%s1031 + $0x7a8] sm:$0xff] %v6447
          %6840 = vst [vmem:[%s1031 + $0x7b0] sm:$0xff] %v6448
          %6841 = vst [vmem:[%s1031 + $0x7b8] sm:$0xff] %v6449
          %6842 = vst [vmem:[%s1031 + $0x7c0] sm:$0xff] %v6450
          %6843 = vst [vmem:[%s1031 + $0x7c8] sm:$0xff] %v6451
          %6844 = vst [vmem:[%s1031 + $0x7d0] sm:$0xff] %v6452
          %6845 = vst [vmem:[%s1031 + $0x7d8] sm:$0xff] %v6453
          %6846 = vst [vmem:[%s1031 + $0x7e0] sm:$0xff] %v6454
          %6847 = vst [vmem:[%s1031 + $0x7e8] sm:$0xff] %v6455
          %6848 = vst [vmem:[%s1031 + $0x7f0] sm:$0xff] %v6456
          %6849 = vst [vmem:[%s1031 + $0x7f8] sm:$0xff] %v6457
          %6850 = vst [vmem:[%s1031 + $0x800] sm:$0xff] %v6458
          %6851 = vst [vmem:[%s1031 + $0x808] sm:$0xff] %v6459
          %6852 = vst [vmem:[%s1031 + $0x810] sm:$0xff] %v6460
          %6853 = vst [vmem:[%s1031 + $0x818] sm:$0xff] %v6461
          %6854 = vst [vmem:[%s1031 + $0x820] sm:$0xff] %v6462
          %6855 = vst [vmem:[%s1031 + $0x828] sm:$0xff] %v6463
          %6856 = vst [vmem:[%s1031 + $0x830] sm:$0xff] %v6464
          %6857 = vst [vmem:[%s1031 + $0x838] sm:$0xff] %v6465
          %6858 = vst [vmem:[%s1031 + $0x840] sm:$0xff] %v6466
          %6859 = vst [vmem:[%s1031 + $0x848] sm:$0xff] %v6467
          %6860 = vst [vmem:[%s1031 + $0x850] sm:$0xff] %v6468
          %6861 = vst [vmem:[%s1031 + $0x858] sm:$0xff] %v6469
          %6862 = vst [vmem:[%s1031 + $0x860] sm:$0xff] %v6470
          %6863 = vst [vmem:[%s1031 + $0x868] sm:$0xff] %v6471
          %6864 = vst [vmem:[%s1031 + $0x870] sm:$0xff] %v6472
          %6865 = vst [vmem:[%s1031 + $0x878] sm:$0xff] %v6473
          %6866 = vst [vmem:[%s1031 + $0x880] sm:$0xff] %v6474
          %6867 = vst [vmem:[%s1031 + $0x888] sm:$0xff] %v6475
          %6868 = vst [vmem:[%s1031 + $0x890] sm:$0xff] %v6476
          %6869 = vst [vmem:[%s1031 + $0x898] sm:$0xff] %v6477
          %6870 = vst [vmem:[%s1031 + $0x8a0] sm:$0xff] %v6478
          %6871 = vst [vmem:[%s1031 + $0x8a8] sm:$0xff] %v6479
          %6872 = vst [vmem:[%s1031 + $0x8b0] sm:$0xff] %v6480
          %6873 = vst [vmem:[%s1031 + $0x8b8] sm:$0xff] %v6481
          %6874 = vst [vmem:[%s1031 + $0x8c0] sm:$0xff] %v6482
          %6875 = vst [vmem:[%s1031 + $0x8c8] sm:$0xff] %v6483
          %6876 = vst [vmem:[%s1031 + $0x8d0] sm:$0xff] %v6484
          %6877 = vst [vmem:[%s1031 + $0x8d8] sm:$0xff] %v6485
          %6878 = vst [vmem:[%s1031 + $0x8e0] sm:$0xff] %v6486
          %6879 = vst [vmem:[%s1031 + $0x8e8] sm:$0xff] %v6487
          %6880 = vst [vmem:[%s1031 + $0x8f0] sm:$0xff] %v6488
          %6881 = vst [vmem:[%s1031 + $0x8f8] sm:$0xff] %v6489
          %6882 = vst [vmem:[%s1031 + $0x900] sm:$0xff] %v6490
          %6883 = vst [vmem:[%s1031 + $0x908] sm:$0xff] %v6491
          %6884 = vst [vmem:[%s1031 + $0x910] sm:$0xff] %v6492
          %6885 = vst [vmem:[%s1031 + $0x918] sm:$0xff] %v6493
          %6886 = vst [vmem:[%s1031 + $0x920] sm:$0xff] %v6494
          %6887 = vst [vmem:[%s1031 + $0x928] sm:$0xff] %v6495
          %6888 = vst [vmem:[%s1031 + $0x930] sm:$0xff] %v6496
          %6889 = vst [vmem:[%s1031 + $0x938] sm:$0xff] %v6497
          %6890 = vst [vmem:[%s1031 + $0x940] sm:$0xff] %v6498
          %6891 = vst [vmem:[%s1031 + $0x948] sm:$0xff] %v6499
          %6892 = vst [vmem:[%s1031 + $0x950] sm:$0xff] %v6500
          %6893 = vst [vmem:[%s1031 + $0x958] sm:$0xff] %v6501
          %6894 = vst [vmem:[%s1031 + $0x960] sm:$0xff] %v6502
          %6895 = vst [vmem:[%s1031 + $0x968] sm:$0xff] %v6503
          %6896 = vst [vmem:[%s1031 + $0x970] sm:$0xff] %v6504
          %6897 = vst [vmem:[%s1031 + $0x978] sm:$0xff] %v6505
          %6898 = vst [vmem:[%s1031 + $0x980] sm:$0xff] %v6506
          %6899 = vst [vmem:[%s1031 + $0x988] sm:$0xff] %v6507
          %6900 = vst [vmem:[%s1031 + $0x990] sm:$0xff] %v6508
          %6901 = vst [vmem:[%s1031 + $0x998] sm:$0xff] %v6509
          %6902 = vst [vmem:[%s1031 + $0x9a0] sm:$0xff] %v6510
          %6903 = vst [vmem:[%s1031 + $0x9a8] sm:$0xff] %v6511
          %6904 = vst [vmem:[%s1031 + $0x9b0] sm:$0xff] %v6512
          %6905 = vst [vmem:[%s1031 + $0x9b8] sm:$0xff] %v6513
          %6906 = vst [vmem:[%s1031 + $0x9c0] sm:$0xff] %v6514
          %6907 = vst [vmem:[%s1031 + $0x9c8] sm:$0xff] %v6515
          %6908 = vst [vmem:[%s1031 + $0x9d0] sm:$0xff] %v6516
          %6909 = vst [vmem:[%s1031 + $0x9d8] sm:$0xff] %v6517
          %6910 = vst [vmem:[%s1031 + $0x9e0] sm:$0xff] %v6518
          %6911 = vst [vmem:[%s1031 + $0x9e8] sm:$0xff] %v6519
          %6912 = vst [vmem:[%s1031 + $0x9f0] sm:$0xff] %v6520
          %6913 = vst [vmem:[%s1031 + $0x9f8] sm:$0xff] %v6521
          %6914 = vst [vmem:[%s1031 + $0xa00] sm:$0xff] %v6522
          %6915 = vst [vmem:[%s1031 + $0xa08] sm:$0xff] %v6523
          %6916 = vst [vmem:[%s1031 + $0xa10] sm:$0xff] %v6524
          %6917 = vst [vmem:[%s1031 + $0xa18] sm:$0xff] %v6525
          %6918 = vst [vmem:[%s1031 + $0xa20] sm:$0xff] %v6526
          %6919 = vst [vmem:[%s1031 + $0xa28] sm:$0xff] %v6527
          %6920 = vst [vmem:[%s1031 + $0xa30] sm:$0xff] %v6528
          %6921 = vst [vmem:[%s1031 + $0xa38] sm:$0xff] %v6529
          %6922 = vst [vmem:[%s1031 + $0xa40] sm:$0xff] %v6530
          %6923 = vst [vmem:[%s1031 + $0xa48] sm:$0xff] %v6531
          %6924 = vst [vmem:[%s1031 + $0xa50] sm:$0xff] %v6532
          %6925 = vst [vmem:[%s1031 + $0xa58] sm:$0xff] %v6533
          %6926 = vst [vmem:[%s1031 + $0xa60] sm:$0xff] %v6534
          %6927 = vst [vmem:[%s1031 + $0xa68] sm:$0xff] %v6535
          %6928 = vst [vmem:[%s1031 + $0xa70] sm:$0xff] %v6536
          %6929 = vst [vmem:[%s1031 + $0xa78] sm:$0xff] %v6537
          %6930 = vst [vmem:[%s1031 + $0xa80] sm:$0xff] %v6538
          %6931 = vst [vmem:[%s1031 + $0xa88] sm:$0xff] %v6539
          %6932 = vst [vmem:[%s1031 + $0xa90] sm:$0xff] %v6540
          %6933 = vst [vmem:[%s1031 + $0xa98] sm:$0xff] %v6541
          %6934 = vst [vmem:[%s1031 + $0xaa0] sm:$0xff] %v6542
          %6935 = vst [vmem:[%s1031 + $0xaa8] sm:$0xff] %v6543
          %6936 = vst [vmem:[%s1031 + $0xab0] sm:$0xff] %v6544
          %6937 = vst [vmem:[%s1031 + $0xab8] sm:$0xff] %v6545
          %6938 = vst [vmem:[%s1031 + $0xac0] sm:$0xff] %v6546
          %6939 = vst [vmem:[%s1031 + $0xac8] sm:$0xff] %v6547
          %6940 = vst [vmem:[%s1031 + $0xad0] sm:$0xff] %v6548
          %6941 = vst [vmem:[%s1031 + $0xad8] sm:$0xff] %v6549
          %6942 = vst [vmem:[%s1031 + $0xae0] sm:$0xff] %v6550
          %6943 = vst [vmem:[%s1031 + $0xae8] sm:$0xff] %v6551
          %6944 = vst [vmem:[%s1031 + $0xaf0] sm:$0xff] %v6552
          %6945 = vst [vmem:[%s1031 + $0xaf8] sm:$0xff] %v6553
          %6946 = vst [vmem:[%s1031 + $0xb00] sm:$0xff] %v6554
          %6947 = vst [vmem:[%s1031 + $0xb08] sm:$0xff] %v6555
          %6948 = vst [vmem:[%s1031 + $0xb10] sm:$0xff] %v6556
          %6949 = vst [vmem:[%s1031 + $0xb18] sm:$0xff] %v6557
          %6950 = vst [vmem:[%s1031 + $0xb20] sm:$0xff] %v6558
          %6951 = vst [vmem:[%s1031 + $0xb28] sm:$0xff] %v6559
          %6952 = vst [vmem:[%s1031 + $0xb30] sm:$0xff] %v6560
          %6953 = vst [vmem:[%s1031 + $0xb38] sm:$0xff] %v6561
          %6954 = vst [vmem:[%s1031 + $0xb40] sm:$0xff] %v6562
          %6955 = vst [vmem:[%s1031 + $0xb48] sm:$0xff] %v6563
          %6956 = vst [vmem:[%s1031 + $0xb50] sm:$0xff] %v6564
          %6957 = vst [vmem:[%s1031 + $0xb58] sm:$0xff] %v6565
          %6958 = vst [vmem:[%s1031 + $0xb60] sm:$0xff] %v6566
          %6959 = vst [vmem:[%s1031 + $0xb68] sm:$0xff] %v6567
          %6960 = vst [vmem:[%s1031 + $0xb70] sm:$0xff] %v6568
          %6961 = vst [vmem:[%s1031 + $0xb78] sm:$0xff] %v6569
          %6962 = vst [vmem:[%s1031 + $0xb80] sm:$0xff] %v6570
          %6963 = vst [vmem:[%s1031 + $0xb88] sm:$0xff] %v6571
          %6964 = vst [vmem:[%s1031 + $0xb90] sm:$0xff] %v6572
          %6965 = vst [vmem:[%s1031 + $0xb98] sm:$0xff] %v6573
          %6966 = vst [vmem:[%s1031 + $0xba0] sm:$0xff] %v6574
          %6967 = vst [vmem:[%s1031 + $0xba8] sm:$0xff] %v6575
          %6968 = vst [vmem:[%s1031 + $0xbb0] sm:$0xff] %v6576
          %6969 = vst [vmem:[%s1031 + $0xbb8] sm:$0xff] %v6577
          %6970 = vst [vmem:[%s1031 + $0xbc0] sm:$0xff] %v6578
          %6971 = vst [vmem:[%s1031 + $0xbc8] sm:$0xff] %v6579
          %6972 = vst [vmem:[%s1031 + $0xbd0] sm:$0xff] %v6580
          %6973 = vst [vmem:[%s1031 + $0xbd8] sm:$0xff] %v6581
          %6974 = vst [vmem:[%s1031 + $0xbe0] sm:$0xff] %v6582
          %6975 = vst [vmem:[%s1031 + $0xbe8] sm:$0xff] %v6583
          %6976 = vst [vmem:[%s1031 + $0xbf0] sm:$0xff] %v6584
          %6977 = vst [vmem:[%s1031 + $0xbf8] sm:$0xff] %v6585
          %6978 = vst [vmem:[%s1031 + $0xc00] sm:$0xff] %v6586
          %6979 = vst [vmem:[%s1031 + $0xc08] sm:$0xff] %v6587
          %6980 = vst [vmem:[%s1031 + $0xc10] sm:$0xff] %v6588
          %6981 = vst [vmem:[%s1031 + $0xc18] sm:$0xff] %v6589
          %6982 = vst [vmem:[%s1031 + $0xc20] sm:$0xff] %v6590
          %6983 = vst [vmem:[%s1031 + $0xc28] sm:$0xff] %v6591
          %6984 = vst [vmem:[%s1031 + $0xc30] sm:$0xff] %v6592
          %6985 = vst [vmem:[%s1031 + $0xc38] sm:$0xff] %v6593
        $region90: #{extract_image_feature.1} parent=73 // pred_fallthru
          _
        %p6986 = scmp.eq.s32.totalorder %s23, 3
        // Predicated region
        $region91: #{extract_image_feature.1} parent=73 // pred_check
          %p6987 = pneg %p6986
        $region92: #{extract_image_feature.1} parent=73 // pred_check_branch
          %6989 = sbr.rel (%p6987) target = $region94
        $region93: #{extract_image_feature.1} parent=73 // pred_region
          %v6990 = vld [vmem:[%s1031] sm:$0xff]
          %v6991 = vld [vmem:[%s1031 + $0x8] sm:$0xff]
          %v6992 = vld [vmem:[%s1031 + $0x10] sm:$0xff]
          %v6993 = vld [vmem:[%s1031 + $0x18] sm:$0xff]
          %v6994 = vld [vmem:[%s1031 + $0x20] sm:$0xff]
          %v6995 = vld [vmem:[%s1031 + $0x28] sm:$0xff]
          %v6996 = vld [vmem:[%s1031 + $0x30] sm:$0xff]
          %v6997 = vld [vmem:[%s1031 + $0x38] sm:$0xff]
          %v6998 = vld [vmem:[%s1031 + $0x40] sm:$0xff]
          %v6999 = vld [vmem:[%s1031 + $0x48] sm:$0xff]
          %v7000 = vld [vmem:[%s1031 + $0x50] sm:$0xff]
          %v7001 = vld [vmem:[%s1031 + $0x58] sm:$0xff]
          %v7002 = vld [vmem:[%s1031 + $0x60] sm:$0xff]
          %v7003 = vld [vmem:[%s1031 + $0x68] sm:$0xff]
          %v7004 = vld [vmem:[%s1031 + $0x70] sm:$0xff]
          %v7005 = vld [vmem:[%s1031 + $0x78] sm:$0xff]
          %v7006 = vld [vmem:[%s1031 + $0x80] sm:$0xff]
          %v7007 = vld [vmem:[%s1031 + $0x88] sm:$0xff]
          %v7008 = vld [vmem:[%s1031 + $0x90] sm:$0xff]
          %v7009 = vld [vmem:[%s1031 + $0x98] sm:$0xff]
          %v7010 = vld [vmem:[%s1031 + $0xa0] sm:$0xff]
          %v7011 = vld [vmem:[%s1031 + $0xa8] sm:$0xff]
          %v7012 = vld [vmem:[%s1031 + $0xb0] sm:$0xff]
          %v7013 = vld [vmem:[%s1031 + $0xb8] sm:$0xff]
          %v7014 = vld [vmem:[%s1031 + $0xc0] sm:$0xff]
          %v7015 = vld [vmem:[%s1031 + $0xc8] sm:$0xff]
          %v7016 = vld [vmem:[%s1031 + $0xd0] sm:$0xff]
          %v7017 = vld [vmem:[%s1031 + $0xd8] sm:$0xff]
          %v7018 = vld [vmem:[%s1031 + $0xe0] sm:$0xff]
          %v7019 = vld [vmem:[%s1031 + $0xe8] sm:$0xff]
          %v7020 = vld [vmem:[%s1031 + $0xf0] sm:$0xff]
          %v7021 = vld [vmem:[%s1031 + $0xf8] sm:$0xff]
          %v7022 = vld [vmem:[%s1031 + $0x100] sm:$0xff]
          %v7023 = vld [vmem:[%s1031 + $0x108] sm:$0xff]
          %v7024 = vld [vmem:[%s1031 + $0x110] sm:$0xff]
          %v7025 = vld [vmem:[%s1031 + $0x118] sm:$0xff]
          %v7026 = vld [vmem:[%s1031 + $0x120] sm:$0xff]
          %v7027 = vld [vmem:[%s1031 + $0x128] sm:$0xff]
          %v7028 = vld [vmem:[%s1031 + $0x130] sm:$0xff]
          %v7029 = vld [vmem:[%s1031 + $0x138] sm:$0xff]
          %v7030 = vld [vmem:[%s1031 + $0x140] sm:$0xff]
          %v7031 = vld [vmem:[%s1031 + $0x148] sm:$0xff]
          %v7032 = vld [vmem:[%s1031 + $0x150] sm:$0xff]
          %v7033 = vld [vmem:[%s1031 + $0x158] sm:$0xff]
          %v7034 = vld [vmem:[%s1031 + $0x160] sm:$0xff]
          %v7035 = vld [vmem:[%s1031 + $0x168] sm:$0xff]
          %v7036 = vld [vmem:[%s1031 + $0x170] sm:$0xff]
          %v7037 = vld [vmem:[%s1031 + $0x178] sm:$0xff]
          %v7038 = vld [vmem:[%s1031 + $0x180] sm:$0xff]
          %v7039 = vld [vmem:[%s1031 + $0x188] sm:$0xff]
          %v7040 = vld [vmem:[%s1031 + $0x190] sm:$0xff]
          %v7041 = vld [vmem:[%s1031 + $0x198] sm:$0xff]
          %v7042 = vld [vmem:[%s1031 + $0x1a0] sm:$0xff]
          %v7043 = vld [vmem:[%s1031 + $0x1a8] sm:$0xff]
          %v7044 = vld [vmem:[%s1031 + $0x1b0] sm:$0xff]
          %v7045 = vld [vmem:[%s1031 + $0x1b8] sm:$0xff]
          %v7046 = vld [vmem:[%s1031 + $0x1c0] sm:$0xff]
          %v7047 = vld [vmem:[%s1031 + $0x1c8] sm:$0xff]
          %v7048 = vld [vmem:[%s1031 + $0x1d0] sm:$0xff]
          %v7049 = vld [vmem:[%s1031 + $0x1d8] sm:$0xff]
          %v7050 = vld [vmem:[%s1031 + $0x1e0] sm:$0xff]
          %v7051 = vld [vmem:[%s1031 + $0x1e8] sm:$0xff]
          %v7052 = vld [vmem:[%s1031 + $0x1f0] sm:$0xff]
          %v7053 = vld [vmem:[%s1031 + $0x1f8] sm:$0xff]
          %v7054 = vld [vmem:[%s1031 + $0x200] sm:$0xff]
          %v7055 = vld [vmem:[%s1031 + $0x208] sm:$0xff]
          %v7056 = vld [vmem:[%s1031 + $0x210] sm:$0xff]
          %v7057 = vld [vmem:[%s1031 + $0x218] sm:$0xff]
          %v7058 = vld [vmem:[%s1031 + $0x220] sm:$0xff]
          %v7059 = vld [vmem:[%s1031 + $0x228] sm:$0xff]
          %v7060 = vld [vmem:[%s1031 + $0x230] sm:$0xff]
          %v7061 = vld [vmem:[%s1031 + $0x238] sm:$0xff]
          %v7062 = vld [vmem:[%s1031 + $0x240] sm:$0xff]
          %v7063 = vld [vmem:[%s1031 + $0x248] sm:$0xff]
          %v7064 = vld [vmem:[%s1031 + $0x250] sm:$0xff]
          %v7065 = vld [vmem:[%s1031 + $0x258] sm:$0xff]
          %v7066 = vld [vmem:[%s1031 + $0x260] sm:$0xff]
          %v7067 = vld [vmem:[%s1031 + $0x268] sm:$0xff]
          %v7068 = vld [vmem:[%s1031 + $0x270] sm:$0xff]
          %v7069 = vld [vmem:[%s1031 + $0x278] sm:$0xff]
          %v7070 = vld [vmem:[%s1031 + $0x280] sm:$0xff]
          %v7071 = vld [vmem:[%s1031 + $0x288] sm:$0xff]
          %v7072 = vld [vmem:[%s1031 + $0x290] sm:$0xff]
          %v7073 = vld [vmem:[%s1031 + $0x298] sm:$0xff]
          %v7074 = vld [vmem:[%s1031 + $0x2a0] sm:$0xff]
          %v7075 = vld [vmem:[%s1031 + $0x2a8] sm:$0xff]
          %v7076 = vld [vmem:[%s1031 + $0x2b0] sm:$0xff]
          %v7077 = vld [vmem:[%s1031 + $0x2b8] sm:$0xff]
          %v7078 = vld [vmem:[%s1031 + $0x2c0] sm:$0xff]
          %v7079 = vld [vmem:[%s1031 + $0x2c8] sm:$0xff]
          %v7080 = vld [vmem:[%s1031 + $0x2d0] sm:$0xff]
          %v7081 = vld [vmem:[%s1031 + $0x2d8] sm:$0xff]
          %v7082 = vld [vmem:[%s1031 + $0x2e0] sm:$0xff]
          %v7083 = vld [vmem:[%s1031 + $0x2e8] sm:$0xff]
          %v7084 = vld [vmem:[%s1031 + $0x2f0] sm:$0xff]
          %v7085 = vld [vmem:[%s1031 + $0x2f8] sm:$0xff]
          %v7086 = vld [vmem:[%s1031 + $0x300] sm:$0xff]
          %v7087 = vld [vmem:[%s1031 + $0x308] sm:$0xff]
          %v7088 = vld [vmem:[%s1031 + $0x310] sm:$0xff]
          %v7089 = vld [vmem:[%s1031 + $0x318] sm:$0xff]
          %v7090 = vld [vmem:[%s1031 + $0x320] sm:$0xff]
          %v7091 = vld [vmem:[%s1031 + $0x328] sm:$0xff]
          %v7092 = vld [vmem:[%s1031 + $0x330] sm:$0xff]
          %v7093 = vld [vmem:[%s1031 + $0x338] sm:$0xff]
          %v7094 = vld [vmem:[%s1031 + $0x340] sm:$0xff]
          %v7095 = vld [vmem:[%s1031 + $0x348] sm:$0xff]
          %v7096 = vld [vmem:[%s1031 + $0x350] sm:$0xff]
          %v7097 = vld [vmem:[%s1031 + $0x358] sm:$0xff]
          %v7098 = vld [vmem:[%s1031 + $0x360] sm:$0xff]
          %v7099 = vld [vmem:[%s1031 + $0x368] sm:$0xff]
          %v7100 = vld [vmem:[%s1031 + $0x370] sm:$0xff]
          %v7101 = vld [vmem:[%s1031 + $0x378] sm:$0xff]
          %v7102 = vld [vmem:[%s1031 + $0x380] sm:$0xff]
          %v7103 = vld [vmem:[%s1031 + $0x388] sm:$0xff]
          %v7104 = vld [vmem:[%s1031 + $0x390] sm:$0xff]
          %v7105 = vld [vmem:[%s1031 + $0x398] sm:$0xff]
          %v7106 = vld [vmem:[%s1031 + $0x3a0] sm:$0xff]
          %v7107 = vld [vmem:[%s1031 + $0x3a8] sm:$0xff]
          %v7108 = vld [vmem:[%s1031 + $0x3b0] sm:$0xff]
          %v7109 = vld [vmem:[%s1031 + $0x3b8] sm:$0xff]
          %v7110 = vld [vmem:[%s1031 + $0x3c0] sm:$0xff]
          %v7111 = vld [vmem:[%s1031 + $0x3c8] sm:$0xff]
          %v7112 = vld [vmem:[%s1031 + $0x3d0] sm:$0xff]
          %v7113 = vld [vmem:[%s1031 + $0x3d8] sm:$0xff]
          %v7114 = vld [vmem:[%s1031 + $0x3e0] sm:$0xff]
          %v7115 = vld [vmem:[%s1031 + $0x3e8] sm:$0xff]
          %v7116 = vld [vmem:[%s1031 + $0x3f0] sm:$0xff]
          %v7117 = vld [vmem:[%s1031 + $0x3f8] sm:$0xff]
          %v7118 = vld [vmem:[%s1031 + $0x400] sm:$0xff]
          %v7119 = vld [vmem:[%s1031 + $0x408] sm:$0xff]
          %v7120 = vld [vmem:[%s1031 + $0x410] sm:$0xff]
          %v7121 = vld [vmem:[%s1031 + $0x418] sm:$0xff]
          %v7122 = vld [vmem:[%s1031 + $0x420] sm:$0xff]
          %v7123 = vld [vmem:[%s1031 + $0x428] sm:$0xff]
          %v7124 = vld [vmem:[%s1031 + $0x430] sm:$0xff]
          %v7125 = vld [vmem:[%s1031 + $0x438] sm:$0xff]
          %v7126 = vld [vmem:[%s1031 + $0x440] sm:$0xff]
          %v7127 = vld [vmem:[%s1031 + $0x448] sm:$0xff]
          %v7128 = vld [vmem:[%s1031 + $0x450] sm:$0xff]
          %v7129 = vld [vmem:[%s1031 + $0x458] sm:$0xff]
          %v7130 = vld [vmem:[%s1031 + $0x460] sm:$0xff]
          %v7131 = vld [vmem:[%s1031 + $0x468] sm:$0xff]
          %v7132 = vld [vmem:[%s1031 + $0x470] sm:$0xff]
          %v7133 = vld [vmem:[%s1031 + $0x478] sm:$0xff]
          %v7134 = vld [vmem:[%s1031 + $0x480] sm:$0xff]
          %v7135 = vld [vmem:[%s1031 + $0x488] sm:$0xff]
          %v7136 = vld [vmem:[%s1031 + $0x490] sm:$0xff]
          %v7137 = vld [vmem:[%s1031 + $0x498] sm:$0xff]
          %v7138 = vld [vmem:[%s1031 + $0x4a0] sm:$0xff]
          %v7139 = vld [vmem:[%s1031 + $0x4a8] sm:$0xff]
          %v7140 = vld [vmem:[%s1031 + $0x4b0] sm:$0xff]
          %v7141 = vld [vmem:[%s1031 + $0x4b8] sm:$0xff]
          %v7142 = vld [vmem:[%s1031 + $0x4c0] sm:$0xff]
          %v7143 = vld [vmem:[%s1031 + $0x4c8] sm:$0xff]
          %v7144 = vld [vmem:[%s1031 + $0x4d0] sm:$0xff]
          %v7145 = vld [vmem:[%s1031 + $0x4d8] sm:$0xff]
          %v7146 = vld [vmem:[%s1031 + $0x4e0] sm:$0xff]
          %v7147 = vld [vmem:[%s1031 + $0x4e8] sm:$0xff]
          %v7148 = vld [vmem:[%s1031 + $0x4f0] sm:$0xff]
          %v7149 = vld [vmem:[%s1031 + $0x4f8] sm:$0xff]
          %v7150 = vld [vmem:[%s1031 + $0x500] sm:$0xff]
          %v7151 = vld [vmem:[%s1031 + $0x508] sm:$0xff]
          %v7152 = vld [vmem:[%s1031 + $0x510] sm:$0xff]
          %v7153 = vld [vmem:[%s1031 + $0x518] sm:$0xff]
          %v7154 = vld [vmem:[%s1031 + $0x520] sm:$0xff]
          %v7155 = vld [vmem:[%s1031 + $0x528] sm:$0xff]
          %v7156 = vld [vmem:[%s1031 + $0x530] sm:$0xff]
          %v7157 = vld [vmem:[%s1031 + $0x538] sm:$0xff]
          %v7158 = vld [vmem:[%s1031 + $0x540] sm:$0xff]
          %v7159 = vld [vmem:[%s1031 + $0x548] sm:$0xff]
          %v7160 = vld [vmem:[%s1031 + $0x550] sm:$0xff]
          %v7161 = vld [vmem:[%s1031 + $0x558] sm:$0xff]
          %v7162 = vld [vmem:[%s1031 + $0x560] sm:$0xff]
          %v7163 = vld [vmem:[%s1031 + $0x568] sm:$0xff]
          %v7164 = vld [vmem:[%s1031 + $0x570] sm:$0xff]
          %v7165 = vld [vmem:[%s1031 + $0x578] sm:$0xff]
          %v7166 = vld [vmem:[%s1031 + $0x580] sm:$0xff]
          %v7167 = vld [vmem:[%s1031 + $0x588] sm:$0xff]
          %v7168 = vld [vmem:[%s1031 + $0x590] sm:$0xff]
          %v7169 = vld [vmem:[%s1031 + $0x598] sm:$0xff]
          %v7170 = vld [vmem:[%s1031 + $0x5a0] sm:$0xff]
          %v7171 = vld [vmem:[%s1031 + $0x5a8] sm:$0xff]
          %v7172 = vld [vmem:[%s1031 + $0x5b0] sm:$0xff]
          %v7173 = vld [vmem:[%s1031 + $0x5b8] sm:$0xff]
          %v7174 = vld [vmem:[%s1031 + $0x5c0] sm:$0xff]
          %v7175 = vld [vmem:[%s1031 + $0x5c8] sm:$0xff]
          %v7176 = vld [vmem:[%s1031 + $0x5d0] sm:$0xff]
          %v7177 = vld [vmem:[%s1031 + $0x5d8] sm:$0xff]
          %v7178 = vld [vmem:[%s1031 + $0x5e0] sm:$0xff]
          %v7179 = vld [vmem:[%s1031 + $0x5e8] sm:$0xff]
          %v7180 = vld [vmem:[%s1031 + $0x5f0] sm:$0xff]
          %v7181 = vld [vmem:[%s1031 + $0x5f8] sm:$0xff]
          %v7182 = vld [vmem:[%s1031 + $0x600] sm:$0xff]
          %v7183 = vld [vmem:[%s1031 + $0x608] sm:$0xff]
          %v7184 = vld [vmem:[%s1031 + $0x610] sm:$0xff]
          %v7185 = vld [vmem:[%s1031 + $0x618] sm:$0xff]
          %v7186 = vld [vmem:[%s1031 + $0x620] sm:$0xff]
          %v7187 = vld [vmem:[%s1031 + $0x628] sm:$0xff]
          %v7188 = vld [vmem:[%s1031 + $0x630] sm:$0xff]
          %v7189 = vld [vmem:[%s1031 + $0x638] sm:$0xff]
          %v7190 = vld [vmem:[%s1031 + $0x640] sm:$0xff]
          %v7191 = vld [vmem:[%s1031 + $0x648] sm:$0xff]
          %v7192 = vld [vmem:[%s1031 + $0x650] sm:$0xff]
          %v7193 = vld [vmem:[%s1031 + $0x658] sm:$0xff]
          %v7194 = vld [vmem:[%s1031 + $0x660] sm:$0xff]
          %v7195 = vld [vmem:[%s1031 + $0x668] sm:$0xff]
          %v7196 = vld [vmem:[%s1031 + $0x670] sm:$0xff]
          %v7197 = vld [vmem:[%s1031 + $0x678] sm:$0xff]
          %v7198 = vld [vmem:[%s1031 + $0x680] sm:$0xff]
          %v7199 = vld [vmem:[%s1031 + $0x688] sm:$0xff]
          %v7200 = vld [vmem:[%s1031 + $0x690] sm:$0xff]
          %v7201 = vld [vmem:[%s1031 + $0x698] sm:$0xff]
          %v7202 = vld [vmem:[%s1031 + $0x6a0] sm:$0xff]
          %v7203 = vld [vmem:[%s1031 + $0x6a8] sm:$0xff]
          %v7204 = vld [vmem:[%s1031 + $0x6b0] sm:$0xff]
          %v7205 = vld [vmem:[%s1031 + $0x6b8] sm:$0xff]
          %v7206 = vld [vmem:[%s1031 + $0x6c0] sm:$0xff]
          %v7207 = vld [vmem:[%s1031 + $0x6c8] sm:$0xff]
          %v7208 = vld [vmem:[%s1031 + $0x6d0] sm:$0xff]
          %v7209 = vld [vmem:[%s1031 + $0x6d8] sm:$0xff]
          %v7210 = vld [vmem:[%s1031 + $0x6e0] sm:$0xff]
          %v7211 = vld [vmem:[%s1031 + $0x6e8] sm:$0xff]
          %v7212 = vld [vmem:[%s1031 + $0x6f0] sm:$0xff]
          %v7213 = vld [vmem:[%s1031 + $0x6f8] sm:$0xff]
          %v7214 = vld [vmem:[%s1031 + $0x700] sm:$0xff]
          %v7215 = vld [vmem:[%s1031 + $0x708] sm:$0xff]
          %v7216 = vld [vmem:[%s1031 + $0x710] sm:$0xff]
          %v7217 = vld [vmem:[%s1031 + $0x718] sm:$0xff]
          %v7218 = vld [vmem:[%s1031 + $0x720] sm:$0xff]
          %v7219 = vld [vmem:[%s1031 + $0x728] sm:$0xff]
          %v7220 = vld [vmem:[%s1031 + $0x730] sm:$0xff]
          %v7221 = vld [vmem:[%s1031 + $0x738] sm:$0xff]
          %v7222 = vld [vmem:[%s1031 + $0x740] sm:$0xff]
          %v7223 = vld [vmem:[%s1031 + $0x748] sm:$0xff]
          %v7224 = vld [vmem:[%s1031 + $0x750] sm:$0xff]
          %v7225 = vld [vmem:[%s1031 + $0x758] sm:$0xff]
          %v7226 = vld [vmem:[%s1031 + $0x760] sm:$0xff]
          %v7227 = vld [vmem:[%s1031 + $0x768] sm:$0xff]
          %v7228 = vld [vmem:[%s1031 + $0x770] sm:$0xff]
          %v7229 = vld [vmem:[%s1031 + $0x778] sm:$0xff]
          %v7230 = vld [vmem:[%s1031 + $0x780] sm:$0xff]
          %v7231 = vld [vmem:[%s1031 + $0x788] sm:$0xff]
          %v7232 = vld [vmem:[%s1031 + $0x790] sm:$0xff]
          %v7233 = vld [vmem:[%s1031 + $0x798] sm:$0xff]
          %v7234 = vld [vmem:[%s1031 + $0x7a0] sm:$0xff]
          %v7235 = vld [vmem:[%s1031 + $0x7a8] sm:$0xff]
          %v7236 = vld [vmem:[%s1031 + $0x7b0] sm:$0xff]
          %v7237 = vld [vmem:[%s1031 + $0x7b8] sm:$0xff]
          %v7238 = vld [vmem:[%s1031 + $0x7c0] sm:$0xff]
          %v7239 = vld [vmem:[%s1031 + $0x7c8] sm:$0xff]
          %v7240 = vld [vmem:[%s1031 + $0x7d0] sm:$0xff]
          %v7241 = vld [vmem:[%s1031 + $0x7d8] sm:$0xff]
          %v7242 = vld [vmem:[%s1031 + $0x7e0] sm:$0xff]
          %v7243 = vld [vmem:[%s1031 + $0x7e8] sm:$0xff]
          %v7244 = vld [vmem:[%s1031 + $0x7f0] sm:$0xff]
          %v7245 = vld [vmem:[%s1031 + $0x7f8] sm:$0xff]
          %v7246 = vld [vmem:[%s1031 + $0x800] sm:$0xff]
          %v7247 = vld [vmem:[%s1031 + $0x808] sm:$0xff]
          %v7248 = vld [vmem:[%s1031 + $0x810] sm:$0xff]
          %v7249 = vld [vmem:[%s1031 + $0x818] sm:$0xff]
          %v7250 = vld [vmem:[%s1031 + $0x820] sm:$0xff]
          %v7251 = vld [vmem:[%s1031 + $0x828] sm:$0xff]
          %v7252 = vld [vmem:[%s1031 + $0x830] sm:$0xff]
          %v7253 = vld [vmem:[%s1031 + $0x838] sm:$0xff]
          %v7254 = vld [vmem:[%s1031 + $0x840] sm:$0xff]
          %v7255 = vld [vmem:[%s1031 + $0x848] sm:$0xff]
          %v7256 = vld [vmem:[%s1031 + $0x850] sm:$0xff]
          %v7257 = vld [vmem:[%s1031 + $0x858] sm:$0xff]
          %v7258 = vld [vmem:[%s1031 + $0x860] sm:$0xff]
          %v7259 = vld [vmem:[%s1031 + $0x868] sm:$0xff]
          %v7260 = vld [vmem:[%s1031 + $0x870] sm:$0xff]
          %v7261 = vld [vmem:[%s1031 + $0x878] sm:$0xff]
          %v7262 = vld [vmem:[%s1031 + $0x880] sm:$0xff]
          %v7263 = vld [vmem:[%s1031 + $0x888] sm:$0xff]
          %v7264 = vld [vmem:[%s1031 + $0x890] sm:$0xff]
          %v7265 = vld [vmem:[%s1031 + $0x898] sm:$0xff]
          %v7266 = vld [vmem:[%s1031 + $0x8a0] sm:$0xff]
          %v7267 = vld [vmem:[%s1031 + $0x8a8] sm:$0xff]
          %v7268 = vld [vmem:[%s1031 + $0x8b0] sm:$0xff]
          %v7269 = vld [vmem:[%s1031 + $0x8b8] sm:$0xff]
          %v7270 = vld [vmem:[%s1031 + $0x8c0] sm:$0xff]
          %v7271 = vld [vmem:[%s1031 + $0x8c8] sm:$0xff]
          %v7272 = vld [vmem:[%s1031 + $0x8d0] sm:$0xff]
          %v7273 = vld [vmem:[%s1031 + $0x8d8] sm:$0xff]
          %v7274 = vld [vmem:[%s1031 + $0x8e0] sm:$0xff]
          %v7275 = vld [vmem:[%s1031 + $0x8e8] sm:$0xff]
          %v7276 = vld [vmem:[%s1031 + $0x8f0] sm:$0xff]
          %v7277 = vld [vmem:[%s1031 + $0x8f8] sm:$0xff]
          %v7278 = vld [vmem:[%s1031 + $0x900] sm:$0xff]
          %v7279 = vld [vmem:[%s1031 + $0x908] sm:$0xff]
          %v7280 = vld [vmem:[%s1031 + $0x910] sm:$0xff]
          %v7281 = vld [vmem:[%s1031 + $0x918] sm:$0xff]
          %v7282 = vld [vmem:[%s1031 + $0x920] sm:$0xff]
          %v7283 = vld [vmem:[%s1031 + $0x928] sm:$0xff]
          %v7284 = vld [vmem:[%s1031 + $0x930] sm:$0xff]
          %v7285 = vld [vmem:[%s1031 + $0x938] sm:$0xff]
          %v7286 = vld [vmem:[%s1031 + $0x940] sm:$0xff]
          %v7287 = vld [vmem:[%s1031 + $0x948] sm:$0xff]
          %v7288 = vld [vmem:[%s1031 + $0x950] sm:$0xff]
          %v7289 = vld [vmem:[%s1031 + $0x958] sm:$0xff]
          %v7290 = vld [vmem:[%s1031 + $0x960] sm:$0xff]
          %v7291 = vld [vmem:[%s1031 + $0x968] sm:$0xff]
          %v7292 = vld [vmem:[%s1031 + $0x970] sm:$0xff]
          %v7293 = vld [vmem:[%s1031 + $0x978] sm:$0xff]
          %v7294 = vld [vmem:[%s1031 + $0x980] sm:$0xff]
          %v7295 = vld [vmem:[%s1031 + $0x988] sm:$0xff]
          %v7296 = vld [vmem:[%s1031 + $0x990] sm:$0xff]
          %v7297 = vld [vmem:[%s1031 + $0x998] sm:$0xff]
          %v7298 = vld [vmem:[%s1031 + $0x9a0] sm:$0xff]
          %v7299 = vld [vmem:[%s1031 + $0x9a8] sm:$0xff]
          %v7300 = vld [vmem:[%s1031 + $0x9b0] sm:$0xff]
          %v7301 = vld [vmem:[%s1031 + $0x9b8] sm:$0xff]
          %v7302 = vld [vmem:[%s1031 + $0x9c0] sm:$0xff]
          %v7303 = vld [vmem:[%s1031 + $0x9c8] sm:$0xff]
          %v7304 = vld [vmem:[%s1031 + $0x9d0] sm:$0xff]
          %v7305 = vld [vmem:[%s1031 + $0x9d8] sm:$0xff]
          %v7306 = vld [vmem:[%s1031 + $0x9e0] sm:$0xff]
          %v7307 = vld [vmem:[%s1031 + $0x9e8] sm:$0xff]
          %v7308 = vld [vmem:[%s1031 + $0x9f0] sm:$0xff]
          %v7309 = vld [vmem:[%s1031 + $0x9f8] sm:$0xff]
          %v7310 = vld [vmem:[%s1031 + $0xa00] sm:$0xff]
          %v7311 = vld [vmem:[%s1031 + $0xa08] sm:$0xff]
          %v7312 = vld [vmem:[%s1031 + $0xa10] sm:$0xff]
          %v7313 = vld [vmem:[%s1031 + $0xa18] sm:$0xff]
          %v7314 = vld [vmem:[%s1031 + $0xa20] sm:$0xff]
          %v7315 = vld [vmem:[%s1031 + $0xa28] sm:$0xff]
          %v7316 = vld [vmem:[%s1031 + $0xa30] sm:$0xff]
          %v7317 = vld [vmem:[%s1031 + $0xa38] sm:$0xff]
          %v7318 = vld [vmem:[%s1031 + $0xa40] sm:$0xff]
          %v7319 = vld [vmem:[%s1031 + $0xa48] sm:$0xff]
          %v7320 = vld [vmem:[%s1031 + $0xa50] sm:$0xff]
          %v7321 = vld [vmem:[%s1031 + $0xa58] sm:$0xff]
          %v7322 = vld [vmem:[%s1031 + $0xa60] sm:$0xff]
          %v7323 = vld [vmem:[%s1031 + $0xa68] sm:$0xff]
          %v7324 = vld [vmem:[%s1031 + $0xa70] sm:$0xff]
          %v7325 = vld [vmem:[%s1031 + $0xa78] sm:$0xff]
          %v7326 = vld [vmem:[%s1031 + $0xa80] sm:$0xff]
          %v7327 = vld [vmem:[%s1031 + $0xa88] sm:$0xff]
          %v7328 = vld [vmem:[%s1031 + $0xa90] sm:$0xff]
          %v7329 = vld [vmem:[%s1031 + $0xa98] sm:$0xff]
          %v7330 = vld [vmem:[%s1031 + $0xaa0] sm:$0xff]
          %v7331 = vld [vmem:[%s1031 + $0xaa8] sm:$0xff]
          %v7332 = vld [vmem:[%s1031 + $0xab0] sm:$0xff]
          %v7333 = vld [vmem:[%s1031 + $0xab8] sm:$0xff]
          %v7334 = vld [vmem:[%s1031 + $0xac0] sm:$0xff]
          %v7335 = vld [vmem:[%s1031 + $0xac8] sm:$0xff]
          %v7336 = vld [vmem:[%s1031 + $0xad0] sm:$0xff]
          %v7337 = vld [vmem:[%s1031 + $0xad8] sm:$0xff]
          %v7338 = vld [vmem:[%s1031 + $0xae0] sm:$0xff]
          %v7339 = vld [vmem:[%s1031 + $0xae8] sm:$0xff]
          %v7340 = vld [vmem:[%s1031 + $0xaf0] sm:$0xff]
          %v7341 = vld [vmem:[%s1031 + $0xaf8] sm:$0xff]
          %v7342 = vld [vmem:[%s1031 + $0xb00] sm:$0xff]
          %v7343 = vld [vmem:[%s1031 + $0xb08] sm:$0xff]
          %v7344 = vld [vmem:[%s1031 + $0xb10] sm:$0xff]
          %v7345 = vld [vmem:[%s1031 + $0xb18] sm:$0xff]
          %v7346 = vld [vmem:[%s1031 + $0xb20] sm:$0xff]
          %v7347 = vld [vmem:[%s1031 + $0xb28] sm:$0xff]
          %v7348 = vld [vmem:[%s1031 + $0xb30] sm:$0xff]
          %v7349 = vld [vmem:[%s1031 + $0xb38] sm:$0xff]
          %v7350 = vld [vmem:[%s1031 + $0xb40] sm:$0xff]
          %v7351 = vld [vmem:[%s1031 + $0xb48] sm:$0xff]
          %v7352 = vld [vmem:[%s1031 + $0xb50] sm:$0xff]
          %v7353 = vld [vmem:[%s1031 + $0xb58] sm:$0xff]
          %v7354 = vld [vmem:[%s1031 + $0xb60] sm:$0xff]
          %v7355 = vld [vmem:[%s1031 + $0xb68] sm:$0xff]
          %v7356 = vld [vmem:[%s1031 + $0xb70] sm:$0xff]
          %v7357 = vld [vmem:[%s1031 + $0xb78] sm:$0xff]
          %v7358 = vld [vmem:[%s1031 + $0xb80] sm:$0xff]
          %v7359 = vld [vmem:[%s1031 + $0xb88] sm:$0xff]
          %v7360 = vld [vmem:[%s1031 + $0xb90] sm:$0xff]
          %v7361 = vld [vmem:[%s1031 + $0xb98] sm:$0xff]
          %v7362 = vld [vmem:[%s1031 + $0xba0] sm:$0xff]
          %v7363 = vld [vmem:[%s1031 + $0xba8] sm:$0xff]
          %v7364 = vld [vmem:[%s1031 + $0xbb0] sm:$0xff]
          %v7365 = vld [vmem:[%s1031 + $0xbb8] sm:$0xff]
          %v7366 = vld [vmem:[%s1031 + $0xbc0] sm:$0xff]
          %v7367 = vld [vmem:[%s1031 + $0xbc8] sm:$0xff]
          %v7368 = vld [vmem:[%s1031 + $0xbd0] sm:$0xff]
          %v7369 = vld [vmem:[%s1031 + $0xbd8] sm:$0xff]
          %v7370 = vld [vmem:[%s1031 + $0xbe0] sm:$0xff]
          %v7371 = vld [vmem:[%s1031 + $0xbe8] sm:$0xff]
          %v7372 = vld [vmem:[%s1031 + $0xbf0] sm:$0xff]
          %v7373 = vld [vmem:[%s1031 + $0xbf8] sm:$0xff]
          %v7374 = vld [vmem:[%s1031 + $0xc00] sm:$0xff]
          %v7375 = vld [vmem:[%s1031 + $0xc08] sm:$0xff]
          %v7376 = vld [vmem:[%s1031 + $0xc10] sm:$0xff]
          %v7377 = vld [vmem:[%s1031 + $0xc18] sm:$0xff]
          %v7378 = vld [vmem:[%s1031 + $0xc20] sm:$0xff]
          %v7379 = vld [vmem:[%s1031 + $0xc28] sm:$0xff]
          %v7380 = vld [vmem:[%s1031 + $0xc30] sm:$0xff]
          %v7381 = vld [vmem:[%s1031 + $0xc38] sm:$0xff]
          %v7382 = vld [vmem:[%s1025] sm:$0xff]
          %v7384 = vlaneseq
          %v7385 = vshrl.u32 %v7384, 7
          %v7386 = vsub.s32 0, %v7385
          %v7387 = vrot.slane %v7382, %v7386
          %v7388 = vlaneseq
          %v7389 = vshrl.u32 %v7388, 7
          %v7390 = vsub.s32 1, %v7389
          %v7391 = vrot.slane %v7382, %v7390
          %v7392 = vlaneseq
          %v7393 = vshrl.u32 %v7392, 7
          %v7394 = vsub.s32 2, %v7393
          %v7395 = vrot.slane %v7382, %v7394
          %v7396 = vlaneseq
          %v7397 = vshrl.u32 %v7396, 7
          %v7398 = vsub.s32 3, %v7397
          %v7399 = vrot.slane %v7382, %v7398
          %v7400 = vlaneseq
          %v7401 = vshrl.u32 %v7400, 7
          %v7402 = vsub.s32 4, %v7401
          %v7403 = vrot.slane %v7382, %v7402
          %v7404 = vlaneseq
          %v7405 = vshrl.u32 %v7404, 7
          %v7406 = vsub.s32 5, %v7405
          %v7407 = vrot.slane %v7382, %v7406
          %v7408 = vlaneseq
          %v7409 = vshrl.u32 %v7408, 7
          %v7410 = vsub.s32 6, %v7409
          %v7411 = vrot.slane %v7382, %v7410
          %v7412 = vlaneseq
          %v7413 = vshrl.u32 %v7412, 7
          %v7414 = vsub.s32 7, %v7413
          %v7415 = vrot.slane %v7382, %v7414
          %v7424 = vadd.f32 %v6990, %v7387
          %v7425 = vadd.f32 %v6991, %v7391
          %v7426 = vadd.f32 %v6992, %v7395
          %v7427 = vadd.f32 %v6993, %v7399
          %v7428 = vadd.f32 %v6994, %v7403
          %v7429 = vadd.f32 %v6995, %v7407
          %v7430 = vadd.f32 %v6996, %v7411
          %v7431 = vadd.f32 %v6997, %v7415
          %v7432 = vadd.f32 %v6998, %v7387
          %v7433 = vadd.f32 %v6999, %v7391
          %v7434 = vadd.f32 %v7000, %v7395
          %v7435 = vadd.f32 %v7001, %v7399
          %v7436 = vadd.f32 %v7002, %v7403
          %v7437 = vadd.f32 %v7003, %v7407
          %v7438 = vadd.f32 %v7004, %v7411
          %v7439 = vadd.f32 %v7005, %v7415
          %v7440 = vadd.f32 %v7006, %v7387
          %v7441 = vadd.f32 %v7007, %v7391
          %v7442 = vadd.f32 %v7008, %v7395
          %v7443 = vadd.f32 %v7009, %v7399
          %v7444 = vadd.f32 %v7010, %v7403
          %v7445 = vadd.f32 %v7011, %v7407
          %v7446 = vadd.f32 %v7012, %v7411
          %v7447 = vadd.f32 %v7013, %v7415
          %v7448 = vadd.f32 %v7014, %v7387
          %v7449 = vadd.f32 %v7015, %v7391
          %v7450 = vadd.f32 %v7016, %v7395
          %v7451 = vadd.f32 %v7017, %v7399
          %v7452 = vadd.f32 %v7018, %v7403
          %v7453 = vadd.f32 %v7019, %v7407
          %v7454 = vadd.f32 %v7020, %v7411
          %v7455 = vadd.f32 %v7021, %v7415
          %v7456 = vadd.f32 %v7022, %v7387
          %v7457 = vadd.f32 %v7023, %v7391
          %v7458 = vadd.f32 %v7024, %v7395
          %v7459 = vadd.f32 %v7025, %v7399
          %v7460 = vadd.f32 %v7026, %v7403
          %v7461 = vadd.f32 %v7027, %v7407
          %v7462 = vadd.f32 %v7028, %v7411
          %v7463 = vadd.f32 %v7029, %v7415
          %v7464 = vadd.f32 %v7030, %v7387
          %v7465 = vadd.f32 %v7031, %v7391
          %v7466 = vadd.f32 %v7032, %v7395
          %v7467 = vadd.f32 %v7033, %v7399
          %v7468 = vadd.f32 %v7034, %v7403
          %v7469 = vadd.f32 %v7035, %v7407
          %v7470 = vadd.f32 %v7036, %v7411
          %v7471 = vadd.f32 %v7037, %v7415
          %v7472 = vadd.f32 %v7038, %v7387
          %v7473 = vadd.f32 %v7039, %v7391
          %v7474 = vadd.f32 %v7040, %v7395
          %v7475 = vadd.f32 %v7041, %v7399
          %v7476 = vadd.f32 %v7042, %v7403
          %v7477 = vadd.f32 %v7043, %v7407
          %v7478 = vadd.f32 %v7044, %v7411
          %v7479 = vadd.f32 %v7045, %v7415
          %v7480 = vadd.f32 %v7046, %v7387
          %v7481 = vadd.f32 %v7047, %v7391
          %v7482 = vadd.f32 %v7048, %v7395
          %v7483 = vadd.f32 %v7049, %v7399
          %v7484 = vadd.f32 %v7050, %v7403
          %v7485 = vadd.f32 %v7051, %v7407
          %v7486 = vadd.f32 %v7052, %v7411
          %v7487 = vadd.f32 %v7053, %v7415
          %v7488 = vadd.f32 %v7054, %v7387
          %v7489 = vadd.f32 %v7055, %v7391
          %v7490 = vadd.f32 %v7056, %v7395
          %v7491 = vadd.f32 %v7057, %v7399
          %v7492 = vadd.f32 %v7058, %v7403
          %v7493 = vadd.f32 %v7059, %v7407
          %v7494 = vadd.f32 %v7060, %v7411
          %v7495 = vadd.f32 %v7061, %v7415
          %v7496 = vadd.f32 %v7062, %v7387
          %v7497 = vadd.f32 %v7063, %v7391
          %v7498 = vadd.f32 %v7064, %v7395
          %v7499 = vadd.f32 %v7065, %v7399
          %v7500 = vadd.f32 %v7066, %v7403
          %v7501 = vadd.f32 %v7067, %v7407
          %v7502 = vadd.f32 %v7068, %v7411
          %v7503 = vadd.f32 %v7069, %v7415
          %v7504 = vadd.f32 %v7070, %v7387
          %v7505 = vadd.f32 %v7071, %v7391
          %v7506 = vadd.f32 %v7072, %v7395
          %v7507 = vadd.f32 %v7073, %v7399
          %v7508 = vadd.f32 %v7074, %v7403
          %v7509 = vadd.f32 %v7075, %v7407
          %v7510 = vadd.f32 %v7076, %v7411
          %v7511 = vadd.f32 %v7077, %v7415
          %v7512 = vadd.f32 %v7078, %v7387
          %v7513 = vadd.f32 %v7079, %v7391
          %v7514 = vadd.f32 %v7080, %v7395
          %v7515 = vadd.f32 %v7081, %v7399
          %v7516 = vadd.f32 %v7082, %v7403
          %v7517 = vadd.f32 %v7083, %v7407
          %v7518 = vadd.f32 %v7084, %v7411
          %v7519 = vadd.f32 %v7085, %v7415
          %v7520 = vadd.f32 %v7086, %v7387
          %v7521 = vadd.f32 %v7087, %v7391
          %v7522 = vadd.f32 %v7088, %v7395
          %v7523 = vadd.f32 %v7089, %v7399
          %v7524 = vadd.f32 %v7090, %v7403
          %v7525 = vadd.f32 %v7091, %v7407
          %v7526 = vadd.f32 %v7092, %v7411
          %v7527 = vadd.f32 %v7093, %v7415
          %v7528 = vadd.f32 %v7094, %v7387
          %v7529 = vadd.f32 %v7095, %v7391
          %v7530 = vadd.f32 %v7096, %v7395
          %v7531 = vadd.f32 %v7097, %v7399
          %v7532 = vadd.f32 %v7098, %v7403
          %v7533 = vadd.f32 %v7099, %v7407
          %v7534 = vadd.f32 %v7100, %v7411
          %v7535 = vadd.f32 %v7101, %v7415
          %v7536 = vadd.f32 %v7102, %v7387
          %v7537 = vadd.f32 %v7103, %v7391
          %v7538 = vadd.f32 %v7104, %v7395
          %v7539 = vadd.f32 %v7105, %v7399
          %v7540 = vadd.f32 %v7106, %v7403
          %v7541 = vadd.f32 %v7107, %v7407
          %v7542 = vadd.f32 %v7108, %v7411
          %v7543 = vadd.f32 %v7109, %v7415
          %v7544 = vadd.f32 %v7110, %v7387
          %v7545 = vadd.f32 %v7111, %v7391
          %v7546 = vadd.f32 %v7112, %v7395
          %v7547 = vadd.f32 %v7113, %v7399
          %v7548 = vadd.f32 %v7114, %v7403
          %v7549 = vadd.f32 %v7115, %v7407
          %v7550 = vadd.f32 %v7116, %v7411
          %v7551 = vadd.f32 %v7117, %v7415
          %v7552 = vadd.f32 %v7118, %v7387
          %v7553 = vadd.f32 %v7119, %v7391
          %v7554 = vadd.f32 %v7120, %v7395
          %v7555 = vadd.f32 %v7121, %v7399
          %v7556 = vadd.f32 %v7122, %v7403
          %v7557 = vadd.f32 %v7123, %v7407
          %v7558 = vadd.f32 %v7124, %v7411
          %v7559 = vadd.f32 %v7125, %v7415
          %v7560 = vadd.f32 %v7126, %v7387
          %v7561 = vadd.f32 %v7127, %v7391
          %v7562 = vadd.f32 %v7128, %v7395
          %v7563 = vadd.f32 %v7129, %v7399
          %v7564 = vadd.f32 %v7130, %v7403
          %v7565 = vadd.f32 %v7131, %v7407
          %v7566 = vadd.f32 %v7132, %v7411
          %v7567 = vadd.f32 %v7133, %v7415
          %v7568 = vadd.f32 %v7134, %v7387
          %v7569 = vadd.f32 %v7135, %v7391
          %v7570 = vadd.f32 %v7136, %v7395
          %v7571 = vadd.f32 %v7137, %v7399
          %v7572 = vadd.f32 %v7138, %v7403
          %v7573 = vadd.f32 %v7139, %v7407
          %v7574 = vadd.f32 %v7140, %v7411
          %v7575 = vadd.f32 %v7141, %v7415
          %v7576 = vadd.f32 %v7142, %v7387
          %v7577 = vadd.f32 %v7143, %v7391
          %v7578 = vadd.f32 %v7144, %v7395
          %v7579 = vadd.f32 %v7145, %v7399
          %v7580 = vadd.f32 %v7146, %v7403
          %v7581 = vadd.f32 %v7147, %v7407
          %v7582 = vadd.f32 %v7148, %v7411
          %v7583 = vadd.f32 %v7149, %v7415
          %v7584 = vadd.f32 %v7150, %v7387
          %v7585 = vadd.f32 %v7151, %v7391
          %v7586 = vadd.f32 %v7152, %v7395
          %v7587 = vadd.f32 %v7153, %v7399
          %v7588 = vadd.f32 %v7154, %v7403
          %v7589 = vadd.f32 %v7155, %v7407
          %v7590 = vadd.f32 %v7156, %v7411
          %v7591 = vadd.f32 %v7157, %v7415
          %v7592 = vadd.f32 %v7158, %v7387
          %v7593 = vadd.f32 %v7159, %v7391
          %v7594 = vadd.f32 %v7160, %v7395
          %v7595 = vadd.f32 %v7161, %v7399
          %v7596 = vadd.f32 %v7162, %v7403
          %v7597 = vadd.f32 %v7163, %v7407
          %v7598 = vadd.f32 %v7164, %v7411
          %v7599 = vadd.f32 %v7165, %v7415
          %v7600 = vadd.f32 %v7166, %v7387
          %v7601 = vadd.f32 %v7167, %v7391
          %v7602 = vadd.f32 %v7168, %v7395
          %v7603 = vadd.f32 %v7169, %v7399
          %v7604 = vadd.f32 %v7170, %v7403
          %v7605 = vadd.f32 %v7171, %v7407
          %v7606 = vadd.f32 %v7172, %v7411
          %v7607 = vadd.f32 %v7173, %v7415
          %v7608 = vadd.f32 %v7174, %v7387
          %v7609 = vadd.f32 %v7175, %v7391
          %v7610 = vadd.f32 %v7176, %v7395
          %v7611 = vadd.f32 %v7177, %v7399
          %v7612 = vadd.f32 %v7178, %v7403
          %v7613 = vadd.f32 %v7179, %v7407
          %v7614 = vadd.f32 %v7180, %v7411
          %v7615 = vadd.f32 %v7181, %v7415
          %v7616 = vadd.f32 %v7182, %v7387
          %v7617 = vadd.f32 %v7183, %v7391
          %v7618 = vadd.f32 %v7184, %v7395
          %v7619 = vadd.f32 %v7185, %v7399
          %v7620 = vadd.f32 %v7186, %v7403
          %v7621 = vadd.f32 %v7187, %v7407
          %v7622 = vadd.f32 %v7188, %v7411
          %v7623 = vadd.f32 %v7189, %v7415
          %v7624 = vadd.f32 %v7190, %v7387
          %v7625 = vadd.f32 %v7191, %v7391
          %v7626 = vadd.f32 %v7192, %v7395
          %v7627 = vadd.f32 %v7193, %v7399
          %v7628 = vadd.f32 %v7194, %v7403
          %v7629 = vadd.f32 %v7195, %v7407
          %v7630 = vadd.f32 %v7196, %v7411
          %v7631 = vadd.f32 %v7197, %v7415
          %v7632 = vadd.f32 %v7198, %v7387
          %v7633 = vadd.f32 %v7199, %v7391
          %v7634 = vadd.f32 %v7200, %v7395
          %v7635 = vadd.f32 %v7201, %v7399
          %v7636 = vadd.f32 %v7202, %v7403
          %v7637 = vadd.f32 %v7203, %v7407
          %v7638 = vadd.f32 %v7204, %v7411
          %v7639 = vadd.f32 %v7205, %v7415
          %v7640 = vadd.f32 %v7206, %v7387
          %v7641 = vadd.f32 %v7207, %v7391
          %v7642 = vadd.f32 %v7208, %v7395
          %v7643 = vadd.f32 %v7209, %v7399
          %v7644 = vadd.f32 %v7210, %v7403
          %v7645 = vadd.f32 %v7211, %v7407
          %v7646 = vadd.f32 %v7212, %v7411
          %v7647 = vadd.f32 %v7213, %v7415
          %v7648 = vadd.f32 %v7214, %v7387
          %v7649 = vadd.f32 %v7215, %v7391
          %v7650 = vadd.f32 %v7216, %v7395
          %v7651 = vadd.f32 %v7217, %v7399
          %v7652 = vadd.f32 %v7218, %v7403
          %v7653 = vadd.f32 %v7219, %v7407
          %v7654 = vadd.f32 %v7220, %v7411
          %v7655 = vadd.f32 %v7221, %v7415
          %v7656 = vadd.f32 %v7222, %v7387
          %v7657 = vadd.f32 %v7223, %v7391
          %v7658 = vadd.f32 %v7224, %v7395
          %v7659 = vadd.f32 %v7225, %v7399
          %v7660 = vadd.f32 %v7226, %v7403
          %v7661 = vadd.f32 %v7227, %v7407
          %v7662 = vadd.f32 %v7228, %v7411
          %v7663 = vadd.f32 %v7229, %v7415
          %v7664 = vadd.f32 %v7230, %v7387
          %v7665 = vadd.f32 %v7231, %v7391
          %v7666 = vadd.f32 %v7232, %v7395
          %v7667 = vadd.f32 %v7233, %v7399
          %v7668 = vadd.f32 %v7234, %v7403
          %v7669 = vadd.f32 %v7235, %v7407
          %v7670 = vadd.f32 %v7236, %v7411
          %v7671 = vadd.f32 %v7237, %v7415
          %v7672 = vadd.f32 %v7238, %v7387
          %v7673 = vadd.f32 %v7239, %v7391
          %v7674 = vadd.f32 %v7240, %v7395
          %v7675 = vadd.f32 %v7241, %v7399
          %v7676 = vadd.f32 %v7242, %v7403
          %v7677 = vadd.f32 %v7243, %v7407
          %v7678 = vadd.f32 %v7244, %v7411
          %v7679 = vadd.f32 %v7245, %v7415
          %v7680 = vadd.f32 %v7246, %v7387
          %v7681 = vadd.f32 %v7247, %v7391
          %v7682 = vadd.f32 %v7248, %v7395
          %v7683 = vadd.f32 %v7249, %v7399
          %v7684 = vadd.f32 %v7250, %v7403
          %v7685 = vadd.f32 %v7251, %v7407
          %v7686 = vadd.f32 %v7252, %v7411
          %v7687 = vadd.f32 %v7253, %v7415
          %v7688 = vadd.f32 %v7254, %v7387
          %v7689 = vadd.f32 %v7255, %v7391
          %v7690 = vadd.f32 %v7256, %v7395
          %v7691 = vadd.f32 %v7257, %v7399
          %v7692 = vadd.f32 %v7258, %v7403
          %v7693 = vadd.f32 %v7259, %v7407
          %v7694 = vadd.f32 %v7260, %v7411
          %v7695 = vadd.f32 %v7261, %v7415
          %v7696 = vadd.f32 %v7262, %v7387
          %v7697 = vadd.f32 %v7263, %v7391
          %v7698 = vadd.f32 %v7264, %v7395
          %v7699 = vadd.f32 %v7265, %v7399
          %v7700 = vadd.f32 %v7266, %v7403
          %v7701 = vadd.f32 %v7267, %v7407
          %v7702 = vadd.f32 %v7268, %v7411
          %v7703 = vadd.f32 %v7269, %v7415
          %v7704 = vadd.f32 %v7270, %v7387
          %v7705 = vadd.f32 %v7271, %v7391
          %v7706 = vadd.f32 %v7272, %v7395
          %v7707 = vadd.f32 %v7273, %v7399
          %v7708 = vadd.f32 %v7274, %v7403
          %v7709 = vadd.f32 %v7275, %v7407
          %v7710 = vadd.f32 %v7276, %v7411
          %v7711 = vadd.f32 %v7277, %v7415
          %v7712 = vadd.f32 %v7278, %v7387
          %v7713 = vadd.f32 %v7279, %v7391
          %v7714 = vadd.f32 %v7280, %v7395
          %v7715 = vadd.f32 %v7281, %v7399
          %v7716 = vadd.f32 %v7282, %v7403
          %v7717 = vadd.f32 %v7283, %v7407
          %v7718 = vadd.f32 %v7284, %v7411
          %v7719 = vadd.f32 %v7285, %v7415
          %v7720 = vadd.f32 %v7286, %v7387
          %v7721 = vadd.f32 %v7287, %v7391
          %v7722 = vadd.f32 %v7288, %v7395
          %v7723 = vadd.f32 %v7289, %v7399
          %v7724 = vadd.f32 %v7290, %v7403
          %v7725 = vadd.f32 %v7291, %v7407
          %v7726 = vadd.f32 %v7292, %v7411
          %v7727 = vadd.f32 %v7293, %v7415
          %v7728 = vadd.f32 %v7294, %v7387
          %v7729 = vadd.f32 %v7295, %v7391
          %v7730 = vadd.f32 %v7296, %v7395
          %v7731 = vadd.f32 %v7297, %v7399
          %v7732 = vadd.f32 %v7298, %v7403
          %v7733 = vadd.f32 %v7299, %v7407
          %v7734 = vadd.f32 %v7300, %v7411
          %v7735 = vadd.f32 %v7301, %v7415
          %v7736 = vadd.f32 %v7302, %v7387
          %v7737 = vadd.f32 %v7303, %v7391
          %v7738 = vadd.f32 %v7304, %v7395
          %v7739 = vadd.f32 %v7305, %v7399
          %v7740 = vadd.f32 %v7306, %v7403
          %v7741 = vadd.f32 %v7307, %v7407
          %v7742 = vadd.f32 %v7308, %v7411
          %v7743 = vadd.f32 %v7309, %v7415
          %v7744 = vadd.f32 %v7310, %v7387
          %v7745 = vadd.f32 %v7311, %v7391
          %v7746 = vadd.f32 %v7312, %v7395
          %v7747 = vadd.f32 %v7313, %v7399
          %v7748 = vadd.f32 %v7314, %v7403
          %v7749 = vadd.f32 %v7315, %v7407
          %v7750 = vadd.f32 %v7316, %v7411
          %v7751 = vadd.f32 %v7317, %v7415
          %v7752 = vadd.f32 %v7318, %v7387
          %v7753 = vadd.f32 %v7319, %v7391
          %v7754 = vadd.f32 %v7320, %v7395
          %v7755 = vadd.f32 %v7321, %v7399
          %v7756 = vadd.f32 %v7322, %v7403
          %v7757 = vadd.f32 %v7323, %v7407
          %v7758 = vadd.f32 %v7324, %v7411
          %v7759 = vadd.f32 %v7325, %v7415
          %v7760 = vadd.f32 %v7326, %v7387
          %v7761 = vadd.f32 %v7327, %v7391
          %v7762 = vadd.f32 %v7328, %v7395
          %v7763 = vadd.f32 %v7329, %v7399
          %v7764 = vadd.f32 %v7330, %v7403
          %v7765 = vadd.f32 %v7331, %v7407
          %v7766 = vadd.f32 %v7332, %v7411
          %v7767 = vadd.f32 %v7333, %v7415
          %v7768 = vadd.f32 %v7334, %v7387
          %v7769 = vadd.f32 %v7335, %v7391
          %v7770 = vadd.f32 %v7336, %v7395
          %v7771 = vadd.f32 %v7337, %v7399
          %v7772 = vadd.f32 %v7338, %v7403
          %v7773 = vadd.f32 %v7339, %v7407
          %v7774 = vadd.f32 %v7340, %v7411
          %v7775 = vadd.f32 %v7341, %v7415
          %v7776 = vadd.f32 %v7342, %v7387
          %v7777 = vadd.f32 %v7343, %v7391
          %v7778 = vadd.f32 %v7344, %v7395
          %v7779 = vadd.f32 %v7345, %v7399
          %v7780 = vadd.f32 %v7346, %v7403
          %v7781 = vadd.f32 %v7347, %v7407
          %v7782 = vadd.f32 %v7348, %v7411
          %v7783 = vadd.f32 %v7349, %v7415
          %v7784 = vadd.f32 %v7350, %v7387
          %v7785 = vadd.f32 %v7351, %v7391
          %v7786 = vadd.f32 %v7352, %v7395
          %v7787 = vadd.f32 %v7353, %v7399
          %v7788 = vadd.f32 %v7354, %v7403
          %v7789 = vadd.f32 %v7355, %v7407
          %v7790 = vadd.f32 %v7356, %v7411
          %v7791 = vadd.f32 %v7357, %v7415
          %v7792 = vadd.f32 %v7358, %v7387
          %v7793 = vadd.f32 %v7359, %v7391
          %v7794 = vadd.f32 %v7360, %v7395
          %v7795 = vadd.f32 %v7361, %v7399
          %v7796 = vadd.f32 %v7362, %v7403
          %v7797 = vadd.f32 %v7363, %v7407
          %v7798 = vadd.f32 %v7364, %v7411
          %v7799 = vadd.f32 %v7365, %v7415
          %v7800 = vadd.f32 %v7366, %v7387
          %v7801 = vadd.f32 %v7367, %v7391
          %v7802 = vadd.f32 %v7368, %v7395
          %v7803 = vadd.f32 %v7369, %v7399
          %v7804 = vadd.f32 %v7370, %v7403
          %v7805 = vadd.f32 %v7371, %v7407
          %v7806 = vadd.f32 %v7372, %v7411
          %v7807 = vadd.f32 %v7373, %v7415
          %v7808 = vadd.f32 %v7374, %v7387
          %v7809 = vadd.f32 %v7375, %v7391
          %v7810 = vadd.f32 %v7376, %v7395
          %v7811 = vadd.f32 %v7377, %v7399
          %v7812 = vadd.f32 %v7378, %v7403
          %v7813 = vadd.f32 %v7379, %v7407
          %v7814 = vadd.f32 %v7380, %v7411
          %v7815 = vadd.f32 %v7381, %v7415
          %v7816 = vmax.f32 %v7424, 0.0
          %v7817 = vmax.f32 %v7425, 0.0
          %v7818 = vmax.f32 %v7426, 0.0
          %v7819 = vmax.f32 %v7427, 0.0
          %v7820 = vmax.f32 %v7428, 0.0
          %v7821 = vmax.f32 %v7429, 0.0
          %v7822 = vmax.f32 %v7430, 0.0
          %v7823 = vmax.f32 %v7431, 0.0
          %v7824 = vmax.f32 %v7432, 0.0
          %v7825 = vmax.f32 %v7433, 0.0
          %v7826 = vmax.f32 %v7434, 0.0
          %v7827 = vmax.f32 %v7435, 0.0
          %v7828 = vmax.f32 %v7436, 0.0
          %v7829 = vmax.f32 %v7437, 0.0
          %v7830 = vmax.f32 %v7438, 0.0
          %v7831 = vmax.f32 %v7439, 0.0
          %v7832 = vmax.f32 %v7440, 0.0
          %v7833 = vmax.f32 %v7441, 0.0
          %v7834 = vmax.f32 %v7442, 0.0
          %v7835 = vmax.f32 %v7443, 0.0
          %v7836 = vmax.f32 %v7444, 0.0
          %v7837 = vmax.f32 %v7445, 0.0
          %v7838 = vmax.f32 %v7446, 0.0
          %v7839 = vmax.f32 %v7447, 0.0
          %v7840 = vmax.f32 %v7448, 0.0
          %v7841 = vmax.f32 %v7449, 0.0
          %v7842 = vmax.f32 %v7450, 0.0
          %v7843 = vmax.f32 %v7451, 0.0
          %v7844 = vmax.f32 %v7452, 0.0
          %v7845 = vmax.f32 %v7453, 0.0
          %v7846 = vmax.f32 %v7454, 0.0
          %v7847 = vmax.f32 %v7455, 0.0
          %v7848 = vmax.f32 %v7456, 0.0
          %v7849 = vmax.f32 %v7457, 0.0
          %v7850 = vmax.f32 %v7458, 0.0
          %v7851 = vmax.f32 %v7459, 0.0
          %v7852 = vmax.f32 %v7460, 0.0
          %v7853 = vmax.f32 %v7461, 0.0
          %v7854 = vmax.f32 %v7462, 0.0
          %v7855 = vmax.f32 %v7463, 0.0
          %v7856 = vmax.f32 %v7464, 0.0
          %v7857 = vmax.f32 %v7465, 0.0
          %v7858 = vmax.f32 %v7466, 0.0
          %v7859 = vmax.f32 %v7467, 0.0
          %v7860 = vmax.f32 %v7468, 0.0
          %v7861 = vmax.f32 %v7469, 0.0
          %v7862 = vmax.f32 %v7470, 0.0
          %v7863 = vmax.f32 %v7471, 0.0
          %v7864 = vmax.f32 %v7472, 0.0
          %v7865 = vmax.f32 %v7473, 0.0
          %v7866 = vmax.f32 %v7474, 0.0
          %v7867 = vmax.f32 %v7475, 0.0
          %v7868 = vmax.f32 %v7476, 0.0
          %v7869 = vmax.f32 %v7477, 0.0
          %v7870 = vmax.f32 %v7478, 0.0
          %v7871 = vmax.f32 %v7479, 0.0
          %v7872 = vmax.f32 %v7480, 0.0
          %v7873 = vmax.f32 %v7481, 0.0
          %v7874 = vmax.f32 %v7482, 0.0
          %v7875 = vmax.f32 %v7483, 0.0
          %v7876 = vmax.f32 %v7484, 0.0
          %v7877 = vmax.f32 %v7485, 0.0
          %v7878 = vmax.f32 %v7486, 0.0
          %v7879 = vmax.f32 %v7487, 0.0
          %v7880 = vmax.f32 %v7488, 0.0
          %v7881 = vmax.f32 %v7489, 0.0
          %v7882 = vmax.f32 %v7490, 0.0
          %v7883 = vmax.f32 %v7491, 0.0
          %v7884 = vmax.f32 %v7492, 0.0
          %v7885 = vmax.f32 %v7493, 0.0
          %v7886 = vmax.f32 %v7494, 0.0
          %v7887 = vmax.f32 %v7495, 0.0
          %v7888 = vmax.f32 %v7496, 0.0
          %v7889 = vmax.f32 %v7497, 0.0
          %v7890 = vmax.f32 %v7498, 0.0
          %v7891 = vmax.f32 %v7499, 0.0
          %v7892 = vmax.f32 %v7500, 0.0
          %v7893 = vmax.f32 %v7501, 0.0
          %v7894 = vmax.f32 %v7502, 0.0
          %v7895 = vmax.f32 %v7503, 0.0
          %v7896 = vmax.f32 %v7504, 0.0
          %v7897 = vmax.f32 %v7505, 0.0
          %v7898 = vmax.f32 %v7506, 0.0
          %v7899 = vmax.f32 %v7507, 0.0
          %v7900 = vmax.f32 %v7508, 0.0
          %v7901 = vmax.f32 %v7509, 0.0
          %v7902 = vmax.f32 %v7510, 0.0
          %v7903 = vmax.f32 %v7511, 0.0
          %v7904 = vmax.f32 %v7512, 0.0
          %v7905 = vmax.f32 %v7513, 0.0
          %v7906 = vmax.f32 %v7514, 0.0
          %v7907 = vmax.f32 %v7515, 0.0
          %v7908 = vmax.f32 %v7516, 0.0
          %v7909 = vmax.f32 %v7517, 0.0
          %v7910 = vmax.f32 %v7518, 0.0
          %v7911 = vmax.f32 %v7519, 0.0
          %v7912 = vmax.f32 %v7520, 0.0
          %v7913 = vmax.f32 %v7521, 0.0
          %v7914 = vmax.f32 %v7522, 0.0
          %v7915 = vmax.f32 %v7523, 0.0
          %v7916 = vmax.f32 %v7524, 0.0
          %v7917 = vmax.f32 %v7525, 0.0
          %v7918 = vmax.f32 %v7526, 0.0
          %v7919 = vmax.f32 %v7527, 0.0
          %v7920 = vmax.f32 %v7528, 0.0
          %v7921 = vmax.f32 %v7529, 0.0
          %v7922 = vmax.f32 %v7530, 0.0
          %v7923 = vmax.f32 %v7531, 0.0
          %v7924 = vmax.f32 %v7532, 0.0
          %v7925 = vmax.f32 %v7533, 0.0
          %v7926 = vmax.f32 %v7534, 0.0
          %v7927 = vmax.f32 %v7535, 0.0
          %v7928 = vmax.f32 %v7536, 0.0
          %v7929 = vmax.f32 %v7537, 0.0
          %v7930 = vmax.f32 %v7538, 0.0
          %v7931 = vmax.f32 %v7539, 0.0
          %v7932 = vmax.f32 %v7540, 0.0
          %v7933 = vmax.f32 %v7541, 0.0
          %v7934 = vmax.f32 %v7542, 0.0
          %v7935 = vmax.f32 %v7543, 0.0
          %v7936 = vmax.f32 %v7544, 0.0
          %v7937 = vmax.f32 %v7545, 0.0
          %v7938 = vmax.f32 %v7546, 0.0
          %v7939 = vmax.f32 %v7547, 0.0
          %v7940 = vmax.f32 %v7548, 0.0
          %v7941 = vmax.f32 %v7549, 0.0
          %v7942 = vmax.f32 %v7550, 0.0
          %v7943 = vmax.f32 %v7551, 0.0
          %v7944 = vmax.f32 %v7552, 0.0
          %v7945 = vmax.f32 %v7553, 0.0
          %v7946 = vmax.f32 %v7554, 0.0
          %v7947 = vmax.f32 %v7555, 0.0
          %v7948 = vmax.f32 %v7556, 0.0
          %v7949 = vmax.f32 %v7557, 0.0
          %v7950 = vmax.f32 %v7558, 0.0
          %v7951 = vmax.f32 %v7559, 0.0
          %v7952 = vmax.f32 %v7560, 0.0
          %v7953 = vmax.f32 %v7561, 0.0
          %v7954 = vmax.f32 %v7562, 0.0
          %v7955 = vmax.f32 %v7563, 0.0
          %v7956 = vmax.f32 %v7564, 0.0
          %v7957 = vmax.f32 %v7565, 0.0
          %v7958 = vmax.f32 %v7566, 0.0
          %v7959 = vmax.f32 %v7567, 0.0
          %v7960 = vmax.f32 %v7568, 0.0
          %v7961 = vmax.f32 %v7569, 0.0
          %v7962 = vmax.f32 %v7570, 0.0
          %v7963 = vmax.f32 %v7571, 0.0
          %v7964 = vmax.f32 %v7572, 0.0
          %v7965 = vmax.f32 %v7573, 0.0
          %v7966 = vmax.f32 %v7574, 0.0
          %v7967 = vmax.f32 %v7575, 0.0
          %v7968 = vmax.f32 %v7576, 0.0
          %v7969 = vmax.f32 %v7577, 0.0
          %v7970 = vmax.f32 %v7578, 0.0
          %v7971 = vmax.f32 %v7579, 0.0
          %v7972 = vmax.f32 %v7580, 0.0
          %v7973 = vmax.f32 %v7581, 0.0
          %v7974 = vmax.f32 %v7582, 0.0
          %v7975 = vmax.f32 %v7583, 0.0
          %v7976 = vmax.f32 %v7584, 0.0
          %v7977 = vmax.f32 %v7585, 0.0
          %v7978 = vmax.f32 %v7586, 0.0
          %v7979 = vmax.f32 %v7587, 0.0
          %v7980 = vmax.f32 %v7588, 0.0
          %v7981 = vmax.f32 %v7589, 0.0
          %v7982 = vmax.f32 %v7590, 0.0
          %v7983 = vmax.f32 %v7591, 0.0
          %v7984 = vmax.f32 %v7592, 0.0
          %v7985 = vmax.f32 %v7593, 0.0
          %v7986 = vmax.f32 %v7594, 0.0
          %v7987 = vmax.f32 %v7595, 0.0
          %v7988 = vmax.f32 %v7596, 0.0
          %v7989 = vmax.f32 %v7597, 0.0
          %v7990 = vmax.f32 %v7598, 0.0
          %v7991 = vmax.f32 %v7599, 0.0
          %v7992 = vmax.f32 %v7600, 0.0
          %v7993 = vmax.f32 %v7601, 0.0
          %v7994 = vmax.f32 %v7602, 0.0
          %v7995 = vmax.f32 %v7603, 0.0
          %v7996 = vmax.f32 %v7604, 0.0
          %v7997 = vmax.f32 %v7605, 0.0
          %v7998 = vmax.f32 %v7606, 0.0
          %v7999 = vmax.f32 %v7607, 0.0
          %v8000 = vmax.f32 %v7608, 0.0
          %v8001 = vmax.f32 %v7609, 0.0
          %v8002 = vmax.f32 %v7610, 0.0
          %v8003 = vmax.f32 %v7611, 0.0
          %v8004 = vmax.f32 %v7612, 0.0
          %v8005 = vmax.f32 %v7613, 0.0
          %v8006 = vmax.f32 %v7614, 0.0
          %v8007 = vmax.f32 %v7615, 0.0
          %v8008 = vmax.f32 %v7616, 0.0
          %v8009 = vmax.f32 %v7617, 0.0
          %v8010 = vmax.f32 %v7618, 0.0
          %v8011 = vmax.f32 %v7619, 0.0
          %v8012 = vmax.f32 %v7620, 0.0
          %v8013 = vmax.f32 %v7621, 0.0
          %v8014 = vmax.f32 %v7622, 0.0
          %v8015 = vmax.f32 %v7623, 0.0
          %v8016 = vmax.f32 %v7624, 0.0
          %v8017 = vmax.f32 %v7625, 0.0
          %v8018 = vmax.f32 %v7626, 0.0
          %v8019 = vmax.f32 %v7627, 0.0
          %v8020 = vmax.f32 %v7628, 0.0
          %v8021 = vmax.f32 %v7629, 0.0
          %v8022 = vmax.f32 %v7630, 0.0
          %v8023 = vmax.f32 %v7631, 0.0
          %v8024 = vmax.f32 %v7632, 0.0
          %v8025 = vmax.f32 %v7633, 0.0
          %v8026 = vmax.f32 %v7634, 0.0
          %v8027 = vmax.f32 %v7635, 0.0
          %v8028 = vmax.f32 %v7636, 0.0
          %v8029 = vmax.f32 %v7637, 0.0
          %v8030 = vmax.f32 %v7638, 0.0
          %v8031 = vmax.f32 %v7639, 0.0
          %v8032 = vmax.f32 %v7640, 0.0
          %v8033 = vmax.f32 %v7641, 0.0
          %v8034 = vmax.f32 %v7642, 0.0
          %v8035 = vmax.f32 %v7643, 0.0
          %v8036 = vmax.f32 %v7644, 0.0
          %v8037 = vmax.f32 %v7645, 0.0
          %v8038 = vmax.f32 %v7646, 0.0
          %v8039 = vmax.f32 %v7647, 0.0
          %v8040 = vmax.f32 %v7648, 0.0
          %v8041 = vmax.f32 %v7649, 0.0
          %v8042 = vmax.f32 %v7650, 0.0
          %v8043 = vmax.f32 %v7651, 0.0
          %v8044 = vmax.f32 %v7652, 0.0
          %v8045 = vmax.f32 %v7653, 0.0
          %v8046 = vmax.f32 %v7654, 0.0
          %v8047 = vmax.f32 %v7655, 0.0
          %v8048 = vmax.f32 %v7656, 0.0
          %v8049 = vmax.f32 %v7657, 0.0
          %v8050 = vmax.f32 %v7658, 0.0
          %v8051 = vmax.f32 %v7659, 0.0
          %v8052 = vmax.f32 %v7660, 0.0
          %v8053 = vmax.f32 %v7661, 0.0
          %v8054 = vmax.f32 %v7662, 0.0
          %v8055 = vmax.f32 %v7663, 0.0
          %v8056 = vmax.f32 %v7664, 0.0
          %v8057 = vmax.f32 %v7665, 0.0
          %v8058 = vmax.f32 %v7666, 0.0
          %v8059 = vmax.f32 %v7667, 0.0
          %v8060 = vmax.f32 %v7668, 0.0
          %v8061 = vmax.f32 %v7669, 0.0
          %v8062 = vmax.f32 %v7670, 0.0
          %v8063 = vmax.f32 %v7671, 0.0
          %v8064 = vmax.f32 %v7672, 0.0
          %v8065 = vmax.f32 %v7673, 0.0
          %v8066 = vmax.f32 %v7674, 0.0
          %v8067 = vmax.f32 %v7675, 0.0
          %v8068 = vmax.f32 %v7676, 0.0
          %v8069 = vmax.f32 %v7677, 0.0
          %v8070 = vmax.f32 %v7678, 0.0
          %v8071 = vmax.f32 %v7679, 0.0
          %v8072 = vmax.f32 %v7680, 0.0
          %v8073 = vmax.f32 %v7681, 0.0
          %v8074 = vmax.f32 %v7682, 0.0
          %v8075 = vmax.f32 %v7683, 0.0
          %v8076 = vmax.f32 %v7684, 0.0
          %v8077 = vmax.f32 %v7685, 0.0
          %v8078 = vmax.f32 %v7686, 0.0
          %v8079 = vmax.f32 %v7687, 0.0
          %v8080 = vmax.f32 %v7688, 0.0
          %v8081 = vmax.f32 %v7689, 0.0
          %v8082 = vmax.f32 %v7690, 0.0
          %v8083 = vmax.f32 %v7691, 0.0
          %v8084 = vmax.f32 %v7692, 0.0
          %v8085 = vmax.f32 %v7693, 0.0
          %v8086 = vmax.f32 %v7694, 0.0
          %v8087 = vmax.f32 %v7695, 0.0
          %v8088 = vmax.f32 %v7696, 0.0
          %v8089 = vmax.f32 %v7697, 0.0
          %v8090 = vmax.f32 %v7698, 0.0
          %v8091 = vmax.f32 %v7699, 0.0
          %v8092 = vmax.f32 %v7700, 0.0
          %v8093 = vmax.f32 %v7701, 0.0
          %v8094 = vmax.f32 %v7702, 0.0
          %v8095 = vmax.f32 %v7703, 0.0
          %v8096 = vmax.f32 %v7704, 0.0
          %v8097 = vmax.f32 %v7705, 0.0
          %v8098 = vmax.f32 %v7706, 0.0
          %v8099 = vmax.f32 %v7707, 0.0
          %v8100 = vmax.f32 %v7708, 0.0
          %v8101 = vmax.f32 %v7709, 0.0
          %v8102 = vmax.f32 %v7710, 0.0
          %v8103 = vmax.f32 %v7711, 0.0
          %v8104 = vmax.f32 %v7712, 0.0
          %v8105 = vmax.f32 %v7713, 0.0
          %v8106 = vmax.f32 %v7714, 0.0
          %v8107 = vmax.f32 %v7715, 0.0
          %v8108 = vmax.f32 %v7716, 0.0
          %v8109 = vmax.f32 %v7717, 0.0
          %v8110 = vmax.f32 %v7718, 0.0
          %v8111 = vmax.f32 %v7719, 0.0
          %v8112 = vmax.f32 %v7720, 0.0
          %v8113 = vmax.f32 %v7721, 0.0
          %v8114 = vmax.f32 %v7722, 0.0
          %v8115 = vmax.f32 %v7723, 0.0
          %v8116 = vmax.f32 %v7724, 0.0
          %v8117 = vmax.f32 %v7725, 0.0
          %v8118 = vmax.f32 %v7726, 0.0
          %v8119 = vmax.f32 %v7727, 0.0
          %v8120 = vmax.f32 %v7728, 0.0
          %v8121 = vmax.f32 %v7729, 0.0
          %v8122 = vmax.f32 %v7730, 0.0
          %v8123 = vmax.f32 %v7731, 0.0
          %v8124 = vmax.f32 %v7732, 0.0
          %v8125 = vmax.f32 %v7733, 0.0
          %v8126 = vmax.f32 %v7734, 0.0
          %v8127 = vmax.f32 %v7735, 0.0
          %v8128 = vmax.f32 %v7736, 0.0
          %v8129 = vmax.f32 %v7737, 0.0
          %v8130 = vmax.f32 %v7738, 0.0
          %v8131 = vmax.f32 %v7739, 0.0
          %v8132 = vmax.f32 %v7740, 0.0
          %v8133 = vmax.f32 %v7741, 0.0
          %v8134 = vmax.f32 %v7742, 0.0
          %v8135 = vmax.f32 %v7743, 0.0
          %v8136 = vmax.f32 %v7744, 0.0
          %v8137 = vmax.f32 %v7745, 0.0
          %v8138 = vmax.f32 %v7746, 0.0
          %v8139 = vmax.f32 %v7747, 0.0
          %v8140 = vmax.f32 %v7748, 0.0
          %v8141 = vmax.f32 %v7749, 0.0
          %v8142 = vmax.f32 %v7750, 0.0
          %v8143 = vmax.f32 %v7751, 0.0
          %v8144 = vmax.f32 %v7752, 0.0
          %v8145 = vmax.f32 %v7753, 0.0
          %v8146 = vmax.f32 %v7754, 0.0
          %v8147 = vmax.f32 %v7755, 0.0
          %v8148 = vmax.f32 %v7756, 0.0
          %v8149 = vmax.f32 %v7757, 0.0
          %v8150 = vmax.f32 %v7758, 0.0
          %v8151 = vmax.f32 %v7759, 0.0
          %v8152 = vmax.f32 %v7760, 0.0
          %v8153 = vmax.f32 %v7761, 0.0
          %v8154 = vmax.f32 %v7762, 0.0
          %v8155 = vmax.f32 %v7763, 0.0
          %v8156 = vmax.f32 %v7764, 0.0
          %v8157 = vmax.f32 %v7765, 0.0
          %v8158 = vmax.f32 %v7766, 0.0
          %v8159 = vmax.f32 %v7767, 0.0
          %v8160 = vmax.f32 %v7768, 0.0
          %v8161 = vmax.f32 %v7769, 0.0
          %v8162 = vmax.f32 %v7770, 0.0
          %v8163 = vmax.f32 %v7771, 0.0
          %v8164 = vmax.f32 %v7772, 0.0
          %v8165 = vmax.f32 %v7773, 0.0
          %v8166 = vmax.f32 %v7774, 0.0
          %v8167 = vmax.f32 %v7775, 0.0
          %v8168 = vmax.f32 %v7776, 0.0
          %v8169 = vmax.f32 %v7777, 0.0
          %v8170 = vmax.f32 %v7778, 0.0
          %v8171 = vmax.f32 %v7779, 0.0
          %v8172 = vmax.f32 %v7780, 0.0
          %v8173 = vmax.f32 %v7781, 0.0
          %v8174 = vmax.f32 %v7782, 0.0
          %v8175 = vmax.f32 %v7783, 0.0
          %v8176 = vmax.f32 %v7784, 0.0
          %v8177 = vmax.f32 %v7785, 0.0
          %v8178 = vmax.f32 %v7786, 0.0
          %v8179 = vmax.f32 %v7787, 0.0
          %v8180 = vmax.f32 %v7788, 0.0
          %v8181 = vmax.f32 %v7789, 0.0
          %v8182 = vmax.f32 %v7790, 0.0
          %v8183 = vmax.f32 %v7791, 0.0
          %v8184 = vmax.f32 %v7792, 0.0
          %v8185 = vmax.f32 %v7793, 0.0
          %v8186 = vmax.f32 %v7794, 0.0
          %v8187 = vmax.f32 %v7795, 0.0
          %v8188 = vmax.f32 %v7796, 0.0
          %v8189 = vmax.f32 %v7797, 0.0
          %v8190 = vmax.f32 %v7798, 0.0
          %v8191 = vmax.f32 %v7799, 0.0
          %v8192 = vmax.f32 %v7800, 0.0
          %v8193 = vmax.f32 %v7801, 0.0
          %v8194 = vmax.f32 %v7802, 0.0
          %v8195 = vmax.f32 %v7803, 0.0
          %v8196 = vmax.f32 %v7804, 0.0
          %v8197 = vmax.f32 %v7805, 0.0
          %v8198 = vmax.f32 %v7806, 0.0
          %v8199 = vmax.f32 %v7807, 0.0
          %v8200 = vmax.f32 %v7808, 0.0
          %v8201 = vmax.f32 %v7809, 0.0
          %v8202 = vmax.f32 %v7810, 0.0
          %v8203 = vmax.f32 %v7811, 0.0
          %v8204 = vmax.f32 %v7812, 0.0
          %v8205 = vmax.f32 %v7813, 0.0
          %v8206 = vmax.f32 %v7814, 0.0
          %v8207 = vmax.f32 %v7815, 0.0
          %8208 = vst [vmem:[%s1031] sm:$0xff] %v7816
          %8209 = vst [vmem:[%s1031 + $0x8] sm:$0xff] %v7817
          %8210 = vst [vmem:[%s1031 + $0x10] sm:$0xff] %v7818
          %8211 = vst [vmem:[%s1031 + $0x18] sm:$0xff] %v7819
          %8212 = vst [vmem:[%s1031 + $0x20] sm:$0xff] %v7820
          %8213 = vst [vmem:[%s1031 + $0x28] sm:$0xff] %v7821
          %8214 = vst [vmem:[%s1031 + $0x30] sm:$0xff] %v7822
          %8215 = vst [vmem:[%s1031 + $0x38] sm:$0xff] %v7823
          %8216 = vst [vmem:[%s1031 + $0x40] sm:$0xff] %v7824
          %8217 = vst [vmem:[%s1031 + $0x48] sm:$0xff] %v7825
          %8218 = vst [vmem:[%s1031 + $0x50] sm:$0xff] %v7826
          %8219 = vst [vmem:[%s1031 + $0x58] sm:$0xff] %v7827
          %8220 = vst [vmem:[%s1031 + $0x60] sm:$0xff] %v7828
          %8221 = vst [vmem:[%s1031 + $0x68] sm:$0xff] %v7829
          %8222 = vst [vmem:[%s1031 + $0x70] sm:$0xff] %v7830
          %8223 = vst [vmem:[%s1031 + $0x78] sm:$0xff] %v7831
          %8224 = vst [vmem:[%s1031 + $0x80] sm:$0xff] %v7832
          %8225 = vst [vmem:[%s1031 + $0x88] sm:$0xff] %v7833
          %8226 = vst [vmem:[%s1031 + $0x90] sm:$0xff] %v7834
          %8227 = vst [vmem:[%s1031 + $0x98] sm:$0xff] %v7835
          %8228 = vst [vmem:[%s1031 + $0xa0] sm:$0xff] %v7836
          %8229 = vst [vmem:[%s1031 + $0xa8] sm:$0xff] %v7837
          %8230 = vst [vmem:[%s1031 + $0xb0] sm:$0xff] %v7838
          %8231 = vst [vmem:[%s1031 + $0xb8] sm:$0xff] %v7839
          %8232 = vst [vmem:[%s1031 + $0xc0] sm:$0xff] %v7840
          %8233 = vst [vmem:[%s1031 + $0xc8] sm:$0xff] %v7841
          %8234 = vst [vmem:[%s1031 + $0xd0] sm:$0xff] %v7842
          %8235 = vst [vmem:[%s1031 + $0xd8] sm:$0xff] %v7843
          %8236 = vst [vmem:[%s1031 + $0xe0] sm:$0xff] %v7844
          %8237 = vst [vmem:[%s1031 + $0xe8] sm:$0xff] %v7845
          %8238 = vst [vmem:[%s1031 + $0xf0] sm:$0xff] %v7846
          %8239 = vst [vmem:[%s1031 + $0xf8] sm:$0xff] %v7847
          %8240 = vst [vmem:[%s1031 + $0x100] sm:$0xff] %v7848
          %8241 = vst [vmem:[%s1031 + $0x108] sm:$0xff] %v7849
          %8242 = vst [vmem:[%s1031 + $0x110] sm:$0xff] %v7850
          %8243 = vst [vmem:[%s1031 + $0x118] sm:$0xff] %v7851
          %8244 = vst [vmem:[%s1031 + $0x120] sm:$0xff] %v7852
          %8245 = vst [vmem:[%s1031 + $0x128] sm:$0xff] %v7853
          %8246 = vst [vmem:[%s1031 + $0x130] sm:$0xff] %v7854
          %8247 = vst [vmem:[%s1031 + $0x138] sm:$0xff] %v7855
          %8248 = vst [vmem:[%s1031 + $0x140] sm:$0xff] %v7856
          %8249 = vst [vmem:[%s1031 + $0x148] sm:$0xff] %v7857
          %8250 = vst [vmem:[%s1031 + $0x150] sm:$0xff] %v7858
          %8251 = vst [vmem:[%s1031 + $0x158] sm:$0xff] %v7859
          %8252 = vst [vmem:[%s1031 + $0x160] sm:$0xff] %v7860
          %8253 = vst [vmem:[%s1031 + $0x168] sm:$0xff] %v7861
          %8254 = vst [vmem:[%s1031 + $0x170] sm:$0xff] %v7862
          %8255 = vst [vmem:[%s1031 + $0x178] sm:$0xff] %v7863
          %8256 = vst [vmem:[%s1031 + $0x180] sm:$0xff] %v7864
          %8257 = vst [vmem:[%s1031 + $0x188] sm:$0xff] %v7865
          %8258 = vst [vmem:[%s1031 + $0x190] sm:$0xff] %v7866
          %8259 = vst [vmem:[%s1031 + $0x198] sm:$0xff] %v7867
          %8260 = vst [vmem:[%s1031 + $0x1a0] sm:$0xff] %v7868
          %8261 = vst [vmem:[%s1031 + $0x1a8] sm:$0xff] %v7869
          %8262 = vst [vmem:[%s1031 + $0x1b0] sm:$0xff] %v7870
          %8263 = vst [vmem:[%s1031 + $0x1b8] sm:$0xff] %v7871
          %8264 = vst [vmem:[%s1031 + $0x1c0] sm:$0xff] %v7872
          %8265 = vst [vmem:[%s1031 + $0x1c8] sm:$0xff] %v7873
          %8266 = vst [vmem:[%s1031 + $0x1d0] sm:$0xff] %v7874
          %8267 = vst [vmem:[%s1031 + $0x1d8] sm:$0xff] %v7875
          %8268 = vst [vmem:[%s1031 + $0x1e0] sm:$0xff] %v7876
          %8269 = vst [vmem:[%s1031 + $0x1e8] sm:$0xff] %v7877
          %8270 = vst [vmem:[%s1031 + $0x1f0] sm:$0xff] %v7878
          %8271 = vst [vmem:[%s1031 + $0x1f8] sm:$0xff] %v7879
          %8272 = vst [vmem:[%s1031 + $0x200] sm:$0xff] %v7880
          %8273 = vst [vmem:[%s1031 + $0x208] sm:$0xff] %v7881
          %8274 = vst [vmem:[%s1031 + $0x210] sm:$0xff] %v7882
          %8275 = vst [vmem:[%s1031 + $0x218] sm:$0xff] %v7883
          %8276 = vst [vmem:[%s1031 + $0x220] sm:$0xff] %v7884
          %8277 = vst [vmem:[%s1031 + $0x228] sm:$0xff] %v7885
          %8278 = vst [vmem:[%s1031 + $0x230] sm:$0xff] %v7886
          %8279 = vst [vmem:[%s1031 + $0x238] sm:$0xff] %v7887
          %8280 = vst [vmem:[%s1031 + $0x240] sm:$0xff] %v7888
          %8281 = vst [vmem:[%s1031 + $0x248] sm:$0xff] %v7889
          %8282 = vst [vmem:[%s1031 + $0x250] sm:$0xff] %v7890
          %8283 = vst [vmem:[%s1031 + $0x258] sm:$0xff] %v7891
          %8284 = vst [vmem:[%s1031 + $0x260] sm:$0xff] %v7892
          %8285 = vst [vmem:[%s1031 + $0x268] sm:$0xff] %v7893
          %8286 = vst [vmem:[%s1031 + $0x270] sm:$0xff] %v7894
          %8287 = vst [vmem:[%s1031 + $0x278] sm:$0xff] %v7895
          %8288 = vst [vmem:[%s1031 + $0x280] sm:$0xff] %v7896
          %8289 = vst [vmem:[%s1031 + $0x288] sm:$0xff] %v7897
          %8290 = vst [vmem:[%s1031 + $0x290] sm:$0xff] %v7898
          %8291 = vst [vmem:[%s1031 + $0x298] sm:$0xff] %v7899
          %8292 = vst [vmem:[%s1031 + $0x2a0] sm:$0xff] %v7900
          %8293 = vst [vmem:[%s1031 + $0x2a8] sm:$0xff] %v7901
          %8294 = vst [vmem:[%s1031 + $0x2b0] sm:$0xff] %v7902
          %8295 = vst [vmem:[%s1031 + $0x2b8] sm:$0xff] %v7903
          %8296 = vst [vmem:[%s1031 + $0x2c0] sm:$0xff] %v7904
          %8297 = vst [vmem:[%s1031 + $0x2c8] sm:$0xff] %v7905
          %8298 = vst [vmem:[%s1031 + $0x2d0] sm:$0xff] %v7906
          %8299 = vst [vmem:[%s1031 + $0x2d8] sm:$0xff] %v7907
          %8300 = vst [vmem:[%s1031 + $0x2e0] sm:$0xff] %v7908
          %8301 = vst [vmem:[%s1031 + $0x2e8] sm:$0xff] %v7909
          %8302 = vst [vmem:[%s1031 + $0x2f0] sm:$0xff] %v7910
          %8303 = vst [vmem:[%s1031 + $0x2f8] sm:$0xff] %v7911
          %8304 = vst [vmem:[%s1031 + $0x300] sm:$0xff] %v7912
          %8305 = vst [vmem:[%s1031 + $0x308] sm:$0xff] %v7913
          %8306 = vst [vmem:[%s1031 + $0x310] sm:$0xff] %v7914
          %8307 = vst [vmem:[%s1031 + $0x318] sm:$0xff] %v7915
          %8308 = vst [vmem:[%s1031 + $0x320] sm:$0xff] %v7916
          %8309 = vst [vmem:[%s1031 + $0x328] sm:$0xff] %v7917
          %8310 = vst [vmem:[%s1031 + $0x330] sm:$0xff] %v7918
          %8311 = vst [vmem:[%s1031 + $0x338] sm:$0xff] %v7919
          %8312 = vst [vmem:[%s1031 + $0x340] sm:$0xff] %v7920
          %8313 = vst [vmem:[%s1031 + $0x348] sm:$0xff] %v7921
          %8314 = vst [vmem:[%s1031 + $0x350] sm:$0xff] %v7922
          %8315 = vst [vmem:[%s1031 + $0x358] sm:$0xff] %v7923
          %8316 = vst [vmem:[%s1031 + $0x360] sm:$0xff] %v7924
          %8317 = vst [vmem:[%s1031 + $0x368] sm:$0xff] %v7925
          %8318 = vst [vmem:[%s1031 + $0x370] sm:$0xff] %v7926
          %8319 = vst [vmem:[%s1031 + $0x378] sm:$0xff] %v7927
          %8320 = vst [vmem:[%s1031 + $0x380] sm:$0xff] %v7928
          %8321 = vst [vmem:[%s1031 + $0x388] sm:$0xff] %v7929
          %8322 = vst [vmem:[%s1031 + $0x390] sm:$0xff] %v7930
          %8323 = vst [vmem:[%s1031 + $0x398] sm:$0xff] %v7931
          %8324 = vst [vmem:[%s1031 + $0x3a0] sm:$0xff] %v7932
          %8325 = vst [vmem:[%s1031 + $0x3a8] sm:$0xff] %v7933
          %8326 = vst [vmem:[%s1031 + $0x3b0] sm:$0xff] %v7934
          %8327 = vst [vmem:[%s1031 + $0x3b8] sm:$0xff] %v7935
          %8328 = vst [vmem:[%s1031 + $0x3c0] sm:$0xff] %v7936
          %8329 = vst [vmem:[%s1031 + $0x3c8] sm:$0xff] %v7937
          %8330 = vst [vmem:[%s1031 + $0x3d0] sm:$0xff] %v7938
          %8331 = vst [vmem:[%s1031 + $0x3d8] sm:$0xff] %v7939
          %8332 = vst [vmem:[%s1031 + $0x3e0] sm:$0xff] %v7940
          %8333 = vst [vmem:[%s1031 + $0x3e8] sm:$0xff] %v7941
          %8334 = vst [vmem:[%s1031 + $0x3f0] sm:$0xff] %v7942
          %8335 = vst [vmem:[%s1031 + $0x3f8] sm:$0xff] %v7943
          %8336 = vst [vmem:[%s1031 + $0x400] sm:$0xff] %v7944
          %8337 = vst [vmem:[%s1031 + $0x408] sm:$0xff] %v7945
          %8338 = vst [vmem:[%s1031 + $0x410] sm:$0xff] %v7946
          %8339 = vst [vmem:[%s1031 + $0x418] sm:$0xff] %v7947
          %8340 = vst [vmem:[%s1031 + $0x420] sm:$0xff] %v7948
          %8341 = vst [vmem:[%s1031 + $0x428] sm:$0xff] %v7949
          %8342 = vst [vmem:[%s1031 + $0x430] sm:$0xff] %v7950
          %8343 = vst [vmem:[%s1031 + $0x438] sm:$0xff] %v7951
          %8344 = vst [vmem:[%s1031 + $0x440] sm:$0xff] %v7952
          %8345 = vst [vmem:[%s1031 + $0x448] sm:$0xff] %v7953
          %8346 = vst [vmem:[%s1031 + $0x450] sm:$0xff] %v7954
          %8347 = vst [vmem:[%s1031 + $0x458] sm:$0xff] %v7955
          %8348 = vst [vmem:[%s1031 + $0x460] sm:$0xff] %v7956
          %8349 = vst [vmem:[%s1031 + $0x468] sm:$0xff] %v7957
          %8350 = vst [vmem:[%s1031 + $0x470] sm:$0xff] %v7958
          %8351 = vst [vmem:[%s1031 + $0x478] sm:$0xff] %v7959
          %8352 = vst [vmem:[%s1031 + $0x480] sm:$0xff] %v7960
          %8353 = vst [vmem:[%s1031 + $0x488] sm:$0xff] %v7961
          %8354 = vst [vmem:[%s1031 + $0x490] sm:$0xff] %v7962
          %8355 = vst [vmem:[%s1031 + $0x498] sm:$0xff] %v7963
          %8356 = vst [vmem:[%s1031 + $0x4a0] sm:$0xff] %v7964
          %8357 = vst [vmem:[%s1031 + $0x4a8] sm:$0xff] %v7965
          %8358 = vst [vmem:[%s1031 + $0x4b0] sm:$0xff] %v7966
          %8359 = vst [vmem:[%s1031 + $0x4b8] sm:$0xff] %v7967
          %8360 = vst [vmem:[%s1031 + $0x4c0] sm:$0xff] %v7968
          %8361 = vst [vmem:[%s1031 + $0x4c8] sm:$0xff] %v7969
          %8362 = vst [vmem:[%s1031 + $0x4d0] sm:$0xff] %v7970
          %8363 = vst [vmem:[%s1031 + $0x4d8] sm:$0xff] %v7971
          %8364 = vst [vmem:[%s1031 + $0x4e0] sm:$0xff] %v7972
          %8365 = vst [vmem:[%s1031 + $0x4e8] sm:$0xff] %v7973
          %8366 = vst [vmem:[%s1031 + $0x4f0] sm:$0xff] %v7974
          %8367 = vst [vmem:[%s1031 + $0x4f8] sm:$0xff] %v7975
          %8368 = vst [vmem:[%s1031 + $0x500] sm:$0xff] %v7976
          %8369 = vst [vmem:[%s1031 + $0x508] sm:$0xff] %v7977
          %8370 = vst [vmem:[%s1031 + $0x510] sm:$0xff] %v7978
          %8371 = vst [vmem:[%s1031 + $0x518] sm:$0xff] %v7979
          %8372 = vst [vmem:[%s1031 + $0x520] sm:$0xff] %v7980
          %8373 = vst [vmem:[%s1031 + $0x528] sm:$0xff] %v7981
          %8374 = vst [vmem:[%s1031 + $0x530] sm:$0xff] %v7982
          %8375 = vst [vmem:[%s1031 + $0x538] sm:$0xff] %v7983
          %8376 = vst [vmem:[%s1031 + $0x540] sm:$0xff] %v7984
          %8377 = vst [vmem:[%s1031 + $0x548] sm:$0xff] %v7985
          %8378 = vst [vmem:[%s1031 + $0x550] sm:$0xff] %v7986
          %8379 = vst [vmem:[%s1031 + $0x558] sm:$0xff] %v7987
          %8380 = vst [vmem:[%s1031 + $0x560] sm:$0xff] %v7988
          %8381 = vst [vmem:[%s1031 + $0x568] sm:$0xff] %v7989
          %8382 = vst [vmem:[%s1031 + $0x570] sm:$0xff] %v7990
          %8383 = vst [vmem:[%s1031 + $0x578] sm:$0xff] %v7991
          %8384 = vst [vmem:[%s1031 + $0x580] sm:$0xff] %v7992
          %8385 = vst [vmem:[%s1031 + $0x588] sm:$0xff] %v7993
          %8386 = vst [vmem:[%s1031 + $0x590] sm:$0xff] %v7994
          %8387 = vst [vmem:[%s1031 + $0x598] sm:$0xff] %v7995
          %8388 = vst [vmem:[%s1031 + $0x5a0] sm:$0xff] %v7996
          %8389 = vst [vmem:[%s1031 + $0x5a8] sm:$0xff] %v7997
          %8390 = vst [vmem:[%s1031 + $0x5b0] sm:$0xff] %v7998
          %8391 = vst [vmem:[%s1031 + $0x5b8] sm:$0xff] %v7999
          %8392 = vst [vmem:[%s1031 + $0x5c0] sm:$0xff] %v8000
          %8393 = vst [vmem:[%s1031 + $0x5c8] sm:$0xff] %v8001
          %8394 = vst [vmem:[%s1031 + $0x5d0] sm:$0xff] %v8002
          %8395 = vst [vmem:[%s1031 + $0x5d8] sm:$0xff] %v8003
          %8396 = vst [vmem:[%s1031 + $0x5e0] sm:$0xff] %v8004
          %8397 = vst [vmem:[%s1031 + $0x5e8] sm:$0xff] %v8005
          %8398 = vst [vmem:[%s1031 + $0x5f0] sm:$0xff] %v8006
          %8399 = vst [vmem:[%s1031 + $0x5f8] sm:$0xff] %v8007
          %8400 = vst [vmem:[%s1031 + $0x600] sm:$0xff] %v8008
          %8401 = vst [vmem:[%s1031 + $0x608] sm:$0xff] %v8009
          %8402 = vst [vmem:[%s1031 + $0x610] sm:$0xff] %v8010
          %8403 = vst [vmem:[%s1031 + $0x618] sm:$0xff] %v8011
          %8404 = vst [vmem:[%s1031 + $0x620] sm:$0xff] %v8012
          %8405 = vst [vmem:[%s1031 + $0x628] sm:$0xff] %v8013
          %8406 = vst [vmem:[%s1031 + $0x630] sm:$0xff] %v8014
          %8407 = vst [vmem:[%s1031 + $0x638] sm:$0xff] %v8015
          %8408 = vst [vmem:[%s1031 + $0x640] sm:$0xff] %v8016
          %8409 = vst [vmem:[%s1031 + $0x648] sm:$0xff] %v8017
          %8410 = vst [vmem:[%s1031 + $0x650] sm:$0xff] %v8018
          %8411 = vst [vmem:[%s1031 + $0x658] sm:$0xff] %v8019
          %8412 = vst [vmem:[%s1031 + $0x660] sm:$0xff] %v8020
          %8413 = vst [vmem:[%s1031 + $0x668] sm:$0xff] %v8021
          %8414 = vst [vmem:[%s1031 + $0x670] sm:$0xff] %v8022
          %8415 = vst [vmem:[%s1031 + $0x678] sm:$0xff] %v8023
          %8416 = vst [vmem:[%s1031 + $0x680] sm:$0xff] %v8024
          %8417 = vst [vmem:[%s1031 + $0x688] sm:$0xff] %v8025
          %8418 = vst [vmem:[%s1031 + $0x690] sm:$0xff] %v8026
          %8419 = vst [vmem:[%s1031 + $0x698] sm:$0xff] %v8027
          %8420 = vst [vmem:[%s1031 + $0x6a0] sm:$0xff] %v8028
          %8421 = vst [vmem:[%s1031 + $0x6a8] sm:$0xff] %v8029
          %8422 = vst [vmem:[%s1031 + $0x6b0] sm:$0xff] %v8030
          %8423 = vst [vmem:[%s1031 + $0x6b8] sm:$0xff] %v8031
          %8424 = vst [vmem:[%s1031 + $0x6c0] sm:$0xff] %v8032
          %8425 = vst [vmem:[%s1031 + $0x6c8] sm:$0xff] %v8033
          %8426 = vst [vmem:[%s1031 + $0x6d0] sm:$0xff] %v8034
          %8427 = vst [vmem:[%s1031 + $0x6d8] sm:$0xff] %v8035
          %8428 = vst [vmem:[%s1031 + $0x6e0] sm:$0xff] %v8036
          %8429 = vst [vmem:[%s1031 + $0x6e8] sm:$0xff] %v8037
          %8430 = vst [vmem:[%s1031 + $0x6f0] sm:$0xff] %v8038
          %8431 = vst [vmem:[%s1031 + $0x6f8] sm:$0xff] %v8039
          %8432 = vst [vmem:[%s1031 + $0x700] sm:$0xff] %v8040
          %8433 = vst [vmem:[%s1031 + $0x708] sm:$0xff] %v8041
          %8434 = vst [vmem:[%s1031 + $0x710] sm:$0xff] %v8042
          %8435 = vst [vmem:[%s1031 + $0x718] sm:$0xff] %v8043
          %8436 = vst [vmem:[%s1031 + $0x720] sm:$0xff] %v8044
          %8437 = vst [vmem:[%s1031 + $0x728] sm:$0xff] %v8045
          %8438 = vst [vmem:[%s1031 + $0x730] sm:$0xff] %v8046
          %8439 = vst [vmem:[%s1031 + $0x738] sm:$0xff] %v8047
          %8440 = vst [vmem:[%s1031 + $0x740] sm:$0xff] %v8048
          %8441 = vst [vmem:[%s1031 + $0x748] sm:$0xff] %v8049
          %8442 = vst [vmem:[%s1031 + $0x750] sm:$0xff] %v8050
          %8443 = vst [vmem:[%s1031 + $0x758] sm:$0xff] %v8051
          %8444 = vst [vmem:[%s1031 + $0x760] sm:$0xff] %v8052
          %8445 = vst [vmem:[%s1031 + $0x768] sm:$0xff] %v8053
          %8446 = vst [vmem:[%s1031 + $0x770] sm:$0xff] %v8054
          %8447 = vst [vmem:[%s1031 + $0x778] sm:$0xff] %v8055
          %8448 = vst [vmem:[%s1031 + $0x780] sm:$0xff] %v8056
          %8449 = vst [vmem:[%s1031 + $0x788] sm:$0xff] %v8057
          %8450 = vst [vmem:[%s1031 + $0x790] sm:$0xff] %v8058
          %8451 = vst [vmem:[%s1031 + $0x798] sm:$0xff] %v8059
          %8452 = vst [vmem:[%s1031 + $0x7a0] sm:$0xff] %v8060
          %8453 = vst [vmem:[%s1031 + $0x7a8] sm:$0xff] %v8061
          %8454 = vst [vmem:[%s1031 + $0x7b0] sm:$0xff] %v8062
          %8455 = vst [vmem:[%s1031 + $0x7b8] sm:$0xff] %v8063
          %8456 = vst [vmem:[%s1031 + $0x7c0] sm:$0xff] %v8064
          %8457 = vst [vmem:[%s1031 + $0x7c8] sm:$0xff] %v8065
          %8458 = vst [vmem:[%s1031 + $0x7d0] sm:$0xff] %v8066
          %8459 = vst [vmem:[%s1031 + $0x7d8] sm:$0xff] %v8067
          %8460 = vst [vmem:[%s1031 + $0x7e0] sm:$0xff] %v8068
          %8461 = vst [vmem:[%s1031 + $0x7e8] sm:$0xff] %v8069
          %8462 = vst [vmem:[%s1031 + $0x7f0] sm:$0xff] %v8070
          %8463 = vst [vmem:[%s1031 + $0x7f8] sm:$0xff] %v8071
          %8464 = vst [vmem:[%s1031 + $0x800] sm:$0xff] %v8072
          %8465 = vst [vmem:[%s1031 + $0x808] sm:$0xff] %v8073
          %8466 = vst [vmem:[%s1031 + $0x810] sm:$0xff] %v8074
          %8467 = vst [vmem:[%s1031 + $0x818] sm:$0xff] %v8075
          %8468 = vst [vmem:[%s1031 + $0x820] sm:$0xff] %v8076
          %8469 = vst [vmem:[%s1031 + $0x828] sm:$0xff] %v8077
          %8470 = vst [vmem:[%s1031 + $0x830] sm:$0xff] %v8078
          %8471 = vst [vmem:[%s1031 + $0x838] sm:$0xff] %v8079
          %8472 = vst [vmem:[%s1031 + $0x840] sm:$0xff] %v8080
          %8473 = vst [vmem:[%s1031 + $0x848] sm:$0xff] %v8081
          %8474 = vst [vmem:[%s1031 + $0x850] sm:$0xff] %v8082
          %8475 = vst [vmem:[%s1031 + $0x858] sm:$0xff] %v8083
          %8476 = vst [vmem:[%s1031 + $0x860] sm:$0xff] %v8084
          %8477 = vst [vmem:[%s1031 + $0x868] sm:$0xff] %v8085
          %8478 = vst [vmem:[%s1031 + $0x870] sm:$0xff] %v8086
          %8479 = vst [vmem:[%s1031 + $0x878] sm:$0xff] %v8087
          %8480 = vst [vmem:[%s1031 + $0x880] sm:$0xff] %v8088
          %8481 = vst [vmem:[%s1031 + $0x888] sm:$0xff] %v8089
          %8482 = vst [vmem:[%s1031 + $0x890] sm:$0xff] %v8090
          %8483 = vst [vmem:[%s1031 + $0x898] sm:$0xff] %v8091
          %8484 = vst [vmem:[%s1031 + $0x8a0] sm:$0xff] %v8092
          %8485 = vst [vmem:[%s1031 + $0x8a8] sm:$0xff] %v8093
          %8486 = vst [vmem:[%s1031 + $0x8b0] sm:$0xff] %v8094
          %8487 = vst [vmem:[%s1031 + $0x8b8] sm:$0xff] %v8095
          %8488 = vst [vmem:[%s1031 + $0x8c0] sm:$0xff] %v8096
          %8489 = vst [vmem:[%s1031 + $0x8c8] sm:$0xff] %v8097
          %8490 = vst [vmem:[%s1031 + $0x8d0] sm:$0xff] %v8098
          %8491 = vst [vmem:[%s1031 + $0x8d8] sm:$0xff] %v8099
          %8492 = vst [vmem:[%s1031 + $0x8e0] sm:$0xff] %v8100
          %8493 = vst [vmem:[%s1031 + $0x8e8] sm:$0xff] %v8101
          %8494 = vst [vmem:[%s1031 + $0x8f0] sm:$0xff] %v8102
          %8495 = vst [vmem:[%s1031 + $0x8f8] sm:$0xff] %v8103
          %8496 = vst [vmem:[%s1031 + $0x900] sm:$0xff] %v8104
          %8497 = vst [vmem:[%s1031 + $0x908] sm:$0xff] %v8105
          %8498 = vst [vmem:[%s1031 + $0x910] sm:$0xff] %v8106
          %8499 = vst [vmem:[%s1031 + $0x918] sm:$0xff] %v8107
          %8500 = vst [vmem:[%s1031 + $0x920] sm:$0xff] %v8108
          %8501 = vst [vmem:[%s1031 + $0x928] sm:$0xff] %v8109
          %8502 = vst [vmem:[%s1031 + $0x930] sm:$0xff] %v8110
          %8503 = vst [vmem:[%s1031 + $0x938] sm:$0xff] %v8111
          %8504 = vst [vmem:[%s1031 + $0x940] sm:$0xff] %v8112
          %8505 = vst [vmem:[%s1031 + $0x948] sm:$0xff] %v8113
          %8506 = vst [vmem:[%s1031 + $0x950] sm:$0xff] %v8114
          %8507 = vst [vmem:[%s1031 + $0x958] sm:$0xff] %v8115
          %8508 = vst [vmem:[%s1031 + $0x960] sm:$0xff] %v8116
          %8509 = vst [vmem:[%s1031 + $0x968] sm:$0xff] %v8117
          %8510 = vst [vmem:[%s1031 + $0x970] sm:$0xff] %v8118
          %8511 = vst [vmem:[%s1031 + $0x978] sm:$0xff] %v8119
          %8512 = vst [vmem:[%s1031 + $0x980] sm:$0xff] %v8120
          %8513 = vst [vmem:[%s1031 + $0x988] sm:$0xff] %v8121
          %8514 = vst [vmem:[%s1031 + $0x990] sm:$0xff] %v8122
          %8515 = vst [vmem:[%s1031 + $0x998] sm:$0xff] %v8123
          %8516 = vst [vmem:[%s1031 + $0x9a0] sm:$0xff] %v8124
          %8517 = vst [vmem:[%s1031 + $0x9a8] sm:$0xff] %v8125
          %8518 = vst [vmem:[%s1031 + $0x9b0] sm:$0xff] %v8126
          %8519 = vst [vmem:[%s1031 + $0x9b8] sm:$0xff] %v8127
          %8520 = vst [vmem:[%s1031 + $0x9c0] sm:$0xff] %v8128
          %8521 = vst [vmem:[%s1031 + $0x9c8] sm:$0xff] %v8129
          %8522 = vst [vmem:[%s1031 + $0x9d0] sm:$0xff] %v8130
          %8523 = vst [vmem:[%s1031 + $0x9d8] sm:$0xff] %v8131
          %8524 = vst [vmem:[%s1031 + $0x9e0] sm:$0xff] %v8132
          %8525 = vst [vmem:[%s1031 + $0x9e8] sm:$0xff] %v8133
          %8526 = vst [vmem:[%s1031 + $0x9f0] sm:$0xff] %v8134
          %8527 = vst [vmem:[%s1031 + $0x9f8] sm:$0xff] %v8135
          %8528 = vst [vmem:[%s1031 + $0xa00] sm:$0xff] %v8136
          %8529 = vst [vmem:[%s1031 + $0xa08] sm:$0xff] %v8137
          %8530 = vst [vmem:[%s1031 + $0xa10] sm:$0xff] %v8138
          %8531 = vst [vmem:[%s1031 + $0xa18] sm:$0xff] %v8139
          %8532 = vst [vmem:[%s1031 + $0xa20] sm:$0xff] %v8140
          %8533 = vst [vmem:[%s1031 + $0xa28] sm:$0xff] %v8141
          %8534 = vst [vmem:[%s1031 + $0xa30] sm:$0xff] %v8142
          %8535 = vst [vmem:[%s1031 + $0xa38] sm:$0xff] %v8143
          %8536 = vst [vmem:[%s1031 + $0xa40] sm:$0xff] %v8144
          %8537 = vst [vmem:[%s1031 + $0xa48] sm:$0xff] %v8145
          %8538 = vst [vmem:[%s1031 + $0xa50] sm:$0xff] %v8146
          %8539 = vst [vmem:[%s1031 + $0xa58] sm:$0xff] %v8147
          %8540 = vst [vmem:[%s1031 + $0xa60] sm:$0xff] %v8148
          %8541 = vst [vmem:[%s1031 + $0xa68] sm:$0xff] %v8149
          %8542 = vst [vmem:[%s1031 + $0xa70] sm:$0xff] %v8150
          %8543 = vst [vmem:[%s1031 + $0xa78] sm:$0xff] %v8151
          %8544 = vst [vmem:[%s1031 + $0xa80] sm:$0xff] %v8152
          %8545 = vst [vmem:[%s1031 + $0xa88] sm:$0xff] %v8153
          %8546 = vst [vmem:[%s1031 + $0xa90] sm:$0xff] %v8154
          %8547 = vst [vmem:[%s1031 + $0xa98] sm:$0xff] %v8155
          %8548 = vst [vmem:[%s1031 + $0xaa0] sm:$0xff] %v8156
          %8549 = vst [vmem:[%s1031 + $0xaa8] sm:$0xff] %v8157
          %8550 = vst [vmem:[%s1031 + $0xab0] sm:$0xff] %v8158
          %8551 = vst [vmem:[%s1031 + $0xab8] sm:$0xff] %v8159
          %8552 = vst [vmem:[%s1031 + $0xac0] sm:$0xff] %v8160
          %8553 = vst [vmem:[%s1031 + $0xac8] sm:$0xff] %v8161
          %8554 = vst [vmem:[%s1031 + $0xad0] sm:$0xff] %v8162
          %8555 = vst [vmem:[%s1031 + $0xad8] sm:$0xff] %v8163
          %8556 = vst [vmem:[%s1031 + $0xae0] sm:$0xff] %v8164
          %8557 = vst [vmem:[%s1031 + $0xae8] sm:$0xff] %v8165
          %8558 = vst [vmem:[%s1031 + $0xaf0] sm:$0xff] %v8166
          %8559 = vst [vmem:[%s1031 + $0xaf8] sm:$0xff] %v8167
          %8560 = vst [vmem:[%s1031 + $0xb00] sm:$0xff] %v8168
          %8561 = vst [vmem:[%s1031 + $0xb08] sm:$0xff] %v8169
          %8562 = vst [vmem:[%s1031 + $0xb10] sm:$0xff] %v8170
          %8563 = vst [vmem:[%s1031 + $0xb18] sm:$0xff] %v8171
          %8564 = vst [vmem:[%s1031 + $0xb20] sm:$0xff] %v8172
          %8565 = vst [vmem:[%s1031 + $0xb28] sm:$0xff] %v8173
          %8566 = vst [vmem:[%s1031 + $0xb30] sm:$0xff] %v8174
          %8567 = vst [vmem:[%s1031 + $0xb38] sm:$0xff] %v8175
          %8568 = vst [vmem:[%s1031 + $0xb40] sm:$0xff] %v8176
          %8569 = vst [vmem:[%s1031 + $0xb48] sm:$0xff] %v8177
          %8570 = vst [vmem:[%s1031 + $0xb50] sm:$0xff] %v8178
          %8571 = vst [vmem:[%s1031 + $0xb58] sm:$0xff] %v8179
          %8572 = vst [vmem:[%s1031 + $0xb60] sm:$0xff] %v8180
          %8573 = vst [vmem:[%s1031 + $0xb68] sm:$0xff] %v8181
          %8574 = vst [vmem:[%s1031 + $0xb70] sm:$0xff] %v8182
          %8575 = vst [vmem:[%s1031 + $0xb78] sm:$0xff] %v8183
          %8576 = vst [vmem:[%s1031 + $0xb80] sm:$0xff] %v8184
          %8577 = vst [vmem:[%s1031 + $0xb88] sm:$0xff] %v8185
          %8578 = vst [vmem:[%s1031 + $0xb90] sm:$0xff] %v8186
          %8579 = vst [vmem:[%s1031 + $0xb98] sm:$0xff] %v8187
          %8580 = vst [vmem:[%s1031 + $0xba0] sm:$0xff] %v8188
          %8581 = vst [vmem:[%s1031 + $0xba8] sm:$0xff] %v8189
          %8582 = vst [vmem:[%s1031 + $0xbb0] sm:$0xff] %v8190
          %8583 = vst [vmem:[%s1031 + $0xbb8] sm:$0xff] %v8191
          %8584 = vst [vmem:[%s1031 + $0xbc0] sm:$0xff] %v8192
          %8585 = vst [vmem:[%s1031 + $0xbc8] sm:$0xff] %v8193
          %8586 = vst [vmem:[%s1031 + $0xbd0] sm:$0xff] %v8194
          %8587 = vst [vmem:[%s1031 + $0xbd8] sm:$0xff] %v8195
          %8588 = vst [vmem:[%s1031 + $0xbe0] sm:$0xff] %v8196
          %8589 = vst [vmem:[%s1031 + $0xbe8] sm:$0xff] %v8197
          %8590 = vst [vmem:[%s1031 + $0xbf0] sm:$0xff] %v8198
          %8591 = vst [vmem:[%s1031 + $0xbf8] sm:$0xff] %v8199
          %8592 = vst [vmem:[%s1031 + $0xc00] sm:$0xff] %v8200
          %8593 = vst [vmem:[%s1031 + $0xc08] sm:$0xff] %v8201
          %8594 = vst [vmem:[%s1031 + $0xc10] sm:$0xff] %v8202
          %8595 = vst [vmem:[%s1031 + $0xc18] sm:$0xff] %v8203
          %8596 = vst [vmem:[%s1031 + $0xc20] sm:$0xff] %v8204
          %8597 = vst [vmem:[%s1031 + $0xc28] sm:$0xff] %v8205
          %8598 = vst [vmem:[%s1031 + $0xc30] sm:$0xff] %v8206
          %8599 = vst [vmem:[%s1031 + $0xc38] sm:$0xff] %v8207
          %v8600 = vld [vmem:[%s3] sm:$0xff]
          %v8602 = vcombine.high %v8600, %v8600
          %v8604 = vunpack.c.l.s4 1983009808
          %v8605 = vunpack.c.0.s8 %v8604
          %v8606 = vlaneseq
          %v8607 = vshrl.u32 %v8606, 7
          %v8608 = vsub.s32 %v8605, %v8607
          %v8609 = vrot.slane %v8600, %v8608
          %v8611 = vunpack.c.l.s4 1983009808
          %v8612 = vunpack.c.0.s8 %v8611
          %v8613 = vlaneseq
          %v8614 = vshrl.u32 %v8613, 7
          %v8615 = vsub.s32 %v8612, %v8614
          %v8616 = vrot.slane %v8602, %v8615
          %v8617 = vcombine.high %v8609, %v8609
          %v8618 = vcombine.high %v8616, %v8616
          %vm8622 = vcmask 64512
          %v8623 = vsel %vm8622, %v8618, 0
          %8625 = vmatprep.subr.mxu0 %v7817
          %8626 = vmatpush1.msra.mxu0 %v7816
          %8627 = vmatprep.subr.mxu0 %v7825
          %8628 = vmatpush1.msra.mxu0 %v7824
          %8629 = vmatprep.subr.mxu0 %v7833
          %8630 = vmatpush1.msra.mxu0 %v7832
          %8631 = vmatprep.subr.mxu0 %v7841
          %8632 = vmatpush1.msra.mxu0 %v7840
          %8633 = vmatprep.subr.mxu0 %v7849
          %8634 = vmatpush1.msra.mxu0 %v7848
          %8635 = vmatprep.subr.mxu0 %v7857
          %8636 = vmatpush1.msra.mxu0 %v7856
          %8637 = vmatprep.subr.mxu0 %v7865
          %8638 = vmatpush1.msra.mxu0 %v7864
          %8639 = vmatprep.subr.mxu0 %v7873
          %8640 = vmatpush1.msra.mxu0 %v7872
          %8641 = vmatprep.subr.mxu0 %v7881
          %8642 = vmatpush1.msra.mxu0 %v7880
          %8643 = vmatprep.subr.mxu0 %v7889
          %8644 = vmatpush1.msra.mxu0 %v7888
          %8645 = vmatprep.subr.mxu0 %v7897
          %8646 = vmatpush1.msra.mxu0 %v7896
          %8647 = vmatprep.subr.mxu0 %v7905
          %8648 = vmatpush1.msra.mxu0 %v7904
          %8649 = vmatprep.subr.mxu0 %v7913
          %8650 = vmatpush1.msra.mxu0 %v7912
          %8651 = vmatprep.subr.mxu0 %v7921
          %8652 = vmatpush1.msra.mxu0 %v7920
          %8653 = vmatprep.subr.mxu0 %v7929
          %8654 = vmatpush1.msra.mxu0 %v7928
          %8655 = vmatprep.subr.mxu0 %v7937
          %8656 = vmatpush1.msra.mxu0 %v7936
          %8657 = vmatprep.subr.mxu0 %v7945
          %8658 = vmatpush1.msra.mxu0 %v7944
          %8659 = vmatprep.subr.mxu0 %v7953
          %8660 = vmatpush1.msra.mxu0 %v7952
          %8661 = vmatprep.subr.mxu0 %v7961
          %8662 = vmatpush1.msra.mxu0 %v7960
          %8663 = vmatprep.subr.mxu0 %v7969
          %8664 = vmatpush1.msra.mxu0 %v7968
          %8665 = vmatprep.subr.mxu0 %v7977
          %8666 = vmatpush1.msra.mxu0 %v7976
          %8667 = vmatprep.subr.mxu0 %v7985
          %8668 = vmatpush1.msra.mxu0 %v7984
          %8669 = vmatprep.subr.mxu0 %v7993
          %8670 = vmatpush1.msra.mxu0 %v7992
          %8671 = vmatprep.subr.mxu0 %v8001
          %8672 = vmatpush1.msra.mxu0 %v8000
          %8673 = vmatprep.subr.mxu0 %v8009
          %8674 = vmatpush1.msra.mxu0 %v8008
          %8675 = vmatprep.subr.mxu0 %v8017
          %8676 = vmatpush1.msra.mxu0 %v8016
          %8677 = vmatprep.subr.mxu0 %v8025
          %8678 = vmatpush1.msra.mxu0 %v8024
          %8679 = vmatprep.subr.mxu0 %v8033
          %8680 = vmatpush1.msra.mxu0 %v8032
          %8681 = vmatprep.subr.mxu0 %v8041
          %8682 = vmatpush1.msra.mxu0 %v8040
          %8683 = vmatprep.subr.mxu0 %v8049
          %8684 = vmatpush1.msra.mxu0 %v8048
          %8685 = vmatprep.subr.mxu0 %v8057
          %8686 = vmatpush1.msra.mxu0 %v8056
          %8687 = vmatprep.subr.mxu0 %v8065
          %8688 = vmatpush1.msra.mxu0 %v8064
          %8689 = vmatprep.mubr.f32.mxu0 %v8617
          %8690 = vmatmul.mubr.f32.gmra.mrb[0].mxu0 %v8609
          %v8691 = vpop.f32.mrb[0].mxu0
          %v8692 = vadd.f32 0.0, %v8691
          %v8693 = vpop.f32.mrb[0].mxu0
          %v8694 = vadd.f32 0.0, %v8693
          %8695 = vdwg.mxu0
          %8696 = vmatprep.subr.mxu0 %v8073
          %8697 = vmatpush1.msra.mxu0 %v8072
          %8698 = vmatprep.subr.mxu0 %v8081
          %8699 = vmatpush1.msra.mxu0 %v8080
          %8700 = vmatprep.subr.mxu0 %v8089
          %8701 = vmatpush1.msra.mxu0 %v8088
          %8702 = vmatprep.subr.mxu0 %v8097
          %8703 = vmatpush1.msra.mxu0 %v8096
          %8704 = vmatprep.subr.mxu0 %v8105
          %8705 = vmatpush1.msra.mxu0 %v8104
          %8706 = vmatprep.subr.mxu0 %v8113
          %8707 = vmatpush1.msra.mxu0 %v8112
          %8708 = vmatprep.subr.mxu0 %v8121
          %8709 = vmatpush1.msra.mxu0 %v8120
          %8710 = vmatprep.subr.mxu0 %v8129
          %8711 = vmatpush1.msra.mxu0 %v8128
          %8712 = vmatprep.subr.mxu0 %v8137
          %8713 = vmatpush1.msra.mxu0 %v8136
          %8714 = vmatprep.subr.mxu0 %v8145
          %8715 = vmatpush1.msra.mxu0 %v8144
          %8716 = vmatprep.subr.mxu0 %v8153
          %8717 = vmatpush1.msra.mxu0 %v8152
          %8718 = vmatprep.subr.mxu0 %v8161
          %8719 = vmatpush1.msra.mxu0 %v8160
          %8720 = vmatprep.subr.mxu0 %v8169
          %8721 = vmatpush1.msra.mxu0 %v8168
          %8722 = vmatprep.subr.mxu0 %v8177
          %8723 = vmatpush1.msra.mxu0 %v8176
          %8724 = vmatprep.subr.mxu0 %v8185
          %8725 = vmatpush1.msra.mxu0 %v8184
          %8726 = vmatprep.subr.mxu0 %v8193
          %8727 = vmatpush1.msra.mxu0 %v8192
          %8728 = vmatprep.subr.mxu0 %v8201
          %8729 = vmatpush1.msra.mxu0 %v8200
          %8730 = vmatprep.subr.mxu0 0.0
          %8731 = vmatpush1.msra.mxu0 0.0
          %8732 = vmatprep.subr.mxu0 0.0
          %8733 = vmatpush1.msra.mxu0 0.0
          %8734 = vmatprep.subr.mxu0 0.0
          %8735 = vmatpush1.msra.mxu0 0.0
          %8736 = vmatprep.subr.mxu0 0.0
          %8737 = vmatpush1.msra.mxu0 0.0
          %8738 = vmatprep.subr.mxu0 0.0
          %8739 = vmatpush1.msra.mxu0 0.0
          %8740 = vmatprep.subr.mxu0 0.0
          %8741 = vmatpush1.msra.mxu0 0.0
          %8742 = vmatprep.subr.mxu0 0.0
          %8743 = vmatpush1.msra.mxu0 0.0
          %8744 = vmatprep.subr.mxu0 0.0
          %8745 = vmatpush1.msra.mxu0 0.0
          %8746 = vmatprep.subr.mxu0 0.0
          %8747 = vmatpush1.msra.mxu0 0.0
          %8748 = vmatprep.subr.mxu0 0.0
          %8749 = vmatpush1.msra.mxu0 0.0
          %8750 = vmatprep.subr.mxu0 0.0
          %8751 = vmatpush1.msra.mxu0 0.0
          %8752 = vmatprep.subr.mxu0 0.0
          %8753 = vmatpush1.msra.mxu0 0.0
          %8754 = vmatprep.subr.mxu0 0.0
          %8755 = vmatpush1.msra.mxu0 0.0
          %8756 = vmatprep.subr.mxu0 0.0
          %8757 = vmatpush1.msra.mxu0 0.0
          %8758 = vmatprep.subr.mxu0 0.0
          %8759 = vmatpush1.msra.mxu0 0.0
          %8760 = vmatprep.mubr.f32.mxu0 %v8623
          %8761 = vmatmul.mubr.f32.gmra.mrb[0].mxu0 %v8616
          %v8762 = vpop.f32.mrb[0].mxu0
          %v8763 = vadd.f32 %v8692, %v8762
          %v8764 = vpop.f32.mrb[0].mxu0
          %v8765 = vadd.f32 %v8694, %v8764
          %8766 = vdwg.mxu0
          %8767 = vmatprep.subr.mxu0 %v7819
          %8768 = vmatpush1.msra.mxu0 %v7818
          %8769 = vmatprep.subr.mxu0 %v7827
          %8770 = vmatpush1.msra.mxu0 %v7826
          %8771 = vmatprep.subr.mxu0 %v7835
          %8772 = vmatpush1.msra.mxu0 %v7834
          %8773 = vmatprep.subr.mxu0 %v7843
          %8774 = vmatpush1.msra.mxu0 %v7842
          %8775 = vmatprep.subr.mxu0 %v7851
          %8776 = vmatpush1.msra.mxu0 %v7850
          %8777 = vmatprep.subr.mxu0 %v7859
          %8778 = vmatpush1.msra.mxu0 %v7858
          %8779 = vmatprep.subr.mxu0 %v7867
          %8780 = vmatpush1.msra.mxu0 %v7866
          %8781 = vmatprep.subr.mxu0 %v7875
          %8782 = vmatpush1.msra.mxu0 %v7874
          %8783 = vmatprep.subr.mxu0 %v7883
          %8784 = vmatpush1.msra.mxu0 %v7882
          %8785 = vmatprep.subr.mxu0 %v7891
          %8786 = vmatpush1.msra.mxu0 %v7890
          %8787 = vmatprep.subr.mxu0 %v7899
          %8788 = vmatpush1.msra.mxu0 %v7898
          %8789 = vmatprep.subr.mxu0 %v7907
          %8790 = vmatpush1.msra.mxu0 %v7906
          %8791 = vmatprep.subr.mxu0 %v7915
          %8792 = vmatpush1.msra.mxu0 %v7914
          %8793 = vmatprep.subr.mxu0 %v7923
          %8794 = vmatpush1.msra.mxu0 %v7922
          %8795 = vmatprep.subr.mxu0 %v7931
          %8796 = vmatpush1.msra.mxu0 %v7930
          %8797 = vmatprep.subr.mxu0 %v7939
          %8798 = vmatpush1.msra.mxu0 %v7938
          %8799 = vmatprep.subr.mxu0 %v7947
          %8800 = vmatpush1.msra.mxu0 %v7946
          %8801 = vmatprep.subr.mxu0 %v7955
          %8802 = vmatpush1.msra.mxu0 %v7954
          %8803 = vmatprep.subr.mxu0 %v7963
          %8804 = vmatpush1.msra.mxu0 %v7962
          %8805 = vmatprep.subr.mxu0 %v7971
          %8806 = vmatpush1.msra.mxu0 %v7970
          %8807 = vmatprep.subr.mxu0 %v7979
          %8808 = vmatpush1.msra.mxu0 %v7978
          %8809 = vmatprep.subr.mxu0 %v7987
          %8810 = vmatpush1.msra.mxu0 %v7986
          %8811 = vmatprep.subr.mxu0 %v7995
          %8812 = vmatpush1.msra.mxu0 %v7994
          %8813 = vmatprep.subr.mxu0 %v8003
          %8814 = vmatpush1.msra.mxu0 %v8002
          %8815 = vmatprep.subr.mxu0 %v8011
          %8816 = vmatpush1.msra.mxu0 %v8010
          %8817 = vmatprep.subr.mxu0 %v8019
          %8818 = vmatpush1.msra.mxu0 %v8018
          %8819 = vmatprep.subr.mxu0 %v8027
          %8820 = vmatpush1.msra.mxu0 %v8026
          %8821 = vmatprep.subr.mxu0 %v8035
          %8822 = vmatpush1.msra.mxu0 %v8034
          %8823 = vmatprep.subr.mxu0 %v8043
          %8824 = vmatpush1.msra.mxu0 %v8042
          %8825 = vmatprep.subr.mxu0 %v8051
          %8826 = vmatpush1.msra.mxu0 %v8050
          %8827 = vmatprep.subr.mxu0 %v8059
          %8828 = vmatpush1.msra.mxu0 %v8058
          %8829 = vmatprep.subr.mxu0 %v8067
          %8830 = vmatpush1.msra.mxu0 %v8066
          %8831 = vmatprep.mubr.f32.mxu0 %v8617
          %8832 = vmatmul.mubr.f32.gmra.mrb[0].mxu0 %v8609
          %v8833 = vpop.f32.mrb[0].mxu0
          %v8834 = vadd.f32 0.0, %v8833
          %v8835 = vpop.f32.mrb[0].mxu0
          %v8836 = vadd.f32 0.0, %v8835
          %8837 = vdwg.mxu0
          %8838 = vmatprep.subr.mxu0 %v8075
          %8839 = vmatpush1.msra.mxu0 %v8074
          %8840 = vmatprep.subr.mxu0 %v8083
          %8841 = vmatpush1.msra.mxu0 %v8082
          %8842 = vmatprep.subr.mxu0 %v8091
          %8843 = vmatpush1.msra.mxu0 %v8090
          %8844 = vmatprep.subr.mxu0 %v8099
          %8845 = vmatpush1.msra.mxu0 %v8098
          %8846 = vmatprep.subr.mxu0 %v8107
          %8847 = vmatpush1.msra.mxu0 %v8106
          %8848 = vmatprep.subr.mxu0 %v8115
          %8849 = vmatpush1.msra.mxu0 %v8114
          %8850 = vmatprep.subr.mxu0 %v8123
          %8851 = vmatpush1.msra.mxu0 %v8122
          %8852 = vmatprep.subr.mxu0 %v8131
          %8853 = vmatpush1.msra.mxu0 %v8130
          %8854 = vmatprep.subr.mxu0 %v8139
          %8855 = vmatpush1.msra.mxu0 %v8138
          %8856 = vmatprep.subr.mxu0 %v8147
          %8857 = vmatpush1.msra.mxu0 %v8146
          %8858 = vmatprep.subr.mxu0 %v8155
          %8859 = vmatpush1.msra.mxu0 %v8154
          %8860 = vmatprep.subr.mxu0 %v8163
          %8861 = vmatpush1.msra.mxu0 %v8162
          %8862 = vmatprep.subr.mxu0 %v8171
          %8863 = vmatpush1.msra.mxu0 %v8170
          %8864 = vmatprep.subr.mxu0 %v8179
          %8865 = vmatpush1.msra.mxu0 %v8178
          %8866 = vmatprep.subr.mxu0 %v8187
          %8867 = vmatpush1.msra.mxu0 %v8186
          %8868 = vmatprep.subr.mxu0 %v8195
          %8869 = vmatpush1.msra.mxu0 %v8194
          %8870 = vmatprep.subr.mxu0 %v8203
          %8871 = vmatpush1.msra.mxu0 %v8202
          %8872 = vmatprep.subr.mxu0 0.0
          %8873 = vmatpush1.msra.mxu0 0.0
          %8874 = vmatprep.subr.mxu0 0.0
          %8875 = vmatpush1.msra.mxu0 0.0
          %8876 = vmatprep.subr.mxu0 0.0
          %8877 = vmatpush1.msra.mxu0 0.0
          %8878 = vmatprep.subr.mxu0 0.0
          %8879 = vmatpush1.msra.mxu0 0.0
          %8880 = vmatprep.subr.mxu0 0.0
          %8881 = vmatpush1.msra.mxu0 0.0
          %8882 = vmatprep.subr.mxu0 0.0
          %8883 = vmatpush1.msra.mxu0 0.0
          %8884 = vmatprep.subr.mxu0 0.0
          %8885 = vmatpush1.msra.mxu0 0.0
          %8886 = vmatprep.subr.mxu0 0.0
          %8887 = vmatpush1.msra.mxu0 0.0
          %8888 = vmatprep.subr.mxu0 0.0
          %8889 = vmatpush1.msra.mxu0 0.0
          %8890 = vmatprep.subr.mxu0 0.0
          %8891 = vmatpush1.msra.mxu0 0.0
          %8892 = vmatprep.subr.mxu0 0.0
          %8893 = vmatpush1.msra.mxu0 0.0
          %8894 = vmatprep.subr.mxu0 0.0
          %8895 = vmatpush1.msra.mxu0 0.0
          %8896 = vmatprep.subr.mxu0 0.0
          %8897 = vmatpush1.msra.mxu0 0.0
          %8898 = vmatprep.subr.mxu0 0.0
          %8899 = vmatpush1.msra.mxu0 0.0
          %8900 = vmatprep.subr.mxu0 0.0
          %8901 = vmatpush1.msra.mxu0 0.0
          %8902 = vmatprep.mubr.f32.mxu0 %v8623
          %8903 = vmatmul.mubr.f32.gmra.mrb[0].mxu0 %v8616
          %v8904 = vpop.f32.mrb[0].mxu0
          %v8905 = vadd.f32 %v8834, %v8904
          %v8906 = vpop.f32.mrb[0].mxu0
          %v8907 = vadd.f32 %v8836, %v8906
          %8908 = vdwg.mxu0
          %8909 = vmatprep.subr.mxu0 %v7821
          %8910 = vmatpush1.msra.mxu0 %v7820
          %8911 = vmatprep.subr.mxu0 %v7829
          %8912 = vmatpush1.msra.mxu0 %v7828
          %8913 = vmatprep.subr.mxu0 %v7837
          %8914 = vmatpush1.msra.mxu0 %v7836
          %8915 = vmatprep.subr.mxu0 %v7845
          %8916 = vmatpush1.msra.mxu0 %v7844
          %8917 = vmatprep.subr.mxu0 %v7853
          %8918 = vmatpush1.msra.mxu0 %v7852
          %8919 = vmatprep.subr.mxu0 %v7861
          %8920 = vmatpush1.msra.mxu0 %v7860
          %8921 = vmatprep.subr.mxu0 %v7869
          %8922 = vmatpush1.msra.mxu0 %v7868
          %8923 = vmatprep.subr.mxu0 %v7877
          %8924 = vmatpush1.msra.mxu0 %v7876
          %8925 = vmatprep.subr.mxu0 %v7885
          %8926 = vmatpush1.msra.mxu0 %v7884
          %8927 = vmatprep.subr.mxu0 %v7893
          %8928 = vmatpush1.msra.mxu0 %v7892
          %8929 = vmatprep.subr.mxu0 %v7901
          %8930 = vmatpush1.msra.mxu0 %v7900
          %8931 = vmatprep.subr.mxu0 %v7909
          %8932 = vmatpush1.msra.mxu0 %v7908
          %8933 = vmatprep.subr.mxu0 %v7917
          %8934 = vmatpush1.msra.mxu0 %v7916
          %8935 = vmatprep.subr.mxu0 %v7925
          %8936 = vmatpush1.msra.mxu0 %v7924
          %8937 = vmatprep.subr.mxu0 %v7933
          %8938 = vmatpush1.msra.mxu0 %v7932
          %8939 = vmatprep.subr.mxu0 %v7941
          %8940 = vmatpush1.msra.mxu0 %v7940
          %8941 = vmatprep.subr.mxu0 %v7949
          %8942 = vmatpush1.msra.mxu0 %v7948
          %8943 = vmatprep.subr.mxu0 %v7957
          %8944 = vmatpush1.msra.mxu0 %v7956
          %8945 = vmatprep.subr.mxu0 %v7965
          %8946 = vmatpush1.msra.mxu0 %v7964
          %8947 = vmatprep.subr.mxu0 %v7973
          %8948 = vmatpush1.msra.mxu0 %v7972
          %8949 = vmatprep.subr.mxu0 %v7981
          %8950 = vmatpush1.msra.mxu0 %v7980
          %8951 = vmatprep.subr.mxu0 %v7989
          %8952 = vmatpush1.msra.mxu0 %v7988
          %8953 = vmatprep.subr.mxu0 %v7997
          %8954 = vmatpush1.msra.mxu0 %v7996
          %8955 = vmatprep.subr.mxu0 %v8005
          %8956 = vmatpush1.msra.mxu0 %v8004
          %8957 = vmatprep.subr.mxu0 %v8013
          %8958 = vmatpush1.msra.mxu0 %v8012
          %8959 = vmatprep.subr.mxu0 %v8021
          %8960 = vmatpush1.msra.mxu0 %v8020
          %8961 = vmatprep.subr.mxu0 %v8029
          %8962 = vmatpush1.msra.mxu0 %v8028
          %8963 = vmatprep.subr.mxu0 %v8037
          %8964 = vmatpush1.msra.mxu0 %v8036
          %8965 = vmatprep.subr.mxu0 %v8045
          %8966 = vmatpush1.msra.mxu0 %v8044
          %8967 = vmatprep.subr.mxu0 %v8053
          %8968 = vmatpush1.msra.mxu0 %v8052
          %8969 = vmatprep.subr.mxu0 %v8061
          %8970 = vmatpush1.msra.mxu0 %v8060
          %8971 = vmatprep.subr.mxu0 %v8069
          %8972 = vmatpush1.msra.mxu0 %v8068
          %8973 = vmatprep.mubr.f32.mxu0 %v8617
          %8974 = vmatmul.mubr.f32.gmra.mrb[0].mxu0 %v8609
          %v8975 = vpop.f32.mrb[0].mxu0
          %v8976 = vadd.f32 0.0, %v8975
          %v8977 = vpop.f32.mrb[0].mxu0
          %v8978 = vadd.f32 0.0, %v8977
          %8979 = vdwg.mxu0
          %8980 = vmatprep.subr.mxu0 %v8077
          %8981 = vmatpush1.msra.mxu0 %v8076
          %8982 = vmatprep.subr.mxu0 %v8085
          %8983 = vmatpush1.msra.mxu0 %v8084
          %8984 = vmatprep.subr.mxu0 %v8093
          %8985 = vmatpush1.msra.mxu0 %v8092
          %8986 = vmatprep.subr.mxu0 %v8101
          %8987 = vmatpush1.msra.mxu0 %v8100
          %8988 = vmatprep.subr.mxu0 %v8109
          %8989 = vmatpush1.msra.mxu0 %v8108
          %8990 = vmatprep.subr.mxu0 %v8117
          %8991 = vmatpush1.msra.mxu0 %v8116
          %8992 = vmatprep.subr.mxu0 %v8125
          %8993 = vmatpush1.msra.mxu0 %v8124
          %8994 = vmatprep.subr.mxu0 %v8133
          %8995 = vmatpush1.msra.mxu0 %v8132
          %8996 = vmatprep.subr.mxu0 %v8141
          %8997 = vmatpush1.msra.mxu0 %v8140
          %8998 = vmatprep.subr.mxu0 %v8149
          %8999 = vmatpush1.msra.mxu0 %v8148
          %9000 = vmatprep.subr.mxu0 %v8157
          %9001 = vmatpush1.msra.mxu0 %v8156
          %9002 = vmatprep.subr.mxu0 %v8165
          %9003 = vmatpush1.msra.mxu0 %v8164
          %9004 = vmatprep.subr.mxu0 %v8173
          %9005 = vmatpush1.msra.mxu0 %v8172
          %9006 = vmatprep.subr.mxu0 %v8181
          %9007 = vmatpush1.msra.mxu0 %v8180
          %9008 = vmatprep.subr.mxu0 %v8189
          %9009 = vmatpush1.msra.mxu0 %v8188
          %9010 = vmatprep.subr.mxu0 %v8197
          %9011 = vmatpush1.msra.mxu0 %v8196
          %9012 = vmatprep.subr.mxu0 %v8205
          %9013 = vmatpush1.msra.mxu0 %v8204
          %9014 = vmatprep.subr.mxu0 0.0
          %9015 = vmatpush1.msra.mxu0 0.0
          %9016 = vmatprep.subr.mxu0 0.0
          %9017 = vmatpush1.msra.mxu0 0.0
          %9018 = vmatprep.subr.mxu0 0.0
          %9019 = vmatpush1.msra.mxu0 0.0
          %9020 = vmatprep.subr.mxu0 0.0
          %9021 = vmatpush1.msra.mxu0 0.0
          %9022 = vmatprep.subr.mxu0 0.0
          %9023 = vmatpush1.msra.mxu0 0.0
          %9024 = vmatprep.subr.mxu0 0.0
          %9025 = vmatpush1.msra.mxu0 0.0
          %9026 = vmatprep.subr.mxu0 0.0
          %9027 = vmatpush1.msra.mxu0 0.0
          %9028 = vmatprep.subr.mxu0 0.0
          %9029 = vmatpush1.msra.mxu0 0.0
          %9030 = vmatprep.subr.mxu0 0.0
          %9031 = vmatpush1.msra.mxu0 0.0
          %9032 = vmatprep.subr.mxu0 0.0
          %9033 = vmatpush1.msra.mxu0 0.0
          %9034 = vmatprep.subr.mxu0 0.0
          %9035 = vmatpush1.msra.mxu0 0.0
          %9036 = vmatprep.subr.mxu0 0.0
          %9037 = vmatpush1.msra.mxu0 0.0
          %9038 = vmatprep.subr.mxu0 0.0
          %9039 = vmatpush1.msra.mxu0 0.0
          %9040 = vmatprep.subr.mxu0 0.0
          %9041 = vmatpush1.msra.mxu0 0.0
          %9042 = vmatprep.subr.mxu0 0.0
          %9043 = vmatpush1.msra.mxu0 0.0
          %9044 = vmatprep.mubr.f32.mxu0 %v8623
          %9045 = vmatmul.mubr.f32.gmra.mrb[0].mxu0 %v8616
          %v9046 = vpop.f32.mrb[0].mxu0
          %v9047 = vadd.f32 %v8976, %v9046
          %v9048 = vpop.f32.mrb[0].mxu0
          %v9049 = vadd.f32 %v8978, %v9048
          %9050 = vdwg.mxu0
          %9051 = vmatprep.subr.mxu0 %v7823
          %9052 = vmatpush1.msra.mxu0 %v7822
          %9053 = vmatprep.subr.mxu0 %v7831
          %9054 = vmatpush1.msra.mxu0 %v7830
          %9055 = vmatprep.subr.mxu0 %v7839
          %9056 = vmatpush1.msra.mxu0 %v7838
          %9057 = vmatprep.subr.mxu0 %v7847
          %9058 = vmatpush1.msra.mxu0 %v7846
          %9059 = vmatprep.subr.mxu0 %v7855
          %9060 = vmatpush1.msra.mxu0 %v7854
          %9061 = vmatprep.subr.mxu0 %v7863
          %9062 = vmatpush1.msra.mxu0 %v7862
          %9063 = vmatprep.subr.mxu0 %v7871
          %9064 = vmatpush1.msra.mxu0 %v7870
          %9065 = vmatprep.subr.mxu0 %v7879
          %9066 = vmatpush1.msra.mxu0 %v7878
          %9067 = vmatprep.subr.mxu0 %v7887
          %9068 = vmatpush1.msra.mxu0 %v7886
          %9069 = vmatprep.subr.mxu0 %v7895
          %9070 = vmatpush1.msra.mxu0 %v7894
          %9071 = vmatprep.subr.mxu0 %v7903
          %9072 = vmatpush1.msra.mxu0 %v7902
          %9073 = vmatprep.subr.mxu0 %v7911
          %9074 = vmatpush1.msra.mxu0 %v7910
          %9075 = vmatprep.subr.mxu0 %v7919
          %9076 = vmatpush1.msra.mxu0 %v7918
          %9077 = vmatprep.subr.mxu0 %v7927
          %9078 = vmatpush1.msra.mxu0 %v7926
          %9079 = vmatprep.subr.mxu0 %v7935
          %9080 = vmatpush1.msra.mxu0 %v7934
          %9081 = vmatprep.subr.mxu0 %v7943
          %9082 = vmatpush1.msra.mxu0 %v7942
          %9083 = vmatprep.subr.mxu0 %v7951
          %9084 = vmatpush1.msra.mxu0 %v7950
          %9085 = vmatprep.subr.mxu0 %v7959
          %9086 = vmatpush1.msra.mxu0 %v7958
          %9087 = vmatprep.subr.mxu0 %v7967
          %9088 = vmatpush1.msra.mxu0 %v7966
          %9089 = vmatprep.subr.mxu0 %v7975
          %9090 = vmatpush1.msra.mxu0 %v7974
          %9091 = vmatprep.subr.mxu0 %v7983
          %9092 = vmatpush1.msra.mxu0 %v7982
          %9093 = vmatprep.subr.mxu0 %v7991
          %9094 = vmatpush1.msra.mxu0 %v7990
          %9095 = vmatprep.subr.mxu0 %v7999
          %9096 = vmatpush1.msra.mxu0 %v7998
          %9097 = vmatprep.subr.mxu0 %v8007
          %9098 = vmatpush1.msra.mxu0 %v8006
          %9099 = vmatprep.subr.mxu0 %v8015
          %9100 = vmatpush1.msra.mxu0 %v8014
          %9101 = vmatprep.subr.mxu0 %v8023
          %9102 = vmatpush1.msra.mxu0 %v8022
          %9103 = vmatprep.subr.mxu0 %v8031
          %9104 = vmatpush1.msra.mxu0 %v8030
          %9105 = vmatprep.subr.mxu0 %v8039
          %9106 = vmatpush1.msra.mxu0 %v8038
          %9107 = vmatprep.subr.mxu0 %v8047
          %9108 = vmatpush1.msra.mxu0 %v8046
          %9109 = vmatprep.subr.mxu0 %v8055
          %9110 = vmatpush1.msra.mxu0 %v8054
          %9111 = vmatprep.subr.mxu0 %v8063
          %9112 = vmatpush1.msra.mxu0 %v8062
          %9113 = vmatprep.subr.mxu0 %v8071
          %9114 = vmatpush1.msra.mxu0 %v8070
          %9115 = vmatprep.mubr.f32.mxu0 %v8617
          %9116 = vmatmul.mubr.f32.gmra.mrb[0].mxu0 %v8609
          %v9117 = vpop.f32.mrb[0].mxu0
          %v9118 = vadd.f32 0.0, %v9117
          %v9119 = vpop.f32.mrb[0].mxu0
          %v9120 = vadd.f32 0.0, %v9119
          %9121 = vdwg.mxu0
          %9122 = vmatprep.subr.mxu0 %v8079
          %9123 = vmatpush1.msra.mxu0 %v8078
          %9124 = vmatprep.subr.mxu0 %v8087
          %9125 = vmatpush1.msra.mxu0 %v8086
          %9126 = vmatprep.subr.mxu0 %v8095
          %9127 = vmatpush1.msra.mxu0 %v8094
          %9128 = vmatprep.subr.mxu0 %v8103
          %9129 = vmatpush1.msra.mxu0 %v8102
          %9130 = vmatprep.subr.mxu0 %v8111
          %9131 = vmatpush1.msra.mxu0 %v8110
          %9132 = vmatprep.subr.mxu0 %v8119
          %9133 = vmatpush1.msra.mxu0 %v8118
          %9134 = vmatprep.subr.mxu0 %v8127
          %9135 = vmatpush1.msra.mxu0 %v8126
          %9136 = vmatprep.subr.mxu0 %v8135
          %9137 = vmatpush1.msra.mxu0 %v8134
          %9138 = vmatprep.subr.mxu0 %v8143
          %9139 = vmatpush1.msra.mxu0 %v8142
          %9140 = vmatprep.subr.mxu0 %v8151
          %9141 = vmatpush1.msra.mxu0 %v8150
          %9142 = vmatprep.subr.mxu0 %v8159
          %9143 = vmatpush1.msra.mxu0 %v8158
          %9144 = vmatprep.subr.mxu0 %v8167
          %9145 = vmatpush1.msra.mxu0 %v8166
          %9146 = vmatprep.subr.mxu0 %v8175
          %9147 = vmatpush1.msra.mxu0 %v8174
          %9148 = vmatprep.subr.mxu0 %v8183
          %9149 = vmatpush1.msra.mxu0 %v8182
          %9150 = vmatprep.subr.mxu0 %v8191
          %9151 = vmatpush1.msra.mxu0 %v8190
          %9152 = vmatprep.subr.mxu0 %v8199
          %9153 = vmatpush1.msra.mxu0 %v8198
          %9154 = vmatprep.subr.mxu0 %v8207
          %9155 = vmatpush1.msra.mxu0 %v8206
          %9156 = vmatprep.subr.mxu0 0.0
          %9157 = vmatpush1.msra.mxu0 0.0
          %9158 = vmatprep.subr.mxu0 0.0
          %9159 = vmatpush1.msra.mxu0 0.0
          %9160 = vmatprep.subr.mxu0 0.0
          %9161 = vmatpush1.msra.mxu0 0.0
          %9162 = vmatprep.subr.mxu0 0.0
          %9163 = vmatpush1.msra.mxu0 0.0
          %9164 = vmatprep.subr.mxu0 0.0
          %9165 = vmatpush1.msra.mxu0 0.0
          %9166 = vmatprep.subr.mxu0 0.0
          %9167 = vmatpush1.msra.mxu0 0.0
          %9168 = vmatprep.subr.mxu0 0.0
          %9169 = vmatpush1.msra.mxu0 0.0
          %9170 = vmatprep.subr.mxu0 0.0
          %9171 = vmatpush1.msra.mxu0 0.0
          %9172 = vmatprep.subr.mxu0 0.0
          %9173 = vmatpush1.msra.mxu0 0.0
          %9174 = vmatprep.subr.mxu0 0.0
          %9175 = vmatpush1.msra.mxu0 0.0
          %9176 = vmatprep.subr.mxu0 0.0
          %9177 = vmatpush1.msra.mxu0 0.0
          %9178 = vmatprep.subr.mxu0 0.0
          %9179 = vmatpush1.msra.mxu0 0.0
          %9180 = vmatprep.subr.mxu0 0.0
          %9181 = vmatpush1.msra.mxu0 0.0
          %9182 = vmatprep.subr.mxu0 0.0
          %9183 = vmatpush1.msra.mxu0 0.0
          %9184 = vmatprep.subr.mxu0 0.0
          %9185 = vmatpush1.msra.mxu0 0.0
          %9186 = vmatprep.mubr.f32.mxu0 %v8623
          %9187 = vmatmul.mubr.f32.gmra.mrb[0].mxu0 %v8616
          %v9188 = vpop.f32.mrb[0].mxu0
          %v9189 = vadd.f32 %v9118, %v9188
          %v9190 = vpop.f32.mrb[0].mxu0
          %v9191 = vadd.f32 %v9120, %v9190
          %9192 = vdwg.mxu0
          %v9201 = vcombine.low %v8763, %v8765
          %v9202 = vcombine.low %v8905, %v8907
          %v9204 = vunpack.c.l.s4 1983009808
          %v9205 = vunpack.c.0.s8 %v9204
          %v9206 = vlaneseq
          %v9207 = vshrl.u32 %v9206, 7
          %v9208 = vsub.s32 %v9205, %v9207
          %v9209 = vrot.slane %v9201, %v9208
          %v9211 = vunpack.c.l.s4 1983009808
          %v9212 = vunpack.c.0.s8 %v9211
          %v9213 = vlaneseq
          %v9214 = vshrl.u32 %v9213, 7
          %v9215 = vsub.s32 %v9212, %v9214
          %v9216 = vrot.slane %v9202, %v9215
          %v9217 = vcombine.low %v9209, %v9216
          %v9218 = vcombine.low %v9047, %v9049
          %v9219 = vcombine.low %v9189, %v9191
          %v9221 = vunpack.c.l.s4 1983009808
          %v9222 = vunpack.c.0.s8 %v9221
          %v9223 = vlaneseq
          %v9224 = vshrl.u32 %v9223, 7
          %v9225 = vsub.s32 %v9222, %v9224
          %v9226 = vrot.slane %v9218, %v9225
          %v9228 = vunpack.c.l.s4 1983009808
          %v9229 = vunpack.c.0.s8 %v9228
          %v9230 = vlaneseq
          %v9231 = vshrl.u32 %v9230, 7
          %v9232 = vsub.s32 %v9229, %v9231
          %v9233 = vrot.slane %v9219, %v9232
          %v9234 = vcombine.low %v9226, %v9233
          %9237 = vst [vmem:[#allocation4] sm:$0xff] %v9217
          %9238 = vst [vmem:[#allocation4 + $0x8] sm:$0xff] %v9234
        $region94: #{extract_image_feature.1} parent=73 // pred_fallthru
          _
        %s9239 = smul.u32 8, %s22
        %p9240 = scmp.lt.s32.totalorder %s9239, 7
        %s9241 = scalar_select %p9240, %s9239, 7
        %s9242 = smul.addr %s9241, 8
        %s9243 = scalar_lea.vmem %s4, %s9242
        // Predicated region
        $region95: #{extract_image_feature.1} parent=73 // pred_check
          %p9244 = pneg %p149
        $region96: #{extract_image_feature.1} parent=73 // pred_check_branch
          %9246 = sbr.rel (%p9244) target = $region98
        $region97: #{extract_image_feature.1} parent=73 // pred_region
          %s9247 = smul.u32 8, %s22
        $region98: #{extract_image_feature.1} parent=73 // pred_fallthru
          _
        // Predicated region
        $region99: #{extract_image_feature.1} parent=73 // pred_check
          %p9248 = pneg %p175
        $region100: #{extract_image_feature.1} parent=73 // pred_check_branch
          %9250 = sbr.rel (%p9248) target = $region102
        $region101: #{extract_image_feature.1} parent=73 // pred_region
          %s9251 = smul.u32 8, %s22
          %s9253 = ssub.s32 256, 256
          %9254 = vsyncadd [#allocation5], %s9253
          %s9255 = smul.addr %s9251, 32
          %s9256 = scalar_lea.hbm %s5, %s9255
          %s9258 = sshll.u32 [#allocation4], 4
          %s9259 = int_to_ptr.vmem [resolvable:$true] %s9258
          %9261 = dma.vmem_to_hbm [thread:$0]  %s9259, 256, %s9256, [#allocation5]
        $region102: #{extract_image_feature.1} parent=73 // pred_fallthru
          _
        // Predicated region
        $region103: #{extract_image_feature.1} parent=73 // pred_check
          %p9262 = pneg %p149
        $region104: #{extract_image_feature.1} parent=73 // pred_check_branch
          %9264 = sbr.rel (%p9262) target = $region106
        $region105: #{extract_image_feature.1} parent=73 // pred_region
          %s9265 = smul.u32 8, %s22
          %p9266 = scmp.lt.s32.totalorder %s9265, 7
          %s9267 = scalar_select %p9266, %s9265, 7
          %s9268 = smul.addr %s9267, 8
          %s9269 = scalar_lea.vmem %s4, %s9268
        $region106: #{extract_image_feature.1} parent=73 // pred_fallthru
          _
        // Predicated region
        $region107: #{extract_image_feature.1} parent=73 // pred_check
          %p9270 = pneg %p175
        $region108: #{extract_image_feature.1} parent=73 // pred_check_branch
          %9272 = sbr.rel (%p9270) target = $region110
        $region109: #{extract_image_feature.1} parent=73 // pred_region
          %9273 = dma.done [#allocation5], 256
        $region110: #{extract_image_feature.1} parent=73 // pred_fallthru
          _
      $region74: #{extract_image_feature.1} parent=5 // pred_fallthru
        _
      %p9274 = scmp.le.s32.totalorder 2, %s13
      // Predicated region
      $region111: #{extract_image_feature.1} parent=5 // pred_check
        %p9275 = pneg %p9274
      $region112: #{extract_image_feature.1} parent=5 // pred_check_branch
        %9277 = sbr.rel (%p9275) target = $region114
      $region113: #{extract_image_feature.1} parent=5 // pred_region
        %s9278 = ssub.s32 %s13, 2
      $region114: #{extract_image_feature.1} parent=5 // pred_fallthru
        _
    $region6: #{extract_image_feature.1} parent=1 // loop_footer
      %s17 = sadd.s32 1, %s13
    $region7: #{extract_image_feature.1} parent=1 // loop_footer_branch
      %12 = sbr.rel target = $region3
    $region8: #{extract_image_feature.1} parent=1 // loop_exit
      _
    %9279 = vsyncpa [#allocation5], 1
    %s9280 = scalar_lea.sflag [#allocation5], 1
    %9281 = vsyncpa %s9280, 1

</llo_original>
